<compile_context>
chip_gen: v5e
topology: v5e:2x2
jax: 0.10.0
libtpu: 0.0.40
codegen_flags: <defaults>
</compile_context>

<pallas_src>
import functools

import numpy as np

import jax
import jax.numpy as jnp
from jax import lax
from jax.experimental import pallas as pl
from jax.experimental.pallas import tpu as pltpu

# ----------------------------- config ---------------------------------------
B = 2
L = 1024                         # audio samples per clip
N_FFT = 128
HOP = 32
RATIO = N_FFT // HOP             # 4 overlapping HOP-rows per frame
SR = 8000
FMIN, FMAX = 300.0, 3000.0
FREQ_BINS = N_FFT // 2 + 1       # 65 (freq_bins=None -> n_fft//2+1, linear scale)
F_PAD = 128                      # freq bins padded to a full lane tile
N_FRAMES = L // HOP + 1          # 33 (center=True, reflect pad)
TP = 64                          # frames per batch, padded (>= N_FRAMES + RATIO - 1)
NTOT = B * TP                    # 128 -> full sublane tiles everywhere
IMG = 128                        # stand-in for image_size=384
PATCH = 4
NP = IMG // PATCH                # 32 patches per side
NPATCH = NP * NP                 # 1024 patches per image
C_EMBED = 32                     # stand-in for convnext embed dim
NUM_CLASSES = 2

# PCENTransform(eps=1e-6, s=0.025, alpha=0.6, delta=0.1, r=0.2, trainable=True)
PCEN_EPS, PCEN_S, PCEN_ALPHA, PCEN_DELTA, PCEN_R = 1e-6, 0.025, 0.6, 0.1, 0.2


# ----------------------------- fused kernel ---------------------------------
def _mids_med_kernel(
    rows_ref,    # (NTOT, HOP)          reflect-padded audio as HOP-sample rows
    wft_ref,     # (N_FFT, 2*F_PAD)     windowed Fourier kernel [cos | sin], freq-padded
    asm_ref,     # (F_PAD, F_PAD)       PCEN IIR smoother as lower-triangular map
    rh_ref,      # (IMG, F_PAD)         bilinear freq-resize
    rwblk_ref,   # (NTOT, B*IMG)        bilinear time-resize (per-batch blocks)
    prow_ref,    # (IMG, IMG)           patch-row permutation for the stem conv
    kstem_ref,   # (PATCH, IMG, NP*C)   stem conv weight map per in-patch row i
    bstem_ref,   # (1, NP*C)            stem bias (tiled over pw)
    lng_ref,     # (1, NP*C)            stem LN gamma (tiled)
    lnb_ref,     # (1, NP*C)            stem LN beta (tiled)
    gavg_ref,    # (NP*C, NP)           per-(pw) channel-mean gather
    gbrd_ref,    # (NP, NP*C)           broadcast group mean back to lanes
    gpool_ref,   # (NP*C, C)            per-channel patch-mean gather (1/NPATCH)
    hg_ref,      # (1, C)               head LN gamma
    hb_ref,      # (1, C)               head LN beta
    wh_ref,      # (C, NUM_CLASSES)     head weight
    bh_ref,      # (1, NUM_CLASSES)     head bias
    spec_ref,    # out: (B, IMG, IMG)   resized PCEN spectrogram
    pred_ref,    # out: (B, NUM_CLASSES)
):
    f32 = jnp.float32
    rows = rows_ref[...]                                           # (NTOT, HOP)

    # ---- 1) framing + magnitude STFT (combine over hop-chunks on the MXU) --
    # frame t of each batch block = HOP-rows t..t+RATIO-1.  The k-shift is a
    # sublane rotate of the small audio-row array (pltpu.roll == jnp.roll for
    # non-negative shifts); each shifted copy hits its own 32-row chunk of wft.
    proj = jnp.zeros((NTOT, 2 * F_PAD), f32)
    for k in range(RATIO):
        rk = rows if k == 0 else pltpu.roll(rows, shift=NTOT - k, axis=0)
        proj = proj + jnp.dot(rk, wft_ref[k * HOP:(k + 1) * HOP, :],
                              preferred_element_type=f32)
    real = proj[:, :F_PAD]                                         # lane-aligned split
    imag = proj[:, F_PAD:]
    mag = jnp.sqrt(real * real + imag * imag + 1e-8)               # (NTOT, F_PAD)

    # ---- 2) PCEN:  M[0]=s*x[0], M[f]=(1-s)M[f-1]+s*x[f] along freq (dim -2,
    # as in the module) expressed as one lower-triangular matmul on the MXU.
    m = jnp.dot(mag, asm_ref[...], preferred_element_type=f32)
    denom = jnp.exp(PCEN_ALPHA * jnp.log(m + PCEN_EPS))            # (M+eps)^alpha
    ratio = mag * pl.reciprocal(denom, approx=True)
    pcen = jnp.exp(PCEN_R * jnp.log(ratio + PCEN_DELTA)) - PCEN_DELTA ** PCEN_R

    # ---- 3) min/max normalize over the FREQ_BINS real bins per (b, t);
    # degenerate rows (max==min -> 0/0 NaN in torch) go to 0 like the module.
    col = lax.broadcasted_iota(jnp.int32, pcen.shape, 1)
    fvalid = col < FREQ_BINS
    mx = jnp.max(jnp.where(fvalid, pcen, -jnp.inf), axis=1, keepdims=True)
    mn = jnp.min(jnp.where(fvalid, pcen, jnp.inf), axis=1, keepdims=True)
    span = mx - mn
    inv_span = pl.reciprocal(jnp.where(span > 0.0, span, 1.0), approx=True)
    normed = jnp.where(fvalid & (span > 0.0), (pcen - mn) * inv_span, 0.0)

    # ---- 4) bilinear resize (freq, time) -> (IMG, IMG), both batches at once:
    # one full-tile transpose + two canonical matmuls (no transposed operands).
    nt = jnp.transpose(normed)                                      # (F_PAD, NTOT)
    w1 = jnp.dot(rh_ref[...], nt, preferred_element_type=f32)       # (IMG, NTOT)
    spec_flat = jnp.dot(w1, rwblk_ref[...], preferred_element_type=f32)  # (IMG, B*IMG)
    for b in range(B):
        spec_ref[b] = spec_flat[:, b * IMG:(b + 1) * IMG]

    # ---- 5) zero-input guard (whole-batch sum, backbone input only) --------
    tot = jnp.sum(spec_flat, keepdims=True)                         # (1, 1)
    guard = jnp.where(tot == 0.0, 1e-6, 0.0).astype(f32)
    xg = spec_flat + guard                                          # (IMG, B*IMG)

    # ---- 6) backbone ---------------------------------------------------------
    # TODO(synk): the timm ConvNeXt-base trunk (3 downsample stages + 36 blocks)
    # is not translated; only the 4x4/stride-4 patchify stem + LayerNorm,
    # 'avgmax' global pool, head LayerNorm and final Linear(->2) are implemented.
    # Stem conv as matmuls: prow reorders image rows to [i*NP + ph]; kstem[i]
    # maps (image cols) -> lane-dense (pw*C + c) features.
    r_all = jnp.dot(prow_ref[...], xg, preferred_element_type=f32)  # (IMG, B*IMG)
    feats = []
    for b in range(B):
        fb = jnp.zeros((NP, NP * C_EMBED), f32)
        for i in range(PATCH):
            r_bi = r_all[i * NP:(i + 1) * NP, b * IMG:(b + 1) * IMG]  # (NP, IMG)
            fb = fb + jnp.dot(r_bi, kstem_ref[i], preferred_element_type=f32)
        feats.append(fb)
    feat = jnp.concatenate(feats, axis=0) + bstem_ref[...]           # (B*NP, NP*C)

    # stem LayerNorm over channels: per-(ph,pw) moments via gather/broadcast matmuls.
    mu = jnp.dot(jnp.dot(feat, gavg_ref[...], preferred_element_type=f32),
                 gbrd_ref[...], preferred_element_type=f32)
    m2 = jnp.dot(jnp.dot(feat * feat, gavg_ref[...], preferred_element_type=f32),
                 gbrd_ref[...], preferred_element_type=f32)
    var = jnp.maximum(m2 - mu * mu, 0.0)
    lnf = (feat - mu) * lax.rsqrt(var + 1e-6) * lng_ref[...] + lnb_ref[...]

    # 'avgmax' global pool over the NPATCH patches per batch, per channel.
    pooled_list = []
    for b in range(B):
        lb = lnf[b * NP:(b + 1) * NP, :]                             # (NP, NP*C)
        s = jnp.sum(lb, axis=0, keepdims=True)                       # (1, NP*C)
        avg = jnp.dot(s, gpool_ref[...], preferred_element_type=f32)  # (1, C)
        mrow = jnp.max(lb, axis=0, keepdims=True)                    # (1, NP*C)
        step = 1
        while step < NP:     # lane roll tree; covers the stride-C coset either roll direction
            mrow = jnp.maximum(mrow, pltpu.roll(mrow, shift=step * C_EMBED, axis=1))
            step *= 2
        mxp = mrow[:, :C_EMBED]                                      # (1, C)
        pooled_list.append(0.5 * (avg + mxp))
    pooled = jnp.concatenate(pooled_list, axis=0)                    # (B, C)

    # head LayerNorm + Linear
    hmu = jnp.mean(pooled, axis=1, keepdims=True)
    hvar = jnp.mean((pooled - hmu) ** 2, axis=1, keepdims=True)
    pooled = (pooled - hmu) * lax.rsqrt(hvar + 1e-6) * hg_ref[...] + hb_ref[...]
    pred_ref[...] = jnp.dot(pooled, wh_ref[...], preferred_element_type=f32) + bh_ref[...]


# ----------------------------- parameters -----------------------------------
def _bilinear_matrix(out_size, in_size):
    """Bilinear resize (align_corners=False) as a dense (out, in) matrix.
    Both spectrogram axes are upsampled here, so torchvision antialias is a no-op."""
    scale = in_size / out_size
    dst = np.arange(out_size, dtype=np.float64)
    src = np.clip((dst + 0.5) * scale - 0.5, 0.0, in_size - 1.0)
    x0 = np.floor(src).astype(np.int64)
    x1 = np.minimum(x0 + 1, in_size - 1)
    w1 = src - x0
    w0 = 1.0 - w1
    r = np.zeros((out_size, in_size), np.float64)
    r[np.arange(out_size), x0] += w0
    r[np.arange(out_size), x1] += w1
    return r.astype(np.float32)


def init_params():
    key = jax.random.PRNGKey(0)
    k1, k2 = jax.random.split(key)
    wstem = np.asarray(jax.random.normal(k1, (PATCH * PATCH, C_EMBED), jnp.float32)) * 0.02
    whead = np.asarray(jax.random.normal(k2, (C_EMBED, NUM_CLASSES), jnp.float32)) * 0.02

    # nnAudio STFT kernel (hann window, freq_scale='linear', fmin/fmax), freq padded.
    n = np.arange(N_FFT, dtype=np.float64)
    window = 0.5 - 0.5 * np.cos(2.0 * np.pi * n / N_FFT)
    start_bin = FMIN * N_FFT / SR
    scaling = (FMAX - FMIN) * (N_FFT / SR) / FREQ_BINS
    kbins = start_bin + scaling * np.arange(FREQ_BINS, dtype=np.float64)
    ang = 2.0 * np.pi * np.outer(n, kbins) / N_FFT
    wft = np.zeros((N_FFT, 2 * F_PAD), np.float32)
    wft[:, :FREQ_BINS] = np.cos(ang) * window[:, None]
    wft[:, F_PAD:F_PAD + FREQ_BINS] = np.sin(ang) * window[:, None]

    # PCEN smoother M = x @ asm with asm[j,f] = s*(1-s)^(f-j), f>=j (module init M[0]=s*x[0]).
    asm = np.zeros((F_PAD, F_PAD), np.float32)
    for j in range(FREQ_BINS):
        f = np.arange(j, FREQ_BINS)
        asm[j, j:FREQ_BINS] = PCEN_S * (1.0 - PCEN_S) ** (f - j)

    # Resize matrices (freq pad to F_PAD; time resize as per-batch block matrix).
    rh = np.zeros((IMG, F_PAD), np.float32)
    rh[:, :FREQ_BINS] = _bilinear_matrix(IMG, FREQ_BINS)
    rwt = _bilinear_matrix(IMG, N_FRAMES).T                         # (T, IMG)
    rwblk = np.zeros((NTOT, B * IMG), np.float32)
    for b in range(B):
        rwblk[b * TP:b * TP + N_FRAMES, b * IMG:(b + 1) * IMG] = rwt

    # Stem conv as matmuls: row permutation + per-patch-row weight maps.
    prow = np.zeros((IMG, IMG), np.float32)
    for ph in range(NP):
        for i in range(PATCH):
            prow[i * NP + ph, PATCH * ph + i] = 1.0
    kstem = np.zeros((PATCH, IMG, NP * C_EMBED), np.float32)
    for i in range(PATCH):
        for j in range(PATCH):
            for pw in range(NP):
                kstem[i, PATCH * pw + j, pw * C_EMBED:(pw + 1) * C_EMBED] = wstem[i * PATCH + j]

    # LayerNorm / pooling gather-broadcast operators.
    gavg = np.zeros((NP * C_EMBED, NP), np.float32)
    gbrd = np.zeros((NP, NP * C_EMBED), np.float32)
    gpool = np.zeros((NP * C_EMBED, C_EMBED), np.float32)
    eye_c = np.eye(C_EMBED, dtype=np.float32)
    for pw in range(NP):
        gavg[pw * C_EMBED:(pw + 1) * C_EMBED, pw] = 1.0 / C_EMBED
        gbrd[pw, pw * C_EMBED:(pw + 1) * C_EMBED] = 1.0
        gpool[pw * C_EMBED:(pw + 1) * C_EMBED, :] = eye_c / NPATCH

    gamma1 = np.ones((C_EMBED,), np.float32)
    beta1 = np.zeros((C_EMBED,), np.float32)
    bstem = np.zeros((C_EMBED,), np.float32)

    params = dict(
        wft=wft, asm=asm, rh=rh, rwblk=rwblk, prow=prow, kstem=kstem,
        bstem=np.tile(bstem, NP)[None, :].astype(np.float32),
        lng=np.tile(gamma1, NP)[None, :].astype(np.float32),
        lnb=np.tile(beta1, NP)[None, :].astype(np.float32),
        gavg=gavg, gbrd=gbrd, gpool=gpool,
        hg=np.ones((1, C_EMBED), np.float32),
        hb=np.zeros((1, C_EMBED), np.float32),
        whead=whead.astype(np.float32),
        bhead=np.zeros((1, NUM_CLASSES), np.float32),
    )
    return {k: jnp.asarray(v) for k, v in params.items()}


# ----------------------------- forward wrapper ------------------------------
def mids_med_forward(x, params):
    # reflect pad (center=True) + zero pad to TP frames + free reshape into
    # HOP-sample rows; everything downstream runs in the single fused kernel.
    pad = N_FFT // 2
    xp = jnp.pad(x, ((0, 0), (pad, pad)), mode="reflect")           # (B, L + N_FFT)
    xp = jnp.pad(xp, ((0, 0), (0, TP * HOP - xp.shape[1])))         # (B, TP*HOP)
    rows = xp.reshape(B * TP, HOP)                                  # (NTOT, HOP)

    vmem = pl.BlockSpec(memory_space=pltpu.MemorySpace.VMEM)
    spec, pred = pl.pallas_call(
        _mids_med_kernel,
        out_shape=(
            jax.ShapeDtypeStruct((B, IMG, IMG), jnp.float32),
            jax.ShapeDtypeStruct((B, NUM_CLASSES), jnp.float32),
        ),
        in_specs=[vmem] * 17,
        out_specs=(vmem, vmem),
    )(rows, params["wft"], params["asm"], params["rh"], params["rwblk"],
      params["prow"], params["kstem"], params["bstem"], params["lng"],
      params["lnb"], params["gavg"], params["gbrd"], params["gpool"],
      params["hg"], params["hb"], params["whead"], params["bhead"])

    return {"prediction": pred, "spectrogram": spec}


if __name__ == "__main__":
    params = init_params()
    x = jax.random.normal(jax.random.PRNGKey(0), (B, L), jnp.float32)
    fwd = jax.jit(functools.partial(mids_med_forward, params=params))
    out = fwd(x)
    jax.block_until_ready(out)
    assert out["prediction"].shape == (B, NUM_CLASSES)
    assert out["spectrogram"].shape == (B, IMG, IMG)
    print("KERNEL_OK")
</pallas_src>

<mosaic_0001>
module attributes {stable_mosaic.version = 11 : i64} {
  func.func @_mids_med_kernel(%arg0: memref<128x32xf32, #tpu.memory_space<vmem>>, %arg1: memref<128x256xf32, #tpu.memory_space<vmem>>, %arg2: memref<128x128xf32, #tpu.memory_space<vmem>>, %arg3: memref<128x128xf32, #tpu.memory_space<vmem>>, %arg4: memref<128x256xf32, #tpu.memory_space<vmem>>, %arg5: memref<128x128xf32, #tpu.memory_space<vmem>>, %arg6: memref<4x128x1024xf32, #tpu.memory_space<vmem>>, %arg7: memref<1x1024xf32, #tpu.memory_space<vmem>>, %arg8: memref<1x1024xf32, #tpu.memory_space<vmem>>, %arg9: memref<1x1024xf32, #tpu.memory_space<vmem>>, %arg10: memref<1024x32xf32, #tpu.memory_space<vmem>>, %arg11: memref<32x1024xf32, #tpu.memory_space<vmem>>, %arg12: memref<1024x32xf32, #tpu.memory_space<vmem>>, %arg13: memref<1x32xf32, #tpu.memory_space<vmem>>, %arg14: memref<1x32xf32, #tpu.memory_space<vmem>>, %arg15: memref<32x2xf32, #tpu.memory_space<vmem>>, %arg16: memref<1x2xf32, #tpu.memory_space<vmem>>, %arg17: memref<2x128x128xf32, #tpu.memory_space<vmem>>, %arg18: memref<2x2xf32, #tpu.memory_space<vmem>>) attributes {dimension_semantics = [], scalar_prefetch = 0 : i64, scratch_operands = 0 : i64, tpu.core_type = #tpu.core_type<tc>} {
    %c0 = arith.constant 0 : index
    %c0_0 = arith.constant 0 : index
    %0 = vector.load %arg0[%c0, %c0_0] : memref<128x32xf32, #tpu.memory_space<vmem>>, vector<128x32xf32>
    %cst = arith.constant 0.000000e+00 : f32
    %1 = vector.broadcast %cst : f32 to vector<128x256xf32>
    %c0_1 = arith.constant 0 : index
    %c0_2 = arith.constant 0 : index
    %2 = vector.load %arg1[%c0_1, %c0_2] : memref<128x256xf32, #tpu.memory_space<vmem>>, vector<32x256xf32>
    %cst_3 = arith.constant dense<0.000000e+00> : vector<128x256xf32>
    %3 = tpu.matmul %0, %2, %cst_3 {dimension_numbers = #tpu.dot_dimension_numbers<[1], [0], [0], [1], [0, 0, 1, 1], [], []>} : vector<128x32xf32>, vector<32x256xf32>, vector<128x256xf32> -> vector<128x256xf32>
    %4 = arith.addf %1, %3 : vector<128x256xf32>
    %c127_i32 = arith.constant 127 : i32
    %5 = tpu.dynamic_rotate %0 by %c127_i32 dim 0 : vector<128x32xf32>, i32 -> vector<128x32xf32>
    %c32 = arith.constant 32 : index
    %c0_4 = arith.constant 0 : index
    %6 = vector.load %arg1[%c32, %c0_4] : memref<128x256xf32, #tpu.memory_space<vmem>>, vector<32x256xf32>
    %cst_5 = arith.constant dense<0.000000e+00> : vector<128x256xf32>
    %7 = tpu.matmul %5, %6, %cst_5 {dimension_numbers = #tpu.dot_dimension_numbers<[1], [0], [0], [1], [0, 0, 1, 1], [], []>} : vector<128x32xf32>, vector<32x256xf32>, vector<128x256xf32> -> vector<128x256xf32>
    %8 = arith.addf %4, %7 : vector<128x256xf32>
    %c126_i32 = arith.constant 126 : i32
    %9 = tpu.dynamic_rotate %0 by %c126_i32 dim 0 : vector<128x32xf32>, i32 -> vector<128x32xf32>
    %c64 = arith.constant 64 : index
    %c0_6 = arith.constant 0 : index
    %10 = vector.load %arg1[%c64, %c0_6] : memref<128x256xf32, #tpu.memory_space<vmem>>, vector<32x256xf32>
    %cst_7 = arith.constant dense<0.000000e+00> : vector<128x256xf32>
    %11 = tpu.matmul %9, %10, %cst_7 {dimension_numbers = #tpu.dot_dimension_numbers<[1], [0], [0], [1], [0, 0, 1, 1], [], []>} : vector<128x32xf32>, vector<32x256xf32>, vector<128x256xf32> -> vector<128x256xf32>
    %12 = arith.addf %8, %11 : vector<128x256xf32>
    %c125_i32 = arith.constant 125 : i32
    %13 = tpu.dynamic_rotate %0 by %c125_i32 dim 0 : vector<128x32xf32>, i32 -> vector<128x32xf32>
    %c96 = arith.constant 96 : index
    %c0_8 = arith.constant 0 : index
    %14 = vector.load %arg1[%c96, %c0_8] : memref<128x256xf32, #tpu.memory_space<vmem>>, vector<32x256xf32>
    %cst_9 = arith.constant dense<0.000000e+00> : vector<128x256xf32>
    %15 = tpu.matmul %13, %14, %cst_9 {dimension_numbers = #tpu.dot_dimension_numbers<[1], [0], [0], [1], [0, 0, 1, 1], [], []>} : vector<128x32xf32>, vector<32x256xf32>, vector<128x256xf32> -> vector<128x256xf32>
    %16 = arith.addf %12, %15 : vector<128x256xf32>
    %17 = vector.extract_strided_slice %16 {offsets = [0, 0], sizes = [128, 128], strides = [1, 1]} : vector<128x256xf32> to vector<128x128xf32>
    %18 = vector.extract_strided_slice %16 {offsets = [0, 128], sizes = [128, 128], strides = [1, 1]} : vector<128x256xf32> to vector<128x128xf32>
    %19 = arith.mulf %17, %17 : vector<128x128xf32>
    %20 = arith.mulf %18, %18 : vector<128x128xf32>
    %21 = arith.addf %19, %20 : vector<128x128xf32>
    %cst_10 = arith.constant 9.99999993E-9 : f32
    %22 = vector.broadcast %cst_10 : f32 to vector<128x128xf32>
    %23 = arith.addf %21, %22 : vector<128x128xf32>
    %24 = math.sqrt %23 : vector<128x128xf32>
    %c0_11 = arith.constant 0 : index
    %c0_12 = arith.constant 0 : index
    %25 = vector.load %arg2[%c0_11, %c0_12] : memref<128x128xf32, #tpu.memory_space<vmem>>, vector<128x128xf32>
    %cst_13 = arith.constant dense<0.000000e+00> : vector<128x128xf32>
    %26 = tpu.matmul %24, %25, %cst_13 {dimension_numbers = #tpu.dot_dimension_numbers<[1], [0], [0], [1], [0, 0, 1, 1], [], []>} : vector<128x128xf32>, vector<128x128xf32>, vector<128x128xf32> -> vector<128x128xf32>
    %cst_14 = arith.constant 9.99999997E-7 : f32
    %27 = vector.broadcast %cst_14 : f32 to vector<128x128xf32>
    %28 = arith.addf %26, %27 : vector<128x128xf32>
    %29 = math.log %28 : vector<128x128xf32>
    %cst_15 = arith.constant 6.000000e-01 : f32
    %30 = vector.broadcast %cst_15 : f32 to vector<128x128xf32>
    %31 = arith.mulf %30, %29 : vector<128x128xf32>
    %32 = math.exp %31 : vector<128x128xf32>
    %33 = tpu.reciprocal %32 {approx = true} : vector<128x128xf32> -> vector<128x128xf32>
    %34 = arith.mulf %24, %33 : vector<128x128xf32>
    %cst_16 = arith.constant 1.000000e-01 : f32
    %35 = vector.broadcast %cst_16 : f32 to vector<128x128xf32>
    %36 = arith.addf %34, %35 : vector<128x128xf32>
    %37 = math.log %36 : vector<128x128xf32>
    %cst_17 = arith.constant 2.000000e-01 : f32
    %38 = vector.broadcast %cst_17 : f32 to vector<128x128xf32>
    %39 = arith.mulf %38, %37 : vector<128x128xf32>
    %40 = math.exp %39 : vector<128x128xf32>
    %cst_18 = arith.constant 0.630957365 : f32
    %41 = vector.broadcast %cst_18 : f32 to vector<128x128xf32>
    %42 = arith.subf %40, %41 : vector<128x128xf32>
    %43 = tpu.iota {dimensions = array<i32: 1>} : vector<128x128xi32>
    %c65_i32 = arith.constant 65 : i32
    %44 = vector.broadcast %c65_i32 : i32 to vector<128x128xi32>
    %45 = arith.cmpi slt, %43, %44 : vector<128x128xi32>
    %cst_19 = arith.constant 0xFF800000 : f32
    %46 = vector.broadcast %cst_19 : f32 to vector<128x128xf32>
    %47 = arith.select %45, %42, %46 : vector<128x128xi1>, vector<128x128xf32>
    %cst_20 = arith.constant dense<0xFF800000> : vector<128xf32>
    %48 = vector.multi_reduction <maximumf>, %47, %cst_20 [1] : vector<128x128xf32> to vector<128xf32>
    %49 = vector.shape_cast %48 : vector<128xf32> to vector<128x1xf32>
    %cst_21 = arith.constant 0x7F800000 : f32
    %50 = vector.broadcast %cst_21 : f32 to vector<128x128xf32>
    %51 = arith.select %45, %42, %50 : vector<128x128xi1>, vector<128x128xf32>
    %cst_22 = arith.constant dense<0x7F800000> : vector<128xf32>
    %52 = vector.multi_reduction <minimumf>, %51, %cst_22 [1] : vector<128x128xf32> to vector<128xf32>
    %53 = vector.shape_cast %52 : vector<128xf32> to vector<128x1xf32>
    %54 = arith.subf %49, %53 : vector<128x1xf32>
    %cst_23 = arith.constant 0.000000e+00 : f32
    %55 = vector.broadcast %cst_23 : f32 to vector<128x1xf32>
    %56 = arith.cmpf ogt, %54, %55 : vector<128x1xf32>
    %cst_24 = arith.constant 1.000000e+00 : f32
    %57 = vector.broadcast %cst_24 : f32 to vector<128x1xf32>
    %58 = arith.select %56, %54, %57 : vector<128x1xi1>, vector<128x1xf32>
    %59 = tpu.reciprocal %58 {approx = true} : vector<128x1xf32> -> vector<128x1xf32>
    %cst_25 = arith.constant 0.000000e+00 : f32
    %60 = vector.broadcast %cst_25 : f32 to vector<128x1xf32>
    %61 = arith.cmpf ogt, %54, %60 : vector<128x1xf32>
    %62 = vector.broadcast %61 : vector<128x1xi1> to vector<128x128xi1>
    %63 = arith.andi %45, %62 : vector<128x128xi1>
    %64 = vector.broadcast %53 : vector<128x1xf32> to vector<128x128xf32>
    %65 = arith.subf %42, %64 : vector<128x128xf32>
    %66 = vector.broadcast %59 : vector<128x1xf32> to vector<128x128xf32>
    %67 = arith.mulf %65, %66 : vector<128x128xf32>
    %cst_26 = arith.constant 0.000000e+00 : f32
    %68 = vector.broadcast %cst_26 : f32 to vector<128x128xf32>
    %69 = arith.select %63, %67, %68 : vector<128x128xi1>, vector<128x128xf32>
    %70 = tpu.transpose %69, [1, 0] : vector<128x128xf32> -> vector<128x128xf32>
    %c0_27 = arith.constant 0 : index
    %c0_28 = arith.constant 0 : index
    %71 = vector.load %arg3[%c0_27, %c0_28] : memref<128x128xf32, #tpu.memory_space<vmem>>, vector<128x128xf32>
    %cst_29 = arith.constant dense<0.000000e+00> : vector<128x128xf32>
    %72 = tpu.matmul %71, %70, %cst_29 {dimension_numbers = #tpu.dot_dimension_numbers<[1], [0], [0], [1], [0, 0, 1, 1], [], []>} : vector<128x128xf32>, vector<128x128xf32>, vector<128x128xf32> -> vector<128x128xf32>
    %c0_30 = arith.constant 0 : index
    %c0_31 = arith.constant 0 : index
    %73 = vector.load %arg4[%c0_30, %c0_31] : memref<128x256xf32, #tpu.memory_space<vmem>>, vector<128x256xf32>
    %cst_32 = arith.constant dense<0.000000e+00> : vector<128x256xf32>
    %74 = tpu.matmul %72, %73, %cst_32 {dimension_numbers = #tpu.dot_dimension_numbers<[1], [0], [0], [1], [0, 0, 1, 1], [], []>} : vector<128x128xf32>, vector<128x256xf32>, vector<128x256xf32> -> vector<128x256xf32>
    %75 = vector.extract_strided_slice %74 {offsets = [0, 0], sizes = [128, 128], strides = [1, 1]} : vector<128x256xf32> to vector<128x128xf32>
    %c0_33 = arith.constant 0 : index
    %c0_34 = arith.constant 0 : index
    %c0_35 = arith.constant 0 : index
    %76 = vector.load %arg17[%c0_33, %c0_34, %c0_35] : memref<2x128x128xf32, #tpu.memory_space<vmem>>, vector<1x128x128xf32>
    %77 = vector.shape_cast %76 : vector<1x128x128xf32> to vector<128x128xf32>
    %78 = vector.shape_cast %75 : vector<128x128xf32> to vector<1x128x128xf32>
    tpu.vector_store %arg17[%c0_33, %c0_34, %c0_35], %78 {strides = array<i32>} : memref<2x128x128xf32, #tpu.memory_space<vmem>>, vector<1x128x128xf32>,
    %79 = vector.extract_strided_slice %74 {offsets = [0, 128], sizes = [128, 128], strides = [1, 1]} : vector<128x256xf32> to vector<128x128xf32>
    %c1 = arith.constant 1 : index
    %c0_36 = arith.constant 0 : index
    %c0_37 = arith.constant 0 : index
    %80 = vector.load %arg17[%c1, %c0_36, %c0_37] : memref<2x128x128xf32, #tpu.memory_space<vmem>>, vector<1x128x128xf32>
    %81 = vector.shape_cast %80 : vector<1x128x128xf32> to vector<128x128xf32>
    %82 = vector.shape_cast %79 : vector<128x128xf32> to vector<1x128x128xf32>
    tpu.vector_store %arg17[%c1, %c0_36, %c0_37], %82 {strides = array<i32>} : memref<2x128x128xf32, #tpu.memory_space<vmem>>, vector<1x128x128xf32>,
    %83 = vector.shape_cast %74 : vector<128x256xf32> to vector<1x128x256xf32>
    %cst_38 = arith.constant dense<0.000000e+00> : vector<1xf32>
    %84 = vector.multi_reduction <add>, %83, %cst_38 [1, 2] : vector<1x128x256xf32> to vector<1xf32>
    %85 = vector.shape_cast %84 : vector<1xf32> to vector<1x1x1xf32>
    %86 = vector.extract %85[0, 0, 0] : f32 from vector<1x1x1xf32>
    %87 = vector.broadcast %86 : f32 to vector<1x1xf32>
    %cst_39 = arith.constant 0.000000e+00 : f32
    %88 = vector.broadcast %cst_39 : f32 to vector<1x1xf32>
    %89 = arith.cmpf oeq, %87, %88 : vector<1x1xf32>
    %cst_40 = arith.constant 9.99999997E-7 : f32
    %cst_41 = arith.constant 0.000000e+00 : f32
    %90 = vector.broadcast %cst_40 : f32 to vector<1x1xf32>
    %91 = vector.broadcast %cst_41 : f32 to vector<1x1xf32>
    %92 = arith.select %89, %90, %91 : vector<1x1xi1>, vector<1x1xf32>
    %93 = vector.broadcast %92 : vector<1x1xf32> to vector<128x256xf32>
    %94 = arith.addf %74, %93 : vector<128x256xf32>
    %c0_42 = arith.constant 0 : index
    %c0_43 = arith.constant 0 : index
    %95 = vector.load %arg5[%c0_42, %c0_43] : memref<128x128xf32, #tpu.memory_space<vmem>>, vector<128x128xf32>
    %cst_44 = arith.constant dense<0.000000e+00> : vector<128x256xf32>
    %96 = tpu.matmul %95, %94, %cst_44 {dimension_numbers = #tpu.dot_dimension_numbers<[1], [0], [0], [1], [0, 0, 1, 1], [], []>} : vector<128x128xf32>, vector<128x256xf32>, vector<128x256xf32> -> vector<128x256xf32>
    %cst_45 = arith.constant 0.000000e+00 : f32
    %97 = vector.broadcast %cst_45 : f32 to vector<32x1024xf32>
    %98 = vector.extract_strided_slice %96 {offsets = [0, 0], sizes = [32, 128], strides = [1, 1]} : vector<128x256xf32> to vector<32x128xf32>
    %c0_46 = arith.constant 0 : index
    %c0_47 = arith.constant 0 : index
    %c0_48 = arith.constant 0 : index
    %99 = vector.load %arg6[%c0_46, %c0_47, %c0_48] : memref<4x128x1024xf32, #tpu.memory_space<vmem>>, vector<1x128x1024xf32>
    %100 = vector.shape_cast %99 : vector<1x128x1024xf32> to vector<128x1024xf32>
    %cst_49 = arith.constant dense<0.000000e+00> : vector<32x1024xf32>
    %101 = tpu.matmul %98, %100, %cst_49 {dimension_numbers = #tpu.dot_dimension_numbers<[1], [0], [0], [1], [0, 0, 1, 1], [], []>} : vector<32x128xf32>, vector<128x1024xf32>, vector<32x1024xf32> -> vector<32x1024xf32>
    %102 = arith.addf %97, %101 : vector<32x1024xf32>
    %103 = vector.extract_strided_slice %96 {offsets = [32, 0], sizes = [32, 128], strides = [1, 1]} : vector<128x256xf32> to vector<32x128xf32>
    %c1_50 = arith.constant 1 : index
    %c0_51 = arith.constant 0 : index
    %c0_52 = arith.constant 0 : index
    %104 = vector.load %arg6[%c1_50, %c0_51, %c0_52] : memref<4x128x1024xf32, #tpu.memory_space<vmem>>, vector<1x128x1024xf32>
    %105 = vector.shape_cast %104 : vector<1x128x1024xf32> to vector<128x1024xf32>
    %cst_53 = arith.constant dense<0.000000e+00> : vector<32x1024xf32>
    %106 = tpu.matmul %103, %105, %cst_53 {dimension_numbers = #tpu.dot_dimension_numbers<[1], [0], [0], [1], [0, 0, 1, 1], [], []>} : vector<32x128xf32>, vector<128x1024xf32>, vector<32x1024xf32> -> vector<32x1024xf32>
    %107 = arith.addf %102, %106 : vector<32x1024xf32>
    %108 = vector.extract_strided_slice %96 {offsets = [64, 0], sizes = [32, 128], strides = [1, 1]} : vector<128x256xf32> to vector<32x128xf32>
    %c2 = arith.constant 2 : index
    %c0_54 = arith.constant 0 : index
    %c0_55 = arith.constant 0 : index
    %109 = vector.load %arg6[%c2, %c0_54, %c0_55] : memref<4x128x1024xf32, #tpu.memory_space<vmem>>, vector<1x128x1024xf32>
    %110 = vector.shape_cast %109 : vector<1x128x1024xf32> to vector<128x1024xf32>
    %cst_56 = arith.constant dense<0.000000e+00> : vector<32x1024xf32>
    %111 = tpu.matmul %108, %110, %cst_56 {dimension_numbers = #tpu.dot_dimension_numbers<[1], [0], [0], [1], [0, 0, 1, 1], [], []>} : vector<32x128xf32>, vector<128x1024xf32>, vector<32x1024xf32> -> vector<32x1024xf32>
    %112 = arith.addf %107, %111 : vector<32x1024xf32>
    %113 = vector.extract_strided_slice %96 {offsets = [96, 0], sizes = [32, 128], strides = [1, 1]} : vector<128x256xf32> to vector<32x128xf32>
    %c3 = arith.constant 3 : index
    %c0_57 = arith.constant 0 : index
    %c0_58 = arith.constant 0 : index
    %114 = vector.load %arg6[%c3, %c0_57, %c0_58] : memref<4x128x1024xf32, #tpu.memory_space<vmem>>, vector<1x128x1024xf32>
    %115 = vector.shape_cast %114 : vector<1x128x1024xf32> to vector<128x1024xf32>
    %cst_59 = arith.constant dense<0.000000e+00> : vector<32x1024xf32>
    %116 = tpu.matmul %113, %115, %cst_59 {dimension_numbers = #tpu.dot_dimension_numbers<[1], [0], [0], [1], [0, 0, 1, 1], [], []>} : vector<32x128xf32>, vector<128x1024xf32>, vector<32x1024xf32> -> vector<32x1024xf32>
    %117 = arith.addf %112, %116 : vector<32x1024xf32>
    %cst_60 = arith.constant 0.000000e+00 : f32
    %118 = vector.broadcast %cst_60 : f32 to vector<32x1024xf32>
    %119 = vector.extract_strided_slice %96 {offsets = [0, 128], sizes = [32, 128], strides = [1, 1]} : vector<128x256xf32> to vector<32x128xf32>
    %c0_61 = arith.constant 0 : index
    %c0_62 = arith.constant 0 : index
    %c0_63 = arith.constant 0 : index
    %120 = vector.load %arg6[%c0_61, %c0_62, %c0_63] : memref<4x128x1024xf32, #tpu.memory_space<vmem>>, vector<1x128x1024xf32>
    %121 = vector.shape_cast %120 : vector<1x128x1024xf32> to vector<128x1024xf32>
    %cst_64 = arith.constant dense<0.000000e+00> : vector<32x1024xf32>
    %122 = tpu.matmul %119, %121, %cst_64 {dimension_numbers = #tpu.dot_dimension_numbers<[1], [0], [0], [1], [0, 0, 1, 1], [], []>} : vector<32x128xf32>, vector<128x1024xf32>, vector<32x1024xf32> -> vector<32x1024xf32>
    %123 = arith.addf %118, %122 : vector<32x1024xf32>
    %124 = vector.extract_strided_slice %96 {offsets = [32, 128], sizes = [32, 128], strides = [1, 1]} : vector<128x256xf32> to vector<32x128xf32>
    %c1_65 = arith.constant 1 : index
    %c0_66 = arith.constant 0 : index
    %c0_67 = arith.constant 0 : index
    %125 = vector.load %arg6[%c1_65, %c0_66, %c0_67] : memref<4x128x1024xf32, #tpu.memory_space<vmem>>, vector<1x128x1024xf32>
    %126 = vector.shape_cast %125 : vector<1x128x1024xf32> to vector<128x1024xf32>
    %cst_68 = arith.constant dense<0.000000e+00> : vector<32x1024xf32>
    %127 = tpu.matmul %124, %126, %cst_68 {dimension_numbers = #tpu.dot_dimension_numbers<[1], [0], [0], [1], [0, 0, 1, 1], [], []>} : vector<32x128xf32>, vector<128x1024xf32>, vector<32x1024xf32> -> vector<32x1024xf32>
    %128 = arith.addf %123, %127 : vector<32x1024xf32>
    %129 = vector.extract_strided_slice %96 {offsets = [64, 128], sizes = [32, 128], strides = [1, 1]} : vector<128x256xf32> to vector<32x128xf32>
    %c2_69 = arith.constant 2 : index
    %c0_70 = arith.constant 0 : index
    %c0_71 = arith.constant 0 : index
    %130 = vector.load %arg6[%c2_69, %c0_70, %c0_71] : memref<4x128x1024xf32, #tpu.memory_space<vmem>>, vector<1x128x1024xf32>
    %131 = vector.shape_cast %130 : vector<1x128x1024xf32> to vector<128x1024xf32>
    %cst_72 = arith.constant dense<0.000000e+00> : vector<32x1024xf32>
    %132 = tpu.matmul %129, %131, %cst_72 {dimension_numbers = #tpu.dot_dimension_numbers<[1], [0], [0], [1], [0, 0, 1, 1], [], []>} : vector<32x128xf32>, vector<128x1024xf32>, vector<32x1024xf32> -> vector<32x1024xf32>
    %133 = arith.addf %128, %132 : vector<32x1024xf32>
    %134 = vector.extract_strided_slice %96 {offsets = [96, 128], sizes = [32, 128], strides = [1, 1]} : vector<128x256xf32> to vector<32x128xf32>
    %c3_73 = arith.constant 3 : index
    %c0_74 = arith.constant 0 : index
    %c0_75 = arith.constant 0 : index
    %135 = vector.load %arg6[%c3_73, %c0_74, %c0_75] : memref<4x128x1024xf32, #tpu.memory_space<vmem>>, vector<1x128x1024xf32>
    %136 = vector.shape_cast %135 : vector<1x128x1024xf32> to vector<128x1024xf32>
    %cst_76 = arith.constant dense<0.000000e+00> : vector<32x1024xf32>
    %137 = tpu.matmul %134, %136, %cst_76 {dimension_numbers = #tpu.dot_dimension_numbers<[1], [0], [0], [1], [0, 0, 1, 1], [], []>} : vector<32x128xf32>, vector<128x1024xf32>, vector<32x1024xf32> -> vector<32x1024xf32>
    %138 = arith.addf %133, %137 : vector<32x1024xf32>
    %139 = tpu.concatenate %117, %138 in 0 : vector<32x1024xf32>, vector<32x1024xf32> -> vector<64x1024xf32>
    %c0_77 = arith.constant 0 : index
    %c0_78 = arith.constant 0 : index
    %140 = vector.load %arg7[%c0_77, %c0_78] : memref<1x1024xf32, #tpu.memory_space<vmem>>, vector<1x1024xf32>
    %141 = vector.broadcast %140 : vector<1x1024xf32> to vector<64x1024xf32>
    %142 = arith.addf %139, %141 : vector<64x1024xf32>
    %c0_79 = arith.constant 0 : index
    %c0_80 = arith.constant 0 : index
    %143 = vector.load %arg10[%c0_79, %c0_80] : memref<1024x32xf32, #tpu.memory_space<vmem>>, vector<1024x32xf32>
    %cst_81 = arith.constant dense<0.000000e+00> : vector<64x32xf32>
    %144 = tpu.matmul %142, %143, %cst_81 {dimension_numbers = #tpu.dot_dimension_numbers<[1], [0], [0], [1], [0, 0, 1, 1], [], []>} : vector<64x1024xf32>, vector<1024x32xf32>, vector<64x32xf32> -> vector<64x32xf32>
    %c0_82 = arith.constant 0 : index
    %c0_83 = arith.constant 0 : index
    %145 = vector.load %arg11[%c0_82, %c0_83] : memref<32x1024xf32, #tpu.memory_space<vmem>>, vector<32x1024xf32>
    %cst_84 = arith.constant dense<0.000000e+00> : vector<64x1024xf32>
    %146 = tpu.matmul %144, %145, %cst_84 {dimension_numbers = #tpu.dot_dimension_numbers<[1], [0], [0], [1], [0, 0, 1, 1], [], []>} : vector<64x32xf32>, vector<32x1024xf32>, vector<64x1024xf32> -> vector<64x1024xf32>
    %147 = arith.mulf %142, %142 : vector<64x1024xf32>
    %c0_85 = arith.constant 0 : index
    %c0_86 = arith.constant 0 : index
    %148 = vector.load %arg10[%c0_85, %c0_86] : memref<1024x32xf32, #tpu.memory_space<vmem>>, vector<1024x32xf32>
    %cst_87 = arith.constant dense<0.000000e+00> : vector<64x32xf32>
    %149 = tpu.matmul %147, %148, %cst_87 {dimension_numbers = #tpu.dot_dimension_numbers<[1], [0], [0], [1], [0, 0, 1, 1], [], []>} : vector<64x1024xf32>, vector<1024x32xf32>, vector<64x32xf32> -> vector<64x32xf32>
    %c0_88 = arith.constant 0 : index
    %c0_89 = arith.constant 0 : index
    %150 = vector.load %arg11[%c0_88, %c0_89] : memref<32x1024xf32, #tpu.memory_space<vmem>>, vector<32x1024xf32>
    %cst_90 = arith.constant dense<0.000000e+00> : vector<64x1024xf32>
    %151 = tpu.matmul %149, %150, %cst_90 {dimension_numbers = #tpu.dot_dimension_numbers<[1], [0], [0], [1], [0, 0, 1, 1], [], []>} : vector<64x32xf32>, vector<32x1024xf32>, vector<64x1024xf32> -> vector<64x1024xf32>
    %152 = arith.mulf %146, %146 : vector<64x1024xf32>
    %153 = arith.subf %151, %152 : vector<64x1024xf32>
    %cst_91 = arith.constant 0.000000e+00 : f32
    %154 = vector.broadcast %cst_91 : f32 to vector<64x1024xf32>
    %155 = arith.maximumf %153, %154 : vector<64x1024xf32>
    %156 = arith.subf %142, %146 : vector<64x1024xf32>
    %cst_92 = arith.constant 9.99999997E-7 : f32
    %157 = vector.broadcast %cst_92 : f32 to vector<64x1024xf32>
    %158 = arith.addf %155, %157 : vector<64x1024xf32>
    %159 = math.rsqrt %158 : vector<64x1024xf32>
    %160 = arith.mulf %156, %159 : vector<64x1024xf32>
    %c0_93 = arith.constant 0 : index
    %c0_94 = arith.constant 0 : index
    %161 = vector.load %arg8[%c0_93, %c0_94] : memref<1x1024xf32, #tpu.memory_space<vmem>>, vector<1x1024xf32>
    %162 = vector.broadcast %161 : vector<1x1024xf32> to vector<64x1024xf32>
    %163 = arith.mulf %160, %162 : vector<64x1024xf32>
    %c0_95 = arith.constant 0 : index
    %c0_96 = arith.constant 0 : index
    %164 = vector.load %arg9[%c0_95, %c0_96] : memref<1x1024xf32, #tpu.memory_space<vmem>>, vector<1x1024xf32>
    %165 = vector.broadcast %164 : vector<1x1024xf32> to vector<64x1024xf32>
    %166 = arith.addf %163, %165 : vector<64x1024xf32>
    %167 = vector.extract_strided_slice %166 {offsets = [0, 0], sizes = [32, 1024], strides = [1, 1]} : vector<64x1024xf32> to vector<32x1024xf32>
    %cst_97 = arith.constant dense<0.000000e+00> : vector<1024xf32>
    %168 = vector.multi_reduction <add>, %167, %cst_97 [0] : vector<32x1024xf32> to vector<1024xf32>
    %169 = vector.shape_cast %168 : vector<1024xf32> to vector<1x1024xf32>
    %c0_98 = arith.constant 0 : index
    %c0_99 = arith.constant 0 : index
    %170 = vector.load %arg12[%c0_98, %c0_99] : memref<1024x32xf32, #tpu.memory_space<vmem>>, vector<1024x32xf32>
    %cst_100 = arith.constant dense<0.000000e+00> : vector<1x32xf32>
    %171 = tpu.matmul %169, %170, %cst_100 {dimension_numbers = #tpu.dot_dimension_numbers<[1], [0], [0], [1], [0, 0, 1, 1], [], []>} : vector<1x1024xf32>, vector<1024x32xf32>, vector<1x32xf32> -> vector<1x32xf32>
    %cst_101 = arith.constant dense<0xFF800000> : vector<1024xf32>
    %172 = vector.multi_reduction <maximumf>, %167, %cst_101 [0] : vector<32x1024xf32> to vector<1024xf32>
    %173 = vector.shape_cast %172 : vector<1024xf32> to vector<1x1024xf32>
    %c32_i32 = arith.constant 32 : i32
    %174 = tpu.dynamic_rotate %173 by %c32_i32 dim 1 : vector<1x1024xf32>, i32 -> vector<1x1024xf32>
    %175 = arith.maximumf %173, %174 : vector<1x1024xf32>
    %c64_i32 = arith.constant 64 : i32
    %176 = tpu.dynamic_rotate %175 by %c64_i32 dim 1 : vector<1x1024xf32>, i32 -> vector<1x1024xf32>
    %177 = arith.maximumf %175, %176 : vector<1x1024xf32>
    %c128_i32 = arith.constant 128 : i32
    %178 = tpu.dynamic_rotate %177 by %c128_i32 dim 1 : vector<1x1024xf32>, i32 -> vector<1x1024xf32>
    %179 = arith.maximumf %177, %178 : vector<1x1024xf32>
    %c256_i32 = arith.constant 256 : i32
    %180 = tpu.dynamic_rotate %179 by %c256_i32 dim 1 : vector<1x1024xf32>, i32 -> vector<1x1024xf32>
    %181 = arith.maximumf %179, %180 : vector<1x1024xf32>
    %c512_i32 = arith.constant 512 : i32
    %182 = tpu.dynamic_rotate %181 by %c512_i32 dim 1 : vector<1x1024xf32>, i32 -> vector<1x1024xf32>
    %183 = arith.maximumf %181, %182 : vector<1x1024xf32>
    %184 = vector.extract_strided_slice %183 {offsets = [0, 0], sizes = [1, 32], strides = [1, 1]} : vector<1x1024xf32> to vector<1x32xf32>
    %185 = arith.addf %171, %184 : vector<1x32xf32>
    %cst_102 = arith.constant 5.000000e-01 : f32
    %186 = vector.broadcast %cst_102 : f32 to vector<1x32xf32>
    %187 = arith.mulf %186, %185 : vector<1x32xf32>
    %188 = vector.extract_strided_slice %166 {offsets = [32, 0], sizes = [32, 1024], strides = [1, 1]} : vector<64x1024xf32> to vector<32x1024xf32>
    %cst_103 = arith.constant dense<0.000000e+00> : vector<1024xf32>
    %189 = vector.multi_reduction <add>, %188, %cst_103 [0] : vector<32x1024xf32> to vector<1024xf32>
    %190 = vector.shape_cast %189 : vector<1024xf32> to vector<1x1024xf32>
    %c0_104 = arith.constant 0 : index
    %c0_105 = arith.constant 0 : index
    %191 = vector.load %arg12[%c0_104, %c0_105] : memref<1024x32xf32, #tpu.memory_space<vmem>>, vector<1024x32xf32>
    %cst_106 = arith.constant dense<0.000000e+00> : vector<1x32xf32>
    %192 = tpu.matmul %190, %191, %cst_106 {dimension_numbers = #tpu.dot_dimension_numbers<[1], [0], [0], [1], [0, 0, 1, 1], [], []>} : vector<1x1024xf32>, vector<1024x32xf32>, vector<1x32xf32> -> vector<1x32xf32>
    %cst_107 = arith.constant dense<0xFF800000> : vector<1024xf32>
    %193 = vector.multi_reduction <maximumf>, %188, %cst_107 [0] : vector<32x1024xf32> to vector<1024xf32>
    %194 = vector.shape_cast %193 : vector<1024xf32> to vector<1x1024xf32>
    %c32_i32_108 = arith.constant 32 : i32
    %195 = tpu.dynamic_rotate %194 by %c32_i32_108 dim 1 : vector<1x1024xf32>, i32 -> vector<1x1024xf32>
    %196 = arith.maximumf %194, %195 : vector<1x1024xf32>
    %c64_i32_109 = arith.constant 64 : i32
    %197 = tpu.dynamic_rotate %196 by %c64_i32_109 dim 1 : vector<1x1024xf32>, i32 -> vector<1x1024xf32>
    %198 = arith.maximumf %196, %197 : vector<1x1024xf32>
    %c128_i32_110 = arith.constant 128 : i32
    %199 = tpu.dynamic_rotate %198 by %c128_i32_110 dim 1 : vector<1x1024xf32>, i32 -> vector<1x1024xf32>
    %200 = arith.maximumf %198, %199 : vector<1x1024xf32>
    %c256_i32_111 = arith.constant 256 : i32
    %201 = tpu.dynamic_rotate %200 by %c256_i32_111 dim 1 : vector<1x1024xf32>, i32 -> vector<1x1024xf32>
    %202 = arith.maximumf %200, %201 : vector<1x1024xf32>
    %c512_i32_112 = arith.constant 512 : i32
    %203 = tpu.dynamic_rotate %202 by %c512_i32_112 dim 1 : vector<1x1024xf32>, i32 -> vector<1x1024xf32>
    %204 = arith.maximumf %202, %203 : vector<1x1024xf32>
    %205 = vector.extract_strided_slice %204 {offsets = [0, 0], sizes = [1, 32], strides = [1, 1]} : vector<1x1024xf32> to vector<1x32xf32>
    %206 = arith.addf %192, %205 : vector<1x32xf32>
    %cst_113 = arith.constant 5.000000e-01 : f32
    %207 = vector.broadcast %cst_113 : f32 to vector<1x32xf32>
    %208 = arith.mulf %207, %206 : vector<1x32xf32>
    %209 = tpu.concatenate %187, %208 in 0 : vector<1x32xf32>, vector<1x32xf32> -> vector<2x32xf32>
    %cst_114 = arith.constant dense<0.000000e+00> : vector<2xf32>
    %210 = vector.multi_reduction <add>, %209, %cst_114 [1] : vector<2x32xf32> to vector<2xf32>
    %211 = vector.shape_cast %210 : vector<2xf32> to vector<2x1xf32>
    %cst_115 = arith.constant 3.200000e+01 : f32
    %212 = vector.broadcast %cst_115 : f32 to vector<2x1xf32>
    %213 = arith.divf %211, %212 : vector<2x1xf32>
    %214 = vector.broadcast %213 : vector<2x1xf32> to vector<2x32xf32>
    %215 = arith.subf %209, %214 : vector<2x32xf32>
    %216 = arith.mulf %215, %215 : vector<2x32xf32>
    %cst_116 = arith.constant dense<0.000000e+00> : vector<2xf32>
    %217 = vector.multi_reduction <add>, %216, %cst_116 [1] : vector<2x32xf32> to vector<2xf32>
    %218 = vector.shape_cast %217 : vector<2xf32> to vector<2x1xf32>
    %cst_117 = arith.constant 3.200000e+01 : f32
    %219 = vector.broadcast %cst_117 : f32 to vector<2x1xf32>
    %220 = arith.divf %218, %219 : vector<2x1xf32>
    %221 = vector.broadcast %213 : vector<2x1xf32> to vector<2x32xf32>
    %222 = arith.subf %209, %221 : vector<2x32xf32>
    %cst_118 = arith.constant 9.99999997E-7 : f32
    %223 = vector.broadcast %cst_118 : f32 to vector<2x1xf32>
    %224 = arith.addf %220, %223 : vector<2x1xf32>
    %225 = math.rsqrt %224 : vector<2x1xf32>
    %226 = vector.broadcast %225 : vector<2x1xf32> to vector<2x32xf32>
    %227 = arith.mulf %222, %226 : vector<2x32xf32>
    %c0_119 = arith.constant 0 : index
    %c0_120 = arith.constant 0 : index
    %228 = vector.load %arg13[%c0_119, %c0_120] : memref<1x32xf32, #tpu.memory_space<vmem>>, vector<1x32xf32>
    %229 = vector.broadcast %228 : vector<1x32xf32> to vector<2x32xf32>
    %230 = arith.mulf %227, %229 : vector<2x32xf32>
    %c0_121 = arith.constant 0 : index
    %c0_122 = arith.constant 0 : index
    %231 = vector.load %arg14[%c0_121, %c0_122] : memref<1x32xf32, #tpu.memory_space<vmem>>, vector<1x32xf32>
    %232 = vector.broadcast %231 : vector<1x32xf32> to vector<2x32xf32>
    %233 = arith.addf %230, %232 : vector<2x32xf32>
    %c0_123 = arith.constant 0 : index
    %c0_124 = arith.constant 0 : index
    %234 = vector.load %arg15[%c0_123, %c0_124] : memref<32x2xf32, #tpu.memory_space<vmem>>, vector<32x2xf32>
    %cst_125 = arith.constant dense<0.000000e+00> : vector<2x2xf32>
    %235 = tpu.matmul %233, %234, %cst_125 {dimension_numbers = #tpu.dot_dimension_numbers<[1], [0], [0], [1], [0, 0, 1, 1], [], []>} : vector<2x32xf32>, vector<32x2xf32>, vector<2x2xf32> -> vector<2x2xf32>
    %c0_126 = arith.constant 0 : index
    %c0_127 = arith.constant 0 : index
    %236 = vector.load %arg16[%c0_126, %c0_127] : memref<1x2xf32, #tpu.memory_space<vmem>>, vector<1x2xf32>
    %237 = vector.broadcast %236 : vector<1x2xf32> to vector<2x2xf32>
    %238 = arith.addf %235, %237 : vector<2x2xf32>
    %c0_128 = arith.constant 0 : index
    %c0_129 = arith.constant 0 : index
    %239 = vector.load %arg18[%c0_128, %c0_129] : memref<2x2xf32, #tpu.memory_space<vmem>>, vector<2x2xf32>
    tpu.vector_store %arg18[%c0_128, %c0_129], %238 {strides = array<i32>} : memref<2x2xf32, #tpu.memory_space<vmem>>, vector<2x2xf32>,
    return
  }
}

</mosaic_0001>

<llo_original>
// kernel: mids_med_forward.1
$region0: #{mids_med_forward.1}
  #allocation0 [shape = 'u32[]', space=smem, size = 0x4, offset = 0x4, fixed_abs, tag = 'smem constant byte address 0x4 - core index']
  #allocation1 [shape = 'u32[72,128]{1,0:T(1,128)}', space=vmem, size = 0x9000, scoped, tag = 'internal scratch']
  %s0 = inlined_call_operand.vmem [shape: f32[128,32], index: 0, kind: input, shape index: {}]
  %s1 = inlined_call_operand.hbm [shape: f32[128,256], index: 1, kind: input, shape index: {}]
  %s2 = inlined_call_operand.hbm [shape: f32[128,128], index: 2, kind: input, shape index: {}]
  %s3 = inlined_call_operand.hbm [shape: f32[128,128], index: 3, kind: input, shape index: {}]
  %s4 = inlined_call_operand.hbm [shape: f32[128,256], index: 4, kind: input, shape index: {}]
  %s5 = inlined_call_operand.hbm [shape: f32[128,128], index: 5, kind: input, shape index: {}]
  %s6 = inlined_call_operand.hbm [shape: f32[4,128,1024], index: 6, kind: input, shape index: {}]
  %s7 = inlined_call_operand.vmem [shape: f32[1,1024], index: 7, kind: input, shape index: {}, may-alias: {7,9}]
  %s8 = inlined_call_operand.vmem [shape: f32[1,1024], index: 8, kind: input, shape index: {}]
  %s9 = inlined_call_operand.vmem [shape: f32[1,1024], index: 9, kind: input, shape index: {}, may-alias: {7,9}]
  %s10 = inlined_call_operand.hbm [shape: f32[1024,32], index: 10, kind: input, shape index: {}]
  %s11 = inlined_call_operand.hbm [shape: f32[32,1024], index: 11, kind: input, shape index: {}]
  %s12 = inlined_call_operand.hbm [shape: f32[1024,32], index: 12, kind: input, shape index: {}]
  %s13 = inlined_call_operand.vmem [shape: f32[1,32], index: 13, kind: input, shape index: {}]
  %s14 = inlined_call_operand.vmem [shape: f32[1,32], index: 14, kind: input, shape index: {}]
  %s15 = inlined_call_operand.hbm [shape: f32[32,2], index: 15, kind: input, shape index: {}]
  %s16 = inlined_call_operand.vmem [shape: f32[1,2], index: 16, kind: input, shape index: {}]
  %s17 = inlined_call_operand.hbm [shape: f32[2,128,128], index: 17, kind: output, shape index: {0}]
  %s18 = inlined_call_operand.hbm [shape: f32[2,2], index: 18, kind: output, shape index: {1}]
  %19 = xla_tuple %s17, %s18
  %s20 = sld [smem:[#allocation0]]
  $region126: #{mids_med_forward.1} parent=0
    _
  %s22 = ssub.s32 1, %s20
  %s23 = scalar_select 0, %s22, %s20
  $region1: #{mids_med_forward.1} parent=0
    #allocation2 [shape = 'u8[131072]{0}', space=vmem, size = 0x20000, scoped, tag = 'input window, operand 1, single buffered']
    #allocation3 [shape = 's32[1]{0}', space=sflag, size = 0x4, scoped, tag = 'scoped memory for mids_med_forward.1']
    #allocation4 [shape = 's32[1]{0}', space=sflag, size = 0x4, scoped, tag = 'scoped memory for mids_med_forward.1']
    #allocation5 [shape = 'u8[65536]{0}', space=vmem, size = 0x10000, scoped, tag = 'input window, operand 2, single buffered']
    #allocation6 [shape = 's32[1]{0}', space=sflag, size = 0x4, scoped, tag = 'scoped memory for mids_med_forward.1']
    #allocation7 [shape = 'u8[65536]{0}', space=vmem, size = 0x10000, scoped, tag = 'input window, operand 3, single buffered']
    #allocation8 [shape = 'u8[131072]{0}', space=vmem, size = 0x20000, scoped, tag = 'input window, operand 4, single buffered']
    #allocation9 [shape = 's32[1]{0}', space=sflag, size = 0x4, scoped, tag = 'scoped memory for mids_med_forward.1']
    #allocation10 [shape = 'u8[65536]{0}', space=vmem, size = 0x10000, scoped, tag = 'input window, operand 5, single buffered']
    #allocation11 [shape = 'u8[2097152]{0}', space=vmem, size = 0x200000, scoped, tag = 'input window, operand 6, single buffered']
    #allocation12 [shape = 's32[1]{0}', space=sflag, size = 0x4, scoped, tag = 'scoped memory for mids_med_forward.1']
    #allocation13 [shape = 'u8[524288]{0}', space=vmem, size = 0x80000, scoped, tag = 'input window, operand 10, single buffered']
    #allocation14 [shape = 'u8[131072]{0}', space=vmem, size = 0x20000, scoped, tag = 'input window, operand 11, single buffered']
    #allocation15 [shape = 's32[1]{0}', space=sflag, size = 0x4, scoped, tag = 'scoped memory for mids_med_forward.1']
    #allocation16 [shape = 'u8[524288]{0}', space=vmem, size = 0x80000, scoped, tag = 'input window, operand 12, single buffered']
    #allocation17 [shape = 'u8[16384]{0}', space=vmem, size = 0x4000, scoped, tag = 'input window, operand 15, single buffered']
    #allocation18 [shape = 's32[1]{0}', space=sflag, size = 0x4, scoped, tag = 'scoped memory for mids_med_forward.1']
    #allocation19 [shape = 'u8[131072]{0}', space=vmem, size = 0x20000, scoped, tag = 'output window, operand 0, single buffered']
    #allocation20 [shape = 'u8[1024]{0}', space=vmem, size = 0x400, scoped, tag = 'output window, operand 1, single buffered']
    #allocation21 [shape = 's32[1]{0}', space=sflag, size = 0x4, scoped, tag = 'scoped memory for mids_med_forward.1']
    %24 = vsyncpa [#allocation3], 0
    %25 = vsyncpa [#allocation6], 0
    %26 = vsyncpa [#allocation9], 0
    %27 = vsyncpa [#allocation12], 0
    %28 = vsyncpa [#allocation15], 0
    %29 = vsyncpa [#allocation18], 0
    %30 = vsyncpa [#allocation4], 0
    %31 = vsyncpa [#allocation21], 0
    // Predicated region
    $region2: #{mids_med_forward.1} parent=1 // pred_check
      _
    $region3: #{mids_med_forward.1} parent=1 // pred_check_branch
      %33 = sbr.rel (0) target = $region5
    $region4: #{mids_med_forward.1} parent=1 // pred_region
      _
    $region5: #{mids_med_forward.1} parent=1 // pred_fallthru
      _
    // Predicated region
    $region6: #{mids_med_forward.1} parent=1 // pred_check
      _
    $region7: #{mids_med_forward.1} parent=1 // pred_check_branch
      %35 = sbr.rel (0) target = $region9
    $region8: #{mids_med_forward.1} parent=1 // pred_region
      %37 = vsyncadd [#allocation3], 0
      %s38 = sshll.u32 %s1, 4
      %s39 = int_to_ptr.hbm [resolvable:$true] %s38
      %s40 = sshll.u32 [#allocation2], 4
      %s41 = int_to_ptr.vmem [resolvable:$true] %s40
      %46 = dma.hbm_to_vmem [thread:$0]  %s39, 4096, %s41, [#allocation3], 256, 256, 16
    $region9: #{mids_med_forward.1} parent=1 // pred_fallthru
      _
    // Predicated region
    $region10: #{mids_med_forward.1} parent=1 // pred_check
      _
    $region11: #{mids_med_forward.1} parent=1 // pred_check_branch
      %48 = sbr.rel (0) target = $region13
    $region12: #{mids_med_forward.1} parent=1 // pred_region
      %50 = vsyncadd [#allocation6], 0
      %s51 = sshll.u32 %s2, 4
      %s52 = int_to_ptr.hbm [resolvable:$true] %s51
      %s53 = sshll.u32 [#allocation5], 4
      %s54 = int_to_ptr.vmem [resolvable:$true] %s53
      %59 = dma.hbm_to_vmem [thread:$0]  %s52, 2048, %s54, [#allocation6], 128, 128, 8
    $region13: #{mids_med_forward.1} parent=1 // pred_fallthru
      _
    // Predicated region
    $region14: #{mids_med_forward.1} parent=1 // pred_check
      _
    $region15: #{mids_med_forward.1} parent=1 // pred_check_branch
      %61 = sbr.rel (0) target = $region17
    $region16: #{mids_med_forward.1} parent=1 // pred_region
      %63 = vsyncadd [#allocation6], 0
      %s64 = sshll.u32 %s3, 4
      %s65 = int_to_ptr.hbm [resolvable:$true] %s64
      %s66 = sshll.u32 [#allocation7], 4
      %s67 = int_to_ptr.vmem [resolvable:$true] %s66
      %72 = dma.hbm_to_vmem [thread:$0]  %s65, 2048, %s67, [#allocation6], 128, 128, 8
    $region17: #{mids_med_forward.1} parent=1 // pred_fallthru
      _
    // Predicated region
    $region18: #{mids_med_forward.1} parent=1 // pred_check
      _
    $region19: #{mids_med_forward.1} parent=1 // pred_check_branch
      %74 = sbr.rel (0) target = $region21
    $region20: #{mids_med_forward.1} parent=1 // pred_region
      %76 = vsyncadd [#allocation9], 0
      %s77 = sshll.u32 %s4, 4
      %s78 = int_to_ptr.hbm [resolvable:$true] %s77
      %s79 = sshll.u32 [#allocation8], 4
      %s80 = int_to_ptr.vmem [resolvable:$true] %s79
      %85 = dma.hbm_to_vmem [thread:$0]  %s78, 4096, %s80, [#allocation9], 256, 256, 16
    $region21: #{mids_med_forward.1} parent=1 // pred_fallthru
      _
    // Predicated region
    $region22: #{mids_med_forward.1} parent=1 // pred_check
      _
    $region23: #{mids_med_forward.1} parent=1 // pred_check_branch
      %87 = sbr.rel (0) target = $region25
    $region24: #{mids_med_forward.1} parent=1 // pred_region
      %89 = vsyncadd [#allocation9], 0
      %s90 = sshll.u32 %s5, 4
      %s91 = int_to_ptr.hbm [resolvable:$true] %s90
      %s92 = sshll.u32 [#allocation10], 4
      %s93 = int_to_ptr.vmem [resolvable:$true] %s92
      %98 = dma.hbm_to_vmem [thread:$0]  %s91, 2048, %s93, [#allocation9], 128, 128, 8
    $region25: #{mids_med_forward.1} parent=1 // pred_fallthru
      _
    // Predicated region
    $region26: #{mids_med_forward.1} parent=1 // pred_check
      _
    $region27: #{mids_med_forward.1} parent=1 // pred_check_branch
      %100 = sbr.rel (0) target = $region29
    $region28: #{mids_med_forward.1} parent=1 // pred_region
      %102 = vsyncadd [#allocation12], 0
      %s103 = sshll.u32 %s6, 4
      %s104 = int_to_ptr.hbm [resolvable:$true] %s103
      %s105 = sshll.u32 [#allocation11], 4
      %s106 = int_to_ptr.vmem [resolvable:$true] %s105
      %111 = dma.hbm_to_vmem [thread:$0]  %s104, 65536, %s106, [#allocation12], 1024, 1024, 64
    $region29: #{mids_med_forward.1} parent=1 // pred_fallthru
      _
    // Predicated region
    $region30: #{mids_med_forward.1} parent=1 // pred_check
      _
    $region31: #{mids_med_forward.1} parent=1 // pred_check_branch
      %113 = sbr.rel (0) target = $region33
    $region32: #{mids_med_forward.1} parent=1 // pred_region
      _
    $region33: #{mids_med_forward.1} parent=1 // pred_fallthru
      _
    // Predicated region
    $region34: #{mids_med_forward.1} parent=1 // pred_check
      _
    $region35: #{mids_med_forward.1} parent=1 // pred_check_branch
      %115 = sbr.rel (0) target = $region37
    $region36: #{mids_med_forward.1} parent=1 // pred_region
      _
    $region37: #{mids_med_forward.1} parent=1 // pred_fallthru
      _
    // Predicated region
    $region38: #{mids_med_forward.1} parent=1 // pred_check
      _
    $region39: #{mids_med_forward.1} parent=1 // pred_check_branch
      %117 = sbr.rel (0) target = $region41
    $region40: #{mids_med_forward.1} parent=1 // pred_region
      _
    $region41: #{mids_med_forward.1} parent=1 // pred_fallthru
      _
    // Predicated region
    $region42: #{mids_med_forward.1} parent=1 // pred_check
      _
    $region43: #{mids_med_forward.1} parent=1 // pred_check_branch
      %119 = sbr.rel (0) target = $region45
    $region44: #{mids_med_forward.1} parent=1 // pred_region
      %121 = vsyncadd [#allocation12], 0
      %s122 = sshll.u32 %s10, 4
      %s123 = int_to_ptr.hbm [resolvable:$true] %s122
      %s124 = sshll.u32 [#allocation13], 4
      %s125 = int_to_ptr.vmem [resolvable:$true] %s124
      %130 = dma.hbm_to_vmem [thread:$0]  %s123, 16384, %s125, [#allocation12], 128, 128, 8
    $region45: #{mids_med_forward.1} parent=1 // pred_fallthru
      _
    // Predicated region
    $region46: #{mids_med_forward.1} parent=1 // pred_check
      _
    $region47: #{mids_med_forward.1} parent=1 // pred_check_branch
      %132 = sbr.rel (0) target = $region49
    $region48: #{mids_med_forward.1} parent=1 // pred_region
      %134 = vsyncadd [#allocation15], 0
      %s135 = sshll.u32 %s11, 4
      %s136 = int_to_ptr.hbm [resolvable:$true] %s135
      %s137 = sshll.u32 [#allocation14], 4
      %s138 = int_to_ptr.vmem [resolvable:$true] %s137
      %143 = dma.hbm_to_vmem [thread:$0]  %s136, 4096, %s138, [#allocation15], 1024, 1024, 64
    $region49: #{mids_med_forward.1} parent=1 // pred_fallthru
      _
    // Predicated region
    $region50: #{mids_med_forward.1} parent=1 // pred_check
      _
    $region51: #{mids_med_forward.1} parent=1 // pred_check_branch
      %145 = sbr.rel (0) target = $region53
    $region52: #{mids_med_forward.1} parent=1 // pred_region
      %147 = vsyncadd [#allocation15], 0
      %s148 = sshll.u32 %s12, 4
      %s149 = int_to_ptr.hbm [resolvable:$true] %s148
      %s150 = sshll.u32 [#allocation16], 4
      %s151 = int_to_ptr.vmem [resolvable:$true] %s150
      %156 = dma.hbm_to_vmem [thread:$0]  %s149, 16384, %s151, [#allocation15], 128, 128, 8
    $region53: #{mids_med_forward.1} parent=1 // pred_fallthru
      _
    // Predicated region
    $region54: #{mids_med_forward.1} parent=1 // pred_check
      _
    $region55: #{mids_med_forward.1} parent=1 // pred_check_branch
      %158 = sbr.rel (0) target = $region57
    $region56: #{mids_med_forward.1} parent=1 // pred_region
      _
    $region57: #{mids_med_forward.1} parent=1 // pred_fallthru
      _
    // Predicated region
    $region58: #{mids_med_forward.1} parent=1 // pred_check
      _
    $region59: #{mids_med_forward.1} parent=1 // pred_check_branch
      %160 = sbr.rel (0) target = $region61
    $region60: #{mids_med_forward.1} parent=1 // pred_region
      _
    $region61: #{mids_med_forward.1} parent=1 // pred_fallthru
      _
    // Predicated region
    $region62: #{mids_med_forward.1} parent=1 // pred_check
      _
    $region63: #{mids_med_forward.1} parent=1 // pred_check_branch
      %162 = sbr.rel (0) target = $region65
    $region64: #{mids_med_forward.1} parent=1 // pred_region
      %164 = vsyncadd [#allocation18], 0
      %s165 = sshll.u32 %s15, 4
      %s166 = int_to_ptr.hbm [resolvable:$true] %s165
      %s167 = sshll.u32 [#allocation17], 4
      %s168 = int_to_ptr.vmem [resolvable:$true] %s167
      %173 = dma.hbm_to_vmem [thread:$0]  %s166, 512, %s168, [#allocation18], 128, 128, 8
    $region65: #{mids_med_forward.1} parent=1 // pred_fallthru
      _
    // Predicated region
    $region66: #{mids_med_forward.1} parent=1 // pred_check
      _
    $region67: #{mids_med_forward.1} parent=1 // pred_check_branch
      %175 = sbr.rel (0) target = $region69
    $region68: #{mids_med_forward.1} parent=1 // pred_region
      _
    $region69: #{mids_med_forward.1} parent=1 // pred_fallthru
      _
    // Predicated region
    $region70: #{mids_med_forward.1} parent=1 // pred_check
      _
    $region71: #{mids_med_forward.1} parent=1 // pred_check_branch
      %177 = sbr.rel (0) target = $region73
    $region72: #{mids_med_forward.1} parent=1 // pred_region
      %179 = dma.done [#allocation3], 4096
    $region73: #{mids_med_forward.1} parent=1 // pred_fallthru
      _
    // Predicated region
    $region74: #{mids_med_forward.1} parent=1 // pred_check
      _
    $region75: #{mids_med_forward.1} parent=1 // pred_check_branch
      %181 = sbr.rel (0) target = $region77
    $region76: #{mids_med_forward.1} parent=1 // pred_region
      %183 = dma.done [#allocation6], 2048
    $region77: #{mids_med_forward.1} parent=1 // pred_fallthru
      _
    // Predicated region
    $region78: #{mids_med_forward.1} parent=1 // pred_check
      _
    $region79: #{mids_med_forward.1} parent=1 // pred_check_branch
      %185 = sbr.rel (0) target = $region81
    $region80: #{mids_med_forward.1} parent=1 // pred_region
      %187 = dma.done [#allocation6], 2048
    $region81: #{mids_med_forward.1} parent=1 // pred_fallthru
      _
    // Predicated region
    $region82: #{mids_med_forward.1} parent=1 // pred_check
      _
    $region83: #{mids_med_forward.1} parent=1 // pred_check_branch
      %189 = sbr.rel (0) target = $region85
    $region84: #{mids_med_forward.1} parent=1 // pred_region
      %191 = dma.done [#allocation9], 4096
    $region85: #{mids_med_forward.1} parent=1 // pred_fallthru
      _
    // Predicated region
    $region86: #{mids_med_forward.1} parent=1 // pred_check
      _
    $region87: #{mids_med_forward.1} parent=1 // pred_check_branch
      %193 = sbr.rel (0) target = $region89
    $region88: #{mids_med_forward.1} parent=1 // pred_region
      %195 = dma.done [#allocation9], 2048
    $region89: #{mids_med_forward.1} parent=1 // pred_fallthru
      _
    // Predicated region
    $region90: #{mids_med_forward.1} parent=1 // pred_check
      _
    $region91: #{mids_med_forward.1} parent=1 // pred_check_branch
      %197 = sbr.rel (0) target = $region93
    $region92: #{mids_med_forward.1} parent=1 // pred_region
      %199 = dma.done [#allocation12], 65536
    $region93: #{mids_med_forward.1} parent=1 // pred_fallthru
      _
    // Predicated region
    $region94: #{mids_med_forward.1} parent=1 // pred_check
      _
    $region95: #{mids_med_forward.1} parent=1 // pred_check_branch
      %201 = sbr.rel (0) target = $region97
    $region96: #{mids_med_forward.1} parent=1 // pred_region
      %203 = dma.done [#allocation12], 16384
    $region97: #{mids_med_forward.1} parent=1 // pred_fallthru
      _
    // Predicated region
    $region98: #{mids_med_forward.1} parent=1 // pred_check
      _
    $region99: #{mids_med_forward.1} parent=1 // pred_check_branch
      %205 = sbr.rel (0) target = $region101
    $region100: #{mids_med_forward.1} parent=1 // pred_region
      %207 = dma.done [#allocation15], 4096
    $region101: #{mids_med_forward.1} parent=1 // pred_fallthru
      _
    // Predicated region
    $region102: #{mids_med_forward.1} parent=1 // pred_check
      _
    $region103: #{mids_med_forward.1} parent=1 // pred_check_branch
      %209 = sbr.rel (0) target = $region105
    $region104: #{mids_med_forward.1} parent=1 // pred_region
      %211 = dma.done [#allocation15], 16384
    $region105: #{mids_med_forward.1} parent=1 // pred_fallthru
      _
    // Predicated region
    $region106: #{mids_med_forward.1} parent=1 // pred_check
      _
    $region107: #{mids_med_forward.1} parent=1 // pred_check_branch
      %213 = sbr.rel (0) target = $region109
    $region108: #{mids_med_forward.1} parent=1 // pred_region
      %215 = dma.done [#allocation18], 512
    $region109: #{mids_med_forward.1} parent=1 // pred_fallthru
      _
    %v216 = vld [vmem:[%s0] sm:$0xff]
    %v217 = vld [vmem:[%s0 + $0x8] sm:$0xff]
    %v218 = vld [vmem:[%s0 + $0x10] sm:$0xff]
    %v219 = vld [vmem:[%s0 + $0x18] sm:$0xff]
    %v220 = vld [vmem:[%s0 + $0x20] sm:$0xff]
    %v221 = vld [vmem:[%s0 + $0x28] sm:$0xff]
    %v222 = vld [vmem:[%s0 + $0x30] sm:$0xff]
    %v223 = vld [vmem:[%s0 + $0x38] sm:$0xff]
    %v224 = vld [vmem:[%s0 + $0x40] sm:$0xff]
    %v225 = vld [vmem:[%s0 + $0x48] sm:$0xff]
    %v226 = vld [vmem:[%s0 + $0x50] sm:$0xff]
    %v227 = vld [vmem:[%s0 + $0x58] sm:$0xff]
    %v228 = vld [vmem:[%s0 + $0x60] sm:$0xff]
    %v229 = vld [vmem:[%s0 + $0x68] sm:$0xff]
    %v230 = vld [vmem:[%s0 + $0x70] sm:$0xff]
    %v231 = vld [vmem:[%s0 + $0x78] sm:$0xff]
    %v232 = vld [vmem:[#allocation2] sm:$0xff]
    %v233 = vld [vmem:[#allocation2 + $0x8] sm:$0xff]
    %v234 = vld [vmem:[#allocation2 + $0x10] sm:$0xff]
    %v235 = vld [vmem:[#allocation2 + $0x18] sm:$0xff]
    %v236 = vld [vmem:[#allocation2 + $0x20] sm:$0xff]
    %v237 = vld [vmem:[#allocation2 + $0x28] sm:$0xff]
    %v238 = vld [vmem:[#allocation2 + $0x30] sm:$0xff]
    %v239 = vld [vmem:[#allocation2 + $0x38] sm:$0xff]
    %v240 = vrot.slane %v216, 1
    %v241 = vrot.slane %v217, 1
    %v242 = vrot.slane %v218, 1
    %v243 = vrot.slane %v219, 1
    %v244 = vrot.slane %v220, 1
    %v245 = vrot.slane %v221, 1
    %v246 = vrot.slane %v222, 1
    %v247 = vrot.slane %v223, 1
    %v248 = vrot.slane %v224, 1
    %v249 = vrot.slane %v225, 1
    %v250 = vrot.slane %v226, 1
    %v251 = vrot.slane %v227, 1
    %v252 = vrot.slane %v228, 1
    %v253 = vrot.slane %v229, 1
    %v254 = vrot.slane %v230, 1
    %v255 = vrot.slane %v231, 1
    %v256 = vlaneseq
    %v257 = vshrl.u32 %v256, 7
    %vm258 = vcmp.lt.s32.totalorder %v257, 7
    %v259 = vsel %vm258, %v254, %v255
    %v260 = vsel %vm258, %v253, %v254
    %v261 = vsel %vm258, %v252, %v253
    %v262 = vsel %vm258, %v251, %v252
    %v263 = vsel %vm258, %v250, %v251
    %v264 = vsel %vm258, %v249, %v250
    %v265 = vsel %vm258, %v248, %v249
    %v266 = vsel %vm258, %v247, %v248
    %v267 = vsel %vm258, %v246, %v247
    %v268 = vsel %vm258, %v245, %v246
    %v269 = vsel %vm258, %v244, %v245
    %v270 = vsel %vm258, %v243, %v244
    %v271 = vsel %vm258, %v242, %v243
    %v272 = vsel %vm258, %v241, %v242
    %v273 = vsel %vm258, %v240, %v241
    %v274 = vsel %vm258, %v255, %v240
    %v275 = vld [vmem:[#allocation2 + $0x40] sm:$0xff]
    %v276 = vld [vmem:[#allocation2 + $0x48] sm:$0xff]
    %v277 = vld [vmem:[#allocation2 + $0x50] sm:$0xff]
    %v278 = vld [vmem:[#allocation2 + $0x58] sm:$0xff]
    %v279 = vld [vmem:[#allocation2 + $0x60] sm:$0xff]
    %v280 = vld [vmem:[#allocation2 + $0x68] sm:$0xff]
    %v281 = vld [vmem:[#allocation2 + $0x70] sm:$0xff]
    %v282 = vld [vmem:[#allocation2 + $0x78] sm:$0xff]
    %vm283 = vcmask 261120
    %v285 = vsel %vm283, %v273, 0
    %v288 = vsel %vm283, %v272, 0
    %v291 = vsel %vm283, %v271, 0
    %v294 = vsel %vm283, %v270, 0
    %v297 = vsel %vm283, %v269, 0
    %v300 = vsel %vm283, %v268, 0
    %v303 = vsel %vm283, %v267, 0
    %v306 = vsel %vm283, %v266, 0
    %v309 = vsel %vm283, %v265, 0
    %v312 = vsel %vm283, %v264, 0
    %v315 = vsel %vm283, %v263, 0
    %v318 = vsel %vm283, %v262, 0
    %v321 = vsel %vm283, %v261, 0
    %v324 = vsel %vm283, %v260, 0
    %v327 = vsel %vm283, %v259, 0
    %v330 = vsel %vm283, %v274, 0
    %332 = vmatpush.msra.mxu0 0.0
    %333 = vmatpush.msra.mxu0 0.0
    %334 = vmatpush.msra.mxu0 0.0
    %335 = vmatpush.msra.mxu0 0.0
    %336 = vmatpush.msra.mxu0 0.0
    %337 = vmatpush.msra.mxu0 0.0
    %338 = vmatpush.msra.mxu0 0.0
    %339 = vmatpush.msra.mxu0 0.0
    %340 = vmatpush.msra.mxu0 0.0
    %341 = vmatpush.msra.mxu0 0.0
    %342 = vmatpush.msra.mxu0 0.0
    %343 = vmatpush.msra.mxu0 0.0
    %344 = vmatpush.msra.mxu0 %v281
    %345 = vmatpush.msra.mxu0 %v279
    %346 = vmatpush.msra.mxu0 %v277
    %347 = vmatpush.msra.mxu0 %v275
    %348 = vmatmul.f32.gmra.mxu0 %v285
    %v349 = vpop.f32.mrf.mxu0
    %v350 = vadd.f32 0.0, %v349
    %351 = vmatmul.f32.gmra.mxu0 %v288
    %v352 = vpop.f32.mrf.mxu0
    %v353 = vadd.f32 0.0, %v352
    %354 = vmatmul.f32.gmra.mxu0 %v291
    %v355 = vpop.f32.mrf.mxu0
    %v356 = vadd.f32 0.0, %v355
    %357 = vmatmul.f32.gmra.mxu0 %v294
    %v358 = vpop.f32.mrf.mxu0
    %v359 = vadd.f32 0.0, %v358
    %360 = vmatmul.f32.gmra.mxu0 %v297
    %v361 = vpop.f32.mrf.mxu0
    %v362 = vadd.f32 0.0, %v361
    %363 = vmatmul.f32.gmra.mxu0 %v300
    %v364 = vpop.f32.mrf.mxu0
    %v365 = vadd.f32 0.0, %v364
    %366 = vmatmul.f32.gmra.mxu0 %v303
    %v367 = vpop.f32.mrf.mxu0
    %v368 = vadd.f32 0.0, %v367
    %369 = vmatmul.f32.gmra.mxu0 %v306
    %v370 = vpop.f32.mrf.mxu0
    %v371 = vadd.f32 0.0, %v370
    %372 = vmatmul.f32.gmra.mxu0 %v309
    %v373 = vpop.f32.mrf.mxu0
    %v374 = vadd.f32 0.0, %v373
    %375 = vmatmul.f32.gmra.mxu0 %v312
    %v376 = vpop.f32.mrf.mxu0
    %v377 = vadd.f32 0.0, %v376
    %378 = vmatmul.f32.gmra.mxu0 %v315
    %v379 = vpop.f32.mrf.mxu0
    %v380 = vadd.f32 0.0, %v379
    %381 = vmatmul.f32.gmra.mxu0 %v318
    %v382 = vpop.f32.mrf.mxu0
    %v383 = vadd.f32 0.0, %v382
    %384 = vmatmul.f32.gmra.mxu0 %v321
    %v385 = vpop.f32.mrf.mxu0
    %v386 = vadd.f32 0.0, %v385
    %387 = vmatmul.f32.gmra.mxu0 %v324
    %v388 = vpop.f32.mrf.mxu0
    %v389 = vadd.f32 0.0, %v388
    %390 = vmatmul.f32.gmra.mxu0 %v327
    %v391 = vpop.f32.mrf.mxu0
    %v392 = vadd.f32 0.0, %v391
    %393 = vmatmul.f32.gmra.mxu0 %v330
    %v394 = vpop.f32.mrf.mxu0
    %v395 = vadd.f32 0.0, %v394
    %396 = vdwg.mxu0
    %397 = vmatpush.msra.mxu0 0.0
    %398 = vmatpush.msra.mxu0 0.0
    %399 = vmatpush.msra.mxu0 0.0
    %400 = vmatpush.msra.mxu0 0.0
    %401 = vmatpush.msra.mxu0 0.0
    %402 = vmatpush.msra.mxu0 0.0
    %403 = vmatpush.msra.mxu0 0.0
    %404 = vmatpush.msra.mxu0 0.0
    %405 = vmatpush.msra.mxu0 0.0
    %406 = vmatpush.msra.mxu0 0.0
    %407 = vmatpush.msra.mxu0 0.0
    %408 = vmatpush.msra.mxu0 0.0
    %409 = vmatpush.msra.mxu0 %v282
    %410 = vmatpush.msra.mxu0 %v280
    %411 = vmatpush.msra.mxu0 %v278
    %412 = vmatpush.msra.mxu0 %v276
    %413 = vmatmul.f32.gmra.mxu0 %v285
    %v414 = vpop.f32.mrf.mxu0
    %v415 = vadd.f32 0.0, %v414
    %416 = vmatmul.f32.gmra.mxu0 %v288
    %v417 = vpop.f32.mrf.mxu0
    %v418 = vadd.f32 0.0, %v417
    %419 = vmatmul.f32.gmra.mxu0 %v291
    %v420 = vpop.f32.mrf.mxu0
    %v421 = vadd.f32 0.0, %v420
    %422 = vmatmul.f32.gmra.mxu0 %v294
    %v423 = vpop.f32.mrf.mxu0
    %v424 = vadd.f32 0.0, %v423
    %425 = vmatmul.f32.gmra.mxu0 %v297
    %v426 = vpop.f32.mrf.mxu0
    %v427 = vadd.f32 0.0, %v426
    %428 = vmatmul.f32.gmra.mxu0 %v300
    %v429 = vpop.f32.mrf.mxu0
    %v430 = vadd.f32 0.0, %v429
    %431 = vmatmul.f32.gmra.mxu0 %v303
    %v432 = vpop.f32.mrf.mxu0
    %v433 = vadd.f32 0.0, %v432
    %434 = vmatmul.f32.gmra.mxu0 %v306
    %v435 = vpop.f32.mrf.mxu0
    %v436 = vadd.f32 0.0, %v435
    %437 = vmatmul.f32.gmra.mxu0 %v309
    %v438 = vpop.f32.mrf.mxu0
    %v439 = vadd.f32 0.0, %v438
    %440 = vmatmul.f32.gmra.mxu0 %v312
    %v441 = vpop.f32.mrf.mxu0
    %v442 = vadd.f32 0.0, %v441
    %443 = vmatmul.f32.gmra.mxu0 %v315
    %v444 = vpop.f32.mrf.mxu0
    %v445 = vadd.f32 0.0, %v444
    %446 = vmatmul.f32.gmra.mxu0 %v318
    %v447 = vpop.f32.mrf.mxu0
    %v448 = vadd.f32 0.0, %v447
    %449 = vmatmul.f32.gmra.mxu0 %v321
    %v450 = vpop.f32.mrf.mxu0
    %v451 = vadd.f32 0.0, %v450
    %452 = vmatmul.f32.gmra.mxu0 %v324
    %v453 = vpop.f32.mrf.mxu0
    %v454 = vadd.f32 0.0, %v453
    %455 = vmatmul.f32.gmra.mxu0 %v327
    %v456 = vpop.f32.mrf.mxu0
    %v457 = vadd.f32 0.0, %v456
    %458 = vmatmul.f32.gmra.mxu0 %v330
    %v459 = vpop.f32.mrf.mxu0
    %v460 = vadd.f32 0.0, %v459
    %461 = vdwg.mxu0
    %v463 = vsel %vm283, %v216, 0
    %v466 = vsel %vm283, %v217, 0
    %v469 = vsel %vm283, %v218, 0
    %v472 = vsel %vm283, %v219, 0
    %v475 = vsel %vm283, %v220, 0
    %v478 = vsel %vm283, %v221, 0
    %v481 = vsel %vm283, %v222, 0
    %v484 = vsel %vm283, %v223, 0
    %v487 = vsel %vm283, %v224, 0
    %v490 = vsel %vm283, %v225, 0
    %v493 = vsel %vm283, %v226, 0
    %v496 = vsel %vm283, %v227, 0
    %v499 = vsel %vm283, %v228, 0
    %v502 = vsel %vm283, %v229, 0
    %v505 = vsel %vm283, %v230, 0
    %v508 = vsel %vm283, %v231, 0
    %510 = vmatpush.msra.mxu0 0.0
    %511 = vmatpush.msra.mxu0 0.0
    %512 = vmatpush.msra.mxu0 0.0
    %513 = vmatpush.msra.mxu0 0.0
    %514 = vmatpush.msra.mxu0 0.0
    %515 = vmatpush.msra.mxu0 0.0
    %516 = vmatpush.msra.mxu0 0.0
    %517 = vmatpush.msra.mxu0 0.0
    %518 = vmatpush.msra.mxu0 0.0
    %519 = vmatpush.msra.mxu0 0.0
    %520 = vmatpush.msra.mxu0 0.0
    %521 = vmatpush.msra.mxu0 0.0
    %522 = vmatpush.msra.mxu0 %v238
    %523 = vmatpush.msra.mxu0 %v236
    %524 = vmatpush.msra.mxu0 %v234
    %525 = vmatpush.msra.mxu0 %v232
    %526 = vmatmul.f32.gmra.mxu0 %v463
    %v527 = vpop.f32.mrf.mxu0
    %v528 = vadd.f32 %v350, %v527
    %529 = vmatmul.f32.gmra.mxu0 %v466
    %v530 = vpop.f32.mrf.mxu0
    %v531 = vadd.f32 %v353, %v530
    %532 = vmatmul.f32.gmra.mxu0 %v469
    %v533 = vpop.f32.mrf.mxu0
    %v534 = vadd.f32 %v356, %v533
    %535 = vmatmul.f32.gmra.mxu0 %v472
    %v536 = vpop.f32.mrf.mxu0
    %v537 = vadd.f32 %v359, %v536
    %538 = vmatmul.f32.gmra.mxu0 %v475
    %v539 = vpop.f32.mrf.mxu0
    %v540 = vadd.f32 %v362, %v539
    %541 = vmatmul.f32.gmra.mxu0 %v478
    %v542 = vpop.f32.mrf.mxu0
    %v543 = vadd.f32 %v365, %v542
    %544 = vmatmul.f32.gmra.mxu0 %v481
    %v545 = vpop.f32.mrf.mxu0
    %v546 = vadd.f32 %v368, %v545
    %547 = vmatmul.f32.gmra.mxu0 %v484
    %v548 = vpop.f32.mrf.mxu0
    %v549 = vadd.f32 %v371, %v548
    %550 = vmatmul.f32.gmra.mxu0 %v487
    %v551 = vpop.f32.mrf.mxu0
    %v552 = vadd.f32 %v374, %v551
    %553 = vmatmul.f32.gmra.mxu0 %v490
    %v554 = vpop.f32.mrf.mxu0
    %v555 = vadd.f32 %v377, %v554
    %556 = vmatmul.f32.gmra.mxu0 %v493
    %v557 = vpop.f32.mrf.mxu0
    %v558 = vadd.f32 %v380, %v557
    %559 = vmatmul.f32.gmra.mxu0 %v496
    %v560 = vpop.f32.mrf.mxu0
    %v561 = vadd.f32 %v383, %v560
    %562 = vmatmul.f32.gmra.mxu0 %v499
    %v563 = vpop.f32.mrf.mxu0
    %v564 = vadd.f32 %v386, %v563
    %565 = vmatmul.f32.gmra.mxu0 %v502
    %v566 = vpop.f32.mrf.mxu0
    %v567 = vadd.f32 %v389, %v566
    %568 = vmatmul.f32.gmra.mxu0 %v505
    %v569 = vpop.f32.mrf.mxu0
    %v570 = vadd.f32 %v392, %v569
    %571 = vmatmul.f32.gmra.mxu0 %v508
    %v572 = vpop.f32.mrf.mxu0
    %v573 = vadd.f32 %v395, %v572
    %574 = vdwg.mxu0
    %575 = vmatpush.msra.mxu0 0.0
    %576 = vmatpush.msra.mxu0 0.0
    %577 = vmatpush.msra.mxu0 0.0
    %578 = vmatpush.msra.mxu0 0.0
    %579 = vmatpush.msra.mxu0 0.0
    %580 = vmatpush.msra.mxu0 0.0
    %581 = vmatpush.msra.mxu0 0.0
    %582 = vmatpush.msra.mxu0 0.0
    %583 = vmatpush.msra.mxu0 0.0
    %584 = vmatpush.msra.mxu0 0.0
    %585 = vmatpush.msra.mxu0 0.0
    %586 = vmatpush.msra.mxu0 0.0
    %587 = vmatpush.msra.mxu0 %v239
    %588 = vmatpush.msra.mxu0 %v237
    %589 = vmatpush.msra.mxu0 %v235
    %590 = vmatpush.msra.mxu0 %v233
    %591 = vmatmul.f32.gmra.mxu0 %v463
    %v592 = vpop.f32.mrf.mxu0
    %v593 = vadd.f32 %v415, %v592
    %594 = vmatmul.f32.gmra.mxu0 %v466
    %v595 = vpop.f32.mrf.mxu0
    %v596 = vadd.f32 %v418, %v595
    %597 = vmatmul.f32.gmra.mxu0 %v469
    %v598 = vpop.f32.mrf.mxu0
    %v599 = vadd.f32 %v421, %v598
    %600 = vmatmul.f32.gmra.mxu0 %v472
    %v601 = vpop.f32.mrf.mxu0
    %v602 = vadd.f32 %v424, %v601
    %603 = vmatmul.f32.gmra.mxu0 %v475
    %v604 = vpop.f32.mrf.mxu0
    %v605 = vadd.f32 %v427, %v604
    %606 = vmatmul.f32.gmra.mxu0 %v478
    %v607 = vpop.f32.mrf.mxu0
    %v608 = vadd.f32 %v430, %v607
    %609 = vmatmul.f32.gmra.mxu0 %v481
    %v610 = vpop.f32.mrf.mxu0
    %v611 = vadd.f32 %v433, %v610
    %612 = vmatmul.f32.gmra.mxu0 %v484
    %v613 = vpop.f32.mrf.mxu0
    %v614 = vadd.f32 %v436, %v613
    %615 = vmatmul.f32.gmra.mxu0 %v487
    %v616 = vpop.f32.mrf.mxu0
    %v617 = vadd.f32 %v439, %v616
    %618 = vmatmul.f32.gmra.mxu0 %v490
    %v619 = vpop.f32.mrf.mxu0
    %v620 = vadd.f32 %v442, %v619
    %621 = vmatmul.f32.gmra.mxu0 %v493
    %v622 = vpop.f32.mrf.mxu0
    %v623 = vadd.f32 %v445, %v622
    %624 = vmatmul.f32.gmra.mxu0 %v496
    %v625 = vpop.f32.mrf.mxu0
    %v626 = vadd.f32 %v448, %v625
    %627 = vmatmul.f32.gmra.mxu0 %v499
    %v628 = vpop.f32.mrf.mxu0
    %v629 = vadd.f32 %v451, %v628
    %630 = vmatmul.f32.gmra.mxu0 %v502
    %v631 = vpop.f32.mrf.mxu0
    %v632 = vadd.f32 %v454, %v631
    %633 = vmatmul.f32.gmra.mxu0 %v505
    %v634 = vpop.f32.mrf.mxu0
    %v635 = vadd.f32 %v457, %v634
    %636 = vmatmul.f32.gmra.mxu0 %v508
    %v637 = vpop.f32.mrf.mxu0
    %v638 = vadd.f32 %v460, %v637
    %639 = vdwg.mxu0
    %v640 = vrot.slane %v216, 2
    %v641 = vrot.slane %v217, 2
    %v642 = vrot.slane %v218, 2
    %v643 = vrot.slane %v219, 2
    %v644 = vrot.slane %v220, 2
    %v645 = vrot.slane %v221, 2
    %v646 = vrot.slane %v222, 2
    %v647 = vrot.slane %v223, 2
    %v648 = vrot.slane %v224, 2
    %v649 = vrot.slane %v225, 2
    %v650 = vrot.slane %v226, 2
    %v651 = vrot.slane %v227, 2
    %v652 = vrot.slane %v228, 2
    %v653 = vrot.slane %v229, 2
    %v654 = vrot.slane %v230, 2
    %v655 = vrot.slane %v231, 2
    %vm656 = vcmp.lt.s32.totalorder %v257, 6
    %v657 = vsel %vm656, %v654, %v655
    %v658 = vsel %vm656, %v653, %v654
    %v659 = vsel %vm656, %v652, %v653
    %v660 = vsel %vm656, %v651, %v652
    %v661 = vsel %vm656, %v650, %v651
    %v662 = vsel %vm656, %v649, %v650
    %v663 = vsel %vm656, %v648, %v649
    %v664 = vsel %vm656, %v647, %v648
    %v665 = vsel %vm656, %v646, %v647
    %v666 = vsel %vm656, %v645, %v646
    %v667 = vsel %vm656, %v644, %v645
    %v668 = vsel %vm656, %v643, %v644
    %v669 = vsel %vm656, %v642, %v643
    %v670 = vsel %vm656, %v641, %v642
    %v671 = vsel %vm656, %v640, %v641
    %v672 = vsel %vm656, %v655, %v640
    %v673 = vld [vmem:[#allocation2 + $0x80] sm:$0xff]
    %v674 = vld [vmem:[#allocation2 + $0x88] sm:$0xff]
    %v675 = vld [vmem:[#allocation2 + $0x90] sm:$0xff]
    %v676 = vld [vmem:[#allocation2 + $0x98] sm:$0xff]
    %v677 = vld [vmem:[#allocation2 + $0xa0] sm:$0xff]
    %v678 = vld [vmem:[#allocation2 + $0xa8] sm:$0xff]
    %v679 = vld [vmem:[#allocation2 + $0xb0] sm:$0xff]
    %v680 = vld [vmem:[#allocation2 + $0xb8] sm:$0xff]
    %v682 = vsel %vm283, %v671, 0
    %v685 = vsel %vm283, %v670, 0
    %v688 = vsel %vm283, %v669, 0
    %v691 = vsel %vm283, %v668, 0
    %v694 = vsel %vm283, %v667, 0
    %v697 = vsel %vm283, %v666, 0
    %v700 = vsel %vm283, %v665, 0
    %v703 = vsel %vm283, %v664, 0
    %v706 = vsel %vm283, %v663, 0
    %v709 = vsel %vm283, %v662, 0
    %v712 = vsel %vm283, %v661, 0
    %v715 = vsel %vm283, %v660, 0
    %v718 = vsel %vm283, %v659, 0
    %v721 = vsel %vm283, %v658, 0
    %v724 = vsel %vm283, %v657, 0
    %v727 = vsel %vm283, %v672, 0
    %729 = vmatpush.msra.mxu0 0.0
    %730 = vmatpush.msra.mxu0 0.0
    %731 = vmatpush.msra.mxu0 0.0
    %732 = vmatpush.msra.mxu0 0.0
    %733 = vmatpush.msra.mxu0 0.0
    %734 = vmatpush.msra.mxu0 0.0
    %735 = vmatpush.msra.mxu0 0.0
    %736 = vmatpush.msra.mxu0 0.0
    %737 = vmatpush.msra.mxu0 0.0
    %738 = vmatpush.msra.mxu0 0.0
    %739 = vmatpush.msra.mxu0 0.0
    %740 = vmatpush.msra.mxu0 0.0
    %741 = vmatpush.msra.mxu0 %v679
    %742 = vmatpush.msra.mxu0 %v677
    %743 = vmatpush.msra.mxu0 %v675
    %744 = vmatpush.msra.mxu0 %v673
    %745 = vmatmul.f32.gmra.mxu0 %v682
    %v746 = vpop.f32.mrf.mxu0
    %v747 = vadd.f32 0.0, %v746
    %748 = vmatmul.f32.gmra.mxu0 %v685
    %v749 = vpop.f32.mrf.mxu0
    %v750 = vadd.f32 0.0, %v749
    %751 = vmatmul.f32.gmra.mxu0 %v688
    %v752 = vpop.f32.mrf.mxu0
    %v753 = vadd.f32 0.0, %v752
    %754 = vmatmul.f32.gmra.mxu0 %v691
    %v755 = vpop.f32.mrf.mxu0
    %v756 = vadd.f32 0.0, %v755
    %757 = vmatmul.f32.gmra.mxu0 %v694
    %v758 = vpop.f32.mrf.mxu0
    %v759 = vadd.f32 0.0, %v758
    %760 = vmatmul.f32.gmra.mxu0 %v697
    %v761 = vpop.f32.mrf.mxu0
    %v762 = vadd.f32 0.0, %v761
    %763 = vmatmul.f32.gmra.mxu0 %v700
    %v764 = vpop.f32.mrf.mxu0
    %v765 = vadd.f32 0.0, %v764
    %766 = vmatmul.f32.gmra.mxu0 %v703
    %v767 = vpop.f32.mrf.mxu0
    %v768 = vadd.f32 0.0, %v767
    %769 = vmatmul.f32.gmra.mxu0 %v706
    %v770 = vpop.f32.mrf.mxu0
    %v771 = vadd.f32 0.0, %v770
    %772 = vmatmul.f32.gmra.mxu0 %v709
    %v773 = vpop.f32.mrf.mxu0
    %v774 = vadd.f32 0.0, %v773
    %775 = vmatmul.f32.gmra.mxu0 %v712
    %v776 = vpop.f32.mrf.mxu0
    %v777 = vadd.f32 0.0, %v776
    %778 = vmatmul.f32.gmra.mxu0 %v715
    %v779 = vpop.f32.mrf.mxu0
    %v780 = vadd.f32 0.0, %v779
    %781 = vmatmul.f32.gmra.mxu0 %v718
    %v782 = vpop.f32.mrf.mxu0
    %v783 = vadd.f32 0.0, %v782
    %784 = vmatmul.f32.gmra.mxu0 %v721
    %v785 = vpop.f32.mrf.mxu0
    %v786 = vadd.f32 0.0, %v785
    %787 = vmatmul.f32.gmra.mxu0 %v724
    %v788 = vpop.f32.mrf.mxu0
    %v789 = vadd.f32 0.0, %v788
    %790 = vmatmul.f32.gmra.mxu0 %v727
    %v791 = vpop.f32.mrf.mxu0
    %v792 = vadd.f32 0.0, %v791
    %793 = vdwg.mxu0
    %794 = vmatpush.msra.mxu0 0.0
    %795 = vmatpush.msra.mxu0 0.0
    %796 = vmatpush.msra.mxu0 0.0
    %797 = vmatpush.msra.mxu0 0.0
    %798 = vmatpush.msra.mxu0 0.0
    %799 = vmatpush.msra.mxu0 0.0
    %800 = vmatpush.msra.mxu0 0.0
    %801 = vmatpush.msra.mxu0 0.0
    %802 = vmatpush.msra.mxu0 0.0
    %803 = vmatpush.msra.mxu0 0.0
    %804 = vmatpush.msra.mxu0 0.0
    %805 = vmatpush.msra.mxu0 0.0
    %806 = vmatpush.msra.mxu0 %v680
    %807 = vmatpush.msra.mxu0 %v678
    %808 = vmatpush.msra.mxu0 %v676
    %809 = vmatpush.msra.mxu0 %v674
    %810 = vmatmul.f32.gmra.mxu0 %v682
    %v811 = vpop.f32.mrf.mxu0
    %v812 = vadd.f32 0.0, %v811
    %813 = vmatmul.f32.gmra.mxu0 %v685
    %v814 = vpop.f32.mrf.mxu0
    %v815 = vadd.f32 0.0, %v814
    %816 = vmatmul.f32.gmra.mxu0 %v688
    %v817 = vpop.f32.mrf.mxu0
    %v818 = vadd.f32 0.0, %v817
    %819 = vmatmul.f32.gmra.mxu0 %v691
    %v820 = vpop.f32.mrf.mxu0
    %v821 = vadd.f32 0.0, %v820
    %822 = vmatmul.f32.gmra.mxu0 %v694
    %v823 = vpop.f32.mrf.mxu0
    %v824 = vadd.f32 0.0, %v823
    %825 = vmatmul.f32.gmra.mxu0 %v697
    %v826 = vpop.f32.mrf.mxu0
    %v827 = vadd.f32 0.0, %v826
    %828 = vmatmul.f32.gmra.mxu0 %v700
    %v829 = vpop.f32.mrf.mxu0
    %v830 = vadd.f32 0.0, %v829
    %831 = vmatmul.f32.gmra.mxu0 %v703
    %v832 = vpop.f32.mrf.mxu0
    %v833 = vadd.f32 0.0, %v832
    %834 = vmatmul.f32.gmra.mxu0 %v706
    %v835 = vpop.f32.mrf.mxu0
    %v836 = vadd.f32 0.0, %v835
    %837 = vmatmul.f32.gmra.mxu0 %v709
    %v838 = vpop.f32.mrf.mxu0
    %v839 = vadd.f32 0.0, %v838
    %840 = vmatmul.f32.gmra.mxu0 %v712
    %v841 = vpop.f32.mrf.mxu0
    %v842 = vadd.f32 0.0, %v841
    %843 = vmatmul.f32.gmra.mxu0 %v715
    %v844 = vpop.f32.mrf.mxu0
    %v845 = vadd.f32 0.0, %v844
    %846 = vmatmul.f32.gmra.mxu0 %v718
    %v847 = vpop.f32.mrf.mxu0
    %v848 = vadd.f32 0.0, %v847
    %849 = vmatmul.f32.gmra.mxu0 %v721
    %v850 = vpop.f32.mrf.mxu0
    %v851 = vadd.f32 0.0, %v850
    %852 = vmatmul.f32.gmra.mxu0 %v724
    %v853 = vpop.f32.mrf.mxu0
    %v854 = vadd.f32 0.0, %v853
    %855 = vmatmul.f32.gmra.mxu0 %v727
    %v856 = vpop.f32.mrf.mxu0
    %v857 = vadd.f32 0.0, %v856
    %858 = vdwg.mxu0
    %v859 = vadd.f32 %v528, %v747
    %v860 = vadd.f32 %v593, %v812
    %v861 = vadd.f32 %v531, %v750
    %v862 = vadd.f32 %v596, %v815
    %v863 = vadd.f32 %v534, %v753
    %v864 = vadd.f32 %v599, %v818
    %v865 = vadd.f32 %v537, %v756
    %v866 = vadd.f32 %v602, %v821
    %v867 = vadd.f32 %v540, %v759
    %v868 = vadd.f32 %v605, %v824
    %v869 = vadd.f32 %v543, %v762
    %v870 = vadd.f32 %v608, %v827
    %v871 = vadd.f32 %v546, %v765
    %v872 = vadd.f32 %v611, %v830
    %v873 = vadd.f32 %v549, %v768
    %v874 = vadd.f32 %v614, %v833
    %v875 = vadd.f32 %v552, %v771
    %v876 = vadd.f32 %v617, %v836
    %v877 = vadd.f32 %v555, %v774
    %v878 = vadd.f32 %v620, %v839
    %v879 = vadd.f32 %v558, %v777
    %v880 = vadd.f32 %v623, %v842
    %v881 = vadd.f32 %v561, %v780
    %v882 = vadd.f32 %v626, %v845
    %v883 = vadd.f32 %v564, %v783
    %v884 = vadd.f32 %v629, %v848
    %v885 = vadd.f32 %v567, %v786
    %v886 = vadd.f32 %v632, %v851
    %v887 = vadd.f32 %v570, %v789
    %v888 = vadd.f32 %v635, %v854
    %v889 = vadd.f32 %v573, %v792
    %v890 = vadd.f32 %v638, %v857
    %v891 = vrot.slane %v216, 3
    %v892 = vrot.slane %v217, 3
    %v893 = vrot.slane %v218, 3
    %v894 = vrot.slane %v219, 3
    %v895 = vrot.slane %v220, 3
    %v896 = vrot.slane %v221, 3
    %v897 = vrot.slane %v222, 3
    %v898 = vrot.slane %v223, 3
    %v899 = vrot.slane %v224, 3
    %v900 = vrot.slane %v225, 3
    %v901 = vrot.slane %v226, 3
    %v902 = vrot.slane %v227, 3
    %v903 = vrot.slane %v228, 3
    %v904 = vrot.slane %v229, 3
    %v905 = vrot.slane %v230, 3
    %v906 = vrot.slane %v231, 3
    %vm907 = vcmp.lt.s32.totalorder %v257, 5
    %v908 = vsel %vm907, %v905, %v906
    %v909 = vsel %vm907, %v904, %v905
    %v910 = vsel %vm907, %v903, %v904
    %v911 = vsel %vm907, %v902, %v903
    %v912 = vsel %vm907, %v901, %v902
    %v913 = vsel %vm907, %v900, %v901
    %v914 = vsel %vm907, %v899, %v900
    %v915 = vsel %vm907, %v898, %v899
    %v916 = vsel %vm907, %v897, %v898
    %v917 = vsel %vm907, %v896, %v897
    %v918 = vsel %vm907, %v895, %v896
    %v919 = vsel %vm907, %v894, %v895
    %v920 = vsel %vm907, %v893, %v894
    %v921 = vsel %vm907, %v892, %v893
    %v922 = vsel %vm907, %v891, %v892
    %v923 = vsel %vm907, %v906, %v891
    %v924 = vld [vmem:[#allocation2 + $0xc0] sm:$0xff]
    %v925 = vld [vmem:[#allocation2 + $0xc8] sm:$0xff]
    %v926 = vld [vmem:[#allocation2 + $0xd0] sm:$0xff]
    %v927 = vld [vmem:[#allocation2 + $0xd8] sm:$0xff]
    %v928 = vld [vmem:[#allocation2 + $0xe0] sm:$0xff]
    %v929 = vld [vmem:[#allocation2 + $0xe8] sm:$0xff]
    %v930 = vld [vmem:[#allocation2 + $0xf0] sm:$0xff]
    %v931 = vld [vmem:[#allocation2 + $0xf8] sm:$0xff]
    %v933 = vsel %vm283, %v922, 0
    %v936 = vsel %vm283, %v921, 0
    %v939 = vsel %vm283, %v920, 0
    %v942 = vsel %vm283, %v919, 0
    %v945 = vsel %vm283, %v918, 0
    %v948 = vsel %vm283, %v917, 0
    %v951 = vsel %vm283, %v916, 0
    %v954 = vsel %vm283, %v915, 0
    %v957 = vsel %vm283, %v914, 0
    %v960 = vsel %vm283, %v913, 0
    %v963 = vsel %vm283, %v912, 0
    %v966 = vsel %vm283, %v911, 0
    %v969 = vsel %vm283, %v910, 0
    %v972 = vsel %vm283, %v909, 0
    %v975 = vsel %vm283, %v908, 0
    %v978 = vsel %vm283, %v923, 0
    %980 = vmatpush.msra.mxu0 0.0
    %981 = vmatpush.msra.mxu0 0.0
    %982 = vmatpush.msra.mxu0 0.0
    %983 = vmatpush.msra.mxu0 0.0
    %984 = vmatpush.msra.mxu0 0.0
    %985 = vmatpush.msra.mxu0 0.0
    %986 = vmatpush.msra.mxu0 0.0
    %987 = vmatpush.msra.mxu0 0.0
    %988 = vmatpush.msra.mxu0 0.0
    %989 = vmatpush.msra.mxu0 0.0
    %990 = vmatpush.msra.mxu0 0.0
    %991 = vmatpush.msra.mxu0 0.0
    %992 = vmatpush.msra.mxu0 %v930
    %993 = vmatpush.msra.mxu0 %v928
    %994 = vmatpush.msra.mxu0 %v926
    %995 = vmatpush.msra.mxu0 %v924
    %996 = vmatmul.f32.gmra.mxu0 %v933
    %v997 = vpop.f32.mrf.mxu0
    %v998 = vadd.f32 0.0, %v997
    %999 = vmatmul.f32.gmra.mxu0 %v936
    %v1000 = vpop.f32.mrf.mxu0
    %v1001 = vadd.f32 0.0, %v1000
    %1002 = vmatmul.f32.gmra.mxu0 %v939
    %v1003 = vpop.f32.mrf.mxu0
    %v1004 = vadd.f32 0.0, %v1003
    %1005 = vmatmul.f32.gmra.mxu0 %v942
    %v1006 = vpop.f32.mrf.mxu0
    %v1007 = vadd.f32 0.0, %v1006
    %1008 = vmatmul.f32.gmra.mxu0 %v945
    %v1009 = vpop.f32.mrf.mxu0
    %v1010 = vadd.f32 0.0, %v1009
    %1011 = vmatmul.f32.gmra.mxu0 %v948
    %v1012 = vpop.f32.mrf.mxu0
    %v1013 = vadd.f32 0.0, %v1012
    %1014 = vmatmul.f32.gmra.mxu0 %v951
    %v1015 = vpop.f32.mrf.mxu0
    %v1016 = vadd.f32 0.0, %v1015
    %1017 = vmatmul.f32.gmra.mxu0 %v954
    %v1018 = vpop.f32.mrf.mxu0
    %v1019 = vadd.f32 0.0, %v1018
    %1020 = vmatmul.f32.gmra.mxu0 %v957
    %v1021 = vpop.f32.mrf.mxu0
    %v1022 = vadd.f32 0.0, %v1021
    %1023 = vmatmul.f32.gmra.mxu0 %v960
    %v1024 = vpop.f32.mrf.mxu0
    %v1025 = vadd.f32 0.0, %v1024
    %1026 = vmatmul.f32.gmra.mxu0 %v963
    %v1027 = vpop.f32.mrf.mxu0
    %v1028 = vadd.f32 0.0, %v1027
    %1029 = vmatmul.f32.gmra.mxu0 %v966
    %v1030 = vpop.f32.mrf.mxu0
    %v1031 = vadd.f32 0.0, %v1030
    %1032 = vmatmul.f32.gmra.mxu0 %v969
    %v1033 = vpop.f32.mrf.mxu0
    %v1034 = vadd.f32 0.0, %v1033
    %1035 = vmatmul.f32.gmra.mxu0 %v972
    %v1036 = vpop.f32.mrf.mxu0
    %v1037 = vadd.f32 0.0, %v1036
    %1038 = vmatmul.f32.gmra.mxu0 %v975
    %v1039 = vpop.f32.mrf.mxu0
    %v1040 = vadd.f32 0.0, %v1039
    %1041 = vmatmul.f32.gmra.mxu0 %v978
    %v1042 = vpop.f32.mrf.mxu0
    %v1043 = vadd.f32 0.0, %v1042
    %1044 = vdwg.mxu0
    %1045 = vmatpush.msra.mxu0 0.0
    %1046 = vmatpush.msra.mxu0 0.0
    %1047 = vmatpush.msra.mxu0 0.0
    %1048 = vmatpush.msra.mxu0 0.0
    %1049 = vmatpush.msra.mxu0 0.0
    %1050 = vmatpush.msra.mxu0 0.0
    %1051 = vmatpush.msra.mxu0 0.0
    %1052 = vmatpush.msra.mxu0 0.0
    %1053 = vmatpush.msra.mxu0 0.0
    %1054 = vmatpush.msra.mxu0 0.0
    %1055 = vmatpush.msra.mxu0 0.0
    %1056 = vmatpush.msra.mxu0 0.0
    %1057 = vmatpush.msra.mxu0 %v931
    %1058 = vmatpush.msra.mxu0 %v929
    %1059 = vmatpush.msra.mxu0 %v927
    %1060 = vmatpush.msra.mxu0 %v925
    %1061 = vmatmul.f32.gmra.mxu0 %v933
    %v1062 = vpop.f32.mrf.mxu0
    %v1063 = vadd.f32 0.0, %v1062
    %1064 = vmatmul.f32.gmra.mxu0 %v936
    %v1065 = vpop.f32.mrf.mxu0
    %v1066 = vadd.f32 0.0, %v1065
    %1067 = vmatmul.f32.gmra.mxu0 %v939
    %v1068 = vpop.f32.mrf.mxu0
    %v1069 = vadd.f32 0.0, %v1068
    %1070 = vmatmul.f32.gmra.mxu0 %v942
    %v1071 = vpop.f32.mrf.mxu0
    %v1072 = vadd.f32 0.0, %v1071
    %1073 = vmatmul.f32.gmra.mxu0 %v945
    %v1074 = vpop.f32.mrf.mxu0
    %v1075 = vadd.f32 0.0, %v1074
    %1076 = vmatmul.f32.gmra.mxu0 %v948
    %v1077 = vpop.f32.mrf.mxu0
    %v1078 = vadd.f32 0.0, %v1077
    %1079 = vmatmul.f32.gmra.mxu0 %v951
    %v1080 = vpop.f32.mrf.mxu0
    %v1081 = vadd.f32 0.0, %v1080
    %1082 = vmatmul.f32.gmra.mxu0 %v954
    %v1083 = vpop.f32.mrf.mxu0
    %v1084 = vadd.f32 0.0, %v1083
    %1085 = vmatmul.f32.gmra.mxu0 %v957
    %v1086 = vpop.f32.mrf.mxu0
    %v1087 = vadd.f32 0.0, %v1086
    %1088 = vmatmul.f32.gmra.mxu0 %v960
    %v1089 = vpop.f32.mrf.mxu0
    %v1090 = vadd.f32 0.0, %v1089
    %1091 = vmatmul.f32.gmra.mxu0 %v963
    %v1092 = vpop.f32.mrf.mxu0
    %v1093 = vadd.f32 0.0, %v1092
    %1094 = vmatmul.f32.gmra.mxu0 %v966
    %v1095 = vpop.f32.mrf.mxu0
    %v1096 = vadd.f32 0.0, %v1095
    %1097 = vmatmul.f32.gmra.mxu0 %v969
    %v1098 = vpop.f32.mrf.mxu0
    %v1099 = vadd.f32 0.0, %v1098
    %1100 = vmatmul.f32.gmra.mxu0 %v972
    %v1101 = vpop.f32.mrf.mxu0
    %v1102 = vadd.f32 0.0, %v1101
    %1103 = vmatmul.f32.gmra.mxu0 %v975
    %v1104 = vpop.f32.mrf.mxu0
    %v1105 = vadd.f32 0.0, %v1104
    %1106 = vmatmul.f32.gmra.mxu0 %v978
    %v1107 = vpop.f32.mrf.mxu0
    %v1108 = vadd.f32 0.0, %v1107
    %1109 = vdwg.mxu0
    %v1110 = vadd.f32 %v859, %v998
    %v1111 = vadd.f32 %v860, %v1063
    %v1112 = vadd.f32 %v861, %v1001
    %v1113 = vadd.f32 %v862, %v1066
    %v1114 = vadd.f32 %v863, %v1004
    %v1115 = vadd.f32 %v864, %v1069
    %v1116 = vadd.f32 %v865, %v1007
    %v1117 = vadd.f32 %v866, %v1072
    %v1118 = vadd.f32 %v867, %v1010
    %v1119 = vadd.f32 %v868, %v1075
    %v1120 = vadd.f32 %v869, %v1013
    %v1121 = vadd.f32 %v870, %v1078
    %v1122 = vadd.f32 %v871, %v1016
    %v1123 = vadd.f32 %v872, %v1081
    %v1124 = vadd.f32 %v873, %v1019
    %v1125 = vadd.f32 %v874, %v1084
    %v1126 = vadd.f32 %v875, %v1022
    %v1127 = vadd.f32 %v876, %v1087
    %v1128 = vadd.f32 %v877, %v1025
    %v1129 = vadd.f32 %v878, %v1090
    %v1130 = vadd.f32 %v879, %v1028
    %v1131 = vadd.f32 %v880, %v1093
    %v1132 = vadd.f32 %v881, %v1031
    %v1133 = vadd.f32 %v882, %v1096
    %v1134 = vadd.f32 %v883, %v1034
    %v1135 = vadd.f32 %v884, %v1099
    %v1136 = vadd.f32 %v885, %v1037
    %v1137 = vadd.f32 %v886, %v1102
    %v1138 = vadd.f32 %v887, %v1040
    %v1139 = vadd.f32 %v888, %v1105
    %v1140 = vadd.f32 %v889, %v1043
    %v1141 = vadd.f32 %v890, %v1108
    %v1142 = vmul.f32 %v1110, %v1110
    %v1143 = vmul.f32 %v1112, %v1112
    %v1144 = vmul.f32 %v1114, %v1114
    %v1145 = vmul.f32 %v1116, %v1116
    %v1146 = vmul.f32 %v1118, %v1118
    %v1147 = vmul.f32 %v1120, %v1120
    %v1148 = vmul.f32 %v1122, %v1122
    %v1149 = vmul.f32 %v1124, %v1124
    %v1150 = vmul.f32 %v1126, %v1126
    %v1151 = vmul.f32 %v1128, %v1128
    %v1152 = vmul.f32 %v1130, %v1130
    %v1153 = vmul.f32 %v1132, %v1132
    %v1154 = vmul.f32 %v1134, %v1134
    %v1155 = vmul.f32 %v1136, %v1136
    %v1156 = vmul.f32 %v1138, %v1138
    %v1157 = vmul.f32 %v1140, %v1140
    %v1158 = vmul.f32 %v1111, %v1111
    %v1159 = vmul.f32 %v1113, %v1113
    %v1160 = vmul.f32 %v1115, %v1115
    %v1161 = vmul.f32 %v1117, %v1117
    %v1162 = vmul.f32 %v1119, %v1119
    %v1163 = vmul.f32 %v1121, %v1121
    %v1164 = vmul.f32 %v1123, %v1123
    %v1165 = vmul.f32 %v1125, %v1125
    %v1166 = vmul.f32 %v1127, %v1127
    %v1167 = vmul.f32 %v1129, %v1129
    %v1168 = vmul.f32 %v1131, %v1131
    %v1169 = vmul.f32 %v1133, %v1133
    %v1170 = vmul.f32 %v1135, %v1135
    %v1171 = vmul.f32 %v1137, %v1137
    %v1172 = vmul.f32 %v1139, %v1139
    %v1173 = vmul.f32 %v1141, %v1141
    %v1174 = vadd.f32 %v1142, %v1158
    %v1175 = vadd.f32 %v1143, %v1159
    %v1176 = vadd.f32 %v1144, %v1160
    %v1177 = vadd.f32 %v1145, %v1161
    %v1178 = vadd.f32 %v1146, %v1162
    %v1179 = vadd.f32 %v1147, %v1163
    %v1180 = vadd.f32 %v1148, %v1164
    %v1181 = vadd.f32 %v1149, %v1165
    %v1182 = vadd.f32 %v1150, %v1166
    %v1183 = vadd.f32 %v1151, %v1167
    %v1184 = vadd.f32 %v1152, %v1168
    %v1185 = vadd.f32 %v1153, %v1169
    %v1186 = vadd.f32 %v1154, %v1170
    %v1187 = vadd.f32 %v1155, %v1171
    %v1188 = vadd.f32 %v1156, %v1172
    %v1189 = vadd.f32 %v1157, %v1173
    %v1190 = vadd.f32 %v1174, 1e-08
    %v1191 = vadd.f32 %v1175, 1e-08
    %v1192 = vadd.f32 %v1176, 1e-08
    %v1193 = vadd.f32 %v1177, 1e-08
    %v1194 = vadd.f32 %v1178, 1e-08
    %v1195 = vadd.f32 %v1179, 1e-08
    %v1196 = vadd.f32 %v1180, 1e-08
    %v1197 = vadd.f32 %v1181, 1e-08
    %v1198 = vadd.f32 %v1182, 1e-08
    %v1199 = vadd.f32 %v1183, 1e-08
    %v1200 = vadd.f32 %v1184, 1e-08
    %v1201 = vadd.f32 %v1185, 1e-08
    %v1202 = vadd.f32 %v1186, 1e-08
    %v1203 = vadd.f32 %v1187, 1e-08
    %v1204 = vadd.f32 %v1188, 1e-08
    %v1205 = vadd.f32 %v1189, 1e-08
    %v1206 = vrsqrt.pop %v1190
    %v1207 = vmul.f32 %v1206, %v1190
    %v1208 = vmul.f32 %v1207, %v1206
    %v1209 = vmul.f32 0.5, %v1208
    %v1210 = vsub.f32 1.5, %v1209
    %v1211 = vmul.f32 %v1206, %v1210
    %v1212 = vmul.f32 %v1190, %v1211
    %vm1213 = vcmp.eq.f32.partialorder %v1190, inf
    %v1214 = vsel %vm1213, %v1190, %v1212
    %vm1215 = vcmp.eq.f32.partialorder %v1190, 0.0
    %v1216 = vand.u32 %v1190, 2147483648
    %v1217 = vsel %vm1215, %v1216, %v1214
    %v1218 = vrsqrt.pop %v1191
    %v1219 = vmul.f32 %v1218, %v1191
    %v1220 = vmul.f32 %v1219, %v1218
    %v1221 = vmul.f32 0.5, %v1220
    %v1222 = vsub.f32 1.5, %v1221
    %v1223 = vmul.f32 %v1218, %v1222
    %v1224 = vmul.f32 %v1191, %v1223
    %vm1225 = vcmp.eq.f32.partialorder %v1191, inf
    %v1226 = vsel %vm1225, %v1191, %v1224
    %vm1227 = vcmp.eq.f32.partialorder %v1191, 0.0
    %v1228 = vand.u32 %v1191, 2147483648
    %v1229 = vsel %vm1227, %v1228, %v1226
    %v1230 = vrsqrt.pop %v1192
    %v1231 = vmul.f32 %v1230, %v1192
    %v1232 = vmul.f32 %v1231, %v1230
    %v1233 = vmul.f32 0.5, %v1232
    %v1234 = vsub.f32 1.5, %v1233
    %v1235 = vmul.f32 %v1230, %v1234
    %v1236 = vmul.f32 %v1192, %v1235
    %vm1237 = vcmp.eq.f32.partialorder %v1192, inf
    %v1238 = vsel %vm1237, %v1192, %v1236
    %vm1239 = vcmp.eq.f32.partialorder %v1192, 0.0
    %v1240 = vand.u32 %v1192, 2147483648
    %v1241 = vsel %vm1239, %v1240, %v1238
    %v1242 = vrsqrt.pop %v1193
    %v1243 = vmul.f32 %v1242, %v1193
    %v1244 = vmul.f32 %v1243, %v1242
    %v1245 = vmul.f32 0.5, %v1244
    %v1246 = vsub.f32 1.5, %v1245
    %v1247 = vmul.f32 %v1242, %v1246
    %v1248 = vmul.f32 %v1193, %v1247
    %vm1249 = vcmp.eq.f32.partialorder %v1193, inf
    %v1250 = vsel %vm1249, %v1193, %v1248
    %vm1251 = vcmp.eq.f32.partialorder %v1193, 0.0
    %v1252 = vand.u32 %v1193, 2147483648
    %v1253 = vsel %vm1251, %v1252, %v1250
    %v1254 = vrsqrt.pop %v1194
    %v1255 = vmul.f32 %v1254, %v1194
    %v1256 = vmul.f32 %v1255, %v1254
    %v1257 = vmul.f32 0.5, %v1256
    %v1258 = vsub.f32 1.5, %v1257
    %v1259 = vmul.f32 %v1254, %v1258
    %v1260 = vmul.f32 %v1194, %v1259
    %vm1261 = vcmp.eq.f32.partialorder %v1194, inf
    %v1262 = vsel %vm1261, %v1194, %v1260
    %vm1263 = vcmp.eq.f32.partialorder %v1194, 0.0
    %v1264 = vand.u32 %v1194, 2147483648
    %v1265 = vsel %vm1263, %v1264, %v1262
    %v1266 = vrsqrt.pop %v1195
    %v1267 = vmul.f32 %v1266, %v1195
    %v1268 = vmul.f32 %v1267, %v1266
    %v1269 = vmul.f32 0.5, %v1268
    %v1270 = vsub.f32 1.5, %v1269
    %v1271 = vmul.f32 %v1266, %v1270
    %v1272 = vmul.f32 %v1195, %v1271
    %vm1273 = vcmp.eq.f32.partialorder %v1195, inf
    %v1274 = vsel %vm1273, %v1195, %v1272
    %vm1275 = vcmp.eq.f32.partialorder %v1195, 0.0
    %v1276 = vand.u32 %v1195, 2147483648
    %v1277 = vsel %vm1275, %v1276, %v1274
    %v1278 = vrsqrt.pop %v1196
    %v1279 = vmul.f32 %v1278, %v1196
    %v1280 = vmul.f32 %v1279, %v1278
    %v1281 = vmul.f32 0.5, %v1280
    %v1282 = vsub.f32 1.5, %v1281
    %v1283 = vmul.f32 %v1278, %v1282
    %v1284 = vmul.f32 %v1196, %v1283
    %vm1285 = vcmp.eq.f32.partialorder %v1196, inf
    %v1286 = vsel %vm1285, %v1196, %v1284
    %vm1287 = vcmp.eq.f32.partialorder %v1196, 0.0
    %v1288 = vand.u32 %v1196, 2147483648
    %v1289 = vsel %vm1287, %v1288, %v1286
    %v1290 = vrsqrt.pop %v1197
    %v1291 = vmul.f32 %v1290, %v1197
    %v1292 = vmul.f32 %v1291, %v1290
    %v1293 = vmul.f32 0.5, %v1292
    %v1294 = vsub.f32 1.5, %v1293
    %v1295 = vmul.f32 %v1290, %v1294
    %v1296 = vmul.f32 %v1197, %v1295
    %vm1297 = vcmp.eq.f32.partialorder %v1197, inf
    %v1298 = vsel %vm1297, %v1197, %v1296
    %vm1299 = vcmp.eq.f32.partialorder %v1197, 0.0
    %v1300 = vand.u32 %v1197, 2147483648
    %v1301 = vsel %vm1299, %v1300, %v1298
    %v1302 = vrsqrt.pop %v1198
    %v1303 = vmul.f32 %v1302, %v1198
    %v1304 = vmul.f32 %v1303, %v1302
    %v1305 = vmul.f32 0.5, %v1304
    %v1306 = vsub.f32 1.5, %v1305
    %v1307 = vmul.f32 %v1302, %v1306
    %v1308 = vmul.f32 %v1198, %v1307
    %vm1309 = vcmp.eq.f32.partialorder %v1198, inf
    %v1310 = vsel %vm1309, %v1198, %v1308
    %vm1311 = vcmp.eq.f32.partialorder %v1198, 0.0
    %v1312 = vand.u32 %v1198, 2147483648
    %v1313 = vsel %vm1311, %v1312, %v1310
    %v1314 = vrsqrt.pop %v1199
    %v1315 = vmul.f32 %v1314, %v1199
    %v1316 = vmul.f32 %v1315, %v1314
    %v1317 = vmul.f32 0.5, %v1316
    %v1318 = vsub.f32 1.5, %v1317
    %v1319 = vmul.f32 %v1314, %v1318
    %v1320 = vmul.f32 %v1199, %v1319
    %vm1321 = vcmp.eq.f32.partialorder %v1199, inf
    %v1322 = vsel %vm1321, %v1199, %v1320
    %vm1323 = vcmp.eq.f32.partialorder %v1199, 0.0
    %v1324 = vand.u32 %v1199, 2147483648
    %v1325 = vsel %vm1323, %v1324, %v1322
    %v1326 = vrsqrt.pop %v1200
    %v1327 = vmul.f32 %v1326, %v1200
    %v1328 = vmul.f32 %v1327, %v1326
    %v1329 = vmul.f32 0.5, %v1328
    %v1330 = vsub.f32 1.5, %v1329
    %v1331 = vmul.f32 %v1326, %v1330
    %v1332 = vmul.f32 %v1200, %v1331
    %vm1333 = vcmp.eq.f32.partialorder %v1200, inf
    %v1334 = vsel %vm1333, %v1200, %v1332
    %vm1335 = vcmp.eq.f32.partialorder %v1200, 0.0
    %v1336 = vand.u32 %v1200, 2147483648
    %v1337 = vsel %vm1335, %v1336, %v1334
    %v1338 = vrsqrt.pop %v1201
    %v1339 = vmul.f32 %v1338, %v1201
    %v1340 = vmul.f32 %v1339, %v1338
    %v1341 = vmul.f32 0.5, %v1340
    %v1342 = vsub.f32 1.5, %v1341
    %v1343 = vmul.f32 %v1338, %v1342
    %v1344 = vmul.f32 %v1201, %v1343
    %vm1345 = vcmp.eq.f32.partialorder %v1201, inf
    %v1346 = vsel %vm1345, %v1201, %v1344
    %vm1347 = vcmp.eq.f32.partialorder %v1201, 0.0
    %v1348 = vand.u32 %v1201, 2147483648
    %v1349 = vsel %vm1347, %v1348, %v1346
    %v1350 = vrsqrt.pop %v1202
    %v1351 = vmul.f32 %v1350, %v1202
    %v1352 = vmul.f32 %v1351, %v1350
    %v1353 = vmul.f32 0.5, %v1352
    %v1354 = vsub.f32 1.5, %v1353
    %v1355 = vmul.f32 %v1350, %v1354
    %v1356 = vmul.f32 %v1202, %v1355
    %vm1357 = vcmp.eq.f32.partialorder %v1202, inf
    %v1358 = vsel %vm1357, %v1202, %v1356
    %vm1359 = vcmp.eq.f32.partialorder %v1202, 0.0
    %v1360 = vand.u32 %v1202, 2147483648
    %v1361 = vsel %vm1359, %v1360, %v1358
    %v1362 = vrsqrt.pop %v1203
    %v1363 = vmul.f32 %v1362, %v1203
    %v1364 = vmul.f32 %v1363, %v1362
    %v1365 = vmul.f32 0.5, %v1364
    %v1366 = vsub.f32 1.5, %v1365
    %v1367 = vmul.f32 %v1362, %v1366
    %v1368 = vmul.f32 %v1203, %v1367
    %vm1369 = vcmp.eq.f32.partialorder %v1203, inf
    %v1370 = vsel %vm1369, %v1203, %v1368
    %vm1371 = vcmp.eq.f32.partialorder %v1203, 0.0
    %v1372 = vand.u32 %v1203, 2147483648
    %v1373 = vsel %vm1371, %v1372, %v1370
    %v1374 = vrsqrt.pop %v1204
    %v1375 = vmul.f32 %v1374, %v1204
    %v1376 = vmul.f32 %v1375, %v1374
    %v1377 = vmul.f32 0.5, %v1376
    %v1378 = vsub.f32 1.5, %v1377
    %v1379 = vmul.f32 %v1374, %v1378
    %v1380 = vmul.f32 %v1204, %v1379
    %vm1381 = vcmp.eq.f32.partialorder %v1204, inf
    %v1382 = vsel %vm1381, %v1204, %v1380
    %vm1383 = vcmp.eq.f32.partialorder %v1204, 0.0
    %v1384 = vand.u32 %v1204, 2147483648
    %v1385 = vsel %vm1383, %v1384, %v1382
    %v1386 = vrsqrt.pop %v1205
    %v1387 = vmul.f32 %v1386, %v1205
    %v1388 = vmul.f32 %v1387, %v1386
    %v1389 = vmul.f32 0.5, %v1388
    %v1390 = vsub.f32 1.5, %v1389
    %v1391 = vmul.f32 %v1386, %v1390
    %v1392 = vmul.f32 %v1205, %v1391
    %vm1393 = vcmp.eq.f32.partialorder %v1205, inf
    %v1394 = vsel %vm1393, %v1205, %v1392
    %vm1395 = vcmp.eq.f32.partialorder %v1205, 0.0
    %v1396 = vand.u32 %v1205, 2147483648
    %v1397 = vsel %vm1395, %v1396, %v1394
    %v1398 = vld [vmem:[#allocation5] sm:$0xff]
    %v1399 = vld [vmem:[#allocation5 + $0x8] sm:$0xff]
    %v1400 = vld [vmem:[#allocation5 + $0x10] sm:$0xff]
    %v1401 = vld [vmem:[#allocation5 + $0x18] sm:$0xff]
    %v1402 = vld [vmem:[#allocation5 + $0x20] sm:$0xff]
    %v1403 = vld [vmem:[#allocation5 + $0x28] sm:$0xff]
    %v1404 = vld [vmem:[#allocation5 + $0x30] sm:$0xff]
    %v1405 = vld [vmem:[#allocation5 + $0x38] sm:$0xff]
    %v1406 = vld [vmem:[#allocation5 + $0x40] sm:$0xff]
    %v1407 = vld [vmem:[#allocation5 + $0x48] sm:$0xff]
    %v1408 = vld [vmem:[#allocation5 + $0x50] sm:$0xff]
    %v1409 = vld [vmem:[#allocation5 + $0x58] sm:$0xff]
    %v1410 = vld [vmem:[#allocation5 + $0x60] sm:$0xff]
    %v1411 = vld [vmem:[#allocation5 + $0x68] sm:$0xff]
    %v1412 = vld [vmem:[#allocation5 + $0x70] sm:$0xff]
    %v1413 = vld [vmem:[#allocation5 + $0x78] sm:$0xff]
    %1414 = vmatpush.msra.mxu0 %v1413
    %1415 = vmatpush.msra.mxu0 %v1412
    %1416 = vmatpush.msra.mxu0 %v1411
    %1417 = vmatpush.msra.mxu0 %v1410
    %1418 = vmatpush.msra.mxu0 %v1409
    %1419 = vmatpush.msra.mxu0 %v1408
    %1420 = vmatpush.msra.mxu0 %v1407
    %1421 = vmatpush.msra.mxu0 %v1406
    %1422 = vmatpush.msra.mxu0 %v1405
    %1423 = vmatpush.msra.mxu0 %v1404
    %1424 = vmatpush.msra.mxu0 %v1403
    %1425 = vmatpush.msra.mxu0 %v1402
    %1426 = vmatpush.msra.mxu0 %v1401
    %1427 = vmatpush.msra.mxu0 %v1400
    %1428 = vmatpush.msra.mxu0 %v1399
    %1429 = vmatpush.msra.mxu0 %v1398
    %1430 = vmatmul.f32.gmra.mxu0 %v1217
    %v1431 = vpop.f32.mrf.mxu0
    %v1432 = vadd.f32 1e-06, %v1431
    %1433 = vmatmul.f32.gmra.mxu0 %v1229
    %v1434 = vpop.f32.mrf.mxu0
    %v1435 = vadd.f32 1e-06, %v1434
    %1436 = vmatmul.f32.gmra.mxu0 %v1241
    %v1437 = vpop.f32.mrf.mxu0
    %v1438 = vadd.f32 1e-06, %v1437
    %1439 = vmatmul.f32.gmra.mxu0 %v1253
    %v1440 = vpop.f32.mrf.mxu0
    %v1441 = vadd.f32 1e-06, %v1440
    %1442 = vmatmul.f32.gmra.mxu0 %v1265
    %v1443 = vpop.f32.mrf.mxu0
    %v1444 = vadd.f32 1e-06, %v1443
    %1445 = vmatmul.f32.gmra.mxu0 %v1277
    %v1446 = vpop.f32.mrf.mxu0
    %v1447 = vadd.f32 1e-06, %v1446
    %1448 = vmatmul.f32.gmra.mxu0 %v1289
    %v1449 = vpop.f32.mrf.mxu0
    %v1450 = vadd.f32 1e-06, %v1449
    %1451 = vmatmul.f32.gmra.mxu0 %v1301
    %v1452 = vpop.f32.mrf.mxu0
    %v1453 = vadd.f32 1e-06, %v1452
    %1454 = vmatmul.f32.gmra.mxu0 %v1313
    %v1455 = vpop.f32.mrf.mxu0
    %v1456 = vadd.f32 1e-06, %v1455
    %1457 = vmatmul.f32.gmra.mxu0 %v1325
    %v1458 = vpop.f32.mrf.mxu0
    %v1459 = vadd.f32 1e-06, %v1458
    %1460 = vmatmul.f32.gmra.mxu0 %v1337
    %v1461 = vpop.f32.mrf.mxu0
    %v1462 = vadd.f32 1e-06, %v1461
    %1463 = vmatmul.f32.gmra.mxu0 %v1349
    %v1464 = vpop.f32.mrf.mxu0
    %v1465 = vadd.f32 1e-06, %v1464
    %1466 = vmatmul.f32.gmra.mxu0 %v1361
    %v1467 = vpop.f32.mrf.mxu0
    %v1468 = vadd.f32 1e-06, %v1467
    %1469 = vmatmul.f32.gmra.mxu0 %v1373
    %v1470 = vpop.f32.mrf.mxu0
    %v1471 = vadd.f32 1e-06, %v1470
    %1472 = vmatmul.f32.gmra.mxu0 %v1385
    %v1473 = vpop.f32.mrf.mxu0
    %v1474 = vadd.f32 1e-06, %v1473
    %1475 = vmatmul.f32.gmra.mxu0 %v1397
    %v1476 = vpop.f32.mrf.mxu0
    %v1477 = vadd.f32 1e-06, %v1476
    %1478 = vdwg.mxu0
    %v1479 = vlog2.pop %v1432
    %v1480 = vmul.f32 %v1479, 0.6931472
    %v1481 = vlog2.pop %v1435
    %v1482 = vmul.f32 %v1481, 0.6931472
    %v1483 = vlog2.pop %v1438
    %v1484 = vmul.f32 %v1483, 0.6931472
    %v1485 = vlog2.pop %v1441
    %v1486 = vmul.f32 %v1485, 0.6931472
    %v1487 = vlog2.pop %v1444
    %v1488 = vmul.f32 %v1487, 0.6931472
    %v1489 = vlog2.pop %v1447
    %v1490 = vmul.f32 %v1489, 0.6931472
    %v1491 = vlog2.pop %v1450
    %v1492 = vmul.f32 %v1491, 0.6931472
    %v1493 = vlog2.pop %v1453
    %v1494 = vmul.f32 %v1493, 0.6931472
    %v1495 = vlog2.pop %v1456
    %v1496 = vmul.f32 %v1495, 0.6931472
    %v1497 = vlog2.pop %v1459
    %v1498 = vmul.f32 %v1497, 0.6931472
    %v1499 = vlog2.pop %v1462
    %v1500 = vmul.f32 %v1499, 0.6931472
    %v1501 = vlog2.pop %v1465
    %v1502 = vmul.f32 %v1501, 0.6931472
    %v1503 = vlog2.pop %v1468
    %v1504 = vmul.f32 %v1503, 0.6931472
    %v1505 = vlog2.pop %v1471
    %v1506 = vmul.f32 %v1505, 0.6931472
    %v1507 = vlog2.pop %v1474
    %v1508 = vmul.f32 %v1507, 0.6931472
    %v1509 = vlog2.pop %v1477
    %v1510 = vmul.f32 %v1509, 0.6931472
    %v1511 = vmul.f32 %v1480, 0.6
    %v1512 = vmul.f32 %v1482, 0.6
    %v1513 = vmul.f32 %v1484, 0.6
    %v1514 = vmul.f32 %v1486, 0.6
    %v1515 = vmul.f32 %v1488, 0.6
    %v1516 = vmul.f32 %v1490, 0.6
    %v1517 = vmul.f32 %v1492, 0.6
    %v1518 = vmul.f32 %v1494, 0.6
    %v1519 = vmul.f32 %v1496, 0.6
    %v1520 = vmul.f32 %v1498, 0.6
    %v1521 = vmul.f32 %v1500, 0.6
    %v1522 = vmul.f32 %v1502, 0.6
    %v1523 = vmul.f32 %v1504, 0.6
    %v1524 = vmul.f32 %v1506, 0.6
    %v1525 = vmul.f32 %v1508, 0.6
    %v1526 = vmul.f32 %v1510, 0.6
    %v1527 = vmul.f32 %v1511, 1.442695
    %v1528 = vpow.pop %v1527
    %v1529 = vmul.f32 %v1512, 1.442695
    %v1530 = vpow.pop %v1529
    %v1531 = vmul.f32 %v1513, 1.442695
    %v1532 = vpow.pop %v1531
    %v1533 = vmul.f32 %v1514, 1.442695
    %v1534 = vpow.pop %v1533
    %v1535 = vmul.f32 %v1515, 1.442695
    %v1536 = vpow.pop %v1535
    %v1537 = vmul.f32 %v1516, 1.442695
    %v1538 = vpow.pop %v1537
    %v1539 = vmul.f32 %v1517, 1.442695
    %v1540 = vpow.pop %v1539
    %v1541 = vmul.f32 %v1518, 1.442695
    %v1542 = vpow.pop %v1541
    %v1543 = vmul.f32 %v1519, 1.442695
    %v1544 = vpow.pop %v1543
    %v1545 = vmul.f32 %v1520, 1.442695
    %v1546 = vpow.pop %v1545
    %v1547 = vmul.f32 %v1521, 1.442695
    %v1548 = vpow.pop %v1547
    %v1549 = vmul.f32 %v1522, 1.442695
    %v1550 = vpow.pop %v1549
    %v1551 = vmul.f32 %v1523, 1.442695
    %v1552 = vpow.pop %v1551
    %v1553 = vmul.f32 %v1524, 1.442695
    %v1554 = vpow.pop %v1553
    %v1555 = vmul.f32 %v1525, 1.442695
    %v1556 = vpow.pop %v1555
    %v1557 = vmul.f32 %v1526, 1.442695
    %v1558 = vpow.pop %v1557
    %v1559 = vrcp.pop %v1528
    %v1560 = vrcp.pop %v1530
    %v1561 = vrcp.pop %v1532
    %v1562 = vrcp.pop %v1534
    %v1563 = vrcp.pop %v1536
    %v1564 = vrcp.pop %v1538
    %v1565 = vrcp.pop %v1540
    %v1566 = vrcp.pop %v1542
    %v1567 = vrcp.pop %v1544
    %v1568 = vrcp.pop %v1546
    %v1569 = vrcp.pop %v1548
    %v1570 = vrcp.pop %v1550
    %v1571 = vrcp.pop %v1552
    %v1572 = vrcp.pop %v1554
    %v1573 = vrcp.pop %v1556
    %v1574 = vrcp.pop %v1558
    %v1575 = vmul.f32 %v1217, %v1559
    %v1576 = vmul.f32 %v1229, %v1560
    %v1577 = vmul.f32 %v1241, %v1561
    %v1578 = vmul.f32 %v1253, %v1562
    %v1579 = vmul.f32 %v1265, %v1563
    %v1580 = vmul.f32 %v1277, %v1564
    %v1581 = vmul.f32 %v1289, %v1565
    %v1582 = vmul.f32 %v1301, %v1566
    %v1583 = vmul.f32 %v1313, %v1567
    %v1584 = vmul.f32 %v1325, %v1568
    %v1585 = vmul.f32 %v1337, %v1569
    %v1586 = vmul.f32 %v1349, %v1570
    %v1587 = vmul.f32 %v1361, %v1571
    %v1588 = vmul.f32 %v1373, %v1572
    %v1589 = vmul.f32 %v1385, %v1573
    %v1590 = vmul.f32 %v1397, %v1574
    %v1591 = vadd.f32 %v1575, 0.1
    %v1592 = vadd.f32 %v1576, 0.1
    %v1593 = vadd.f32 %v1577, 0.1
    %v1594 = vadd.f32 %v1578, 0.1
    %v1595 = vadd.f32 %v1579, 0.1
    %v1596 = vadd.f32 %v1580, 0.1
    %v1597 = vadd.f32 %v1581, 0.1
    %v1598 = vadd.f32 %v1582, 0.1
    %v1599 = vadd.f32 %v1583, 0.1
    %v1600 = vadd.f32 %v1584, 0.1
    %v1601 = vadd.f32 %v1585, 0.1
    %v1602 = vadd.f32 %v1586, 0.1
    %v1603 = vadd.f32 %v1587, 0.1
    %v1604 = vadd.f32 %v1588, 0.1
    %v1605 = vadd.f32 %v1589, 0.1
    %v1606 = vadd.f32 %v1590, 0.1
    %v1607 = vlog2.pop %v1591
    %v1608 = vmul.f32 %v1607, 0.6931472
    %v1609 = vlog2.pop %v1592
    %v1610 = vmul.f32 %v1609, 0.6931472
    %v1611 = vlog2.pop %v1593
    %v1612 = vmul.f32 %v1611, 0.6931472
    %v1613 = vlog2.pop %v1594
    %v1614 = vmul.f32 %v1613, 0.6931472
    %v1615 = vlog2.pop %v1595
    %v1616 = vmul.f32 %v1615, 0.6931472
    %v1617 = vlog2.pop %v1596
    %v1618 = vmul.f32 %v1617, 0.6931472
    %v1619 = vlog2.pop %v1597
    %v1620 = vmul.f32 %v1619, 0.6931472
    %v1621 = vlog2.pop %v1598
    %v1622 = vmul.f32 %v1621, 0.6931472
    %v1623 = vlog2.pop %v1599
    %v1624 = vmul.f32 %v1623, 0.6931472
    %v1625 = vlog2.pop %v1600
    %v1626 = vmul.f32 %v1625, 0.6931472
    %v1627 = vlog2.pop %v1601
    %v1628 = vmul.f32 %v1627, 0.6931472
    %v1629 = vlog2.pop %v1602
    %v1630 = vmul.f32 %v1629, 0.6931472
    %v1631 = vlog2.pop %v1603
    %v1632 = vmul.f32 %v1631, 0.6931472
    %v1633 = vlog2.pop %v1604
    %v1634 = vmul.f32 %v1633, 0.6931472
    %v1635 = vlog2.pop %v1605
    %v1636 = vmul.f32 %v1635, 0.6931472
    %v1637 = vlog2.pop %v1606
    %v1638 = vmul.f32 %v1637, 0.6931472
    %v1639 = vmul.f32 %v1608, 0.2
    %v1640 = vmul.f32 %v1610, 0.2
    %v1641 = vmul.f32 %v1612, 0.2
    %v1642 = vmul.f32 %v1614, 0.2
    %v1643 = vmul.f32 %v1616, 0.2
    %v1644 = vmul.f32 %v1618, 0.2
    %v1645 = vmul.f32 %v1620, 0.2
    %v1646 = vmul.f32 %v1622, 0.2
    %v1647 = vmul.f32 %v1624, 0.2
    %v1648 = vmul.f32 %v1626, 0.2
    %v1649 = vmul.f32 %v1628, 0.2
    %v1650 = vmul.f32 %v1630, 0.2
    %v1651 = vmul.f32 %v1632, 0.2
    %v1652 = vmul.f32 %v1634, 0.2
    %v1653 = vmul.f32 %v1636, 0.2
    %v1654 = vmul.f32 %v1638, 0.2
    %v1655 = vmul.f32 %v1639, 1.442695
    %v1656 = vpow.pop %v1655
    %v1657 = vmul.f32 %v1640, 1.442695
    %v1658 = vpow.pop %v1657
    %v1659 = vmul.f32 %v1641, 1.442695
    %v1660 = vpow.pop %v1659
    %v1661 = vmul.f32 %v1642, 1.442695
    %v1662 = vpow.pop %v1661
    %v1663 = vmul.f32 %v1643, 1.442695
    %v1664 = vpow.pop %v1663
    %v1665 = vmul.f32 %v1644, 1.442695
    %v1666 = vpow.pop %v1665
    %v1667 = vmul.f32 %v1645, 1.442695
    %v1668 = vpow.pop %v1667
    %v1669 = vmul.f32 %v1646, 1.442695
    %v1670 = vpow.pop %v1669
    %v1671 = vmul.f32 %v1647, 1.442695
    %v1672 = vpow.pop %v1671
    %v1673 = vmul.f32 %v1648, 1.442695
    %v1674 = vpow.pop %v1673
    %v1675 = vmul.f32 %v1649, 1.442695
    %v1676 = vpow.pop %v1675
    %v1677 = vmul.f32 %v1650, 1.442695
    %v1678 = vpow.pop %v1677
    %v1679 = vmul.f32 %v1651, 1.442695
    %v1680 = vpow.pop %v1679
    %v1681 = vmul.f32 %v1652, 1.442695
    %v1682 = vpow.pop %v1681
    %v1683 = vmul.f32 %v1653, 1.442695
    %v1684 = vpow.pop %v1683
    %v1685 = vmul.f32 %v1654, 1.442695
    %v1686 = vpow.pop %v1685
    %v1687 = vsub.f32 %v1656, 0.63095737
    %v1688 = vsub.f32 %v1658, 0.63095737
    %v1689 = vsub.f32 %v1660, 0.63095737
    %v1690 = vsub.f32 %v1662, 0.63095737
    %v1691 = vsub.f32 %v1664, 0.63095737
    %v1692 = vsub.f32 %v1666, 0.63095737
    %v1693 = vsub.f32 %v1668, 0.63095737
    %v1694 = vsub.f32 %v1670, 0.63095737
    %v1695 = vsub.f32 %v1672, 0.63095737
    %v1696 = vsub.f32 %v1674, 0.63095737
    %v1697 = vsub.f32 %v1676, 0.63095737
    %v1698 = vsub.f32 %v1678, 0.63095737
    %v1699 = vsub.f32 %v1680, 0.63095737
    %v1700 = vsub.f32 %v1682, 0.63095737
    %v1701 = vsub.f32 %v1684, 0.63095737
    %v1702 = vsub.f32 %v1686, 0.63095737
    %v1703 = vlaneseq
    %v1704 = vand.u32 %v1703, 127
    %vm1705 = vcmp.lt.s32.totalorder %v1704, 65
    %v1706 = vsel %vm1705, %v1687, -inf
    %v1707 = vsel %vm1705, %v1688, -inf
    %v1708 = vsel %vm1705, %v1689, -inf
    %v1709 = vsel %vm1705, %v1690, -inf
    %v1710 = vsel %vm1705, %v1691, -inf
    %v1711 = vsel %vm1705, %v1692, -inf
    %v1712 = vsel %vm1705, %v1693, -inf
    %v1713 = vsel %vm1705, %v1694, -inf
    %v1714 = vsel %vm1705, %v1695, -inf
    %v1715 = vsel %vm1705, %v1696, -inf
    %v1716 = vsel %vm1705, %v1697, -inf
    %v1717 = vsel %vm1705, %v1698, -inf
    %v1718 = vsel %vm1705, %v1699, -inf
    %v1719 = vsel %vm1705, %v1700, -inf
    %v1720 = vsel %vm1705, %v1701, -inf
    %v1721 = vsel %vm1705, %v1702, -inf
    %1722 = vmax.xlane.f32.xlu0 %v1706
    %v1723 = vpop.xlane.xlu0 %1722
    %1724 = vmax.xlane.f32.xlu0 %v1707
    %v1725 = vpop.xlane.xlu0 %1724
    %1726 = vmax.xlane.f32.xlu0 %v1708
    %v1727 = vpop.xlane.xlu0 %1726
    %1728 = vmax.xlane.f32.xlu0 %v1709
    %v1729 = vpop.xlane.xlu0 %1728
    %1730 = vmax.xlane.f32.xlu0 %v1710
    %v1731 = vpop.xlane.xlu0 %1730
    %1732 = vmax.xlane.f32.xlu0 %v1711
    %v1733 = vpop.xlane.xlu0 %1732
    %1734 = vmax.xlane.f32.xlu0 %v1712
    %v1735 = vpop.xlane.xlu0 %1734
    %1736 = vmax.xlane.f32.xlu0 %v1713
    %v1737 = vpop.xlane.xlu0 %1736
    %1738 = vmax.xlane.f32.xlu0 %v1714
    %v1739 = vpop.xlane.xlu0 %1738
    %1740 = vmax.xlane.f32.xlu0 %v1715
    %v1741 = vpop.xlane.xlu0 %1740
    %1742 = vmax.xlane.f32.xlu0 %v1716
    %v1743 = vpop.xlane.xlu0 %1742
    %1744 = vmax.xlane.f32.xlu0 %v1717
    %v1745 = vpop.xlane.xlu0 %1744
    %1746 = vmax.xlane.f32.xlu0 %v1718
    %v1747 = vpop.xlane.xlu0 %1746
    %1748 = vmax.xlane.f32.xlu0 %v1719
    %v1749 = vpop.xlane.xlu0 %1748
    %1750 = vmax.xlane.f32.xlu0 %v1720
    %v1751 = vpop.xlane.xlu0 %1750
    %1752 = vmax.xlane.f32.xlu0 %v1721
    %v1753 = vpop.xlane.xlu0 %1752
    %v1754 = vsel %vm1705, %v1687, inf
    %v1755 = vsel %vm1705, %v1688, inf
    %v1756 = vsel %vm1705, %v1689, inf
    %v1757 = vsel %vm1705, %v1690, inf
    %v1758 = vsel %vm1705, %v1691, inf
    %v1759 = vsel %vm1705, %v1692, inf
    %v1760 = vsel %vm1705, %v1693, inf
    %v1761 = vsel %vm1705, %v1694, inf
    %v1762 = vsel %vm1705, %v1695, inf
    %v1763 = vsel %vm1705, %v1696, inf
    %v1764 = vsel %vm1705, %v1697, inf
    %v1765 = vsel %vm1705, %v1698, inf
    %v1766 = vsel %vm1705, %v1699, inf
    %v1767 = vsel %vm1705, %v1700, inf
    %v1768 = vsel %vm1705, %v1701, inf
    %v1769 = vsel %vm1705, %v1702, inf
    %1770 = vmin.xlane.f32.xlu0 %v1754
    %v1771 = vpop.xlane.xlu0 %1770
    %1772 = vmin.xlane.f32.xlu0 %v1755
    %v1773 = vpop.xlane.xlu0 %1772
    %1774 = vmin.xlane.f32.xlu0 %v1756
    %v1775 = vpop.xlane.xlu0 %1774
    %1776 = vmin.xlane.f32.xlu0 %v1757
    %v1777 = vpop.xlane.xlu0 %1776
    %1778 = vmin.xlane.f32.xlu0 %v1758
    %v1779 = vpop.xlane.xlu0 %1778
    %1780 = vmin.xlane.f32.xlu0 %v1759
    %v1781 = vpop.xlane.xlu0 %1780
    %1782 = vmin.xlane.f32.xlu0 %v1760
    %v1783 = vpop.xlane.xlu0 %1782
    %1784 = vmin.xlane.f32.xlu0 %v1761
    %v1785 = vpop.xlane.xlu0 %1784
    %1786 = vmin.xlane.f32.xlu0 %v1762
    %v1787 = vpop.xlane.xlu0 %1786
    %1788 = vmin.xlane.f32.xlu0 %v1763
    %v1789 = vpop.xlane.xlu0 %1788
    %1790 = vmin.xlane.f32.xlu0 %v1764
    %v1791 = vpop.xlane.xlu0 %1790
    %1792 = vmin.xlane.f32.xlu0 %v1765
    %v1793 = vpop.xlane.xlu0 %1792
    %1794 = vmin.xlane.f32.xlu0 %v1766
    %v1795 = vpop.xlane.xlu0 %1794
    %1796 = vmin.xlane.f32.xlu0 %v1767
    %v1797 = vpop.xlane.xlu0 %1796
    %1798 = vmin.xlane.f32.xlu0 %v1768
    %v1799 = vpop.xlane.xlu0 %1798
    %1800 = vmin.xlane.f32.xlu0 %v1769
    %v1801 = vpop.xlane.xlu0 %1800
    %v1802 = vsub.f32 %v1723, %v1771
    %v1803 = vsub.f32 %v1725, %v1773
    %v1804 = vsub.f32 %v1727, %v1775
    %v1805 = vsub.f32 %v1729, %v1777
    %v1806 = vsub.f32 %v1731, %v1779
    %v1807 = vsub.f32 %v1733, %v1781
    %v1808 = vsub.f32 %v1735, %v1783
    %v1809 = vsub.f32 %v1737, %v1785
    %v1810 = vsub.f32 %v1739, %v1787
    %v1811 = vsub.f32 %v1741, %v1789
    %v1812 = vsub.f32 %v1743, %v1791
    %v1813 = vsub.f32 %v1745, %v1793
    %v1814 = vsub.f32 %v1747, %v1795
    %v1815 = vsub.f32 %v1749, %v1797
    %v1816 = vsub.f32 %v1751, %v1799
    %v1817 = vsub.f32 %v1753, %v1801
    %vm1818 = vcmp.gt.f32.partialorder %v1802, 0.0
    %vm1819 = vcmp.gt.f32.partialorder %v1803, 0.0
    %vm1820 = vcmp.gt.f32.partialorder %v1804, 0.0
    %vm1821 = vcmp.gt.f32.partialorder %v1805, 0.0
    %vm1822 = vcmp.gt.f32.partialorder %v1806, 0.0
    %vm1823 = vcmp.gt.f32.partialorder %v1807, 0.0
    %vm1824 = vcmp.gt.f32.partialorder %v1808, 0.0
    %vm1825 = vcmp.gt.f32.partialorder %v1809, 0.0
    %vm1826 = vcmp.gt.f32.partialorder %v1810, 0.0
    %vm1827 = vcmp.gt.f32.partialorder %v1811, 0.0
    %vm1828 = vcmp.gt.f32.partialorder %v1812, 0.0
    %vm1829 = vcmp.gt.f32.partialorder %v1813, 0.0
    %vm1830 = vcmp.gt.f32.partialorder %v1814, 0.0
    %vm1831 = vcmp.gt.f32.partialorder %v1815, 0.0
    %vm1832 = vcmp.gt.f32.partialorder %v1816, 0.0
    %vm1833 = vcmp.gt.f32.partialorder %v1817, 0.0
    %v1834 = vsel %vm1818, %v1802, 1.0
    %v1835 = vsel %vm1819, %v1803, 1.0
    %v1836 = vsel %vm1820, %v1804, 1.0
    %v1837 = vsel %vm1821, %v1805, 1.0
    %v1838 = vsel %vm1822, %v1806, 1.0
    %v1839 = vsel %vm1823, %v1807, 1.0
    %v1840 = vsel %vm1824, %v1808, 1.0
    %v1841 = vsel %vm1825, %v1809, 1.0
    %v1842 = vsel %vm1826, %v1810, 1.0
    %v1843 = vsel %vm1827, %v1811, 1.0
    %v1844 = vsel %vm1828, %v1812, 1.0
    %v1845 = vsel %vm1829, %v1813, 1.0
    %v1846 = vsel %vm1830, %v1814, 1.0
    %v1847 = vsel %vm1831, %v1815, 1.0
    %v1848 = vsel %vm1832, %v1816, 1.0
    %v1849 = vsel %vm1833, %v1817, 1.0
    %v1850 = vrcp.pop %v1834
    %v1851 = vrcp.pop %v1835
    %v1852 = vrcp.pop %v1836
    %v1853 = vrcp.pop %v1837
    %v1854 = vrcp.pop %v1838
    %v1855 = vrcp.pop %v1839
    %v1856 = vrcp.pop %v1840
    %v1857 = vrcp.pop %v1841
    %v1858 = vrcp.pop %v1842
    %v1859 = vrcp.pop %v1843
    %v1860 = vrcp.pop %v1844
    %v1861 = vrcp.pop %v1845
    %v1862 = vrcp.pop %v1846
    %v1863 = vrcp.pop %v1847
    %v1864 = vrcp.pop %v1848
    %v1865 = vrcp.pop %v1849
    %v1866 = vsel %vm1818, 1, 0
    %v1867 = vsel %vm1819, 1, 0
    %v1868 = vsel %vm1820, 1, 0
    %v1869 = vsel %vm1821, 1, 0
    %v1870 = vsel %vm1822, 1, 0
    %v1871 = vsel %vm1823, 1, 0
    %v1872 = vsel %vm1824, 1, 0
    %v1873 = vsel %vm1825, 1, 0
    %v1874 = vsel %vm1826, 1, 0
    %v1875 = vsel %vm1827, 1, 0
    %v1876 = vsel %vm1828, 1, 0
    %v1877 = vsel %vm1829, 1, 0
    %v1878 = vsel %vm1830, 1, 0
    %v1879 = vsel %vm1831, 1, 0
    %v1880 = vsel %vm1832, 1, 0
    %v1881 = vsel %vm1833, 1, 0
    %vm1882 = vcmp.eq.s32.totalorder %v1866, 1
    %vm1883 = vcmp.eq.s32.totalorder %v1867, 1
    %vm1884 = vcmp.eq.s32.totalorder %v1868, 1
    %vm1885 = vcmp.eq.s32.totalorder %v1869, 1
    %vm1886 = vcmp.eq.s32.totalorder %v1870, 1
    %vm1887 = vcmp.eq.s32.totalorder %v1871, 1
    %vm1888 = vcmp.eq.s32.totalorder %v1872, 1
    %vm1889 = vcmp.eq.s32.totalorder %v1873, 1
    %vm1890 = vcmp.eq.s32.totalorder %v1874, 1
    %vm1891 = vcmp.eq.s32.totalorder %v1875, 1
    %vm1892 = vcmp.eq.s32.totalorder %v1876, 1
    %vm1893 = vcmp.eq.s32.totalorder %v1877, 1
    %vm1894 = vcmp.eq.s32.totalorder %v1878, 1
    %vm1895 = vcmp.eq.s32.totalorder %v1879, 1
    %vm1896 = vcmp.eq.s32.totalorder %v1880, 1
    %vm1897 = vcmp.eq.s32.totalorder %v1881, 1
    %vm1898 = vmand %vm1705, %vm1882
    %vm1899 = vmand %vm1705, %vm1883
    %vm1900 = vmand %vm1705, %vm1884
    %vm1901 = vmand %vm1705, %vm1885
    %vm1902 = vmand %vm1705, %vm1886
    %vm1903 = vmand %vm1705, %vm1887
    %vm1904 = vmand %vm1705, %vm1888
    %vm1905 = vmand %vm1705, %vm1889
    %vm1906 = vmand %vm1705, %vm1890
    %vm1907 = vmand %vm1705, %vm1891
    %vm1908 = vmand %vm1705, %vm1892
    %vm1909 = vmand %vm1705, %vm1893
    %vm1910 = vmand %vm1705, %vm1894
    %vm1911 = vmand %vm1705, %vm1895
    %vm1912 = vmand %vm1705, %vm1896
    %vm1913 = vmand %vm1705, %vm1897
    %v1914 = vsub.f32 %v1687, %v1771
    %v1915 = vsub.f32 %v1688, %v1773
    %v1916 = vsub.f32 %v1689, %v1775
    %v1917 = vsub.f32 %v1690, %v1777
    %v1918 = vsub.f32 %v1691, %v1779
    %v1919 = vsub.f32 %v1692, %v1781
    %v1920 = vsub.f32 %v1693, %v1783
    %v1921 = vsub.f32 %v1694, %v1785
    %v1922 = vsub.f32 %v1695, %v1787
    %v1923 = vsub.f32 %v1696, %v1789
    %v1924 = vsub.f32 %v1697, %v1791
    %v1925 = vsub.f32 %v1698, %v1793
    %v1926 = vsub.f32 %v1699, %v1795
    %v1927 = vsub.f32 %v1700, %v1797
    %v1928 = vsub.f32 %v1701, %v1799
    %v1929 = vsub.f32 %v1702, %v1801
    %v1930 = vmul.f32 %v1914, %v1850
    %v1931 = vmul.f32 %v1915, %v1851
    %v1932 = vmul.f32 %v1916, %v1852
    %v1933 = vmul.f32 %v1917, %v1853
    %v1934 = vmul.f32 %v1918, %v1854
    %v1935 = vmul.f32 %v1919, %v1855
    %v1936 = vmul.f32 %v1920, %v1856
    %v1937 = vmul.f32 %v1921, %v1857
    %v1938 = vmul.f32 %v1922, %v1858
    %v1939 = vmul.f32 %v1923, %v1859
    %v1940 = vmul.f32 %v1924, %v1860
    %v1941 = vmul.f32 %v1925, %v1861
    %v1942 = vmul.f32 %v1926, %v1862
    %v1943 = vmul.f32 %v1927, %v1863
    %v1944 = vmul.f32 %v1928, %v1864
    %v1945 = vmul.f32 %v1929, %v1865
    %v1946 = vsel %vm1898, %v1930, 0.0
    %v1947 = vsel %vm1899, %v1931, 0.0
    %v1948 = vsel %vm1900, %v1932, 0.0
    %v1949 = vsel %vm1901, %v1933, 0.0
    %v1950 = vsel %vm1902, %v1934, 0.0
    %v1951 = vsel %vm1903, %v1935, 0.0
    %v1952 = vsel %vm1904, %v1936, 0.0
    %v1953 = vsel %vm1905, %v1937, 0.0
    %v1954 = vsel %vm1906, %v1938, 0.0
    %v1955 = vsel %vm1907, %v1939, 0.0
    %v1956 = vsel %vm1908, %v1940, 0.0
    %v1957 = vsel %vm1909, %v1941, 0.0
    %v1958 = vsel %vm1910, %v1942, 0.0
    %v1959 = vsel %vm1911, %v1943, 0.0
    %v1960 = vsel %vm1912, %v1944, 0.0
    %v1961 = vsel %vm1913, %v1945, 0.0
    %v1962 = vld [vmem:[#allocation7] sm:$0xff]
    %v1963 = vld [vmem:[#allocation7 + $0x8] sm:$0xff]
    %v1964 = vld [vmem:[#allocation7 + $0x10] sm:$0xff]
    %v1965 = vld [vmem:[#allocation7 + $0x18] sm:$0xff]
    %v1966 = vld [vmem:[#allocation7 + $0x20] sm:$0xff]
    %v1967 = vld [vmem:[#allocation7 + $0x28] sm:$0xff]
    %v1968 = vld [vmem:[#allocation7 + $0x30] sm:$0xff]
    %v1969 = vld [vmem:[#allocation7 + $0x38] sm:$0xff]
    %v1970 = vld [vmem:[#allocation7 + $0x40] sm:$0xff]
    %v1971 = vld [vmem:[#allocation7 + $0x48] sm:$0xff]
    %v1972 = vld [vmem:[#allocation7 + $0x50] sm:$0xff]
    %v1973 = vld [vmem:[#allocation7 + $0x58] sm:$0xff]
    %v1974 = vld [vmem:[#allocation7 + $0x60] sm:$0xff]
    %v1975 = vld [vmem:[#allocation7 + $0x68] sm:$0xff]
    %v1976 = vld [vmem:[#allocation7 + $0x70] sm:$0xff]
    %v1977 = vld [vmem:[#allocation7 + $0x78] sm:$0xff]
    %1978 = vmatpush.xpose.msra.mxu0 %v1961
    %1979 = vmatpush.xpose.msra.mxu0 %v1960
    %1980 = vmatpush.xpose.msra.mxu0 %v1959
    %1981 = vmatpush.xpose.msra.mxu0 %v1958
    %1982 = vmatpush.xpose.msra.mxu0 %v1957
    %1983 = vmatpush.xpose.msra.mxu0 %v1956
    %1984 = vmatpush.xpose.msra.mxu0 %v1955
    %1985 = vmatpush.xpose.msra.mxu0 %v1954
    %1986 = vmatpush.xpose.msra.mxu0 %v1953
    %1987 = vmatpush.xpose.msra.mxu0 %v1952
    %1988 = vmatpush.xpose.msra.mxu0 %v1951
    %1989 = vmatpush.xpose.msra.mxu0 %v1950
    %1990 = vmatpush.xpose.msra.mxu0 %v1949
    %1991 = vmatpush.xpose.msra.mxu0 %v1948
    %1992 = vmatpush.xpose.msra.mxu0 %v1947
    %1993 = vmatpush.xpose.msra.mxu0 %v1946
    %1994 = vmatmul.f32.gmra.mxu0 %v1962
    %v1995 = vpop.f32.mrf.mxu0
    %v1996 = vadd.f32 0.0, %v1995
    %1997 = vmatmul.f32.gmra.mxu0 %v1963
    %v1998 = vpop.f32.mrf.mxu0
    %v1999 = vadd.f32 0.0, %v1998
    %2000 = vmatmul.f32.gmra.mxu0 %v1964
    %v2001 = vpop.f32.mrf.mxu0
    %v2002 = vadd.f32 0.0, %v2001
    %2003 = vmatmul.f32.gmra.mxu0 %v1965
    %v2004 = vpop.f32.mrf.mxu0
    %v2005 = vadd.f32 0.0, %v2004
    %2006 = vmatmul.f32.gmra.mxu0 %v1966
    %v2007 = vpop.f32.mrf.mxu0
    %v2008 = vadd.f32 0.0, %v2007
    %2009 = vmatmul.f32.gmra.mxu0 %v1967
    %v2010 = vpop.f32.mrf.mxu0
    %v2011 = vadd.f32 0.0, %v2010
    %2012 = vmatmul.f32.gmra.mxu0 %v1968
    %v2013 = vpop.f32.mrf.mxu0
    %v2014 = vadd.f32 0.0, %v2013
    %2015 = vmatmul.f32.gmra.mxu0 %v1969
    %v2016 = vpop.f32.mrf.mxu0
    %v2017 = vadd.f32 0.0, %v2016
    %2018 = vmatmul.f32.gmra.mxu0 %v1970
    %v2019 = vpop.f32.mrf.mxu0
    %v2020 = vadd.f32 0.0, %v2019
    %2021 = vmatmul.f32.gmra.mxu0 %v1971
    %v2022 = vpop.f32.mrf.mxu0
    %v2023 = vadd.f32 0.0, %v2022
    %2024 = vmatmul.f32.gmra.mxu0 %v1972
    %v2025 = vpop.f32.mrf.mxu0
    %v2026 = vadd.f32 0.0, %v2025
    %2027 = vmatmul.f32.gmra.mxu0 %v1973
    %v2028 = vpop.f32.mrf.mxu0
    %v2029 = vadd.f32 0.0, %v2028
    %2030 = vmatmul.f32.gmra.mxu0 %v1974
    %v2031 = vpop.f32.mrf.mxu0
    %v2032 = vadd.f32 0.0, %v2031
    %2033 = vmatmul.f32.gmra.mxu0 %v1975
    %v2034 = vpop.f32.mrf.mxu0
    %v2035 = vadd.f32 0.0, %v2034
    %2036 = vmatmul.f32.gmra.mxu0 %v1976
    %v2037 = vpop.f32.mrf.mxu0
    %v2038 = vadd.f32 0.0, %v2037
    %2039 = vmatmul.f32.gmra.mxu0 %v1977
    %v2040 = vpop.f32.mrf.mxu0
    %v2041 = vadd.f32 0.0, %v2040
    %2042 = vdwg.mxu0
    %v2043 = vld [vmem:[#allocation8] sm:$0xff]
    %v2044 = vld [vmem:[#allocation8 + $0x8] sm:$0xff]
    %v2045 = vld [vmem:[#allocation8 + $0x10] sm:$0xff]
    %v2046 = vld [vmem:[#allocation8 + $0x18] sm:$0xff]
    %v2047 = vld [vmem:[#allocation8 + $0x20] sm:$0xff]
    %v2048 = vld [vmem:[#allocation8 + $0x28] sm:$0xff]
    %v2049 = vld [vmem:[#allocation8 + $0x30] sm:$0xff]
    %v2050 = vld [vmem:[#allocation8 + $0x38] sm:$0xff]
    %v2051 = vld [vmem:[#allocation8 + $0x40] sm:$0xff]
    %v2052 = vld [vmem:[#allocation8 + $0x48] sm:$0xff]
    %v2053 = vld [vmem:[#allocation8 + $0x50] sm:$0xff]
    %v2054 = vld [vmem:[#allocation8 + $0x58] sm:$0xff]
    %v2055 = vld [vmem:[#allocation8 + $0x60] sm:$0xff]
    %v2056 = vld [vmem:[#allocation8 + $0x68] sm:$0xff]
    %v2057 = vld [vmem:[#allocation8 + $0x70] sm:$0xff]
    %v2058 = vld [vmem:[#allocation8 + $0x78] sm:$0xff]
    %v2059 = vld [vmem:[#allocation8 + $0x80] sm:$0xff]
    %v2060 = vld [vmem:[#allocation8 + $0x88] sm:$0xff]
    %v2061 = vld [vmem:[#allocation8 + $0x90] sm:$0xff]
    %v2062 = vld [vmem:[#allocation8 + $0x98] sm:$0xff]
    %v2063 = vld [vmem:[#allocation8 + $0xa0] sm:$0xff]
    %v2064 = vld [vmem:[#allocation8 + $0xa8] sm:$0xff]
    %v2065 = vld [vmem:[#allocation8 + $0xb0] sm:$0xff]
    %v2066 = vld [vmem:[#allocation8 + $0xb8] sm:$0xff]
    %v2067 = vld [vmem:[#allocation8 + $0xc0] sm:$0xff]
    %v2068 = vld [vmem:[#allocation8 + $0xc8] sm:$0xff]
    %v2069 = vld [vmem:[#allocation8 + $0xd0] sm:$0xff]
    %v2070 = vld [vmem:[#allocation8 + $0xd8] sm:$0xff]
    %v2071 = vld [vmem:[#allocation8 + $0xe0] sm:$0xff]
    %v2072 = vld [vmem:[#allocation8 + $0xe8] sm:$0xff]
    %v2073 = vld [vmem:[#allocation8 + $0xf0] sm:$0xff]
    %v2074 = vld [vmem:[#allocation8 + $0xf8] sm:$0xff]
    %2075 = vmatpush.msra.mxu0 %v2073
    %2076 = vmatpush.msra.mxu0 %v2071
    %2077 = vmatpush.msra.mxu0 %v2069
    %2078 = vmatpush.msra.mxu0 %v2067
    %2079 = vmatpush.msra.mxu0 %v2065
    %2080 = vmatpush.msra.mxu0 %v2063
    %2081 = vmatpush.msra.mxu0 %v2061
    %2082 = vmatpush.msra.mxu0 %v2059
    %2083 = vmatpush.msra.mxu0 %v2057
    %2084 = vmatpush.msra.mxu0 %v2055
    %2085 = vmatpush.msra.mxu0 %v2053
    %2086 = vmatpush.msra.mxu0 %v2051
    %2087 = vmatpush.msra.mxu0 %v2049
    %2088 = vmatpush.msra.mxu0 %v2047
    %2089 = vmatpush.msra.mxu0 %v2045
    %2090 = vmatpush.msra.mxu0 %v2043
    %2091 = vmatmul.f32.gmra.mxu0 %v1996
    %v2092 = vpop.f32.mrf.mxu0
    %v2093 = vadd.f32 0.0, %v2092
    %2094 = vmatmul.f32.gmra.mxu0 %v1999
    %v2095 = vpop.f32.mrf.mxu0
    %v2096 = vadd.f32 0.0, %v2095
    %2097 = vmatmul.f32.gmra.mxu0 %v2002
    %v2098 = vpop.f32.mrf.mxu0
    %v2099 = vadd.f32 0.0, %v2098
    %2100 = vmatmul.f32.gmra.mxu0 %v2005
    %v2101 = vpop.f32.mrf.mxu0
    %v2102 = vadd.f32 0.0, %v2101
    %2103 = vmatmul.f32.gmra.mxu0 %v2008
    %v2104 = vpop.f32.mrf.mxu0
    %v2105 = vadd.f32 0.0, %v2104
    %2106 = vmatmul.f32.gmra.mxu0 %v2011
    %v2107 = vpop.f32.mrf.mxu0
    %v2108 = vadd.f32 0.0, %v2107
    %2109 = vmatmul.f32.gmra.mxu0 %v2014
    %v2110 = vpop.f32.mrf.mxu0
    %v2111 = vadd.f32 0.0, %v2110
    %2112 = vmatmul.f32.gmra.mxu0 %v2017
    %v2113 = vpop.f32.mrf.mxu0
    %v2114 = vadd.f32 0.0, %v2113
    %2115 = vmatmul.f32.gmra.mxu0 %v2020
    %v2116 = vpop.f32.mrf.mxu0
    %v2117 = vadd.f32 0.0, %v2116
    %2118 = vmatmul.f32.gmra.mxu0 %v2023
    %v2119 = vpop.f32.mrf.mxu0
    %v2120 = vadd.f32 0.0, %v2119
    %2121 = vmatmul.f32.gmra.mxu0 %v2026
    %v2122 = vpop.f32.mrf.mxu0
    %v2123 = vadd.f32 0.0, %v2122
    %2124 = vmatmul.f32.gmra.mxu0 %v2029
    %v2125 = vpop.f32.mrf.mxu0
    %v2126 = vadd.f32 0.0, %v2125
    %2127 = vmatmul.f32.gmra.mxu0 %v2032
    %v2128 = vpop.f32.mrf.mxu0
    %v2129 = vadd.f32 0.0, %v2128
    %2130 = vmatmul.f32.gmra.mxu0 %v2035
    %v2131 = vpop.f32.mrf.mxu0
    %v2132 = vadd.f32 0.0, %v2131
    %2133 = vmatmul.f32.gmra.mxu0 %v2038
    %v2134 = vpop.f32.mrf.mxu0
    %v2135 = vadd.f32 0.0, %v2134
    %2136 = vmatmul.f32.gmra.mxu0 %v2041
    %v2137 = vpop.f32.mrf.mxu0
    %v2138 = vadd.f32 0.0, %v2137
    %2139 = vdwg.mxu0
    %2140 = vmatpush.msra.mxu0 %v2074
    %2141 = vmatpush.msra.mxu0 %v2072
    %2142 = vmatpush.msra.mxu0 %v2070
    %2143 = vmatpush.msra.mxu0 %v2068
    %2144 = vmatpush.msra.mxu0 %v2066
    %2145 = vmatpush.msra.mxu0 %v2064
    %2146 = vmatpush.msra.mxu0 %v2062
    %2147 = vmatpush.msra.mxu0 %v2060
    %2148 = vmatpush.msra.mxu0 %v2058
    %2149 = vmatpush.msra.mxu0 %v2056
    %2150 = vmatpush.msra.mxu0 %v2054
    %2151 = vmatpush.msra.mxu0 %v2052
    %2152 = vmatpush.msra.mxu0 %v2050
    %2153 = vmatpush.msra.mxu0 %v2048
    %2154 = vmatpush.msra.mxu0 %v2046
    %2155 = vmatpush.msra.mxu0 %v2044
    %2156 = vmatmul.f32.gmra.mxu0 %v1996
    %v2157 = vpop.f32.mrf.mxu0
    %v2158 = vadd.f32 0.0, %v2157
    %2159 = vmatmul.f32.gmra.mxu0 %v1999
    %v2160 = vpop.f32.mrf.mxu0
    %v2161 = vadd.f32 0.0, %v2160
    %2162 = vmatmul.f32.gmra.mxu0 %v2002
    %v2163 = vpop.f32.mrf.mxu0
    %v2164 = vadd.f32 0.0, %v2163
    %2165 = vmatmul.f32.gmra.mxu0 %v2005
    %v2166 = vpop.f32.mrf.mxu0
    %v2167 = vadd.f32 0.0, %v2166
    %2168 = vmatmul.f32.gmra.mxu0 %v2008
    %v2169 = vpop.f32.mrf.mxu0
    %v2170 = vadd.f32 0.0, %v2169
    %2171 = vmatmul.f32.gmra.mxu0 %v2011
    %v2172 = vpop.f32.mrf.mxu0
    %v2173 = vadd.f32 0.0, %v2172
    %2174 = vmatmul.f32.gmra.mxu0 %v2014
    %v2175 = vpop.f32.mrf.mxu0
    %v2176 = vadd.f32 0.0, %v2175
    %2177 = vmatmul.f32.gmra.mxu0 %v2017
    %v2178 = vpop.f32.mrf.mxu0
    %v2179 = vadd.f32 0.0, %v2178
    %2180 = vmatmul.f32.gmra.mxu0 %v2020
    %v2181 = vpop.f32.mrf.mxu0
    %v2182 = vadd.f32 0.0, %v2181
    %2183 = vmatmul.f32.gmra.mxu0 %v2023
    %v2184 = vpop.f32.mrf.mxu0
    %v2185 = vadd.f32 0.0, %v2184
    %2186 = vmatmul.f32.gmra.mxu0 %v2026
    %v2187 = vpop.f32.mrf.mxu0
    %v2188 = vadd.f32 0.0, %v2187
    %2189 = vmatmul.f32.gmra.mxu0 %v2029
    %v2190 = vpop.f32.mrf.mxu0
    %v2191 = vadd.f32 0.0, %v2190
    %2192 = vmatmul.f32.gmra.mxu0 %v2032
    %v2193 = vpop.f32.mrf.mxu0
    %v2194 = vadd.f32 0.0, %v2193
    %2195 = vmatmul.f32.gmra.mxu0 %v2035
    %v2196 = vpop.f32.mrf.mxu0
    %v2197 = vadd.f32 0.0, %v2196
    %2198 = vmatmul.f32.gmra.mxu0 %v2038
    %v2199 = vpop.f32.mrf.mxu0
    %v2200 = vadd.f32 0.0, %v2199
    %2201 = vmatmul.f32.gmra.mxu0 %v2041
    %v2202 = vpop.f32.mrf.mxu0
    %v2203 = vadd.f32 0.0, %v2202
    %2204 = vdwg.mxu0
    %2205 = vst [vmem:[#allocation19] sm:$0xff] %v2093
    %2206 = vst [vmem:[#allocation19 + $0x8] sm:$0xff] %v2096
    %2207 = vst [vmem:[#allocation19 + $0x10] sm:$0xff] %v2099
    %2208 = vst [vmem:[#allocation19 + $0x18] sm:$0xff] %v2102
    %2209 = vst [vmem:[#allocation19 + $0x20] sm:$0xff] %v2105
    %2210 = vst [vmem:[#allocation19 + $0x28] sm:$0xff] %v2108
    %2211 = vst [vmem:[#allocation19 + $0x30] sm:$0xff] %v2111
    %2212 = vst [vmem:[#allocation19 + $0x38] sm:$0xff] %v2114
    %2213 = vst [vmem:[#allocation19 + $0x40] sm:$0xff] %v2117
    %2214 = vst [vmem:[#allocation19 + $0x48] sm:$0xff] %v2120
    %2215 = vst [vmem:[#allocation19 + $0x50] sm:$0xff] %v2123
    %2216 = vst [vmem:[#allocation19 + $0x58] sm:$0xff] %v2126
    %2217 = vst [vmem:[#allocation19 + $0x60] sm:$0xff] %v2129
    %2218 = vst [vmem:[#allocation19 + $0x68] sm:$0xff] %v2132
    %2219 = vst [vmem:[#allocation19 + $0x70] sm:$0xff] %v2135
    %2220 = vst [vmem:[#allocation19 + $0x78] sm:$0xff] %v2138
    %s2221 = scalar_lea.vmem [#allocation19], 128
    %2222 = vst [vmem:[%s2221] sm:$0xff] %v2158
    %2223 = vst [vmem:[%s2221 + $0x8] sm:$0xff] %v2161
    %2224 = vst [vmem:[%s2221 + $0x10] sm:$0xff] %v2164
    %2225 = vst [vmem:[%s2221 + $0x18] sm:$0xff] %v2167
    %2226 = vst [vmem:[%s2221 + $0x20] sm:$0xff] %v2170
    %2227 = vst [vmem:[%s2221 + $0x28] sm:$0xff] %v2173
    %2228 = vst [vmem:[%s2221 + $0x30] sm:$0xff] %v2176
    %2229 = vst [vmem:[%s2221 + $0x38] sm:$0xff] %v2179
    %2230 = vst [vmem:[%s2221 + $0x40] sm:$0xff] %v2182
    %2231 = vst [vmem:[%s2221 + $0x48] sm:$0xff] %v2185
    %2232 = vst [vmem:[%s2221 + $0x50] sm:$0xff] %v2188
    %2233 = vst [vmem:[%s2221 + $0x58] sm:$0xff] %v2191
    %2234 = vst [vmem:[%s2221 + $0x60] sm:$0xff] %v2194
    %2235 = vst [vmem:[%s2221 + $0x68] sm:$0xff] %v2197
    %2236 = vst [vmem:[%s2221 + $0x70] sm:$0xff] %v2200
    %2237 = vst [vmem:[%s2221 + $0x78] sm:$0xff] %v2203
    %v2238 = vadd.f32 %v2093, %v2158
    %v2239 = vadd.f32 %v2238, %v2096
    %v2240 = vadd.f32 %v2239, %v2161
    %v2241 = vadd.f32 %v2240, %v2099
    %v2242 = vadd.f32 %v2241, %v2164
    %v2243 = vadd.f32 %v2242, %v2102
    %v2244 = vadd.f32 %v2243, %v2167
    %v2245 = vadd.f32 %v2244, %v2105
    %v2246 = vadd.f32 %v2245, %v2170
    %v2247 = vadd.f32 %v2246, %v2108
    %v2248 = vadd.f32 %v2247, %v2173
    %v2249 = vadd.f32 %v2248, %v2111
    %v2250 = vadd.f32 %v2249, %v2176
    %v2251 = vadd.f32 %v2250, %v2114
    %v2252 = vadd.f32 %v2251, %v2179
    %v2253 = vadd.f32 %v2252, %v2117
    %v2254 = vadd.f32 %v2253, %v2182
    %v2255 = vadd.f32 %v2254, %v2120
    %v2256 = vadd.f32 %v2255, %v2185
    %v2257 = vadd.f32 %v2256, %v2123
    %v2258 = vadd.f32 %v2257, %v2188
    %v2259 = vadd.f32 %v2258, %v2126
    %v2260 = vadd.f32 %v2259, %v2191
    %v2261 = vadd.f32 %v2260, %v2129
    %v2262 = vadd.f32 %v2261, %v2194
    %v2263 = vadd.f32 %v2262, %v2132
    %v2264 = vadd.f32 %v2263, %v2197
    %v2265 = vadd.f32 %v2264, %v2135
    %v2266 = vadd.f32 %v2265, %v2200
    %v2267 = vadd.f32 %v2266, %v2138
    %v2268 = vadd.f32 %v2267, %v2203
    %2269 = vadd.xlane.f32.xlu0 %v2268
    %v2270 = vpop.xlane.xlu0 %2269
    %v2271 = vrot.slane %v2270, 4
    %v2272 = vadd.f32 %v2270, %v2271
    %v2273 = vrot.slane %v2272, 2
    %v2274 = vadd.f32 %v2272, %v2273
    %v2275 = vrot.slane %v2274, 1
    %v2276 = vadd.f32 %v2274, %v2275
    %s2277 = vtos %v2276
    %v2278 = vstv %s2277
    %vm2279 = vcmp.eq.f32.partialorder %v2278, 0.0
    %v2280 = vsel %vm2279, 1e-06, 0.0
    %v2281 = vadd.f32 %v2093, %v2280
    %v2282 = vadd.f32 %v2158, %v2280
    %v2283 = vadd.f32 %v2096, %v2280
    %v2284 = vadd.f32 %v2161, %v2280
    %v2285 = vadd.f32 %v2099, %v2280
    %v2286 = vadd.f32 %v2164, %v2280
    %v2287 = vadd.f32 %v2102, %v2280
    %v2288 = vadd.f32 %v2167, %v2280
    %v2289 = vadd.f32 %v2105, %v2280
    %v2290 = vadd.f32 %v2170, %v2280
    %v2291 = vadd.f32 %v2108, %v2280
    %v2292 = vadd.f32 %v2173, %v2280
    %v2293 = vadd.f32 %v2111, %v2280
    %v2294 = vadd.f32 %v2176, %v2280
    %v2295 = vadd.f32 %v2114, %v2280
    %v2296 = vadd.f32 %v2179, %v2280
    %v2297 = vadd.f32 %v2117, %v2280
    %v2298 = vadd.f32 %v2182, %v2280
    %v2299 = vadd.f32 %v2120, %v2280
    %v2300 = vadd.f32 %v2185, %v2280
    %v2301 = vadd.f32 %v2123, %v2280
    %v2302 = vadd.f32 %v2188, %v2280
    %v2303 = vadd.f32 %v2126, %v2280
    %v2304 = vadd.f32 %v2191, %v2280
    %v2305 = vadd.f32 %v2129, %v2280
    %v2306 = vadd.f32 %v2194, %v2280
    %v2307 = vadd.f32 %v2132, %v2280
    %v2308 = vadd.f32 %v2197, %v2280
    %v2309 = vadd.f32 %v2135, %v2280
    %v2310 = vadd.f32 %v2200, %v2280
    %v2311 = vadd.f32 %v2138, %v2280
    %v2312 = vadd.f32 %v2203, %v2280
    %v2313 = vld [vmem:[#allocation10] sm:$0xff]
    %v2314 = vld [vmem:[#allocation10 + $0x8] sm:$0xff]
    %v2315 = vld [vmem:[#allocation10 + $0x10] sm:$0xff]
    %v2316 = vld [vmem:[#allocation10 + $0x18] sm:$0xff]
    %v2317 = vld [vmem:[#allocation10 + $0x20] sm:$0xff]
    %v2318 = vld [vmem:[#allocation10 + $0x28] sm:$0xff]
    %v2319 = vld [vmem:[#allocation10 + $0x30] sm:$0xff]
    %v2320 = vld [vmem:[#allocation10 + $0x38] sm:$0xff]
    %v2321 = vld [vmem:[#allocation10 + $0x40] sm:$0xff]
    %v2322 = vld [vmem:[#allocation10 + $0x48] sm:$0xff]
    %v2323 = vld [vmem:[#allocation10 + $0x50] sm:$0xff]
    %v2324 = vld [vmem:[#allocation10 + $0x58] sm:$0xff]
    %v2325 = vld [vmem:[#allocation10 + $0x60] sm:$0xff]
    %v2326 = vld [vmem:[#allocation10 + $0x68] sm:$0xff]
    %v2327 = vld [vmem:[#allocation10 + $0x70] sm:$0xff]
    %v2328 = vld [vmem:[#allocation10 + $0x78] sm:$0xff]
    %2329 = vmatpush.msra.mxu0 %v2311
    %2330 = vmatpush.msra.mxu0 %v2309
    %2331 = vmatpush.msra.mxu0 %v2307
    %2332 = vmatpush.msra.mxu0 %v2305
    %2333 = vmatpush.msra.mxu0 %v2303
    %2334 = vmatpush.msra.mxu0 %v2301
    %2335 = vmatpush.msra.mxu0 %v2299
    %2336 = vmatpush.msra.mxu0 %v2297
    %2337 = vmatpush.msra.mxu0 %v2295
    %2338 = vmatpush.msra.mxu0 %v2293
    %2339 = vmatpush.msra.mxu0 %v2291
    %2340 = vmatpush.msra.mxu0 %v2289
    %2341 = vmatpush.msra.mxu0 %v2287
    %2342 = vmatpush.msra.mxu0 %v2285
    %2343 = vmatpush.msra.mxu0 %v2283
    %2344 = vmatpush.msra.mxu0 %v2281
    %2345 = vmatmul.f32.gmra.mxu0 %v2313
    %v2346 = vpop.f32.mrf.mxu0
    %v2347 = vadd.f32 0.0, %v2346
    %2348 = vmatmul.f32.gmra.mxu0 %v2314
    %v2349 = vpop.f32.mrf.mxu0
    %v2350 = vadd.f32 0.0, %v2349
    %2351 = vmatmul.f32.gmra.mxu0 %v2315
    %v2352 = vpop.f32.mrf.mxu0
    %v2353 = vadd.f32 0.0, %v2352
    %2354 = vmatmul.f32.gmra.mxu0 %v2316
    %v2355 = vpop.f32.mrf.mxu0
    %v2356 = vadd.f32 0.0, %v2355
    %2357 = vmatmul.f32.gmra.mxu0 %v2317
    %v2358 = vpop.f32.mrf.mxu0
    %v2359 = vadd.f32 0.0, %v2358
    %2360 = vmatmul.f32.gmra.mxu0 %v2318
    %v2361 = vpop.f32.mrf.mxu0
    %v2362 = vadd.f32 0.0, %v2361
    %2363 = vmatmul.f32.gmra.mxu0 %v2319
    %v2364 = vpop.f32.mrf.mxu0
    %v2365 = vadd.f32 0.0, %v2364
    %2366 = vmatmul.f32.gmra.mxu0 %v2320
    %v2367 = vpop.f32.mrf.mxu0
    %v2368 = vadd.f32 0.0, %v2367
    %2369 = vmatmul.f32.gmra.mxu0 %v2321
    %v2370 = vpop.f32.mrf.mxu0
    %v2371 = vadd.f32 0.0, %v2370
    %2372 = vmatmul.f32.gmra.mxu0 %v2322
    %v2373 = vpop.f32.mrf.mxu0
    %v2374 = vadd.f32 0.0, %v2373
    %2375 = vmatmul.f32.gmra.mxu0 %v2323
    %v2376 = vpop.f32.mrf.mxu0
    %v2377 = vadd.f32 0.0, %v2376
    %2378 = vmatmul.f32.gmra.mxu0 %v2324
    %v2379 = vpop.f32.mrf.mxu0
    %v2380 = vadd.f32 0.0, %v2379
    %2381 = vmatmul.f32.gmra.mxu0 %v2325
    %v2382 = vpop.f32.mrf.mxu0
    %v2383 = vadd.f32 0.0, %v2382
    %2384 = vmatmul.f32.gmra.mxu0 %v2326
    %v2385 = vpop.f32.mrf.mxu0
    %v2386 = vadd.f32 0.0, %v2385
    %2387 = vmatmul.f32.gmra.mxu0 %v2327
    %v2388 = vpop.f32.mrf.mxu0
    %v2389 = vadd.f32 0.0, %v2388
    %2390 = vmatmul.f32.gmra.mxu0 %v2328
    %v2391 = vpop.f32.mrf.mxu0
    %v2392 = vadd.f32 0.0, %v2391
    %2393 = vdwg.mxu0
    %2394 = vmatpush.msra.mxu0 %v2312
    %2395 = vmatpush.msra.mxu0 %v2310
    %2396 = vmatpush.msra.mxu0 %v2308
    %2397 = vmatpush.msra.mxu0 %v2306
    %2398 = vmatpush.msra.mxu0 %v2304
    %2399 = vmatpush.msra.mxu0 %v2302
    %2400 = vmatpush.msra.mxu0 %v2300
    %2401 = vmatpush.msra.mxu0 %v2298
    %2402 = vmatpush.msra.mxu0 %v2296
    %2403 = vmatpush.msra.mxu0 %v2294
    %2404 = vmatpush.msra.mxu0 %v2292
    %2405 = vmatpush.msra.mxu0 %v2290
    %2406 = vmatpush.msra.mxu0 %v2288
    %2407 = vmatpush.msra.mxu0 %v2286
    %2408 = vmatpush.msra.mxu0 %v2284
    %2409 = vmatpush.msra.mxu0 %v2282
    %2410 = vmatmul.f32.gmra.mxu0 %v2313
    %v2411 = vpop.f32.mrf.mxu0
    %v2412 = vadd.f32 0.0, %v2411
    %2413 = vmatmul.f32.gmra.mxu0 %v2314
    %v2414 = vpop.f32.mrf.mxu0
    %v2415 = vadd.f32 0.0, %v2414
    %2416 = vmatmul.f32.gmra.mxu0 %v2315
    %v2417 = vpop.f32.mrf.mxu0
    %v2418 = vadd.f32 0.0, %v2417
    %2419 = vmatmul.f32.gmra.mxu0 %v2316
    %v2420 = vpop.f32.mrf.mxu0
    %v2421 = vadd.f32 0.0, %v2420
    %2422 = vmatmul.f32.gmra.mxu0 %v2317
    %v2423 = vpop.f32.mrf.mxu0
    %v2424 = vadd.f32 0.0, %v2423
    %2425 = vmatmul.f32.gmra.mxu0 %v2318
    %v2426 = vpop.f32.mrf.mxu0
    %v2427 = vadd.f32 0.0, %v2426
    %2428 = vmatmul.f32.gmra.mxu0 %v2319
    %v2429 = vpop.f32.mrf.mxu0
    %v2430 = vadd.f32 0.0, %v2429
    %2431 = vmatmul.f32.gmra.mxu0 %v2320
    %v2432 = vpop.f32.mrf.mxu0
    %v2433 = vadd.f32 0.0, %v2432
    %2434 = vmatmul.f32.gmra.mxu0 %v2321
    %v2435 = vpop.f32.mrf.mxu0
    %v2436 = vadd.f32 0.0, %v2435
    %2437 = vmatmul.f32.gmra.mxu0 %v2322
    %v2438 = vpop.f32.mrf.mxu0
    %v2439 = vadd.f32 0.0, %v2438
    %2440 = vmatmul.f32.gmra.mxu0 %v2323
    %v2441 = vpop.f32.mrf.mxu0
    %v2442 = vadd.f32 0.0, %v2441
    %2443 = vmatmul.f32.gmra.mxu0 %v2324
    %v2444 = vpop.f32.mrf.mxu0
    %v2445 = vadd.f32 0.0, %v2444
    %2446 = vmatmul.f32.gmra.mxu0 %v2325
    %v2447 = vpop.f32.mrf.mxu0
    %v2448 = vadd.f32 0.0, %v2447
    %2449 = vmatmul.f32.gmra.mxu0 %v2326
    %v2450 = vpop.f32.mrf.mxu0
    %v2451 = vadd.f32 0.0, %v2450
    %2452 = vmatmul.f32.gmra.mxu0 %v2327
    %v2453 = vpop.f32.mrf.mxu0
    %v2454 = vadd.f32 0.0, %v2453
    %2455 = vmatmul.f32.gmra.mxu0 %v2328
    %v2456 = vpop.f32.mrf.mxu0
    %v2457 = vadd.f32 0.0, %v2456
    %2458 = vdwg.mxu0
    %v2459 = vld [vmem:[#allocation11] sm:$0xff]
    %v2460 = vld [vmem:[#allocation11 + $0x8] sm:$0xff]
    %v2461 = vld [vmem:[#allocation11 + $0x10] sm:$0xff]
    %v2462 = vld [vmem:[#allocation11 + $0x18] sm:$0xff]
    %v2463 = vld [vmem:[#allocation11 + $0x20] sm:$0xff]
    %v2464 = vld [vmem:[#allocation11 + $0x28] sm:$0xff]
    %v2465 = vld [vmem:[#allocation11 + $0x30] sm:$0xff]
    %v2466 = vld [vmem:[#allocation11 + $0x38] sm:$0xff]
    %v2467 = vld [vmem:[#allocation11 + $0x40] sm:$0xff]
    %v2468 = vld [vmem:[#allocation11 + $0x48] sm:$0xff]
    %v2469 = vld [vmem:[#allocation11 + $0x50] sm:$0xff]
    %v2470 = vld [vmem:[#allocation11 + $0x58] sm:$0xff]
    %v2471 = vld [vmem:[#allocation11 + $0x60] sm:$0xff]
    %v2472 = vld [vmem:[#allocation11 + $0x68] sm:$0xff]
    %v2473 = vld [vmem:[#allocation11 + $0x70] sm:$0xff]
    %v2474 = vld [vmem:[#allocation11 + $0x78] sm:$0xff]
    %v2475 = vld [vmem:[#allocation11 + $0x80] sm:$0xff]
    %v2476 = vld [vmem:[#allocation11 + $0x88] sm:$0xff]
    %v2477 = vld [vmem:[#allocation11 + $0x90] sm:$0xff]
    %v2478 = vld [vmem:[#allocation11 + $0x98] sm:$0xff]
    %v2479 = vld [vmem:[#allocation11 + $0xa0] sm:$0xff]
    %v2480 = vld [vmem:[#allocation11 + $0xa8] sm:$0xff]
    %v2481 = vld [vmem:[#allocation11 + $0xb0] sm:$0xff]
    %v2482 = vld [vmem:[#allocation11 + $0xb8] sm:$0xff]
    %v2483 = vld [vmem:[#allocation11 + $0xc0] sm:$0xff]
    %v2484 = vld [vmem:[#allocation11 + $0xc8] sm:$0xff]
    %v2485 = vld [vmem:[#allocation11 + $0xd0] sm:$0xff]
    %v2486 = vld [vmem:[#allocation11 + $0xd8] sm:$0xff]
    %v2487 = vld [vmem:[#allocation11 + $0xe0] sm:$0xff]
    %v2488 = vld [vmem:[#allocation11 + $0xe8] sm:$0xff]
    %v2489 = vld [vmem:[#allocation11 + $0xf0] sm:$0xff]
    %v2490 = vld [vmem:[#allocation11 + $0xf8] sm:$0xff]
    %v2491 = vld [vmem:[#allocation11 + $0x100] sm:$0xff]
    %v2492 = vld [vmem:[#allocation11 + $0x108] sm:$0xff]
    %v2493 = vld [vmem:[#allocation11 + $0x110] sm:$0xff]
    %v2494 = vld [vmem:[#allocation11 + $0x118] sm:$0xff]
    %v2495 = vld [vmem:[#allocation11 + $0x120] sm:$0xff]
    %v2496 = vld [vmem:[#allocation11 + $0x128] sm:$0xff]
    %v2497 = vld [vmem:[#allocation11 + $0x130] sm:$0xff]
    %v2498 = vld [vmem:[#allocation11 + $0x138] sm:$0xff]
    %v2499 = vld [vmem:[#allocation11 + $0x140] sm:$0xff]
    %v2500 = vld [vmem:[#allocation11 + $0x148] sm:$0xff]
    %v2501 = vld [vmem:[#allocation11 + $0x150] sm:$0xff]
    %v2502 = vld [vmem:[#allocation11 + $0x158] sm:$0xff]
    %v2503 = vld [vmem:[#allocation11 + $0x160] sm:$0xff]
    %v2504 = vld [vmem:[#allocation11 + $0x168] sm:$0xff]
    %v2505 = vld [vmem:[#allocation11 + $0x170] sm:$0xff]
    %v2506 = vld [vmem:[#allocation11 + $0x178] sm:$0xff]
    %v2507 = vld [vmem:[#allocation11 + $0x180] sm:$0xff]
    %v2508 = vld [vmem:[#allocation11 + $0x188] sm:$0xff]
    %v2509 = vld [vmem:[#allocation11 + $0x190] sm:$0xff]
    %v2510 = vld [vmem:[#allocation11 + $0x198] sm:$0xff]
    %v2511 = vld [vmem:[#allocation11 + $0x1a0] sm:$0xff]
    %v2512 = vld [vmem:[#allocation11 + $0x1a8] sm:$0xff]
    %v2513 = vld [vmem:[#allocation11 + $0x1b0] sm:$0xff]
    %v2514 = vld [vmem:[#allocation11 + $0x1b8] sm:$0xff]
    %v2515 = vld [vmem:[#allocation11 + $0x1c0] sm:$0xff]
    %v2516 = vld [vmem:[#allocation11 + $0x1c8] sm:$0xff]
    %v2517 = vld [vmem:[#allocation11 + $0x1d0] sm:$0xff]
    %v2518 = vld [vmem:[#allocation11 + $0x1d8] sm:$0xff]
    %v2519 = vld [vmem:[#allocation11 + $0x1e0] sm:$0xff]
    %v2520 = vld [vmem:[#allocation11 + $0x1e8] sm:$0xff]
    %v2521 = vld [vmem:[#allocation11 + $0x1f0] sm:$0xff]
    %v2522 = vld [vmem:[#allocation11 + $0x1f8] sm:$0xff]
    %v2523 = vld [vmem:[#allocation11 + $0x200] sm:$0xff]
    %v2524 = vld [vmem:[#allocation11 + $0x208] sm:$0xff]
    %v2525 = vld [vmem:[#allocation11 + $0x210] sm:$0xff]
    %v2526 = vld [vmem:[#allocation11 + $0x218] sm:$0xff]
    %v2527 = vld [vmem:[#allocation11 + $0x220] sm:$0xff]
    %v2528 = vld [vmem:[#allocation11 + $0x228] sm:$0xff]
    %v2529 = vld [vmem:[#allocation11 + $0x230] sm:$0xff]
    %v2530 = vld [vmem:[#allocation11 + $0x238] sm:$0xff]
    %v2531 = vld [vmem:[#allocation11 + $0x240] sm:$0xff]
    %v2532 = vld [vmem:[#allocation11 + $0x248] sm:$0xff]
    %v2533 = vld [vmem:[#allocation11 + $0x250] sm:$0xff]
    %v2534 = vld [vmem:[#allocation11 + $0x258] sm:$0xff]
    %v2535 = vld [vmem:[#allocation11 + $0x260] sm:$0xff]
    %v2536 = vld [vmem:[#allocation11 + $0x268] sm:$0xff]
    %v2537 = vld [vmem:[#allocation11 + $0x270] sm:$0xff]
    %v2538 = vld [vmem:[#allocation11 + $0x278] sm:$0xff]
    %v2539 = vld [vmem:[#allocation11 + $0x280] sm:$0xff]
    %v2540 = vld [vmem:[#allocation11 + $0x288] sm:$0xff]
    %v2541 = vld [vmem:[#allocation11 + $0x290] sm:$0xff]
    %v2542 = vld [vmem:[#allocation11 + $0x298] sm:$0xff]
    %v2543 = vld [vmem:[#allocation11 + $0x2a0] sm:$0xff]
    %v2544 = vld [vmem:[#allocation11 + $0x2a8] sm:$0xff]
    %v2545 = vld [vmem:[#allocation11 + $0x2b0] sm:$0xff]
    %v2546 = vld [vmem:[#allocation11 + $0x2b8] sm:$0xff]
    %v2547 = vld [vmem:[#allocation11 + $0x2c0] sm:$0xff]
    %v2548 = vld [vmem:[#allocation11 + $0x2c8] sm:$0xff]
    %v2549 = vld [vmem:[#allocation11 + $0x2d0] sm:$0xff]
    %v2550 = vld [vmem:[#allocation11 + $0x2d8] sm:$0xff]
    %v2551 = vld [vmem:[#allocation11 + $0x2e0] sm:$0xff]
    %v2552 = vld [vmem:[#allocation11 + $0x2e8] sm:$0xff]
    %v2553 = vld [vmem:[#allocation11 + $0x2f0] sm:$0xff]
    %v2554 = vld [vmem:[#allocation11 + $0x2f8] sm:$0xff]
    %v2555 = vld [vmem:[#allocation11 + $0x300] sm:$0xff]
    %v2556 = vld [vmem:[#allocation11 + $0x308] sm:$0xff]
    %v2557 = vld [vmem:[#allocation11 + $0x310] sm:$0xff]
    %v2558 = vld [vmem:[#allocation11 + $0x318] sm:$0xff]
    %v2559 = vld [vmem:[#allocation11 + $0x320] sm:$0xff]
    %v2560 = vld [vmem:[#allocation11 + $0x328] sm:$0xff]
    %v2561 = vld [vmem:[#allocation11 + $0x330] sm:$0xff]
    %v2562 = vld [vmem:[#allocation11 + $0x338] sm:$0xff]
    %v2563 = vld [vmem:[#allocation11 + $0x340] sm:$0xff]
    %v2564 = vld [vmem:[#allocation11 + $0x348] sm:$0xff]
    %v2565 = vld [vmem:[#allocation11 + $0x350] sm:$0xff]
    %v2566 = vld [vmem:[#allocation11 + $0x358] sm:$0xff]
    %v2567 = vld [vmem:[#allocation11 + $0x360] sm:$0xff]
    %v2568 = vld [vmem:[#allocation11 + $0x368] sm:$0xff]
    %v2569 = vld [vmem:[#allocation11 + $0x370] sm:$0xff]
    %v2570 = vld [vmem:[#allocation11 + $0x378] sm:$0xff]
    %v2571 = vld [vmem:[#allocation11 + $0x380] sm:$0xff]
    %v2572 = vld [vmem:[#allocation11 + $0x388] sm:$0xff]
    %v2573 = vld [vmem:[#allocation11 + $0x390] sm:$0xff]
    %v2574 = vld [vmem:[#allocation11 + $0x398] sm:$0xff]
    %v2575 = vld [vmem:[#allocation11 + $0x3a0] sm:$0xff]
    %v2576 = vld [vmem:[#allocation11 + $0x3a8] sm:$0xff]
    %v2577 = vld [vmem:[#allocation11 + $0x3b0] sm:$0xff]
    %v2578 = vld [vmem:[#allocation11 + $0x3b8] sm:$0xff]
    %v2579 = vld [vmem:[#allocation11 + $0x3c0] sm:$0xff]
    %v2580 = vld [vmem:[#allocation11 + $0x3c8] sm:$0xff]
    %v2581 = vld [vmem:[#allocation11 + $0x3d0] sm:$0xff]
    %v2582 = vld [vmem:[#allocation11 + $0x3d8] sm:$0xff]
    %v2583 = vld [vmem:[#allocation11 + $0x3e0] sm:$0xff]
    %v2584 = vld [vmem:[#allocation11 + $0x3e8] sm:$0xff]
    %v2585 = vld [vmem:[#allocation11 + $0x3f0] sm:$0xff]
    %v2586 = vld [vmem:[#allocation11 + $0x3f8] sm:$0xff]
    %s2587 = scalar_lea.vmem [#allocation11], 1024
    %v2588 = vld [vmem:[%s2587] sm:$0xff]
    %v2589 = vld [vmem:[%s2587 + $0x8] sm:$0xff]
    %v2590 = vld [vmem:[%s2587 + $0x10] sm:$0xff]
    %v2591 = vld [vmem:[%s2587 + $0x18] sm:$0xff]
    %v2592 = vld [vmem:[%s2587 + $0x20] sm:$0xff]
    %v2593 = vld [vmem:[%s2587 + $0x28] sm:$0xff]
    %v2594 = vld [vmem:[%s2587 + $0x30] sm:$0xff]
    %v2595 = vld [vmem:[%s2587 + $0x38] sm:$0xff]
    %v2596 = vld [vmem:[%s2587 + $0x40] sm:$0xff]
    %v2597 = vld [vmem:[%s2587 + $0x48] sm:$0xff]
    %v2598 = vld [vmem:[%s2587 + $0x50] sm:$0xff]
    %v2599 = vld [vmem:[%s2587 + $0x58] sm:$0xff]
    %v2600 = vld [vmem:[%s2587 + $0x60] sm:$0xff]
    %v2601 = vld [vmem:[%s2587 + $0x68] sm:$0xff]
    %v2602 = vld [vmem:[%s2587 + $0x70] sm:$0xff]
    %v2603 = vld [vmem:[%s2587 + $0x78] sm:$0xff]
    %v2604 = vld [vmem:[%s2587 + $0x80] sm:$0xff]
    %v2605 = vld [vmem:[%s2587 + $0x88] sm:$0xff]
    %v2606 = vld [vmem:[%s2587 + $0x90] sm:$0xff]
    %v2607 = vld [vmem:[%s2587 + $0x98] sm:$0xff]
    %v2608 = vld [vmem:[%s2587 + $0xa0] sm:$0xff]
    %v2609 = vld [vmem:[%s2587 + $0xa8] sm:$0xff]
    %v2610 = vld [vmem:[%s2587 + $0xb0] sm:$0xff]
    %v2611 = vld [vmem:[%s2587 + $0xb8] sm:$0xff]
    %v2612 = vld [vmem:[%s2587 + $0xc0] sm:$0xff]
    %v2613 = vld [vmem:[%s2587 + $0xc8] sm:$0xff]
    %v2614 = vld [vmem:[%s2587 + $0xd0] sm:$0xff]
    %v2615 = vld [vmem:[%s2587 + $0xd8] sm:$0xff]
    %v2616 = vld [vmem:[%s2587 + $0xe0] sm:$0xff]
    %v2617 = vld [vmem:[%s2587 + $0xe8] sm:$0xff]
    %v2618 = vld [vmem:[%s2587 + $0xf0] sm:$0xff]
    %v2619 = vld [vmem:[%s2587 + $0xf8] sm:$0xff]
    %v2620 = vld [vmem:[%s2587 + $0x100] sm:$0xff]
    %v2621 = vld [vmem:[%s2587 + $0x108] sm:$0xff]
    %v2622 = vld [vmem:[%s2587 + $0x110] sm:$0xff]
    %v2623 = vld [vmem:[%s2587 + $0x118] sm:$0xff]
    %v2624 = vld [vmem:[%s2587 + $0x120] sm:$0xff]
    %v2625 = vld [vmem:[%s2587 + $0x128] sm:$0xff]
    %v2626 = vld [vmem:[%s2587 + $0x130] sm:$0xff]
    %v2627 = vld [vmem:[%s2587 + $0x138] sm:$0xff]
    %v2628 = vld [vmem:[%s2587 + $0x140] sm:$0xff]
    %v2629 = vld [vmem:[%s2587 + $0x148] sm:$0xff]
    %v2630 = vld [vmem:[%s2587 + $0x150] sm:$0xff]
    %v2631 = vld [vmem:[%s2587 + $0x158] sm:$0xff]
    %v2632 = vld [vmem:[%s2587 + $0x160] sm:$0xff]
    %v2633 = vld [vmem:[%s2587 + $0x168] sm:$0xff]
    %v2634 = vld [vmem:[%s2587 + $0x170] sm:$0xff]
    %v2635 = vld [vmem:[%s2587 + $0x178] sm:$0xff]
    %v2636 = vld [vmem:[%s2587 + $0x180] sm:$0xff]
    %v2637 = vld [vmem:[%s2587 + $0x188] sm:$0xff]
    %v2638 = vld [vmem:[%s2587 + $0x190] sm:$0xff]
    %v2639 = vld [vmem:[%s2587 + $0x198] sm:$0xff]
    %v2640 = vld [vmem:[%s2587 + $0x1a0] sm:$0xff]
    %v2641 = vld [vmem:[%s2587 + $0x1a8] sm:$0xff]
    %v2642 = vld [vmem:[%s2587 + $0x1b0] sm:$0xff]
    %v2643 = vld [vmem:[%s2587 + $0x1b8] sm:$0xff]
    %v2644 = vld [vmem:[%s2587 + $0x1c0] sm:$0xff]
    %v2645 = vld [vmem:[%s2587 + $0x1c8] sm:$0xff]
    %v2646 = vld [vmem:[%s2587 + $0x1d0] sm:$0xff]
    %v2647 = vld [vmem:[%s2587 + $0x1d8] sm:$0xff]
    %v2648 = vld [vmem:[%s2587 + $0x1e0] sm:$0xff]
    %v2649 = vld [vmem:[%s2587 + $0x1e8] sm:$0xff]
    %v2650 = vld [vmem:[%s2587 + $0x1f0] sm:$0xff]
    %v2651 = vld [vmem:[%s2587 + $0x1f8] sm:$0xff]
    %v2652 = vld [vmem:[%s2587 + $0x200] sm:$0xff]
    %v2653 = vld [vmem:[%s2587 + $0x208] sm:$0xff]
    %v2654 = vld [vmem:[%s2587 + $0x210] sm:$0xff]
    %v2655 = vld [vmem:[%s2587 + $0x218] sm:$0xff]
    %v2656 = vld [vmem:[%s2587 + $0x220] sm:$0xff]
    %v2657 = vld [vmem:[%s2587 + $0x228] sm:$0xff]
    %v2658 = vld [vmem:[%s2587 + $0x230] sm:$0xff]
    %v2659 = vld [vmem:[%s2587 + $0x238] sm:$0xff]
    %v2660 = vld [vmem:[%s2587 + $0x240] sm:$0xff]
    %v2661 = vld [vmem:[%s2587 + $0x248] sm:$0xff]
    %v2662 = vld [vmem:[%s2587 + $0x250] sm:$0xff]
    %v2663 = vld [vmem:[%s2587 + $0x258] sm:$0xff]
    %v2664 = vld [vmem:[%s2587 + $0x260] sm:$0xff]
    %v2665 = vld [vmem:[%s2587 + $0x268] sm:$0xff]
    %v2666 = vld [vmem:[%s2587 + $0x270] sm:$0xff]
    %v2667 = vld [vmem:[%s2587 + $0x278] sm:$0xff]
    %v2668 = vld [vmem:[%s2587 + $0x280] sm:$0xff]
    %v2669 = vld [vmem:[%s2587 + $0x288] sm:$0xff]
    %v2670 = vld [vmem:[%s2587 + $0x290] sm:$0xff]
    %v2671 = vld [vmem:[%s2587 + $0x298] sm:$0xff]
    %v2672 = vld [vmem:[%s2587 + $0x2a0] sm:$0xff]
    %v2673 = vld [vmem:[%s2587 + $0x2a8] sm:$0xff]
    %v2674 = vld [vmem:[%s2587 + $0x2b0] sm:$0xff]
    %v2675 = vld [vmem:[%s2587 + $0x2b8] sm:$0xff]
    %v2676 = vld [vmem:[%s2587 + $0x2c0] sm:$0xff]
    %v2677 = vld [vmem:[%s2587 + $0x2c8] sm:$0xff]
    %v2678 = vld [vmem:[%s2587 + $0x2d0] sm:$0xff]
    %v2679 = vld [vmem:[%s2587 + $0x2d8] sm:$0xff]
    %v2680 = vld [vmem:[%s2587 + $0x2e0] sm:$0xff]
    %v2681 = vld [vmem:[%s2587 + $0x2e8] sm:$0xff]
    %v2682 = vld [vmem:[%s2587 + $0x2f0] sm:$0xff]
    %v2683 = vld [vmem:[%s2587 + $0x2f8] sm:$0xff]
    %v2684 = vld [vmem:[%s2587 + $0x300] sm:$0xff]
    %v2685 = vld [vmem:[%s2587 + $0x308] sm:$0xff]
    %v2686 = vld [vmem:[%s2587 + $0x310] sm:$0xff]
    %v2687 = vld [vmem:[%s2587 + $0x318] sm:$0xff]
    %v2688 = vld [vmem:[%s2587 + $0x320] sm:$0xff]
    %v2689 = vld [vmem:[%s2587 + $0x328] sm:$0xff]
    %v2690 = vld [vmem:[%s2587 + $0x330] sm:$0xff]
    %v2691 = vld [vmem:[%s2587 + $0x338] sm:$0xff]
    %v2692 = vld [vmem:[%s2587 + $0x340] sm:$0xff]
    %v2693 = vld [vmem:[%s2587 + $0x348] sm:$0xff]
    %v2694 = vld [vmem:[%s2587 + $0x350] sm:$0xff]
    %v2695 = vld [vmem:[%s2587 + $0x358] sm:$0xff]
    %v2696 = vld [vmem:[%s2587 + $0x360] sm:$0xff]
    %v2697 = vld [vmem:[%s2587 + $0x368] sm:$0xff]
    %v2698 = vld [vmem:[%s2587 + $0x370] sm:$0xff]
    %v2699 = vld [vmem:[%s2587 + $0x378] sm:$0xff]
    %v2700 = vld [vmem:[%s2587 + $0x380] sm:$0xff]
    %v2701 = vld [vmem:[%s2587 + $0x388] sm:$0xff]
    %v2702 = vld [vmem:[%s2587 + $0x390] sm:$0xff]
    %v2703 = vld [vmem:[%s2587 + $0x398] sm:$0xff]
    %v2704 = vld [vmem:[%s2587 + $0x3a0] sm:$0xff]
    %v2705 = vld [vmem:[%s2587 + $0x3a8] sm:$0xff]
    %v2706 = vld [vmem:[%s2587 + $0x3b0] sm:$0xff]
    %v2707 = vld [vmem:[%s2587 + $0x3b8] sm:$0xff]
    %v2708 = vld [vmem:[%s2587 + $0x3c0] sm:$0xff]
    %v2709 = vld [vmem:[%s2587 + $0x3c8] sm:$0xff]
    %v2710 = vld [vmem:[%s2587 + $0x3d0] sm:$0xff]
    %v2711 = vld [vmem:[%s2587 + $0x3d8] sm:$0xff]
    %v2712 = vld [vmem:[%s2587 + $0x3e0] sm:$0xff]
    %v2713 = vld [vmem:[%s2587 + $0x3e8] sm:$0xff]
    %v2714 = vld [vmem:[%s2587 + $0x3f0] sm:$0xff]
    %v2715 = vld [vmem:[%s2587 + $0x3f8] sm:$0xff]
    %2716 = vmatpush.msra.mxu0 %v2708
    %2717 = vmatpush.msra.mxu0 %v2700
    %2718 = vmatpush.msra.mxu0 %v2692
    %2719 = vmatpush.msra.mxu0 %v2684
    %2720 = vmatpush.msra.mxu0 %v2676
    %2721 = vmatpush.msra.mxu0 %v2668
    %2722 = vmatpush.msra.mxu0 %v2660
    %2723 = vmatpush.msra.mxu0 %v2652
    %2724 = vmatpush.msra.mxu0 %v2644
    %2725 = vmatpush.msra.mxu0 %v2636
    %2726 = vmatpush.msra.mxu0 %v2628
    %2727 = vmatpush.msra.mxu0 %v2620
    %2728 = vmatpush.msra.mxu0 %v2612
    %2729 = vmatpush.msra.mxu0 %v2604
    %2730 = vmatpush.msra.mxu0 %v2596
    %2731 = vmatpush.msra.mxu0 %v2588
    %2732 = vmatmul.f32.gmra.mxu0 %v2359
    %v2733 = vpop.f32.mrf.mxu0
    %v2734 = vadd.f32 0.0, %v2733
    %2735 = vmatmul.f32.gmra.mxu0 %v2362
    %v2736 = vpop.f32.mrf.mxu0
    %v2737 = vadd.f32 0.0, %v2736
    %2738 = vmatmul.f32.gmra.mxu0 %v2365
    %v2739 = vpop.f32.mrf.mxu0
    %v2740 = vadd.f32 0.0, %v2739
    %2741 = vmatmul.f32.gmra.mxu0 %v2368
    %v2742 = vpop.f32.mrf.mxu0
    %v2743 = vadd.f32 0.0, %v2742
    %2744 = vdwg.mxu0
    %2745 = vmatpush.msra.mxu0 %v2709
    %2746 = vmatpush.msra.mxu0 %v2701
    %2747 = vmatpush.msra.mxu0 %v2693
    %2748 = vmatpush.msra.mxu0 %v2685
    %2749 = vmatpush.msra.mxu0 %v2677
    %2750 = vmatpush.msra.mxu0 %v2669
    %2751 = vmatpush.msra.mxu0 %v2661
    %2752 = vmatpush.msra.mxu0 %v2653
    %2753 = vmatpush.msra.mxu0 %v2645
    %2754 = vmatpush.msra.mxu0 %v2637
    %2755 = vmatpush.msra.mxu0 %v2629
    %2756 = vmatpush.msra.mxu0 %v2621
    %2757 = vmatpush.msra.mxu0 %v2613
    %2758 = vmatpush.msra.mxu0 %v2605
    %2759 = vmatpush.msra.mxu0 %v2597
    %2760 = vmatpush.msra.mxu0 %v2589
    %2761 = vmatmul.f32.gmra.mxu0 %v2359
    %v2762 = vpop.f32.mrf.mxu0
    %v2763 = vadd.f32 0.0, %v2762
    %2764 = vmatmul.f32.gmra.mxu0 %v2362
    %v2765 = vpop.f32.mrf.mxu0
    %v2766 = vadd.f32 0.0, %v2765
    %2767 = vmatmul.f32.gmra.mxu0 %v2365
    %v2768 = vpop.f32.mrf.mxu0
    %v2769 = vadd.f32 0.0, %v2768
    %2770 = vmatmul.f32.gmra.mxu0 %v2368
    %v2771 = vpop.f32.mrf.mxu0
    %v2772 = vadd.f32 0.0, %v2771
    %2773 = vdwg.mxu0
    %2774 = vmatpush.msra.mxu0 %v2710
    %2775 = vmatpush.msra.mxu0 %v2702
    %2776 = vmatpush.msra.mxu0 %v2694
    %2777 = vmatpush.msra.mxu0 %v2686
    %2778 = vmatpush.msra.mxu0 %v2678
    %2779 = vmatpush.msra.mxu0 %v2670
    %2780 = vmatpush.msra.mxu0 %v2662
    %2781 = vmatpush.msra.mxu0 %v2654
    %2782 = vmatpush.msra.mxu0 %v2646
    %2783 = vmatpush.msra.mxu0 %v2638
    %2784 = vmatpush.msra.mxu0 %v2630
    %2785 = vmatpush.msra.mxu0 %v2622
    %2786 = vmatpush.msra.mxu0 %v2614
    %2787 = vmatpush.msra.mxu0 %v2606
    %2788 = vmatpush.msra.mxu0 %v2598
    %2789 = vmatpush.msra.mxu0 %v2590
    %2790 = vmatmul.f32.gmra.mxu0 %v2359
    %v2791 = vpop.f32.mrf.mxu0
    %v2792 = vadd.f32 0.0, %v2791
    %2793 = vmatmul.f32.gmra.mxu0 %v2362
    %v2794 = vpop.f32.mrf.mxu0
    %v2795 = vadd.f32 0.0, %v2794
    %2796 = vmatmul.f32.gmra.mxu0 %v2365
    %v2797 = vpop.f32.mrf.mxu0
    %v2798 = vadd.f32 0.0, %v2797
    %2799 = vmatmul.f32.gmra.mxu0 %v2368
    %v2800 = vpop.f32.mrf.mxu0
    %v2801 = vadd.f32 0.0, %v2800
    %2802 = vdwg.mxu0
    %2803 = vmatpush.msra.mxu0 %v2711
    %2804 = vmatpush.msra.mxu0 %v2703
    %2805 = vmatpush.msra.mxu0 %v2695
    %2806 = vmatpush.msra.mxu0 %v2687
    %2807 = vmatpush.msra.mxu0 %v2679
    %2808 = vmatpush.msra.mxu0 %v2671
    %2809 = vmatpush.msra.mxu0 %v2663
    %2810 = vmatpush.msra.mxu0 %v2655
    %2811 = vmatpush.msra.mxu0 %v2647
    %2812 = vmatpush.msra.mxu0 %v2639
    %2813 = vmatpush.msra.mxu0 %v2631
    %2814 = vmatpush.msra.mxu0 %v2623
    %2815 = vmatpush.msra.mxu0 %v2615
    %2816 = vmatpush.msra.mxu0 %v2607
    %2817 = vmatpush.msra.mxu0 %v2599
    %2818 = vmatpush.msra.mxu0 %v2591
    %2819 = vmatmul.f32.gmra.mxu0 %v2359
    %v2820 = vpop.f32.mrf.mxu0
    %v2821 = vadd.f32 0.0, %v2820
    %2822 = vmatmul.f32.gmra.mxu0 %v2362
    %v2823 = vpop.f32.mrf.mxu0
    %v2824 = vadd.f32 0.0, %v2823
    %2825 = vmatmul.f32.gmra.mxu0 %v2365
    %v2826 = vpop.f32.mrf.mxu0
    %v2827 = vadd.f32 0.0, %v2826
    %2828 = vmatmul.f32.gmra.mxu0 %v2368
    %v2829 = vpop.f32.mrf.mxu0
    %v2830 = vadd.f32 0.0, %v2829
    %2831 = vdwg.mxu0
    %2832 = vmatpush.msra.mxu0 %v2712
    %2833 = vmatpush.msra.mxu0 %v2704
    %2834 = vmatpush.msra.mxu0 %v2696
    %2835 = vmatpush.msra.mxu0 %v2688
    %2836 = vmatpush.msra.mxu0 %v2680
    %2837 = vmatpush.msra.mxu0 %v2672
    %2838 = vmatpush.msra.mxu0 %v2664
    %2839 = vmatpush.msra.mxu0 %v2656
    %2840 = vmatpush.msra.mxu0 %v2648
    %2841 = vmatpush.msra.mxu0 %v2640
    %2842 = vmatpush.msra.mxu0 %v2632
    %2843 = vmatpush.msra.mxu0 %v2624
    %2844 = vmatpush.msra.mxu0 %v2616
    %2845 = vmatpush.msra.mxu0 %v2608
    %2846 = vmatpush.msra.mxu0 %v2600
    %2847 = vmatpush.msra.mxu0 %v2592
    %2848 = vmatmul.f32.gmra.mxu0 %v2359
    %v2849 = vpop.f32.mrf.mxu0
    %v2850 = vadd.f32 0.0, %v2849
    %2851 = vmatmul.f32.gmra.mxu0 %v2362
    %v2852 = vpop.f32.mrf.mxu0
    %v2853 = vadd.f32 0.0, %v2852
    %2854 = vmatmul.f32.gmra.mxu0 %v2365
    %v2855 = vpop.f32.mrf.mxu0
    %v2856 = vadd.f32 0.0, %v2855
    %2857 = vmatmul.f32.gmra.mxu0 %v2368
    %v2858 = vpop.f32.mrf.mxu0
    %v2859 = vadd.f32 0.0, %v2858
    %2860 = vdwg.mxu0
    %2861 = vmatpush.msra.mxu0 %v2713
    %2862 = vmatpush.msra.mxu0 %v2705
    %2863 = vmatpush.msra.mxu0 %v2697
    %2864 = vmatpush.msra.mxu0 %v2689
    %2865 = vmatpush.msra.mxu0 %v2681
    %2866 = vmatpush.msra.mxu0 %v2673
    %2867 = vmatpush.msra.mxu0 %v2665
    %2868 = vmatpush.msra.mxu0 %v2657
    %2869 = vmatpush.msra.mxu0 %v2649
    %2870 = vmatpush.msra.mxu0 %v2641
    %2871 = vmatpush.msra.mxu0 %v2633
    %2872 = vmatpush.msra.mxu0 %v2625
    %2873 = vmatpush.msra.mxu0 %v2617
    %2874 = vmatpush.msra.mxu0 %v2609
    %2875 = vmatpush.msra.mxu0 %v2601
    %2876 = vmatpush.msra.mxu0 %v2593
    %2877 = vmatmul.f32.gmra.mxu0 %v2359
    %v2878 = vpop.f32.mrf.mxu0
    %v2879 = vadd.f32 0.0, %v2878
    %2880 = vmatmul.f32.gmra.mxu0 %v2362
    %v2881 = vpop.f32.mrf.mxu0
    %v2882 = vadd.f32 0.0, %v2881
    %2883 = vmatmul.f32.gmra.mxu0 %v2365
    %v2884 = vpop.f32.mrf.mxu0
    %v2885 = vadd.f32 0.0, %v2884
    %2886 = vmatmul.f32.gmra.mxu0 %v2368
    %v2887 = vpop.f32.mrf.mxu0
    %v2888 = vadd.f32 0.0, %v2887
    %2889 = vdwg.mxu0
    %2890 = vmatpush.msra.mxu0 %v2714
    %2891 = vmatpush.msra.mxu0 %v2706
    %2892 = vmatpush.msra.mxu0 %v2698
    %2893 = vmatpush.msra.mxu0 %v2690
    %2894 = vmatpush.msra.mxu0 %v2682
    %2895 = vmatpush.msra.mxu0 %v2674
    %2896 = vmatpush.msra.mxu0 %v2666
    %2897 = vmatpush.msra.mxu0 %v2658
    %2898 = vmatpush.msra.mxu0 %v2650
    %2899 = vmatpush.msra.mxu0 %v2642
    %2900 = vmatpush.msra.mxu0 %v2634
    %2901 = vmatpush.msra.mxu0 %v2626
    %2902 = vmatpush.msra.mxu0 %v2618
    %2903 = vmatpush.msra.mxu0 %v2610
    %2904 = vmatpush.msra.mxu0 %v2602
    %2905 = vmatpush.msra.mxu0 %v2594
    %2906 = vmatmul.f32.gmra.mxu0 %v2359
    %v2907 = vpop.f32.mrf.mxu0
    %v2908 = vadd.f32 0.0, %v2907
    %2909 = vmatmul.f32.gmra.mxu0 %v2362
    %v2910 = vpop.f32.mrf.mxu0
    %v2911 = vadd.f32 0.0, %v2910
    %2912 = vmatmul.f32.gmra.mxu0 %v2365
    %v2913 = vpop.f32.mrf.mxu0
    %v2914 = vadd.f32 0.0, %v2913
    %2915 = vmatmul.f32.gmra.mxu0 %v2368
    %v2916 = vpop.f32.mrf.mxu0
    %v2917 = vadd.f32 0.0, %v2916
    %2918 = vdwg.mxu0
    %2919 = vmatpush.msra.mxu0 %v2715
    %2920 = vmatpush.msra.mxu0 %v2707
    %2921 = vmatpush.msra.mxu0 %v2699
    %2922 = vmatpush.msra.mxu0 %v2691
    %2923 = vmatpush.msra.mxu0 %v2683
    %2924 = vmatpush.msra.mxu0 %v2675
    %2925 = vmatpush.msra.mxu0 %v2667
    %2926 = vmatpush.msra.mxu0 %v2659
    %2927 = vmatpush.msra.mxu0 %v2651
    %2928 = vmatpush.msra.mxu0 %v2643
    %2929 = vmatpush.msra.mxu0 %v2635
    %2930 = vmatpush.msra.mxu0 %v2627
    %2931 = vmatpush.msra.mxu0 %v2619
    %2932 = vmatpush.msra.mxu0 %v2611
    %2933 = vmatpush.msra.mxu0 %v2603
    %2934 = vmatpush.msra.mxu0 %v2595
    %2935 = vmatmul.f32.gmra.mxu0 %v2359
    %v2936 = vpop.f32.mrf.mxu0
    %v2937 = vadd.f32 0.0, %v2936
    %2938 = vmatmul.f32.gmra.mxu0 %v2362
    %v2939 = vpop.f32.mrf.mxu0
    %v2940 = vadd.f32 0.0, %v2939
    %2941 = vmatmul.f32.gmra.mxu0 %v2365
    %v2942 = vpop.f32.mrf.mxu0
    %v2943 = vadd.f32 0.0, %v2942
    %2944 = vmatmul.f32.gmra.mxu0 %v2368
    %v2945 = vpop.f32.mrf.mxu0
    %v2946 = vadd.f32 0.0, %v2945
    %2947 = vdwg.mxu0
    %2948 = vmatpush.msra.mxu0 %v2579
    %2949 = vmatpush.msra.mxu0 %v2571
    %2950 = vmatpush.msra.mxu0 %v2563
    %2951 = vmatpush.msra.mxu0 %v2555
    %2952 = vmatpush.msra.mxu0 %v2547
    %2953 = vmatpush.msra.mxu0 %v2539
    %2954 = vmatpush.msra.mxu0 %v2531
    %2955 = vmatpush.msra.mxu0 %v2523
    %2956 = vmatpush.msra.mxu0 %v2515
    %2957 = vmatpush.msra.mxu0 %v2507
    %2958 = vmatpush.msra.mxu0 %v2499
    %2959 = vmatpush.msra.mxu0 %v2491
    %2960 = vmatpush.msra.mxu0 %v2483
    %2961 = vmatpush.msra.mxu0 %v2475
    %2962 = vmatpush.msra.mxu0 %v2467
    %2963 = vmatpush.msra.mxu0 %v2459
    %2964 = vmatmul.f32.gmra.mxu0 %v2347
    %v2965 = vpop.f32.mrf.mxu0
    %v2966 = vadd.f32 %v2734, %v2965
    %2967 = vmatmul.f32.gmra.mxu0 %v2350
    %v2968 = vpop.f32.mrf.mxu0
    %v2969 = vadd.f32 %v2737, %v2968
    %2970 = vmatmul.f32.gmra.mxu0 %v2353
    %v2971 = vpop.f32.mrf.mxu0
    %v2972 = vadd.f32 %v2740, %v2971
    %2973 = vmatmul.f32.gmra.mxu0 %v2356
    %v2974 = vpop.f32.mrf.mxu0
    %v2975 = vadd.f32 %v2743, %v2974
    %2976 = vdwg.mxu0
    %2977 = vmatpush.msra.mxu0 %v2580
    %2978 = vmatpush.msra.mxu0 %v2572
    %2979 = vmatpush.msra.mxu0 %v2564
    %2980 = vmatpush.msra.mxu0 %v2556
    %2981 = vmatpush.msra.mxu0 %v2548
    %2982 = vmatpush.msra.mxu0 %v2540
    %2983 = vmatpush.msra.mxu0 %v2532
    %2984 = vmatpush.msra.mxu0 %v2524
    %2985 = vmatpush.msra.mxu0 %v2516
    %2986 = vmatpush.msra.mxu0 %v2508
    %2987 = vmatpush.msra.mxu0 %v2500
    %2988 = vmatpush.msra.mxu0 %v2492
    %2989 = vmatpush.msra.mxu0 %v2484
    %2990 = vmatpush.msra.mxu0 %v2476
    %2991 = vmatpush.msra.mxu0 %v2468
    %2992 = vmatpush.msra.mxu0 %v2460
    %2993 = vmatmul.f32.gmra.mxu0 %v2347
    %v2994 = vpop.f32.mrf.mxu0
    %v2995 = vadd.f32 %v2763, %v2994
    %2996 = vmatmul.f32.gmra.mxu0 %v2350
    %v2997 = vpop.f32.mrf.mxu0
    %v2998 = vadd.f32 %v2766, %v2997
    %2999 = vmatmul.f32.gmra.mxu0 %v2353
    %v3000 = vpop.f32.mrf.mxu0
    %v3001 = vadd.f32 %v2769, %v3000
    %3002 = vmatmul.f32.gmra.mxu0 %v2356
    %v3003 = vpop.f32.mrf.mxu0
    %v3004 = vadd.f32 %v2772, %v3003
    %3005 = vdwg.mxu0
    %3006 = vmatpush.msra.mxu0 %v2581
    %3007 = vmatpush.msra.mxu0 %v2573
    %3008 = vmatpush.msra.mxu0 %v2565
    %3009 = vmatpush.msra.mxu0 %v2557
    %3010 = vmatpush.msra.mxu0 %v2549
    %3011 = vmatpush.msra.mxu0 %v2541
    %3012 = vmatpush.msra.mxu0 %v2533
    %3013 = vmatpush.msra.mxu0 %v2525
    %3014 = vmatpush.msra.mxu0 %v2517
    %3015 = vmatpush.msra.mxu0 %v2509
    %3016 = vmatpush.msra.mxu0 %v2501
    %3017 = vmatpush.msra.mxu0 %v2493
    %3018 = vmatpush.msra.mxu0 %v2485
    %3019 = vmatpush.msra.mxu0 %v2477
    %3020 = vmatpush.msra.mxu0 %v2469
    %3021 = vmatpush.msra.mxu0 %v2461
    %3022 = vmatmul.f32.gmra.mxu0 %v2347
    %v3023 = vpop.f32.mrf.mxu0
    %v3024 = vadd.f32 %v2792, %v3023
    %3025 = vmatmul.f32.gmra.mxu0 %v2350
    %v3026 = vpop.f32.mrf.mxu0
    %v3027 = vadd.f32 %v2795, %v3026
    %3028 = vmatmul.f32.gmra.mxu0 %v2353
    %v3029 = vpop.f32.mrf.mxu0
    %v3030 = vadd.f32 %v2798, %v3029
    %3031 = vmatmul.f32.gmra.mxu0 %v2356
    %v3032 = vpop.f32.mrf.mxu0
    %v3033 = vadd.f32 %v2801, %v3032
    %3034 = vdwg.mxu0
    %3035 = vmatpush.msra.mxu0 %v2582
    %3036 = vmatpush.msra.mxu0 %v2574
    %3037 = vmatpush.msra.mxu0 %v2566
    %3038 = vmatpush.msra.mxu0 %v2558
    %3039 = vmatpush.msra.mxu0 %v2550
    %3040 = vmatpush.msra.mxu0 %v2542
    %3041 = vmatpush.msra.mxu0 %v2534
    %3042 = vmatpush.msra.mxu0 %v2526
    %3043 = vmatpush.msra.mxu0 %v2518
    %3044 = vmatpush.msra.mxu0 %v2510
    %3045 = vmatpush.msra.mxu0 %v2502
    %3046 = vmatpush.msra.mxu0 %v2494
    %3047 = vmatpush.msra.mxu0 %v2486
    %3048 = vmatpush.msra.mxu0 %v2478
    %3049 = vmatpush.msra.mxu0 %v2470
    %3050 = vmatpush.msra.mxu0 %v2462
    %3051 = vmatmul.f32.gmra.mxu0 %v2347
    %v3052 = vpop.f32.mrf.mxu0
    %v3053 = vadd.f32 %v2821, %v3052
    %3054 = vmatmul.f32.gmra.mxu0 %v2350
    %v3055 = vpop.f32.mrf.mxu0
    %v3056 = vadd.f32 %v2824, %v3055
    %3057 = vmatmul.f32.gmra.mxu0 %v2353
    %v3058 = vpop.f32.mrf.mxu0
    %v3059 = vadd.f32 %v2827, %v3058
    %3060 = vmatmul.f32.gmra.mxu0 %v2356
    %v3061 = vpop.f32.mrf.mxu0
    %v3062 = vadd.f32 %v2830, %v3061
    %3063 = vdwg.mxu0
    %3064 = vmatpush.msra.mxu0 %v2583
    %3065 = vmatpush.msra.mxu0 %v2575
    %3066 = vmatpush.msra.mxu0 %v2567
    %3067 = vmatpush.msra.mxu0 %v2559
    %3068 = vmatpush.msra.mxu0 %v2551
    %3069 = vmatpush.msra.mxu0 %v2543
    %3070 = vmatpush.msra.mxu0 %v2535
    %3071 = vmatpush.msra.mxu0 %v2527
    %3072 = vmatpush.msra.mxu0 %v2519
    %3073 = vmatpush.msra.mxu0 %v2511
    %3074 = vmatpush.msra.mxu0 %v2503
    %3075 = vmatpush.msra.mxu0 %v2495
    %3076 = vmatpush.msra.mxu0 %v2487
    %3077 = vmatpush.msra.mxu0 %v2479
    %3078 = vmatpush.msra.mxu0 %v2471
    %3079 = vmatpush.msra.mxu0 %v2463
    %3080 = vmatmul.f32.gmra.mxu0 %v2347
    %v3081 = vpop.f32.mrf.mxu0
    %v3082 = vadd.f32 %v2850, %v3081
    %3083 = vmatmul.f32.gmra.mxu0 %v2350
    %v3084 = vpop.f32.mrf.mxu0
    %v3085 = vadd.f32 %v2853, %v3084
    %3086 = vmatmul.f32.gmra.mxu0 %v2353
    %v3087 = vpop.f32.mrf.mxu0
    %v3088 = vadd.f32 %v2856, %v3087
    %3089 = vmatmul.f32.gmra.mxu0 %v2356
    %v3090 = vpop.f32.mrf.mxu0
    %v3091 = vadd.f32 %v2859, %v3090
    %3092 = vdwg.mxu0
    %3093 = vmatpush.msra.mxu0 %v2584
    %3094 = vmatpush.msra.mxu0 %v2576
    %3095 = vmatpush.msra.mxu0 %v2568
    %3096 = vmatpush.msra.mxu0 %v2560
    %3097 = vmatpush.msra.mxu0 %v2552
    %3098 = vmatpush.msra.mxu0 %v2544
    %3099 = vmatpush.msra.mxu0 %v2536
    %3100 = vmatpush.msra.mxu0 %v2528
    %3101 = vmatpush.msra.mxu0 %v2520
    %3102 = vmatpush.msra.mxu0 %v2512
    %3103 = vmatpush.msra.mxu0 %v2504
    %3104 = vmatpush.msra.mxu0 %v2496
    %3105 = vmatpush.msra.mxu0 %v2488
    %3106 = vmatpush.msra.mxu0 %v2480
    %3107 = vmatpush.msra.mxu0 %v2472
    %3108 = vmatpush.msra.mxu0 %v2464
    %3109 = vmatmul.f32.gmra.mxu0 %v2347
    %v3110 = vpop.f32.mrf.mxu0
    %v3111 = vadd.f32 %v2879, %v3110
    %3112 = vmatmul.f32.gmra.mxu0 %v2350
    %v3113 = vpop.f32.mrf.mxu0
    %v3114 = vadd.f32 %v2882, %v3113
    %3115 = vmatmul.f32.gmra.mxu0 %v2353
    %v3116 = vpop.f32.mrf.mxu0
    %v3117 = vadd.f32 %v2885, %v3116
    %3118 = vmatmul.f32.gmra.mxu0 %v2356
    %v3119 = vpop.f32.mrf.mxu0
    %v3120 = vadd.f32 %v2888, %v3119
    %3121 = vdwg.mxu0
    %3122 = vmatpush.msra.mxu0 %v2585
    %3123 = vmatpush.msra.mxu0 %v2577
    %3124 = vmatpush.msra.mxu0 %v2569
    %3125 = vmatpush.msra.mxu0 %v2561
    %3126 = vmatpush.msra.mxu0 %v2553
    %3127 = vmatpush.msra.mxu0 %v2545
    %3128 = vmatpush.msra.mxu0 %v2537
    %3129 = vmatpush.msra.mxu0 %v2529
    %3130 = vmatpush.msra.mxu0 %v2521
    %3131 = vmatpush.msra.mxu0 %v2513
    %3132 = vmatpush.msra.mxu0 %v2505
    %3133 = vmatpush.msra.mxu0 %v2497
    %3134 = vmatpush.msra.mxu0 %v2489
    %3135 = vmatpush.msra.mxu0 %v2481
    %3136 = vmatpush.msra.mxu0 %v2473
    %3137 = vmatpush.msra.mxu0 %v2465
    %3138 = vmatmul.f32.gmra.mxu0 %v2347
    %v3139 = vpop.f32.mrf.mxu0
    %v3140 = vadd.f32 %v2908, %v3139
    %3141 = vmatmul.f32.gmra.mxu0 %v2350
    %v3142 = vpop.f32.mrf.mxu0
    %v3143 = vadd.f32 %v2911, %v3142
    %3144 = vmatmul.f32.gmra.mxu0 %v2353
    %v3145 = vpop.f32.mrf.mxu0
    %v3146 = vadd.f32 %v2914, %v3145
    %3147 = vmatmul.f32.gmra.mxu0 %v2356
    %v3148 = vpop.f32.mrf.mxu0
    %v3149 = vadd.f32 %v2917, %v3148
    %3150 = vdwg.mxu0
    %3151 = vmatpush.msra.mxu0 %v2586
    %3152 = vmatpush.msra.mxu0 %v2578
    %3153 = vmatpush.msra.mxu0 %v2570
    %3154 = vmatpush.msra.mxu0 %v2562
    %3155 = vmatpush.msra.mxu0 %v2554
    %3156 = vmatpush.msra.mxu0 %v2546
    %3157 = vmatpush.msra.mxu0 %v2538
    %3158 = vmatpush.msra.mxu0 %v2530
    %3159 = vmatpush.msra.mxu0 %v2522
    %3160 = vmatpush.msra.mxu0 %v2514
    %3161 = vmatpush.msra.mxu0 %v2506
    %3162 = vmatpush.msra.mxu0 %v2498
    %3163 = vmatpush.msra.mxu0 %v2490
    %3164 = vmatpush.msra.mxu0 %v2482
    %3165 = vmatpush.msra.mxu0 %v2474
    %3166 = vmatpush.msra.mxu0 %v2466
    %3167 = vmatmul.f32.gmra.mxu0 %v2347
    %v3168 = vpop.f32.mrf.mxu0
    %v3169 = vadd.f32 %v2937, %v3168
    %3170 = vmatmul.f32.gmra.mxu0 %v2350
    %v3171 = vpop.f32.mrf.mxu0
    %v3172 = vadd.f32 %v2940, %v3171
    %3173 = vmatmul.f32.gmra.mxu0 %v2353
    %v3174 = vpop.f32.mrf.mxu0
    %v3175 = vadd.f32 %v2943, %v3174
    %3176 = vmatmul.f32.gmra.mxu0 %v2356
    %v3177 = vpop.f32.mrf.mxu0
    %v3178 = vadd.f32 %v2946, %v3177
    %3179 = vdwg.mxu0
    %s3180 = scalar_lea.vmem [#allocation11], 2048
    %v3181 = vld [vmem:[%s3180] sm:$0xff]
    %v3182 = vld [vmem:[%s3180 + $0x8] sm:$0xff]
    %v3183 = vld [vmem:[%s3180 + $0x10] sm:$0xff]
    %v3184 = vld [vmem:[%s3180 + $0x18] sm:$0xff]
    %v3185 = vld [vmem:[%s3180 + $0x20] sm:$0xff]
    %v3186 = vld [vmem:[%s3180 + $0x28] sm:$0xff]
    %v3187 = vld [vmem:[%s3180 + $0x30] sm:$0xff]
    %v3188 = vld [vmem:[%s3180 + $0x38] sm:$0xff]
    %v3189 = vld [vmem:[%s3180 + $0x40] sm:$0xff]
    %v3190 = vld [vmem:[%s3180 + $0x48] sm:$0xff]
    %v3191 = vld [vmem:[%s3180 + $0x50] sm:$0xff]
    %v3192 = vld [vmem:[%s3180 + $0x58] sm:$0xff]
    %v3193 = vld [vmem:[%s3180 + $0x60] sm:$0xff]
    %v3194 = vld [vmem:[%s3180 + $0x68] sm:$0xff]
    %v3195 = vld [vmem:[%s3180 + $0x70] sm:$0xff]
    %v3196 = vld [vmem:[%s3180 + $0x78] sm:$0xff]
    %v3197 = vld [vmem:[%s3180 + $0x80] sm:$0xff]
    %v3198 = vld [vmem:[%s3180 + $0x88] sm:$0xff]
    %v3199 = vld [vmem:[%s3180 + $0x90] sm:$0xff]
    %v3200 = vld [vmem:[%s3180 + $0x98] sm:$0xff]
    %v3201 = vld [vmem:[%s3180 + $0xa0] sm:$0xff]
    %v3202 = vld [vmem:[%s3180 + $0xa8] sm:$0xff]
    %v3203 = vld [vmem:[%s3180 + $0xb0] sm:$0xff]
    %v3204 = vld [vmem:[%s3180 + $0xb8] sm:$0xff]
    %v3205 = vld [vmem:[%s3180 + $0xc0] sm:$0xff]
    %v3206 = vld [vmem:[%s3180 + $0xc8] sm:$0xff]
    %v3207 = vld [vmem:[%s3180 + $0xd0] sm:$0xff]
    %v3208 = vld [vmem:[%s3180 + $0xd8] sm:$0xff]
    %v3209 = vld [vmem:[%s3180 + $0xe0] sm:$0xff]
    %v3210 = vld [vmem:[%s3180 + $0xe8] sm:$0xff]
    %v3211 = vld [vmem:[%s3180 + $0xf0] sm:$0xff]
    %v3212 = vld [vmem:[%s3180 + $0xf8] sm:$0xff]
    %v3213 = vld [vmem:[%s3180 + $0x100] sm:$0xff]
    %v3214 = vld [vmem:[%s3180 + $0x108] sm:$0xff]
    %v3215 = vld [vmem:[%s3180 + $0x110] sm:$0xff]
    %v3216 = vld [vmem:[%s3180 + $0x118] sm:$0xff]
    %v3217 = vld [vmem:[%s3180 + $0x120] sm:$0xff]
    %v3218 = vld [vmem:[%s3180 + $0x128] sm:$0xff]
    %v3219 = vld [vmem:[%s3180 + $0x130] sm:$0xff]
    %v3220 = vld [vmem:[%s3180 + $0x138] sm:$0xff]
    %v3221 = vld [vmem:[%s3180 + $0x140] sm:$0xff]
    %v3222 = vld [vmem:[%s3180 + $0x148] sm:$0xff]
    %v3223 = vld [vmem:[%s3180 + $0x150] sm:$0xff]
    %v3224 = vld [vmem:[%s3180 + $0x158] sm:$0xff]
    %v3225 = vld [vmem:[%s3180 + $0x160] sm:$0xff]
    %v3226 = vld [vmem:[%s3180 + $0x168] sm:$0xff]
    %v3227 = vld [vmem:[%s3180 + $0x170] sm:$0xff]
    %v3228 = vld [vmem:[%s3180 + $0x178] sm:$0xff]
    %v3229 = vld [vmem:[%s3180 + $0x180] sm:$0xff]
    %v3230 = vld [vmem:[%s3180 + $0x188] sm:$0xff]
    %v3231 = vld [vmem:[%s3180 + $0x190] sm:$0xff]
    %v3232 = vld [vmem:[%s3180 + $0x198] sm:$0xff]
    %v3233 = vld [vmem:[%s3180 + $0x1a0] sm:$0xff]
    %v3234 = vld [vmem:[%s3180 + $0x1a8] sm:$0xff]
    %v3235 = vld [vmem:[%s3180 + $0x1b0] sm:$0xff]
    %v3236 = vld [vmem:[%s3180 + $0x1b8] sm:$0xff]
    %v3237 = vld [vmem:[%s3180 + $0x1c0] sm:$0xff]
    %v3238 = vld [vmem:[%s3180 + $0x1c8] sm:$0xff]
    %v3239 = vld [vmem:[%s3180 + $0x1d0] sm:$0xff]
    %v3240 = vld [vmem:[%s3180 + $0x1d8] sm:$0xff]
    %v3241 = vld [vmem:[%s3180 + $0x1e0] sm:$0xff]
    %v3242 = vld [vmem:[%s3180 + $0x1e8] sm:$0xff]
    %v3243 = vld [vmem:[%s3180 + $0x1f0] sm:$0xff]
    %v3244 = vld [vmem:[%s3180 + $0x1f8] sm:$0xff]
    %v3245 = vld [vmem:[%s3180 + $0x200] sm:$0xff]
    %v3246 = vld [vmem:[%s3180 + $0x208] sm:$0xff]
    %v3247 = vld [vmem:[%s3180 + $0x210] sm:$0xff]
    %v3248 = vld [vmem:[%s3180 + $0x218] sm:$0xff]
    %v3249 = vld [vmem:[%s3180 + $0x220] sm:$0xff]
    %v3250 = vld [vmem:[%s3180 + $0x228] sm:$0xff]
    %v3251 = vld [vmem:[%s3180 + $0x230] sm:$0xff]
    %v3252 = vld [vmem:[%s3180 + $0x238] sm:$0xff]
    %v3253 = vld [vmem:[%s3180 + $0x240] sm:$0xff]
    %v3254 = vld [vmem:[%s3180 + $0x248] sm:$0xff]
    %v3255 = vld [vmem:[%s3180 + $0x250] sm:$0xff]
    %v3256 = vld [vmem:[%s3180 + $0x258] sm:$0xff]
    %v3257 = vld [vmem:[%s3180 + $0x260] sm:$0xff]
    %v3258 = vld [vmem:[%s3180 + $0x268] sm:$0xff]
    %v3259 = vld [vmem:[%s3180 + $0x270] sm:$0xff]
    %v3260 = vld [vmem:[%s3180 + $0x278] sm:$0xff]
    %v3261 = vld [vmem:[%s3180 + $0x280] sm:$0xff]
    %v3262 = vld [vmem:[%s3180 + $0x288] sm:$0xff]
    %v3263 = vld [vmem:[%s3180 + $0x290] sm:$0xff]
    %v3264 = vld [vmem:[%s3180 + $0x298] sm:$0xff]
    %v3265 = vld [vmem:[%s3180 + $0x2a0] sm:$0xff]
    %v3266 = vld [vmem:[%s3180 + $0x2a8] sm:$0xff]
    %v3267 = vld [vmem:[%s3180 + $0x2b0] sm:$0xff]
    %v3268 = vld [vmem:[%s3180 + $0x2b8] sm:$0xff]
    %v3269 = vld [vmem:[%s3180 + $0x2c0] sm:$0xff]
    %v3270 = vld [vmem:[%s3180 + $0x2c8] sm:$0xff]
    %v3271 = vld [vmem:[%s3180 + $0x2d0] sm:$0xff]
    %v3272 = vld [vmem:[%s3180 + $0x2d8] sm:$0xff]
    %v3273 = vld [vmem:[%s3180 + $0x2e0] sm:$0xff]
    %v3274 = vld [vmem:[%s3180 + $0x2e8] sm:$0xff]
    %v3275 = vld [vmem:[%s3180 + $0x2f0] sm:$0xff]
    %v3276 = vld [vmem:[%s3180 + $0x2f8] sm:$0xff]
    %v3277 = vld [vmem:[%s3180 + $0x300] sm:$0xff]
    %v3278 = vld [vmem:[%s3180 + $0x308] sm:$0xff]
    %v3279 = vld [vmem:[%s3180 + $0x310] sm:$0xff]
    %v3280 = vld [vmem:[%s3180 + $0x318] sm:$0xff]
    %v3281 = vld [vmem:[%s3180 + $0x320] sm:$0xff]
    %v3282 = vld [vmem:[%s3180 + $0x328] sm:$0xff]
    %v3283 = vld [vmem:[%s3180 + $0x330] sm:$0xff]
    %v3284 = vld [vmem:[%s3180 + $0x338] sm:$0xff]
    %v3285 = vld [vmem:[%s3180 + $0x340] sm:$0xff]
    %v3286 = vld [vmem:[%s3180 + $0x348] sm:$0xff]
    %v3287 = vld [vmem:[%s3180 + $0x350] sm:$0xff]
    %v3288 = vld [vmem:[%s3180 + $0x358] sm:$0xff]
    %v3289 = vld [vmem:[%s3180 + $0x360] sm:$0xff]
    %v3290 = vld [vmem:[%s3180 + $0x368] sm:$0xff]
    %v3291 = vld [vmem:[%s3180 + $0x370] sm:$0xff]
    %v3292 = vld [vmem:[%s3180 + $0x378] sm:$0xff]
    %v3293 = vld [vmem:[%s3180 + $0x380] sm:$0xff]
    %v3294 = vld [vmem:[%s3180 + $0x388] sm:$0xff]
    %v3295 = vld [vmem:[%s3180 + $0x390] sm:$0xff]
    %v3296 = vld [vmem:[%s3180 + $0x398] sm:$0xff]
    %v3297 = vld [vmem:[%s3180 + $0x3a0] sm:$0xff]
    %v3298 = vld [vmem:[%s3180 + $0x3a8] sm:$0xff]
    %v3299 = vld [vmem:[%s3180 + $0x3b0] sm:$0xff]
    %v3300 = vld [vmem:[%s3180 + $0x3b8] sm:$0xff]
    %v3301 = vld [vmem:[%s3180 + $0x3c0] sm:$0xff]
    %v3302 = vld [vmem:[%s3180 + $0x3c8] sm:$0xff]
    %v3303 = vld [vmem:[%s3180 + $0x3d0] sm:$0xff]
    %v3304 = vld [vmem:[%s3180 + $0x3d8] sm:$0xff]
    %v3305 = vld [vmem:[%s3180 + $0x3e0] sm:$0xff]
    %v3306 = vld [vmem:[%s3180 + $0x3e8] sm:$0xff]
    %v3307 = vld [vmem:[%s3180 + $0x3f0] sm:$0xff]
    %v3308 = vld [vmem:[%s3180 + $0x3f8] sm:$0xff]
    %3309 = vmatpush.msra.mxu0 %v3301
    %3310 = vmatpush.msra.mxu0 %v3293
    %3311 = vmatpush.msra.mxu0 %v3285
    %3312 = vmatpush.msra.mxu0 %v3277
    %3313 = vmatpush.msra.mxu0 %v3269
    %3314 = vmatpush.msra.mxu0 %v3261
    %3315 = vmatpush.msra.mxu0 %v3253
    %3316 = vmatpush.msra.mxu0 %v3245
    %3317 = vmatpush.msra.mxu0 %v3237
    %3318 = vmatpush.msra.mxu0 %v3229
    %3319 = vmatpush.msra.mxu0 %v3221
    %3320 = vmatpush.msra.mxu0 %v3213
    %3321 = vmatpush.msra.mxu0 %v3205
    %3322 = vmatpush.msra.mxu0 %v3197
    %3323 = vmatpush.msra.mxu0 %v3189
    %3324 = vmatpush.msra.mxu0 %v3181
    %3325 = vmatmul.f32.gmra.mxu0 %v2371
    %v3326 = vpop.f32.mrf.mxu0
    %v3327 = vadd.f32 0.0, %v3326
    %3328 = vmatmul.f32.gmra.mxu0 %v2374
    %v3329 = vpop.f32.mrf.mxu0
    %v3330 = vadd.f32 0.0, %v3329
    %3331 = vmatmul.f32.gmra.mxu0 %v2377
    %v3332 = vpop.f32.mrf.mxu0
    %v3333 = vadd.f32 0.0, %v3332
    %3334 = vmatmul.f32.gmra.mxu0 %v2380
    %v3335 = vpop.f32.mrf.mxu0
    %v3336 = vadd.f32 0.0, %v3335
    %3337 = vdwg.mxu0
    %3338 = vmatpush.msra.mxu0 %v3302
    %3339 = vmatpush.msra.mxu0 %v3294
    %3340 = vmatpush.msra.mxu0 %v3286
    %3341 = vmatpush.msra.mxu0 %v3278
    %3342 = vmatpush.msra.mxu0 %v3270
    %3343 = vmatpush.msra.mxu0 %v3262
    %3344 = vmatpush.msra.mxu0 %v3254
    %3345 = vmatpush.msra.mxu0 %v3246
    %3346 = vmatpush.msra.mxu0 %v3238
    %3347 = vmatpush.msra.mxu0 %v3230
    %3348 = vmatpush.msra.mxu0 %v3222
    %3349 = vmatpush.msra.mxu0 %v3214
    %3350 = vmatpush.msra.mxu0 %v3206
    %3351 = vmatpush.msra.mxu0 %v3198
    %3352 = vmatpush.msra.mxu0 %v3190
    %3353 = vmatpush.msra.mxu0 %v3182
    %3354 = vmatmul.f32.gmra.mxu0 %v2371
    %v3355 = vpop.f32.mrf.mxu0
    %v3356 = vadd.f32 0.0, %v3355
    %3357 = vmatmul.f32.gmra.mxu0 %v2374
    %v3358 = vpop.f32.mrf.mxu0
    %v3359 = vadd.f32 0.0, %v3358
    %3360 = vmatmul.f32.gmra.mxu0 %v2377
    %v3361 = vpop.f32.mrf.mxu0
    %v3362 = vadd.f32 0.0, %v3361
    %3363 = vmatmul.f32.gmra.mxu0 %v2380
    %v3364 = vpop.f32.mrf.mxu0
    %v3365 = vadd.f32 0.0, %v3364
    %3366 = vdwg.mxu0
    %3367 = vmatpush.msra.mxu0 %v3303
    %3368 = vmatpush.msra.mxu0 %v3295
    %3369 = vmatpush.msra.mxu0 %v3287
    %3370 = vmatpush.msra.mxu0 %v3279
    %3371 = vmatpush.msra.mxu0 %v3271
    %3372 = vmatpush.msra.mxu0 %v3263
    %3373 = vmatpush.msra.mxu0 %v3255
    %3374 = vmatpush.msra.mxu0 %v3247
    %3375 = vmatpush.msra.mxu0 %v3239
    %3376 = vmatpush.msra.mxu0 %v3231
    %3377 = vmatpush.msra.mxu0 %v3223
    %3378 = vmatpush.msra.mxu0 %v3215
    %3379 = vmatpush.msra.mxu0 %v3207
    %3380 = vmatpush.msra.mxu0 %v3199
    %3381 = vmatpush.msra.mxu0 %v3191
    %3382 = vmatpush.msra.mxu0 %v3183
    %3383 = vmatmul.f32.gmra.mxu0 %v2371
    %v3384 = vpop.f32.mrf.mxu0
    %v3385 = vadd.f32 0.0, %v3384
    %3386 = vmatmul.f32.gmra.mxu0 %v2374
    %v3387 = vpop.f32.mrf.mxu0
    %v3388 = vadd.f32 0.0, %v3387
    %3389 = vmatmul.f32.gmra.mxu0 %v2377
    %v3390 = vpop.f32.mrf.mxu0
    %v3391 = vadd.f32 0.0, %v3390
    %3392 = vmatmul.f32.gmra.mxu0 %v2380
    %v3393 = vpop.f32.mrf.mxu0
    %v3394 = vadd.f32 0.0, %v3393
    %3395 = vdwg.mxu0
    %3396 = vmatpush.msra.mxu0 %v3304
    %3397 = vmatpush.msra.mxu0 %v3296
    %3398 = vmatpush.msra.mxu0 %v3288
    %3399 = vmatpush.msra.mxu0 %v3280
    %3400 = vmatpush.msra.mxu0 %v3272
    %3401 = vmatpush.msra.mxu0 %v3264
    %3402 = vmatpush.msra.mxu0 %v3256
    %3403 = vmatpush.msra.mxu0 %v3248
    %3404 = vmatpush.msra.mxu0 %v3240
    %3405 = vmatpush.msra.mxu0 %v3232
    %3406 = vmatpush.msra.mxu0 %v3224
    %3407 = vmatpush.msra.mxu0 %v3216
    %3408 = vmatpush.msra.mxu0 %v3208
    %3409 = vmatpush.msra.mxu0 %v3200
    %3410 = vmatpush.msra.mxu0 %v3192
    %3411 = vmatpush.msra.mxu0 %v3184
    %3412 = vmatmul.f32.gmra.mxu0 %v2371
    %v3413 = vpop.f32.mrf.mxu0
    %v3414 = vadd.f32 0.0, %v3413
    %3415 = vmatmul.f32.gmra.mxu0 %v2374
    %v3416 = vpop.f32.mrf.mxu0
    %v3417 = vadd.f32 0.0, %v3416
    %3418 = vmatmul.f32.gmra.mxu0 %v2377
    %v3419 = vpop.f32.mrf.mxu0
    %v3420 = vadd.f32 0.0, %v3419
    %3421 = vmatmul.f32.gmra.mxu0 %v2380
    %v3422 = vpop.f32.mrf.mxu0
    %v3423 = vadd.f32 0.0, %v3422
    %3424 = vdwg.mxu0
    %3425 = vmatpush.msra.mxu0 %v3305
    %3426 = vmatpush.msra.mxu0 %v3297
    %3427 = vmatpush.msra.mxu0 %v3289
    %3428 = vmatpush.msra.mxu0 %v3281
    %3429 = vmatpush.msra.mxu0 %v3273
    %3430 = vmatpush.msra.mxu0 %v3265
    %3431 = vmatpush.msra.mxu0 %v3257
    %3432 = vmatpush.msra.mxu0 %v3249
    %3433 = vmatpush.msra.mxu0 %v3241
    %3434 = vmatpush.msra.mxu0 %v3233
    %3435 = vmatpush.msra.mxu0 %v3225
    %3436 = vmatpush.msra.mxu0 %v3217
    %3437 = vmatpush.msra.mxu0 %v3209
    %3438 = vmatpush.msra.mxu0 %v3201
    %3439 = vmatpush.msra.mxu0 %v3193
    %3440 = vmatpush.msra.mxu0 %v3185
    %3441 = vmatmul.f32.gmra.mxu0 %v2371
    %v3442 = vpop.f32.mrf.mxu0
    %v3443 = vadd.f32 0.0, %v3442
    %3444 = vmatmul.f32.gmra.mxu0 %v2374
    %v3445 = vpop.f32.mrf.mxu0
    %v3446 = vadd.f32 0.0, %v3445
    %3447 = vmatmul.f32.gmra.mxu0 %v2377
    %v3448 = vpop.f32.mrf.mxu0
    %v3449 = vadd.f32 0.0, %v3448
    %3450 = vmatmul.f32.gmra.mxu0 %v2380
    %v3451 = vpop.f32.mrf.mxu0
    %v3452 = vadd.f32 0.0, %v3451
    %3453 = vdwg.mxu0
    %3454 = vmatpush.msra.mxu0 %v3306
    %3455 = vmatpush.msra.mxu0 %v3298
    %3456 = vmatpush.msra.mxu0 %v3290
    %3457 = vmatpush.msra.mxu0 %v3282
    %3458 = vmatpush.msra.mxu0 %v3274
    %3459 = vmatpush.msra.mxu0 %v3266
    %3460 = vmatpush.msra.mxu0 %v3258
    %3461 = vmatpush.msra.mxu0 %v3250
    %3462 = vmatpush.msra.mxu0 %v3242
    %3463 = vmatpush.msra.mxu0 %v3234
    %3464 = vmatpush.msra.mxu0 %v3226
    %3465 = vmatpush.msra.mxu0 %v3218
    %3466 = vmatpush.msra.mxu0 %v3210
    %3467 = vmatpush.msra.mxu0 %v3202
    %3468 = vmatpush.msra.mxu0 %v3194
    %3469 = vmatpush.msra.mxu0 %v3186
    %3470 = vmatmul.f32.gmra.mxu0 %v2371
    %v3471 = vpop.f32.mrf.mxu0
    %v3472 = vadd.f32 0.0, %v3471
    %3473 = vmatmul.f32.gmra.mxu0 %v2374
    %v3474 = vpop.f32.mrf.mxu0
    %v3475 = vadd.f32 0.0, %v3474
    %3476 = vmatmul.f32.gmra.mxu0 %v2377
    %v3477 = vpop.f32.mrf.mxu0
    %v3478 = vadd.f32 0.0, %v3477
    %3479 = vmatmul.f32.gmra.mxu0 %v2380
    %v3480 = vpop.f32.mrf.mxu0
    %v3481 = vadd.f32 0.0, %v3480
    %3482 = vdwg.mxu0
    %3483 = vmatpush.msra.mxu0 %v3307
    %3484 = vmatpush.msra.mxu0 %v3299
    %3485 = vmatpush.msra.mxu0 %v3291
    %3486 = vmatpush.msra.mxu0 %v3283
    %3487 = vmatpush.msra.mxu0 %v3275
    %3488 = vmatpush.msra.mxu0 %v3267
    %3489 = vmatpush.msra.mxu0 %v3259
    %3490 = vmatpush.msra.mxu0 %v3251
    %3491 = vmatpush.msra.mxu0 %v3243
    %3492 = vmatpush.msra.mxu0 %v3235
    %3493 = vmatpush.msra.mxu0 %v3227
    %3494 = vmatpush.msra.mxu0 %v3219
    %3495 = vmatpush.msra.mxu0 %v3211
    %3496 = vmatpush.msra.mxu0 %v3203
    %3497 = vmatpush.msra.mxu0 %v3195
    %3498 = vmatpush.msra.mxu0 %v3187
    %3499 = vmatmul.f32.gmra.mxu0 %v2371
    %v3500 = vpop.f32.mrf.mxu0
    %v3501 = vadd.f32 0.0, %v3500
    %3502 = vmatmul.f32.gmra.mxu0 %v2374
    %v3503 = vpop.f32.mrf.mxu0
    %v3504 = vadd.f32 0.0, %v3503
    %3505 = vmatmul.f32.gmra.mxu0 %v2377
    %v3506 = vpop.f32.mrf.mxu0
    %v3507 = vadd.f32 0.0, %v3506
    %3508 = vmatmul.f32.gmra.mxu0 %v2380
    %v3509 = vpop.f32.mrf.mxu0
    %v3510 = vadd.f32 0.0, %v3509
    %3511 = vdwg.mxu0
    %3512 = vmatpush.msra.mxu0 %v3308
    %3513 = vmatpush.msra.mxu0 %v3300
    %3514 = vmatpush.msra.mxu0 %v3292
    %3515 = vmatpush.msra.mxu0 %v3284
    %3516 = vmatpush.msra.mxu0 %v3276
    %3517 = vmatpush.msra.mxu0 %v3268
    %3518 = vmatpush.msra.mxu0 %v3260
    %3519 = vmatpush.msra.mxu0 %v3252
    %3520 = vmatpush.msra.mxu0 %v3244
    %3521 = vmatpush.msra.mxu0 %v3236
    %3522 = vmatpush.msra.mxu0 %v3228
    %3523 = vmatpush.msra.mxu0 %v3220
    %3524 = vmatpush.msra.mxu0 %v3212
    %3525 = vmatpush.msra.mxu0 %v3204
    %3526 = vmatpush.msra.mxu0 %v3196
    %3527 = vmatpush.msra.mxu0 %v3188
    %3528 = vmatmul.f32.gmra.mxu0 %v2371
    %v3529 = vpop.f32.mrf.mxu0
    %v3530 = vadd.f32 0.0, %v3529
    %3531 = vmatmul.f32.gmra.mxu0 %v2374
    %v3532 = vpop.f32.mrf.mxu0
    %v3533 = vadd.f32 0.0, %v3532
    %3534 = vmatmul.f32.gmra.mxu0 %v2377
    %v3535 = vpop.f32.mrf.mxu0
    %v3536 = vadd.f32 0.0, %v3535
    %3537 = vmatmul.f32.gmra.mxu0 %v2380
    %v3538 = vpop.f32.mrf.mxu0
    %v3539 = vadd.f32 0.0, %v3538
    %3540 = vdwg.mxu0
    %v3541 = vadd.f32 %v2966, %v3327
    %v3542 = vadd.f32 %v2995, %v3356
    %v3543 = vadd.f32 %v3024, %v3385
    %v3544 = vadd.f32 %v3053, %v3414
    %v3545 = vadd.f32 %v3082, %v3443
    %v3546 = vadd.f32 %v3111, %v3472
    %v3547 = vadd.f32 %v3140, %v3501
    %v3548 = vadd.f32 %v3169, %v3530
    %v3549 = vadd.f32 %v2969, %v3330
    %v3550 = vadd.f32 %v2998, %v3359
    %v3551 = vadd.f32 %v3027, %v3388
    %v3552 = vadd.f32 %v3056, %v3417
    %v3553 = vadd.f32 %v3085, %v3446
    %v3554 = vadd.f32 %v3114, %v3475
    %v3555 = vadd.f32 %v3143, %v3504
    %v3556 = vadd.f32 %v3172, %v3533
    %v3557 = vadd.f32 %v2972, %v3333
    %v3558 = vadd.f32 %v3001, %v3362
    %v3559 = vadd.f32 %v3030, %v3391
    %v3560 = vadd.f32 %v3059, %v3420
    %v3561 = vadd.f32 %v3088, %v3449
    %v3562 = vadd.f32 %v3117, %v3478
    %v3563 = vadd.f32 %v3146, %v3507
    %v3564 = vadd.f32 %v3175, %v3536
    %v3565 = vadd.f32 %v2975, %v3336
    %v3566 = vadd.f32 %v3004, %v3365
    %v3567 = vadd.f32 %v3033, %v3394
    %v3568 = vadd.f32 %v3062, %v3423
    %v3569 = vadd.f32 %v3091, %v3452
    %v3570 = vadd.f32 %v3120, %v3481
    %v3571 = vadd.f32 %v3149, %v3510
    %v3572 = vadd.f32 %v3178, %v3539
    %s3573 = scalar_lea.vmem [#allocation11], 3072
    %v3574 = vld [vmem:[%s3573] sm:$0xff]
    %v3575 = vld [vmem:[%s3573 + $0x8] sm:$0xff]
    %v3576 = vld [vmem:[%s3573 + $0x10] sm:$0xff]
    %v3577 = vld [vmem:[%s3573 + $0x18] sm:$0xff]
    %v3578 = vld [vmem:[%s3573 + $0x20] sm:$0xff]
    %v3579 = vld [vmem:[%s3573 + $0x28] sm:$0xff]
    %v3580 = vld [vmem:[%s3573 + $0x30] sm:$0xff]
    %v3581 = vld [vmem:[%s3573 + $0x38] sm:$0xff]
    %v3582 = vld [vmem:[%s3573 + $0x40] sm:$0xff]
    %v3583 = vld [vmem:[%s3573 + $0x48] sm:$0xff]
    %v3584 = vld [vmem:[%s3573 + $0x50] sm:$0xff]
    %v3585 = vld [vmem:[%s3573 + $0x58] sm:$0xff]
    %v3586 = vld [vmem:[%s3573 + $0x60] sm:$0xff]
    %v3587 = vld [vmem:[%s3573 + $0x68] sm:$0xff]
    %v3588 = vld [vmem:[%s3573 + $0x70] sm:$0xff]
    %v3589 = vld [vmem:[%s3573 + $0x78] sm:$0xff]
    %v3590 = vld [vmem:[%s3573 + $0x80] sm:$0xff]
    %v3591 = vld [vmem:[%s3573 + $0x88] sm:$0xff]
    %v3592 = vld [vmem:[%s3573 + $0x90] sm:$0xff]
    %v3593 = vld [vmem:[%s3573 + $0x98] sm:$0xff]
    %v3594 = vld [vmem:[%s3573 + $0xa0] sm:$0xff]
    %v3595 = vld [vmem:[%s3573 + $0xa8] sm:$0xff]
    %v3596 = vld [vmem:[%s3573 + $0xb0] sm:$0xff]
    %v3597 = vld [vmem:[%s3573 + $0xb8] sm:$0xff]
    %v3598 = vld [vmem:[%s3573 + $0xc0] sm:$0xff]
    %v3599 = vld [vmem:[%s3573 + $0xc8] sm:$0xff]
    %v3600 = vld [vmem:[%s3573 + $0xd0] sm:$0xff]
    %v3601 = vld [vmem:[%s3573 + $0xd8] sm:$0xff]
    %v3602 = vld [vmem:[%s3573 + $0xe0] sm:$0xff]
    %v3603 = vld [vmem:[%s3573 + $0xe8] sm:$0xff]
    %v3604 = vld [vmem:[%s3573 + $0xf0] sm:$0xff]
    %v3605 = vld [vmem:[%s3573 + $0xf8] sm:$0xff]
    %v3606 = vld [vmem:[%s3573 + $0x100] sm:$0xff]
    %v3607 = vld [vmem:[%s3573 + $0x108] sm:$0xff]
    %v3608 = vld [vmem:[%s3573 + $0x110] sm:$0xff]
    %v3609 = vld [vmem:[%s3573 + $0x118] sm:$0xff]
    %v3610 = vld [vmem:[%s3573 + $0x120] sm:$0xff]
    %v3611 = vld [vmem:[%s3573 + $0x128] sm:$0xff]
    %v3612 = vld [vmem:[%s3573 + $0x130] sm:$0xff]
    %v3613 = vld [vmem:[%s3573 + $0x138] sm:$0xff]
    %v3614 = vld [vmem:[%s3573 + $0x140] sm:$0xff]
    %v3615 = vld [vmem:[%s3573 + $0x148] sm:$0xff]
    %v3616 = vld [vmem:[%s3573 + $0x150] sm:$0xff]
    %v3617 = vld [vmem:[%s3573 + $0x158] sm:$0xff]
    %v3618 = vld [vmem:[%s3573 + $0x160] sm:$0xff]
    %v3619 = vld [vmem:[%s3573 + $0x168] sm:$0xff]
    %v3620 = vld [vmem:[%s3573 + $0x170] sm:$0xff]
    %v3621 = vld [vmem:[%s3573 + $0x178] sm:$0xff]
    %v3622 = vld [vmem:[%s3573 + $0x180] sm:$0xff]
    %v3623 = vld [vmem:[%s3573 + $0x188] sm:$0xff]
    %v3624 = vld [vmem:[%s3573 + $0x190] sm:$0xff]
    %v3625 = vld [vmem:[%s3573 + $0x198] sm:$0xff]
    %v3626 = vld [vmem:[%s3573 + $0x1a0] sm:$0xff]
    %v3627 = vld [vmem:[%s3573 + $0x1a8] sm:$0xff]
    %v3628 = vld [vmem:[%s3573 + $0x1b0] sm:$0xff]
    %v3629 = vld [vmem:[%s3573 + $0x1b8] sm:$0xff]
    %v3630 = vld [vmem:[%s3573 + $0x1c0] sm:$0xff]
    %v3631 = vld [vmem:[%s3573 + $0x1c8] sm:$0xff]
    %v3632 = vld [vmem:[%s3573 + $0x1d0] sm:$0xff]
    %v3633 = vld [vmem:[%s3573 + $0x1d8] sm:$0xff]
    %v3634 = vld [vmem:[%s3573 + $0x1e0] sm:$0xff]
    %v3635 = vld [vmem:[%s3573 + $0x1e8] sm:$0xff]
    %v3636 = vld [vmem:[%s3573 + $0x1f0] sm:$0xff]
    %v3637 = vld [vmem:[%s3573 + $0x1f8] sm:$0xff]
    %v3638 = vld [vmem:[%s3573 + $0x200] sm:$0xff]
    %v3639 = vld [vmem:[%s3573 + $0x208] sm:$0xff]
    %v3640 = vld [vmem:[%s3573 + $0x210] sm:$0xff]
    %v3641 = vld [vmem:[%s3573 + $0x218] sm:$0xff]
    %v3642 = vld [vmem:[%s3573 + $0x220] sm:$0xff]
    %v3643 = vld [vmem:[%s3573 + $0x228] sm:$0xff]
    %v3644 = vld [vmem:[%s3573 + $0x230] sm:$0xff]
    %v3645 = vld [vmem:[%s3573 + $0x238] sm:$0xff]
    %v3646 = vld [vmem:[%s3573 + $0x240] sm:$0xff]
    %v3647 = vld [vmem:[%s3573 + $0x248] sm:$0xff]
    %v3648 = vld [vmem:[%s3573 + $0x250] sm:$0xff]
    %v3649 = vld [vmem:[%s3573 + $0x258] sm:$0xff]
    %v3650 = vld [vmem:[%s3573 + $0x260] sm:$0xff]
    %v3651 = vld [vmem:[%s3573 + $0x268] sm:$0xff]
    %v3652 = vld [vmem:[%s3573 + $0x270] sm:$0xff]
    %v3653 = vld [vmem:[%s3573 + $0x278] sm:$0xff]
    %v3654 = vld [vmem:[%s3573 + $0x280] sm:$0xff]
    %v3655 = vld [vmem:[%s3573 + $0x288] sm:$0xff]
    %v3656 = vld [vmem:[%s3573 + $0x290] sm:$0xff]
    %v3657 = vld [vmem:[%s3573 + $0x298] sm:$0xff]
    %v3658 = vld [vmem:[%s3573 + $0x2a0] sm:$0xff]
    %v3659 = vld [vmem:[%s3573 + $0x2a8] sm:$0xff]
    %v3660 = vld [vmem:[%s3573 + $0x2b0] sm:$0xff]
    %v3661 = vld [vmem:[%s3573 + $0x2b8] sm:$0xff]
    %v3662 = vld [vmem:[%s3573 + $0x2c0] sm:$0xff]
    %v3663 = vld [vmem:[%s3573 + $0x2c8] sm:$0xff]
    %v3664 = vld [vmem:[%s3573 + $0x2d0] sm:$0xff]
    %v3665 = vld [vmem:[%s3573 + $0x2d8] sm:$0xff]
    %v3666 = vld [vmem:[%s3573 + $0x2e0] sm:$0xff]
    %v3667 = vld [vmem:[%s3573 + $0x2e8] sm:$0xff]
    %v3668 = vld [vmem:[%s3573 + $0x2f0] sm:$0xff]
    %v3669 = vld [vmem:[%s3573 + $0x2f8] sm:$0xff]
    %v3670 = vld [vmem:[%s3573 + $0x300] sm:$0xff]
    %v3671 = vld [vmem:[%s3573 + $0x308] sm:$0xff]
    %v3672 = vld [vmem:[%s3573 + $0x310] sm:$0xff]
    %v3673 = vld [vmem:[%s3573 + $0x318] sm:$0xff]
    %v3674 = vld [vmem:[%s3573 + $0x320] sm:$0xff]
    %v3675 = vld [vmem:[%s3573 + $0x328] sm:$0xff]
    %v3676 = vld [vmem:[%s3573 + $0x330] sm:$0xff]
    %v3677 = vld [vmem:[%s3573 + $0x338] sm:$0xff]
    %v3678 = vld [vmem:[%s3573 + $0x340] sm:$0xff]
    %v3679 = vld [vmem:[%s3573 + $0x348] sm:$0xff]
    %v3680 = vld [vmem:[%s3573 + $0x350] sm:$0xff]
    %v3681 = vld [vmem:[%s3573 + $0x358] sm:$0xff]
    %v3682 = vld [vmem:[%s3573 + $0x360] sm:$0xff]
    %v3683 = vld [vmem:[%s3573 + $0x368] sm:$0xff]
    %v3684 = vld [vmem:[%s3573 + $0x370] sm:$0xff]
    %v3685 = vld [vmem:[%s3573 + $0x378] sm:$0xff]
    %v3686 = vld [vmem:[%s3573 + $0x380] sm:$0xff]
    %v3687 = vld [vmem:[%s3573 + $0x388] sm:$0xff]
    %v3688 = vld [vmem:[%s3573 + $0x390] sm:$0xff]
    %v3689 = vld [vmem:[%s3573 + $0x398] sm:$0xff]
    %v3690 = vld [vmem:[%s3573 + $0x3a0] sm:$0xff]
    %v3691 = vld [vmem:[%s3573 + $0x3a8] sm:$0xff]
    %v3692 = vld [vmem:[%s3573 + $0x3b0] sm:$0xff]
    %v3693 = vld [vmem:[%s3573 + $0x3b8] sm:$0xff]
    %v3694 = vld [vmem:[%s3573 + $0x3c0] sm:$0xff]
    %v3695 = vld [vmem:[%s3573 + $0x3c8] sm:$0xff]
    %v3696 = vld [vmem:[%s3573 + $0x3d0] sm:$0xff]
    %v3697 = vld [vmem:[%s3573 + $0x3d8] sm:$0xff]
    %v3698 = vld [vmem:[%s3573 + $0x3e0] sm:$0xff]
    %v3699 = vld [vmem:[%s3573 + $0x3e8] sm:$0xff]
    %v3700 = vld [vmem:[%s3573 + $0x3f0] sm:$0xff]
    %v3701 = vld [vmem:[%s3573 + $0x3f8] sm:$0xff]
    %3702 = vmatpush.msra.mxu0 %v3694
    %3703 = vmatpush.msra.mxu0 %v3686
    %3704 = vmatpush.msra.mxu0 %v3678
    %3705 = vmatpush.msra.mxu0 %v3670
    %3706 = vmatpush.msra.mxu0 %v3662
    %3707 = vmatpush.msra.mxu0 %v3654
    %3708 = vmatpush.msra.mxu0 %v3646
    %3709 = vmatpush.msra.mxu0 %v3638
    %3710 = vmatpush.msra.mxu0 %v3630
    %3711 = vmatpush.msra.mxu0 %v3622
    %3712 = vmatpush.msra.mxu0 %v3614
    %3713 = vmatpush.msra.mxu0 %v3606
    %3714 = vmatpush.msra.mxu0 %v3598
    %3715 = vmatpush.msra.mxu0 %v3590
    %3716 = vmatpush.msra.mxu0 %v3582
    %3717 = vmatpush.msra.mxu0 %v3574
    %3718 = vmatmul.f32.gmra.mxu0 %v2383
    %v3719 = vpop.f32.mrf.mxu0
    %v3720 = vadd.f32 0.0, %v3719
    %3721 = vmatmul.f32.gmra.mxu0 %v2386
    %v3722 = vpop.f32.mrf.mxu0
    %v3723 = vadd.f32 0.0, %v3722
    %3724 = vmatmul.f32.gmra.mxu0 %v2389
    %v3725 = vpop.f32.mrf.mxu0
    %v3726 = vadd.f32 0.0, %v3725
    %3727 = vmatmul.f32.gmra.mxu0 %v2392
    %v3728 = vpop.f32.mrf.mxu0
    %v3729 = vadd.f32 0.0, %v3728
    %3730 = vdwg.mxu0
    %3731 = vmatpush.msra.mxu0 %v3695
    %3732 = vmatpush.msra.mxu0 %v3687
    %3733 = vmatpush.msra.mxu0 %v3679
    %3734 = vmatpush.msra.mxu0 %v3671
    %3735 = vmatpush.msra.mxu0 %v3663
    %3736 = vmatpush.msra.mxu0 %v3655
    %3737 = vmatpush.msra.mxu0 %v3647
    %3738 = vmatpush.msra.mxu0 %v3639
    %3739 = vmatpush.msra.mxu0 %v3631
    %3740 = vmatpush.msra.mxu0 %v3623
    %3741 = vmatpush.msra.mxu0 %v3615
    %3742 = vmatpush.msra.mxu0 %v3607
    %3743 = vmatpush.msra.mxu0 %v3599
    %3744 = vmatpush.msra.mxu0 %v3591
    %3745 = vmatpush.msra.mxu0 %v3583
    %3746 = vmatpush.msra.mxu0 %v3575
    %3747 = vmatmul.f32.gmra.mxu0 %v2383
    %v3748 = vpop.f32.mrf.mxu0
    %v3749 = vadd.f32 0.0, %v3748
    %3750 = vmatmul.f32.gmra.mxu0 %v2386
    %v3751 = vpop.f32.mrf.mxu0
    %v3752 = vadd.f32 0.0, %v3751
    %3753 = vmatmul.f32.gmra.mxu0 %v2389
    %v3754 = vpop.f32.mrf.mxu0
    %v3755 = vadd.f32 0.0, %v3754
    %3756 = vmatmul.f32.gmra.mxu0 %v2392
    %v3757 = vpop.f32.mrf.mxu0
    %v3758 = vadd.f32 0.0, %v3757
    %3759 = vdwg.mxu0
    %3760 = vmatpush.msra.mxu0 %v3696
    %3761 = vmatpush.msra.mxu0 %v3688
    %3762 = vmatpush.msra.mxu0 %v3680
    %3763 = vmatpush.msra.mxu0 %v3672
    %3764 = vmatpush.msra.mxu0 %v3664
    %3765 = vmatpush.msra.mxu0 %v3656
    %3766 = vmatpush.msra.mxu0 %v3648
    %3767 = vmatpush.msra.mxu0 %v3640
    %3768 = vmatpush.msra.mxu0 %v3632
    %3769 = vmatpush.msra.mxu0 %v3624
    %3770 = vmatpush.msra.mxu0 %v3616
    %3771 = vmatpush.msra.mxu0 %v3608
    %3772 = vmatpush.msra.mxu0 %v3600
    %3773 = vmatpush.msra.mxu0 %v3592
    %3774 = vmatpush.msra.mxu0 %v3584
    %3775 = vmatpush.msra.mxu0 %v3576
    %3776 = vmatmul.f32.gmra.mxu0 %v2383
    %v3777 = vpop.f32.mrf.mxu0
    %v3778 = vadd.f32 0.0, %v3777
    %3779 = vmatmul.f32.gmra.mxu0 %v2386
    %v3780 = vpop.f32.mrf.mxu0
    %v3781 = vadd.f32 0.0, %v3780
    %3782 = vmatmul.f32.gmra.mxu0 %v2389
    %v3783 = vpop.f32.mrf.mxu0
    %v3784 = vadd.f32 0.0, %v3783
    %3785 = vmatmul.f32.gmra.mxu0 %v2392
    %v3786 = vpop.f32.mrf.mxu0
    %v3787 = vadd.f32 0.0, %v3786
    %3788 = vdwg.mxu0
    %3789 = vmatpush.msra.mxu0 %v3697
    %3790 = vmatpush.msra.mxu0 %v3689
    %3791 = vmatpush.msra.mxu0 %v3681
    %3792 = vmatpush.msra.mxu0 %v3673
    %3793 = vmatpush.msra.mxu0 %v3665
    %3794 = vmatpush.msra.mxu0 %v3657
    %3795 = vmatpush.msra.mxu0 %v3649
    %3796 = vmatpush.msra.mxu0 %v3641
    %3797 = vmatpush.msra.mxu0 %v3633
    %3798 = vmatpush.msra.mxu0 %v3625
    %3799 = vmatpush.msra.mxu0 %v3617
    %3800 = vmatpush.msra.mxu0 %v3609
    %3801 = vmatpush.msra.mxu0 %v3601
    %3802 = vmatpush.msra.mxu0 %v3593
    %3803 = vmatpush.msra.mxu0 %v3585
    %3804 = vmatpush.msra.mxu0 %v3577
    %3805 = vmatmul.f32.gmra.mxu0 %v2383
    %v3806 = vpop.f32.mrf.mxu0
    %v3807 = vadd.f32 0.0, %v3806
    %3808 = vmatmul.f32.gmra.mxu0 %v2386
    %v3809 = vpop.f32.mrf.mxu0
    %v3810 = vadd.f32 0.0, %v3809
    %3811 = vmatmul.f32.gmra.mxu0 %v2389
    %v3812 = vpop.f32.mrf.mxu0
    %v3813 = vadd.f32 0.0, %v3812
    %3814 = vmatmul.f32.gmra.mxu0 %v2392
    %v3815 = vpop.f32.mrf.mxu0
    %v3816 = vadd.f32 0.0, %v3815
    %3817 = vdwg.mxu0
    %3818 = vmatpush.msra.mxu0 %v3698
    %3819 = vmatpush.msra.mxu0 %v3690
    %3820 = vmatpush.msra.mxu0 %v3682
    %3821 = vmatpush.msra.mxu0 %v3674
    %3822 = vmatpush.msra.mxu0 %v3666
    %3823 = vmatpush.msra.mxu0 %v3658
    %3824 = vmatpush.msra.mxu0 %v3650
    %3825 = vmatpush.msra.mxu0 %v3642
    %3826 = vmatpush.msra.mxu0 %v3634
    %3827 = vmatpush.msra.mxu0 %v3626
    %3828 = vmatpush.msra.mxu0 %v3618
    %3829 = vmatpush.msra.mxu0 %v3610
    %3830 = vmatpush.msra.mxu0 %v3602
    %3831 = vmatpush.msra.mxu0 %v3594
    %3832 = vmatpush.msra.mxu0 %v3586
    %3833 = vmatpush.msra.mxu0 %v3578
    %3834 = vmatmul.f32.gmra.mxu0 %v2383
    %v3835 = vpop.f32.mrf.mxu0
    %v3836 = vadd.f32 0.0, %v3835
    %3837 = vmatmul.f32.gmra.mxu0 %v2386
    %v3838 = vpop.f32.mrf.mxu0
    %v3839 = vadd.f32 0.0, %v3838
    %3840 = vmatmul.f32.gmra.mxu0 %v2389
    %v3841 = vpop.f32.mrf.mxu0
    %v3842 = vadd.f32 0.0, %v3841
    %3843 = vmatmul.f32.gmra.mxu0 %v2392
    %v3844 = vpop.f32.mrf.mxu0
    %v3845 = vadd.f32 0.0, %v3844
    %3846 = vdwg.mxu0
    %3847 = vmatpush.msra.mxu0 %v3699
    %3848 = vmatpush.msra.mxu0 %v3691
    %3849 = vmatpush.msra.mxu0 %v3683
    %3850 = vmatpush.msra.mxu0 %v3675
    %3851 = vmatpush.msra.mxu0 %v3667
    %3852 = vmatpush.msra.mxu0 %v3659
    %3853 = vmatpush.msra.mxu0 %v3651
    %3854 = vmatpush.msra.mxu0 %v3643
    %3855 = vmatpush.msra.mxu0 %v3635
    %3856 = vmatpush.msra.mxu0 %v3627
    %3857 = vmatpush.msra.mxu0 %v3619
    %3858 = vmatpush.msra.mxu0 %v3611
    %3859 = vmatpush.msra.mxu0 %v3603
    %3860 = vmatpush.msra.mxu0 %v3595
    %3861 = vmatpush.msra.mxu0 %v3587
    %3862 = vmatpush.msra.mxu0 %v3579
    %3863 = vmatmul.f32.gmra.mxu0 %v2383
    %v3864 = vpop.f32.mrf.mxu0
    %v3865 = vadd.f32 0.0, %v3864
    %3866 = vmatmul.f32.gmra.mxu0 %v2386
    %v3867 = vpop.f32.mrf.mxu0
    %v3868 = vadd.f32 0.0, %v3867
    %3869 = vmatmul.f32.gmra.mxu0 %v2389
    %v3870 = vpop.f32.mrf.mxu0
    %v3871 = vadd.f32 0.0, %v3870
    %3872 = vmatmul.f32.gmra.mxu0 %v2392
    %v3873 = vpop.f32.mrf.mxu0
    %v3874 = vadd.f32 0.0, %v3873
    %3875 = vdwg.mxu0
    %3876 = vmatpush.msra.mxu0 %v3700
    %3877 = vmatpush.msra.mxu0 %v3692
    %3878 = vmatpush.msra.mxu0 %v3684
    %3879 = vmatpush.msra.mxu0 %v3676
    %3880 = vmatpush.msra.mxu0 %v3668
    %3881 = vmatpush.msra.mxu0 %v3660
    %3882 = vmatpush.msra.mxu0 %v3652
    %3883 = vmatpush.msra.mxu0 %v3644
    %3884 = vmatpush.msra.mxu0 %v3636
    %3885 = vmatpush.msra.mxu0 %v3628
    %3886 = vmatpush.msra.mxu0 %v3620
    %3887 = vmatpush.msra.mxu0 %v3612
    %3888 = vmatpush.msra.mxu0 %v3604
    %3889 = vmatpush.msra.mxu0 %v3596
    %3890 = vmatpush.msra.mxu0 %v3588
    %3891 = vmatpush.msra.mxu0 %v3580
    %3892 = vmatmul.f32.gmra.mxu0 %v2383
    %v3893 = vpop.f32.mrf.mxu0
    %v3894 = vadd.f32 0.0, %v3893
    %3895 = vmatmul.f32.gmra.mxu0 %v2386
    %v3896 = vpop.f32.mrf.mxu0
    %v3897 = vadd.f32 0.0, %v3896
    %3898 = vmatmul.f32.gmra.mxu0 %v2389
    %v3899 = vpop.f32.mrf.mxu0
    %v3900 = vadd.f32 0.0, %v3899
    %3901 = vmatmul.f32.gmra.mxu0 %v2392
    %v3902 = vpop.f32.mrf.mxu0
    %v3903 = vadd.f32 0.0, %v3902
    %3904 = vdwg.mxu0
    %3905 = vmatpush.msra.mxu0 %v3701
    %3906 = vmatpush.msra.mxu0 %v3693
    %3907 = vmatpush.msra.mxu0 %v3685
    %3908 = vmatpush.msra.mxu0 %v3677
    %3909 = vmatpush.msra.mxu0 %v3669
    %3910 = vmatpush.msra.mxu0 %v3661
    %3911 = vmatpush.msra.mxu0 %v3653
    %3912 = vmatpush.msra.mxu0 %v3645
    %3913 = vmatpush.msra.mxu0 %v3637
    %3914 = vmatpush.msra.mxu0 %v3629
    %3915 = vmatpush.msra.mxu0 %v3621
    %3916 = vmatpush.msra.mxu0 %v3613
    %3917 = vmatpush.msra.mxu0 %v3605
    %3918 = vmatpush.msra.mxu0 %v3597
    %3919 = vmatpush.msra.mxu0 %v3589
    %3920 = vmatpush.msra.mxu0 %v3581
    %3921 = vmatmul.f32.gmra.mxu0 %v2383
    %v3922 = vpop.f32.mrf.mxu0
    %v3923 = vadd.f32 0.0, %v3922
    %3924 = vmatmul.f32.gmra.mxu0 %v2386
    %v3925 = vpop.f32.mrf.mxu0
    %v3926 = vadd.f32 0.0, %v3925
    %3927 = vmatmul.f32.gmra.mxu0 %v2389
    %v3928 = vpop.f32.mrf.mxu0
    %v3929 = vadd.f32 0.0, %v3928
    %3930 = vmatmul.f32.gmra.mxu0 %v2392
    %v3931 = vpop.f32.mrf.mxu0
    %v3932 = vadd.f32 0.0, %v3931
    %3933 = vdwg.mxu0
    %v3934 = vadd.f32 %v3541, %v3720
    %v3935 = vadd.f32 %v3542, %v3749
    %v3936 = vadd.f32 %v3543, %v3778
    %v3937 = vadd.f32 %v3544, %v3807
    %v3938 = vadd.f32 %v3545, %v3836
    %v3939 = vadd.f32 %v3546, %v3865
    %v3940 = vadd.f32 %v3547, %v3894
    %v3941 = vadd.f32 %v3548, %v3923
    %v3942 = vadd.f32 %v3549, %v3723
    %v3943 = vadd.f32 %v3550, %v3752
    %v3944 = vadd.f32 %v3551, %v3781
    %v3945 = vadd.f32 %v3552, %v3810
    %v3946 = vadd.f32 %v3553, %v3839
    %v3947 = vadd.f32 %v3554, %v3868
    %v3948 = vadd.f32 %v3555, %v3897
    %v3949 = vadd.f32 %v3556, %v3926
    %v3950 = vadd.f32 %v3557, %v3726
    %v3951 = vadd.f32 %v3558, %v3755
    %v3952 = vadd.f32 %v3559, %v3784
    %v3953 = vadd.f32 %v3560, %v3813
    %v3954 = vadd.f32 %v3561, %v3842
    %v3955 = vadd.f32 %v3562, %v3871
    %v3956 = vadd.f32 %v3563, %v3900
    %v3957 = vadd.f32 %v3564, %v3929
    %v3958 = vadd.f32 %v3565, %v3729
    %v3959 = vadd.f32 %v3566, %v3758
    %v3960 = vadd.f32 %v3567, %v3787
    %v3961 = vadd.f32 %v3568, %v3816
    %v3962 = vadd.f32 %v3569, %v3845
    %v3963 = vadd.f32 %v3570, %v3874
    %v3964 = vadd.f32 %v3571, %v3903
    %v3965 = vadd.f32 %v3572, %v3932
    %3966 = vmatpush.msra.mxu0 %v2708
    %3967 = vmatpush.msra.mxu0 %v2700
    %3968 = vmatpush.msra.mxu0 %v2692
    %3969 = vmatpush.msra.mxu0 %v2684
    %3970 = vmatpush.msra.mxu0 %v2676
    %3971 = vmatpush.msra.mxu0 %v2668
    %3972 = vmatpush.msra.mxu0 %v2660
    %3973 = vmatpush.msra.mxu0 %v2652
    %3974 = vmatpush.msra.mxu0 %v2644
    %3975 = vmatpush.msra.mxu0 %v2636
    %3976 = vmatpush.msra.mxu0 %v2628
    %3977 = vmatpush.msra.mxu0 %v2620
    %3978 = vmatpush.msra.mxu0 %v2612
    %3979 = vmatpush.msra.mxu0 %v2604
    %3980 = vmatpush.msra.mxu0 %v2596
    %3981 = vmatpush.msra.mxu0 %v2588
    %3982 = vmatmul.f32.gmra.mxu0 %v2424
    %v3983 = vpop.f32.mrf.mxu0
    %v3984 = vadd.f32 0.0, %v3983
    %3985 = vmatmul.f32.gmra.mxu0 %v2427
    %v3986 = vpop.f32.mrf.mxu0
    %v3987 = vadd.f32 0.0, %v3986
    %3988 = vmatmul.f32.gmra.mxu0 %v2430
    %v3989 = vpop.f32.mrf.mxu0
    %v3990 = vadd.f32 0.0, %v3989
    %3991 = vmatmul.f32.gmra.mxu0 %v2433
    %v3992 = vpop.f32.mrf.mxu0
    %v3993 = vadd.f32 0.0, %v3992
    %3994 = vdwg.mxu0
    %3995 = vmatpush.msra.mxu0 %v2709
    %3996 = vmatpush.msra.mxu0 %v2701
    %3997 = vmatpush.msra.mxu0 %v2693
    %3998 = vmatpush.msra.mxu0 %v2685
    %3999 = vmatpush.msra.mxu0 %v2677
    %4000 = vmatpush.msra.mxu0 %v2669
    %4001 = vmatpush.msra.mxu0 %v2661
    %4002 = vmatpush.msra.mxu0 %v2653
    %4003 = vmatpush.msra.mxu0 %v2645
    %4004 = vmatpush.msra.mxu0 %v2637
    %4005 = vmatpush.msra.mxu0 %v2629
    %4006 = vmatpush.msra.mxu0 %v2621
    %4007 = vmatpush.msra.mxu0 %v2613
    %4008 = vmatpush.msra.mxu0 %v2605
    %4009 = vmatpush.msra.mxu0 %v2597
    %4010 = vmatpush.msra.mxu0 %v2589
    %4011 = vmatmul.f32.gmra.mxu0 %v2424
    %v4012 = vpop.f32.mrf.mxu0
    %v4013 = vadd.f32 0.0, %v4012
    %4014 = vmatmul.f32.gmra.mxu0 %v2427
    %v4015 = vpop.f32.mrf.mxu0
    %v4016 = vadd.f32 0.0, %v4015
    %4017 = vmatmul.f32.gmra.mxu0 %v2430
    %v4018 = vpop.f32.mrf.mxu0
    %v4019 = vadd.f32 0.0, %v4018
    %4020 = vmatmul.f32.gmra.mxu0 %v2433
    %v4021 = vpop.f32.mrf.mxu0
    %v4022 = vadd.f32 0.0, %v4021
    %4023 = vdwg.mxu0
    %4024 = vmatpush.msra.mxu0 %v2710
    %4025 = vmatpush.msra.mxu0 %v2702
    %4026 = vmatpush.msra.mxu0 %v2694
    %4027 = vmatpush.msra.mxu0 %v2686
    %4028 = vmatpush.msra.mxu0 %v2678
    %4029 = vmatpush.msra.mxu0 %v2670
    %4030 = vmatpush.msra.mxu0 %v2662
    %4031 = vmatpush.msra.mxu0 %v2654
    %4032 = vmatpush.msra.mxu0 %v2646
    %4033 = vmatpush.msra.mxu0 %v2638
    %4034 = vmatpush.msra.mxu0 %v2630
    %4035 = vmatpush.msra.mxu0 %v2622
    %4036 = vmatpush.msra.mxu0 %v2614
    %4037 = vmatpush.msra.mxu0 %v2606
    %4038 = vmatpush.msra.mxu0 %v2598
    %4039 = vmatpush.msra.mxu0 %v2590
    %4040 = vmatmul.f32.gmra.mxu0 %v2424
    %v4041 = vpop.f32.mrf.mxu0
    %v4042 = vadd.f32 0.0, %v4041
    %4043 = vmatmul.f32.gmra.mxu0 %v2427
    %v4044 = vpop.f32.mrf.mxu0
    %v4045 = vadd.f32 0.0, %v4044
    %4046 = vmatmul.f32.gmra.mxu0 %v2430
    %v4047 = vpop.f32.mrf.mxu0
    %v4048 = vadd.f32 0.0, %v4047
    %4049 = vmatmul.f32.gmra.mxu0 %v2433
    %v4050 = vpop.f32.mrf.mxu0
    %v4051 = vadd.f32 0.0, %v4050
    %4052 = vdwg.mxu0
    %4053 = vmatpush.msra.mxu0 %v2711
    %4054 = vmatpush.msra.mxu0 %v2703
    %4055 = vmatpush.msra.mxu0 %v2695
    %4056 = vmatpush.msra.mxu0 %v2687
    %4057 = vmatpush.msra.mxu0 %v2679
    %4058 = vmatpush.msra.mxu0 %v2671
    %4059 = vmatpush.msra.mxu0 %v2663
    %4060 = vmatpush.msra.mxu0 %v2655
    %4061 = vmatpush.msra.mxu0 %v2647
    %4062 = vmatpush.msra.mxu0 %v2639
    %4063 = vmatpush.msra.mxu0 %v2631
    %4064 = vmatpush.msra.mxu0 %v2623
    %4065 = vmatpush.msra.mxu0 %v2615
    %4066 = vmatpush.msra.mxu0 %v2607
    %4067 = vmatpush.msra.mxu0 %v2599
    %4068 = vmatpush.msra.mxu0 %v2591
    %4069 = vmatmul.f32.gmra.mxu0 %v2424
    %v4070 = vpop.f32.mrf.mxu0
    %v4071 = vadd.f32 0.0, %v4070
    %4072 = vmatmul.f32.gmra.mxu0 %v2427
    %v4073 = vpop.f32.mrf.mxu0
    %v4074 = vadd.f32 0.0, %v4073
    %4075 = vmatmul.f32.gmra.mxu0 %v2430
    %v4076 = vpop.f32.mrf.mxu0
    %v4077 = vadd.f32 0.0, %v4076
    %4078 = vmatmul.f32.gmra.mxu0 %v2433
    %v4079 = vpop.f32.mrf.mxu0
    %v4080 = vadd.f32 0.0, %v4079
    %4081 = vdwg.mxu0
    %4082 = vmatpush.msra.mxu0 %v2712
    %4083 = vmatpush.msra.mxu0 %v2704
    %4084 = vmatpush.msra.mxu0 %v2696
    %4085 = vmatpush.msra.mxu0 %v2688
    %4086 = vmatpush.msra.mxu0 %v2680
    %4087 = vmatpush.msra.mxu0 %v2672
    %4088 = vmatpush.msra.mxu0 %v2664
    %4089 = vmatpush.msra.mxu0 %v2656
    %4090 = vmatpush.msra.mxu0 %v2648
    %4091 = vmatpush.msra.mxu0 %v2640
    %4092 = vmatpush.msra.mxu0 %v2632
    %4093 = vmatpush.msra.mxu0 %v2624
    %4094 = vmatpush.msra.mxu0 %v2616
    %4095 = vmatpush.msra.mxu0 %v2608
    %4096 = vmatpush.msra.mxu0 %v2600
    %4097 = vmatpush.msra.mxu0 %v2592
    %4098 = vmatmul.f32.gmra.mxu0 %v2424
    %v4099 = vpop.f32.mrf.mxu0
    %v4100 = vadd.f32 0.0, %v4099
    %4101 = vmatmul.f32.gmra.mxu0 %v2427
    %v4102 = vpop.f32.mrf.mxu0
    %v4103 = vadd.f32 0.0, %v4102
    %4104 = vmatmul.f32.gmra.mxu0 %v2430
    %v4105 = vpop.f32.mrf.mxu0
    %v4106 = vadd.f32 0.0, %v4105
    %4107 = vmatmul.f32.gmra.mxu0 %v2433
    %v4108 = vpop.f32.mrf.mxu0
    %v4109 = vadd.f32 0.0, %v4108
    %4110 = vdwg.mxu0
    %4111 = vmatpush.msra.mxu0 %v2713
    %4112 = vmatpush.msra.mxu0 %v2705
    %4113 = vmatpush.msra.mxu0 %v2697
    %4114 = vmatpush.msra.mxu0 %v2689
    %4115 = vmatpush.msra.mxu0 %v2681
    %4116 = vmatpush.msra.mxu0 %v2673
    %4117 = vmatpush.msra.mxu0 %v2665
    %4118 = vmatpush.msra.mxu0 %v2657
    %4119 = vmatpush.msra.mxu0 %v2649
    %4120 = vmatpush.msra.mxu0 %v2641
    %4121 = vmatpush.msra.mxu0 %v2633
    %4122 = vmatpush.msra.mxu0 %v2625
    %4123 = vmatpush.msra.mxu0 %v2617
    %4124 = vmatpush.msra.mxu0 %v2609
    %4125 = vmatpush.msra.mxu0 %v2601
    %4126 = vmatpush.msra.mxu0 %v2593
    %4127 = vmatmul.f32.gmra.mxu0 %v2424
    %v4128 = vpop.f32.mrf.mxu0
    %v4129 = vadd.f32 0.0, %v4128
    %4130 = vmatmul.f32.gmra.mxu0 %v2427
    %v4131 = vpop.f32.mrf.mxu0
    %v4132 = vadd.f32 0.0, %v4131
    %4133 = vmatmul.f32.gmra.mxu0 %v2430
    %v4134 = vpop.f32.mrf.mxu0
    %v4135 = vadd.f32 0.0, %v4134
    %4136 = vmatmul.f32.gmra.mxu0 %v2433
    %v4137 = vpop.f32.mrf.mxu0
    %v4138 = vadd.f32 0.0, %v4137
    %4139 = vdwg.mxu0
    %4140 = vmatpush.msra.mxu0 %v2714
    %4141 = vmatpush.msra.mxu0 %v2706
    %4142 = vmatpush.msra.mxu0 %v2698
    %4143 = vmatpush.msra.mxu0 %v2690
    %4144 = vmatpush.msra.mxu0 %v2682
    %4145 = vmatpush.msra.mxu0 %v2674
    %4146 = vmatpush.msra.mxu0 %v2666
    %4147 = vmatpush.msra.mxu0 %v2658
    %4148 = vmatpush.msra.mxu0 %v2650
    %4149 = vmatpush.msra.mxu0 %v2642
    %4150 = vmatpush.msra.mxu0 %v2634
    %4151 = vmatpush.msra.mxu0 %v2626
    %4152 = vmatpush.msra.mxu0 %v2618
    %4153 = vmatpush.msra.mxu0 %v2610
    %4154 = vmatpush.msra.mxu0 %v2602
    %4155 = vmatpush.msra.mxu0 %v2594
    %4156 = vmatmul.f32.gmra.mxu0 %v2424
    %v4157 = vpop.f32.mrf.mxu0
    %v4158 = vadd.f32 0.0, %v4157
    %4159 = vmatmul.f32.gmra.mxu0 %v2427
    %v4160 = vpop.f32.mrf.mxu0
    %v4161 = vadd.f32 0.0, %v4160
    %4162 = vmatmul.f32.gmra.mxu0 %v2430
    %v4163 = vpop.f32.mrf.mxu0
    %v4164 = vadd.f32 0.0, %v4163
    %4165 = vmatmul.f32.gmra.mxu0 %v2433
    %v4166 = vpop.f32.mrf.mxu0
    %v4167 = vadd.f32 0.0, %v4166
    %4168 = vdwg.mxu0
    %4169 = vmatpush.msra.mxu0 %v2715
    %4170 = vmatpush.msra.mxu0 %v2707
    %4171 = vmatpush.msra.mxu0 %v2699
    %4172 = vmatpush.msra.mxu0 %v2691
    %4173 = vmatpush.msra.mxu0 %v2683
    %4174 = vmatpush.msra.mxu0 %v2675
    %4175 = vmatpush.msra.mxu0 %v2667
    %4176 = vmatpush.msra.mxu0 %v2659
    %4177 = vmatpush.msra.mxu0 %v2651
    %4178 = vmatpush.msra.mxu0 %v2643
    %4179 = vmatpush.msra.mxu0 %v2635
    %4180 = vmatpush.msra.mxu0 %v2627
    %4181 = vmatpush.msra.mxu0 %v2619
    %4182 = vmatpush.msra.mxu0 %v2611
    %4183 = vmatpush.msra.mxu0 %v2603
    %4184 = vmatpush.msra.mxu0 %v2595
    %4185 = vmatmul.f32.gmra.mxu0 %v2424
    %v4186 = vpop.f32.mrf.mxu0
    %v4187 = vadd.f32 0.0, %v4186
    %4188 = vmatmul.f32.gmra.mxu0 %v2427
    %v4189 = vpop.f32.mrf.mxu0
    %v4190 = vadd.f32 0.0, %v4189
    %4191 = vmatmul.f32.gmra.mxu0 %v2430
    %v4192 = vpop.f32.mrf.mxu0
    %v4193 = vadd.f32 0.0, %v4192
    %4194 = vmatmul.f32.gmra.mxu0 %v2433
    %v4195 = vpop.f32.mrf.mxu0
    %v4196 = vadd.f32 0.0, %v4195
    %4197 = vdwg.mxu0
    %4198 = vmatpush.msra.mxu0 %v2579
    %4199 = vmatpush.msra.mxu0 %v2571
    %4200 = vmatpush.msra.mxu0 %v2563
    %4201 = vmatpush.msra.mxu0 %v2555
    %4202 = vmatpush.msra.mxu0 %v2547
    %4203 = vmatpush.msra.mxu0 %v2539
    %4204 = vmatpush.msra.mxu0 %v2531
    %4205 = vmatpush.msra.mxu0 %v2523
    %4206 = vmatpush.msra.mxu0 %v2515
    %4207 = vmatpush.msra.mxu0 %v2507
    %4208 = vmatpush.msra.mxu0 %v2499
    %4209 = vmatpush.msra.mxu0 %v2491
    %4210 = vmatpush.msra.mxu0 %v2483
    %4211 = vmatpush.msra.mxu0 %v2475
    %4212 = vmatpush.msra.mxu0 %v2467
    %4213 = vmatpush.msra.mxu0 %v2459
    %4214 = vmatmul.f32.gmra.mxu0 %v2412
    %v4215 = vpop.f32.mrf.mxu0
    %v4216 = vadd.f32 %v3984, %v4215
    %4217 = vmatmul.f32.gmra.mxu0 %v2415
    %v4218 = vpop.f32.mrf.mxu0
    %v4219 = vadd.f32 %v3987, %v4218
    %4220 = vmatmul.f32.gmra.mxu0 %v2418
    %v4221 = vpop.f32.mrf.mxu0
    %v4222 = vadd.f32 %v3990, %v4221
    %4223 = vmatmul.f32.gmra.mxu0 %v2421
    %v4224 = vpop.f32.mrf.mxu0
    %v4225 = vadd.f32 %v3993, %v4224
    %4226 = vdwg.mxu0
    %4227 = vmatpush.msra.mxu0 %v2580
    %4228 = vmatpush.msra.mxu0 %v2572
    %4229 = vmatpush.msra.mxu0 %v2564
    %4230 = vmatpush.msra.mxu0 %v2556
    %4231 = vmatpush.msra.mxu0 %v2548
    %4232 = vmatpush.msra.mxu0 %v2540
    %4233 = vmatpush.msra.mxu0 %v2532
    %4234 = vmatpush.msra.mxu0 %v2524
    %4235 = vmatpush.msra.mxu0 %v2516
    %4236 = vmatpush.msra.mxu0 %v2508
    %4237 = vmatpush.msra.mxu0 %v2500
    %4238 = vmatpush.msra.mxu0 %v2492
    %4239 = vmatpush.msra.mxu0 %v2484
    %4240 = vmatpush.msra.mxu0 %v2476
    %4241 = vmatpush.msra.mxu0 %v2468
    %4242 = vmatpush.msra.mxu0 %v2460
    %4243 = vmatmul.f32.gmra.mxu0 %v2412
    %v4244 = vpop.f32.mrf.mxu0
    %v4245 = vadd.f32 %v4013, %v4244
    %4246 = vmatmul.f32.gmra.mxu0 %v2415
    %v4247 = vpop.f32.mrf.mxu0
    %v4248 = vadd.f32 %v4016, %v4247
    %4249 = vmatmul.f32.gmra.mxu0 %v2418
    %v4250 = vpop.f32.mrf.mxu0
    %v4251 = vadd.f32 %v4019, %v4250
    %4252 = vmatmul.f32.gmra.mxu0 %v2421
    %v4253 = vpop.f32.mrf.mxu0
    %v4254 = vadd.f32 %v4022, %v4253
    %4255 = vdwg.mxu0
    %4256 = vmatpush.msra.mxu0 %v2581
    %4257 = vmatpush.msra.mxu0 %v2573
    %4258 = vmatpush.msra.mxu0 %v2565
    %4259 = vmatpush.msra.mxu0 %v2557
    %4260 = vmatpush.msra.mxu0 %v2549
    %4261 = vmatpush.msra.mxu0 %v2541
    %4262 = vmatpush.msra.mxu0 %v2533
    %4263 = vmatpush.msra.mxu0 %v2525
    %4264 = vmatpush.msra.mxu0 %v2517
    %4265 = vmatpush.msra.mxu0 %v2509
    %4266 = vmatpush.msra.mxu0 %v2501
    %4267 = vmatpush.msra.mxu0 %v2493
    %4268 = vmatpush.msra.mxu0 %v2485
    %4269 = vmatpush.msra.mxu0 %v2477
    %4270 = vmatpush.msra.mxu0 %v2469
    %4271 = vmatpush.msra.mxu0 %v2461
    %4272 = vmatmul.f32.gmra.mxu0 %v2412
    %v4273 = vpop.f32.mrf.mxu0
    %v4274 = vadd.f32 %v4042, %v4273
    %4275 = vmatmul.f32.gmra.mxu0 %v2415
    %v4276 = vpop.f32.mrf.mxu0
    %v4277 = vadd.f32 %v4045, %v4276
    %4278 = vmatmul.f32.gmra.mxu0 %v2418
    %v4279 = vpop.f32.mrf.mxu0
    %v4280 = vadd.f32 %v4048, %v4279
    %4281 = vmatmul.f32.gmra.mxu0 %v2421
    %v4282 = vpop.f32.mrf.mxu0
    %v4283 = vadd.f32 %v4051, %v4282
    %4284 = vdwg.mxu0
    %4285 = vmatpush.msra.mxu0 %v2582
    %4286 = vmatpush.msra.mxu0 %v2574
    %4287 = vmatpush.msra.mxu0 %v2566
    %4288 = vmatpush.msra.mxu0 %v2558
    %4289 = vmatpush.msra.mxu0 %v2550
    %4290 = vmatpush.msra.mxu0 %v2542
    %4291 = vmatpush.msra.mxu0 %v2534
    %4292 = vmatpush.msra.mxu0 %v2526
    %4293 = vmatpush.msra.mxu0 %v2518
    %4294 = vmatpush.msra.mxu0 %v2510
    %4295 = vmatpush.msra.mxu0 %v2502
    %4296 = vmatpush.msra.mxu0 %v2494
    %4297 = vmatpush.msra.mxu0 %v2486
    %4298 = vmatpush.msra.mxu0 %v2478
    %4299 = vmatpush.msra.mxu0 %v2470
    %4300 = vmatpush.msra.mxu0 %v2462
    %4301 = vmatmul.f32.gmra.mxu0 %v2412
    %v4302 = vpop.f32.mrf.mxu0
    %v4303 = vadd.f32 %v4071, %v4302
    %4304 = vmatmul.f32.gmra.mxu0 %v2415
    %v4305 = vpop.f32.mrf.mxu0
    %v4306 = vadd.f32 %v4074, %v4305
    %4307 = vmatmul.f32.gmra.mxu0 %v2418
    %v4308 = vpop.f32.mrf.mxu0
    %v4309 = vadd.f32 %v4077, %v4308
    %4310 = vmatmul.f32.gmra.mxu0 %v2421
    %v4311 = vpop.f32.mrf.mxu0
    %v4312 = vadd.f32 %v4080, %v4311
    %4313 = vdwg.mxu0
    %4314 = vmatpush.msra.mxu0 %v2583
    %4315 = vmatpush.msra.mxu0 %v2575
    %4316 = vmatpush.msra.mxu0 %v2567
    %4317 = vmatpush.msra.mxu0 %v2559
    %4318 = vmatpush.msra.mxu0 %v2551
    %4319 = vmatpush.msra.mxu0 %v2543
    %4320 = vmatpush.msra.mxu0 %v2535
    %4321 = vmatpush.msra.mxu0 %v2527
    %4322 = vmatpush.msra.mxu0 %v2519
    %4323 = vmatpush.msra.mxu0 %v2511
    %4324 = vmatpush.msra.mxu0 %v2503
    %4325 = vmatpush.msra.mxu0 %v2495
    %4326 = vmatpush.msra.mxu0 %v2487
    %4327 = vmatpush.msra.mxu0 %v2479
    %4328 = vmatpush.msra.mxu0 %v2471
    %4329 = vmatpush.msra.mxu0 %v2463
    %4330 = vmatmul.f32.gmra.mxu0 %v2412
    %v4331 = vpop.f32.mrf.mxu0
    %v4332 = vadd.f32 %v4100, %v4331
    %4333 = vmatmul.f32.gmra.mxu0 %v2415
    %v4334 = vpop.f32.mrf.mxu0
    %v4335 = vadd.f32 %v4103, %v4334
    %4336 = vmatmul.f32.gmra.mxu0 %v2418
    %v4337 = vpop.f32.mrf.mxu0
    %v4338 = vadd.f32 %v4106, %v4337
    %4339 = vmatmul.f32.gmra.mxu0 %v2421
    %v4340 = vpop.f32.mrf.mxu0
    %v4341 = vadd.f32 %v4109, %v4340
    %4342 = vdwg.mxu0
    %4343 = vmatpush.msra.mxu0 %v2584
    %4344 = vmatpush.msra.mxu0 %v2576
    %4345 = vmatpush.msra.mxu0 %v2568
    %4346 = vmatpush.msra.mxu0 %v2560
    %4347 = vmatpush.msra.mxu0 %v2552
    %4348 = vmatpush.msra.mxu0 %v2544
    %4349 = vmatpush.msra.mxu0 %v2536
    %4350 = vmatpush.msra.mxu0 %v2528
    %4351 = vmatpush.msra.mxu0 %v2520
    %4352 = vmatpush.msra.mxu0 %v2512
    %4353 = vmatpush.msra.mxu0 %v2504
    %4354 = vmatpush.msra.mxu0 %v2496
    %4355 = vmatpush.msra.mxu0 %v2488
    %4356 = vmatpush.msra.mxu0 %v2480
    %4357 = vmatpush.msra.mxu0 %v2472
    %4358 = vmatpush.msra.mxu0 %v2464
    %4359 = vmatmul.f32.gmra.mxu0 %v2412
    %v4360 = vpop.f32.mrf.mxu0
    %v4361 = vadd.f32 %v4129, %v4360
    %4362 = vmatmul.f32.gmra.mxu0 %v2415
    %v4363 = vpop.f32.mrf.mxu0
    %v4364 = vadd.f32 %v4132, %v4363
    %4365 = vmatmul.f32.gmra.mxu0 %v2418
    %v4366 = vpop.f32.mrf.mxu0
    %v4367 = vadd.f32 %v4135, %v4366
    %4368 = vmatmul.f32.gmra.mxu0 %v2421
    %v4369 = vpop.f32.mrf.mxu0
    %v4370 = vadd.f32 %v4138, %v4369
    %4371 = vdwg.mxu0
    %4372 = vmatpush.msra.mxu0 %v2585
    %4373 = vmatpush.msra.mxu0 %v2577
    %4374 = vmatpush.msra.mxu0 %v2569
    %4375 = vmatpush.msra.mxu0 %v2561
    %4376 = vmatpush.msra.mxu0 %v2553
    %4377 = vmatpush.msra.mxu0 %v2545
    %4378 = vmatpush.msra.mxu0 %v2537
    %4379 = vmatpush.msra.mxu0 %v2529
    %4380 = vmatpush.msra.mxu0 %v2521
    %4381 = vmatpush.msra.mxu0 %v2513
    %4382 = vmatpush.msra.mxu0 %v2505
    %4383 = vmatpush.msra.mxu0 %v2497
    %4384 = vmatpush.msra.mxu0 %v2489
    %4385 = vmatpush.msra.mxu0 %v2481
    %4386 = vmatpush.msra.mxu0 %v2473
    %4387 = vmatpush.msra.mxu0 %v2465
    %4388 = vmatmul.f32.gmra.mxu0 %v2412
    %v4389 = vpop.f32.mrf.mxu0
    %v4390 = vadd.f32 %v4158, %v4389
    %4391 = vmatmul.f32.gmra.mxu0 %v2415
    %v4392 = vpop.f32.mrf.mxu0
    %v4393 = vadd.f32 %v4161, %v4392
    %4394 = vmatmul.f32.gmra.mxu0 %v2418
    %v4395 = vpop.f32.mrf.mxu0
    %v4396 = vadd.f32 %v4164, %v4395
    %4397 = vmatmul.f32.gmra.mxu0 %v2421
    %v4398 = vpop.f32.mrf.mxu0
    %v4399 = vadd.f32 %v4167, %v4398
    %4400 = vdwg.mxu0
    %4401 = vmatpush.msra.mxu0 %v2586
    %4402 = vmatpush.msra.mxu0 %v2578
    %4403 = vmatpush.msra.mxu0 %v2570
    %4404 = vmatpush.msra.mxu0 %v2562
    %4405 = vmatpush.msra.mxu0 %v2554
    %4406 = vmatpush.msra.mxu0 %v2546
    %4407 = vmatpush.msra.mxu0 %v2538
    %4408 = vmatpush.msra.mxu0 %v2530
    %4409 = vmatpush.msra.mxu0 %v2522
    %4410 = vmatpush.msra.mxu0 %v2514
    %4411 = vmatpush.msra.mxu0 %v2506
    %4412 = vmatpush.msra.mxu0 %v2498
    %4413 = vmatpush.msra.mxu0 %v2490
    %4414 = vmatpush.msra.mxu0 %v2482
    %4415 = vmatpush.msra.mxu0 %v2474
    %4416 = vmatpush.msra.mxu0 %v2466
    %4417 = vmatmul.f32.gmra.mxu0 %v2412
    %v4418 = vpop.f32.mrf.mxu0
    %v4419 = vadd.f32 %v4187, %v4418
    %4420 = vmatmul.f32.gmra.mxu0 %v2415
    %v4421 = vpop.f32.mrf.mxu0
    %v4422 = vadd.f32 %v4190, %v4421
    %4423 = vmatmul.f32.gmra.mxu0 %v2418
    %v4424 = vpop.f32.mrf.mxu0
    %v4425 = vadd.f32 %v4193, %v4424
    %4426 = vmatmul.f32.gmra.mxu0 %v2421
    %v4427 = vpop.f32.mrf.mxu0
    %v4428 = vadd.f32 %v4196, %v4427
    %4429 = vdwg.mxu0
    %4430 = vmatpush.msra.mxu0 %v3301
    %4431 = vmatpush.msra.mxu0 %v3293
    %4432 = vmatpush.msra.mxu0 %v3285
    %4433 = vmatpush.msra.mxu0 %v3277
    %4434 = vmatpush.msra.mxu0 %v3269
    %4435 = vmatpush.msra.mxu0 %v3261
    %4436 = vmatpush.msra.mxu0 %v3253
    %4437 = vmatpush.msra.mxu0 %v3245
    %4438 = vmatpush.msra.mxu0 %v3237
    %4439 = vmatpush.msra.mxu0 %v3229
    %4440 = vmatpush.msra.mxu0 %v3221
    %4441 = vmatpush.msra.mxu0 %v3213
    %4442 = vmatpush.msra.mxu0 %v3205
    %4443 = vmatpush.msra.mxu0 %v3197
    %4444 = vmatpush.msra.mxu0 %v3189
    %4445 = vmatpush.msra.mxu0 %v3181
    %4446 = vmatmul.f32.gmra.mxu0 %v2436
    %v4447 = vpop.f32.mrf.mxu0
    %v4448 = vadd.f32 0.0, %v4447
    %4449 = vmatmul.f32.gmra.mxu0 %v2439
    %v4450 = vpop.f32.mrf.mxu0
    %v4451 = vadd.f32 0.0, %v4450
    %4452 = vmatmul.f32.gmra.mxu0 %v2442
    %v4453 = vpop.f32.mrf.mxu0
    %v4454 = vadd.f32 0.0, %v4453
    %4455 = vmatmul.f32.gmra.mxu0 %v2445
    %v4456 = vpop.f32.mrf.mxu0
    %v4457 = vadd.f32 0.0, %v4456
    %4458 = vdwg.mxu0
    %4459 = vmatpush.msra.mxu0 %v3302
    %4460 = vmatpush.msra.mxu0 %v3294
    %4461 = vmatpush.msra.mxu0 %v3286
    %4462 = vmatpush.msra.mxu0 %v3278
    %4463 = vmatpush.msra.mxu0 %v3270
    %4464 = vmatpush.msra.mxu0 %v3262
    %4465 = vmatpush.msra.mxu0 %v3254
    %4466 = vmatpush.msra.mxu0 %v3246
    %4467 = vmatpush.msra.mxu0 %v3238
    %4468 = vmatpush.msra.mxu0 %v3230
    %4469 = vmatpush.msra.mxu0 %v3222
    %4470 = vmatpush.msra.mxu0 %v3214
    %4471 = vmatpush.msra.mxu0 %v3206
    %4472 = vmatpush.msra.mxu0 %v3198
    %4473 = vmatpush.msra.mxu0 %v3190
    %4474 = vmatpush.msra.mxu0 %v3182
    %4475 = vmatmul.f32.gmra.mxu0 %v2436
    %v4476 = vpop.f32.mrf.mxu0
    %v4477 = vadd.f32 0.0, %v4476
    %4478 = vmatmul.f32.gmra.mxu0 %v2439
    %v4479 = vpop.f32.mrf.mxu0
    %v4480 = vadd.f32 0.0, %v4479
    %4481 = vmatmul.f32.gmra.mxu0 %v2442
    %v4482 = vpop.f32.mrf.mxu0
    %v4483 = vadd.f32 0.0, %v4482
    %4484 = vmatmul.f32.gmra.mxu0 %v2445
    %v4485 = vpop.f32.mrf.mxu0
    %v4486 = vadd.f32 0.0, %v4485
    %4487 = vdwg.mxu0
    %4488 = vmatpush.msra.mxu0 %v3303
    %4489 = vmatpush.msra.mxu0 %v3295
    %4490 = vmatpush.msra.mxu0 %v3287
    %4491 = vmatpush.msra.mxu0 %v3279
    %4492 = vmatpush.msra.mxu0 %v3271
    %4493 = vmatpush.msra.mxu0 %v3263
    %4494 = vmatpush.msra.mxu0 %v3255
    %4495 = vmatpush.msra.mxu0 %v3247
    %4496 = vmatpush.msra.mxu0 %v3239
    %4497 = vmatpush.msra.mxu0 %v3231
    %4498 = vmatpush.msra.mxu0 %v3223
    %4499 = vmatpush.msra.mxu0 %v3215
    %4500 = vmatpush.msra.mxu0 %v3207
    %4501 = vmatpush.msra.mxu0 %v3199
    %4502 = vmatpush.msra.mxu0 %v3191
    %4503 = vmatpush.msra.mxu0 %v3183
    %4504 = vmatmul.f32.gmra.mxu0 %v2436
    %v4505 = vpop.f32.mrf.mxu0
    %v4506 = vadd.f32 0.0, %v4505
    %4507 = vmatmul.f32.gmra.mxu0 %v2439
    %v4508 = vpop.f32.mrf.mxu0
    %v4509 = vadd.f32 0.0, %v4508
    %4510 = vmatmul.f32.gmra.mxu0 %v2442
    %v4511 = vpop.f32.mrf.mxu0
    %v4512 = vadd.f32 0.0, %v4511
    %4513 = vmatmul.f32.gmra.mxu0 %v2445
    %v4514 = vpop.f32.mrf.mxu0
    %v4515 = vadd.f32 0.0, %v4514
    %4516 = vdwg.mxu0
    %4517 = vmatpush.msra.mxu0 %v3304
    %4518 = vmatpush.msra.mxu0 %v3296
    %4519 = vmatpush.msra.mxu0 %v3288
    %4520 = vmatpush.msra.mxu0 %v3280
    %4521 = vmatpush.msra.mxu0 %v3272
    %4522 = vmatpush.msra.mxu0 %v3264
    %4523 = vmatpush.msra.mxu0 %v3256
    %4524 = vmatpush.msra.mxu0 %v3248
    %4525 = vmatpush.msra.mxu0 %v3240
    %4526 = vmatpush.msra.mxu0 %v3232
    %4527 = vmatpush.msra.mxu0 %v3224
    %4528 = vmatpush.msra.mxu0 %v3216
    %4529 = vmatpush.msra.mxu0 %v3208
    %4530 = vmatpush.msra.mxu0 %v3200
    %4531 = vmatpush.msra.mxu0 %v3192
    %4532 = vmatpush.msra.mxu0 %v3184
    %4533 = vmatmul.f32.gmra.mxu0 %v2436
    %v4534 = vpop.f32.mrf.mxu0
    %v4535 = vadd.f32 0.0, %v4534
    %4536 = vmatmul.f32.gmra.mxu0 %v2439
    %v4537 = vpop.f32.mrf.mxu0
    %v4538 = vadd.f32 0.0, %v4537
    %4539 = vmatmul.f32.gmra.mxu0 %v2442
    %v4540 = vpop.f32.mrf.mxu0
    %v4541 = vadd.f32 0.0, %v4540
    %4542 = vmatmul.f32.gmra.mxu0 %v2445
    %v4543 = vpop.f32.mrf.mxu0
    %v4544 = vadd.f32 0.0, %v4543
    %4545 = vdwg.mxu0
    %4546 = vmatpush.msra.mxu0 %v3305
    %4547 = vmatpush.msra.mxu0 %v3297
    %4548 = vmatpush.msra.mxu0 %v3289
    %4549 = vmatpush.msra.mxu0 %v3281
    %4550 = vmatpush.msra.mxu0 %v3273
    %4551 = vmatpush.msra.mxu0 %v3265
    %4552 = vmatpush.msra.mxu0 %v3257
    %4553 = vmatpush.msra.mxu0 %v3249
    %4554 = vmatpush.msra.mxu0 %v3241
    %4555 = vmatpush.msra.mxu0 %v3233
    %4556 = vmatpush.msra.mxu0 %v3225
    %4557 = vmatpush.msra.mxu0 %v3217
    %4558 = vmatpush.msra.mxu0 %v3209
    %4559 = vmatpush.msra.mxu0 %v3201
    %4560 = vmatpush.msra.mxu0 %v3193
    %4561 = vmatpush.msra.mxu0 %v3185
    %4562 = vmatmul.f32.gmra.mxu0 %v2436
    %v4563 = vpop.f32.mrf.mxu0
    %v4564 = vadd.f32 0.0, %v4563
    %4565 = vmatmul.f32.gmra.mxu0 %v2439
    %v4566 = vpop.f32.mrf.mxu0
    %v4567 = vadd.f32 0.0, %v4566
    %4568 = vmatmul.f32.gmra.mxu0 %v2442
    %v4569 = vpop.f32.mrf.mxu0
    %v4570 = vadd.f32 0.0, %v4569
    %4571 = vmatmul.f32.gmra.mxu0 %v2445
    %v4572 = vpop.f32.mrf.mxu0
    %v4573 = vadd.f32 0.0, %v4572
    %4574 = vdwg.mxu0
    %4575 = vmatpush.msra.mxu0 %v3306
    %4576 = vmatpush.msra.mxu0 %v3298
    %4577 = vmatpush.msra.mxu0 %v3290
    %4578 = vmatpush.msra.mxu0 %v3282
    %4579 = vmatpush.msra.mxu0 %v3274
    %4580 = vmatpush.msra.mxu0 %v3266
    %4581 = vmatpush.msra.mxu0 %v3258
    %4582 = vmatpush.msra.mxu0 %v3250
    %4583 = vmatpush.msra.mxu0 %v3242
    %4584 = vmatpush.msra.mxu0 %v3234
    %4585 = vmatpush.msra.mxu0 %v3226
    %4586 = vmatpush.msra.mxu0 %v3218
    %4587 = vmatpush.msra.mxu0 %v3210
    %4588 = vmatpush.msra.mxu0 %v3202
    %4589 = vmatpush.msra.mxu0 %v3194
    %4590 = vmatpush.msra.mxu0 %v3186
    %4591 = vmatmul.f32.gmra.mxu0 %v2436
    %v4592 = vpop.f32.mrf.mxu0
    %v4593 = vadd.f32 0.0, %v4592
    %4594 = vmatmul.f32.gmra.mxu0 %v2439
    %v4595 = vpop.f32.mrf.mxu0
    %v4596 = vadd.f32 0.0, %v4595
    %4597 = vmatmul.f32.gmra.mxu0 %v2442
    %v4598 = vpop.f32.mrf.mxu0
    %v4599 = vadd.f32 0.0, %v4598
    %4600 = vmatmul.f32.gmra.mxu0 %v2445
    %v4601 = vpop.f32.mrf.mxu0
    %v4602 = vadd.f32 0.0, %v4601
    %4603 = vdwg.mxu0
    %4604 = vmatpush.msra.mxu0 %v3307
    %4605 = vmatpush.msra.mxu0 %v3299
    %4606 = vmatpush.msra.mxu0 %v3291
    %4607 = vmatpush.msra.mxu0 %v3283
    %4608 = vmatpush.msra.mxu0 %v3275
    %4609 = vmatpush.msra.mxu0 %v3267
    %4610 = vmatpush.msra.mxu0 %v3259
    %4611 = vmatpush.msra.mxu0 %v3251
    %4612 = vmatpush.msra.mxu0 %v3243
    %4613 = vmatpush.msra.mxu0 %v3235
    %4614 = vmatpush.msra.mxu0 %v3227
    %4615 = vmatpush.msra.mxu0 %v3219
    %4616 = vmatpush.msra.mxu0 %v3211
    %4617 = vmatpush.msra.mxu0 %v3203
    %4618 = vmatpush.msra.mxu0 %v3195
    %4619 = vmatpush.msra.mxu0 %v3187
    %4620 = vmatmul.f32.gmra.mxu0 %v2436
    %v4621 = vpop.f32.mrf.mxu0
    %v4622 = vadd.f32 0.0, %v4621
    %4623 = vmatmul.f32.gmra.mxu0 %v2439
    %v4624 = vpop.f32.mrf.mxu0
    %v4625 = vadd.f32 0.0, %v4624
    %4626 = vmatmul.f32.gmra.mxu0 %v2442
    %v4627 = vpop.f32.mrf.mxu0
    %v4628 = vadd.f32 0.0, %v4627
    %4629 = vmatmul.f32.gmra.mxu0 %v2445
    %v4630 = vpop.f32.mrf.mxu0
    %v4631 = vadd.f32 0.0, %v4630
    %4632 = vdwg.mxu0
    %4633 = vmatpush.msra.mxu0 %v3308
    %4634 = vmatpush.msra.mxu0 %v3300
    %4635 = vmatpush.msra.mxu0 %v3292
    %4636 = vmatpush.msra.mxu0 %v3284
    %4637 = vmatpush.msra.mxu0 %v3276
    %4638 = vmatpush.msra.mxu0 %v3268
    %4639 = vmatpush.msra.mxu0 %v3260
    %4640 = vmatpush.msra.mxu0 %v3252
    %4641 = vmatpush.msra.mxu0 %v3244
    %4642 = vmatpush.msra.mxu0 %v3236
    %4643 = vmatpush.msra.mxu0 %v3228
    %4644 = vmatpush.msra.mxu0 %v3220
    %4645 = vmatpush.msra.mxu0 %v3212
    %4646 = vmatpush.msra.mxu0 %v3204
    %4647 = vmatpush.msra.mxu0 %v3196
    %4648 = vmatpush.msra.mxu0 %v3188
    %4649 = vmatmul.f32.gmra.mxu0 %v2436
    %v4650 = vpop.f32.mrf.mxu0
    %v4651 = vadd.f32 0.0, %v4650
    %4652 = vmatmul.f32.gmra.mxu0 %v2439
    %v4653 = vpop.f32.mrf.mxu0
    %v4654 = vadd.f32 0.0, %v4653
    %4655 = vmatmul.f32.gmra.mxu0 %v2442
    %v4656 = vpop.f32.mrf.mxu0
    %v4657 = vadd.f32 0.0, %v4656
    %4658 = vmatmul.f32.gmra.mxu0 %v2445
    %v4659 = vpop.f32.mrf.mxu0
    %v4660 = vadd.f32 0.0, %v4659
    %4661 = vdwg.mxu0
    %v4662 = vadd.f32 %v4216, %v4448
    %v4663 = vadd.f32 %v4245, %v4477
    %v4664 = vadd.f32 %v4274, %v4506
    %v4665 = vadd.f32 %v4303, %v4535
    %v4666 = vadd.f32 %v4332, %v4564
    %v4667 = vadd.f32 %v4361, %v4593
    %v4668 = vadd.f32 %v4390, %v4622
    %v4669 = vadd.f32 %v4419, %v4651
    %v4670 = vadd.f32 %v4219, %v4451
    %v4671 = vadd.f32 %v4248, %v4480
    %v4672 = vadd.f32 %v4277, %v4509
    %v4673 = vadd.f32 %v4306, %v4538
    %v4674 = vadd.f32 %v4335, %v4567
    %v4675 = vadd.f32 %v4364, %v4596
    %v4676 = vadd.f32 %v4393, %v4625
    %v4677 = vadd.f32 %v4422, %v4654
    %v4678 = vadd.f32 %v4222, %v4454
    %v4679 = vadd.f32 %v4251, %v4483
    %v4680 = vadd.f32 %v4280, %v4512
    %v4681 = vadd.f32 %v4309, %v4541
    %v4682 = vadd.f32 %v4338, %v4570
    %v4683 = vadd.f32 %v4367, %v4599
    %v4684 = vadd.f32 %v4396, %v4628
    %v4685 = vadd.f32 %v4425, %v4657
    %v4686 = vadd.f32 %v4225, %v4457
    %v4687 = vadd.f32 %v4254, %v4486
    %v4688 = vadd.f32 %v4283, %v4515
    %v4689 = vadd.f32 %v4312, %v4544
    %v4690 = vadd.f32 %v4341, %v4573
    %v4691 = vadd.f32 %v4370, %v4602
    %v4692 = vadd.f32 %v4399, %v4631
    %v4693 = vadd.f32 %v4428, %v4660
    %4694 = vmatpush.msra.mxu0 %v3694
    %4695 = vmatpush.msra.mxu0 %v3686
    %4696 = vmatpush.msra.mxu0 %v3678
    %4697 = vmatpush.msra.mxu0 %v3670
    %4698 = vmatpush.msra.mxu0 %v3662
    %4699 = vmatpush.msra.mxu0 %v3654
    %4700 = vmatpush.msra.mxu0 %v3646
    %4701 = vmatpush.msra.mxu0 %v3638
    %4702 = vmatpush.msra.mxu0 %v3630
    %4703 = vmatpush.msra.mxu0 %v3622
    %4704 = vmatpush.msra.mxu0 %v3614
    %4705 = vmatpush.msra.mxu0 %v3606
    %4706 = vmatpush.msra.mxu0 %v3598
    %4707 = vmatpush.msra.mxu0 %v3590
    %4708 = vmatpush.msra.mxu0 %v3582
    %4709 = vmatpush.msra.mxu0 %v3574
    %4710 = vmatmul.f32.gmra.mxu0 %v2448
    %v4711 = vpop.f32.mrf.mxu0
    %v4712 = vadd.f32 0.0, %v4711
    %4713 = vmatmul.f32.gmra.mxu0 %v2451
    %v4714 = vpop.f32.mrf.mxu0
    %v4715 = vadd.f32 0.0, %v4714
    %4716 = vmatmul.f32.gmra.mxu0 %v2454
    %v4717 = vpop.f32.mrf.mxu0
    %v4718 = vadd.f32 0.0, %v4717
    %4719 = vmatmul.f32.gmra.mxu0 %v2457
    %v4720 = vpop.f32.mrf.mxu0
    %v4721 = vadd.f32 0.0, %v4720
    %4722 = vdwg.mxu0
    %4723 = vmatpush.msra.mxu0 %v3695
    %4724 = vmatpush.msra.mxu0 %v3687
    %4725 = vmatpush.msra.mxu0 %v3679
    %4726 = vmatpush.msra.mxu0 %v3671
    %4727 = vmatpush.msra.mxu0 %v3663
    %4728 = vmatpush.msra.mxu0 %v3655
    %4729 = vmatpush.msra.mxu0 %v3647
    %4730 = vmatpush.msra.mxu0 %v3639
    %4731 = vmatpush.msra.mxu0 %v3631
    %4732 = vmatpush.msra.mxu0 %v3623
    %4733 = vmatpush.msra.mxu0 %v3615
    %4734 = vmatpush.msra.mxu0 %v3607
    %4735 = vmatpush.msra.mxu0 %v3599
    %4736 = vmatpush.msra.mxu0 %v3591
    %4737 = vmatpush.msra.mxu0 %v3583
    %4738 = vmatpush.msra.mxu0 %v3575
    %4739 = vmatmul.f32.gmra.mxu0 %v2448
    %v4740 = vpop.f32.mrf.mxu0
    %v4741 = vadd.f32 0.0, %v4740
    %4742 = vmatmul.f32.gmra.mxu0 %v2451
    %v4743 = vpop.f32.mrf.mxu0
    %v4744 = vadd.f32 0.0, %v4743
    %4745 = vmatmul.f32.gmra.mxu0 %v2454
    %v4746 = vpop.f32.mrf.mxu0
    %v4747 = vadd.f32 0.0, %v4746
    %4748 = vmatmul.f32.gmra.mxu0 %v2457
    %v4749 = vpop.f32.mrf.mxu0
    %v4750 = vadd.f32 0.0, %v4749
    %4751 = vdwg.mxu0
    %4752 = vmatpush.msra.mxu0 %v3696
    %4753 = vmatpush.msra.mxu0 %v3688
    %4754 = vmatpush.msra.mxu0 %v3680
    %4755 = vmatpush.msra.mxu0 %v3672
    %4756 = vmatpush.msra.mxu0 %v3664
    %4757 = vmatpush.msra.mxu0 %v3656
    %4758 = vmatpush.msra.mxu0 %v3648
    %4759 = vmatpush.msra.mxu0 %v3640
    %4760 = vmatpush.msra.mxu0 %v3632
    %4761 = vmatpush.msra.mxu0 %v3624
    %4762 = vmatpush.msra.mxu0 %v3616
    %4763 = vmatpush.msra.mxu0 %v3608
    %4764 = vmatpush.msra.mxu0 %v3600
    %4765 = vmatpush.msra.mxu0 %v3592
    %4766 = vmatpush.msra.mxu0 %v3584
    %4767 = vmatpush.msra.mxu0 %v3576
    %4768 = vmatmul.f32.gmra.mxu0 %v2448
    %v4769 = vpop.f32.mrf.mxu0
    %v4770 = vadd.f32 0.0, %v4769
    %4771 = vmatmul.f32.gmra.mxu0 %v2451
    %v4772 = vpop.f32.mrf.mxu0
    %v4773 = vadd.f32 0.0, %v4772
    %4774 = vmatmul.f32.gmra.mxu0 %v2454
    %v4775 = vpop.f32.mrf.mxu0
    %v4776 = vadd.f32 0.0, %v4775
    %4777 = vmatmul.f32.gmra.mxu0 %v2457
    %v4778 = vpop.f32.mrf.mxu0
    %v4779 = vadd.f32 0.0, %v4778
    %4780 = vdwg.mxu0
    %4781 = vmatpush.msra.mxu0 %v3697
    %4782 = vmatpush.msra.mxu0 %v3689
    %4783 = vmatpush.msra.mxu0 %v3681
    %4784 = vmatpush.msra.mxu0 %v3673
    %4785 = vmatpush.msra.mxu0 %v3665
    %4786 = vmatpush.msra.mxu0 %v3657
    %4787 = vmatpush.msra.mxu0 %v3649
    %4788 = vmatpush.msra.mxu0 %v3641
    %4789 = vmatpush.msra.mxu0 %v3633
    %4790 = vmatpush.msra.mxu0 %v3625
    %4791 = vmatpush.msra.mxu0 %v3617
    %4792 = vmatpush.msra.mxu0 %v3609
    %4793 = vmatpush.msra.mxu0 %v3601
    %4794 = vmatpush.msra.mxu0 %v3593
    %4795 = vmatpush.msra.mxu0 %v3585
    %4796 = vmatpush.msra.mxu0 %v3577
    %4797 = vmatmul.f32.gmra.mxu0 %v2448
    %v4798 = vpop.f32.mrf.mxu0
    %v4799 = vadd.f32 0.0, %v4798
    %4800 = vmatmul.f32.gmra.mxu0 %v2451
    %v4801 = vpop.f32.mrf.mxu0
    %v4802 = vadd.f32 0.0, %v4801
    %4803 = vmatmul.f32.gmra.mxu0 %v2454
    %v4804 = vpop.f32.mrf.mxu0
    %v4805 = vadd.f32 0.0, %v4804
    %4806 = vmatmul.f32.gmra.mxu0 %v2457
    %v4807 = vpop.f32.mrf.mxu0
    %v4808 = vadd.f32 0.0, %v4807
    %4809 = vdwg.mxu0
    %4810 = vmatpush.msra.mxu0 %v3698
    %4811 = vmatpush.msra.mxu0 %v3690
    %4812 = vmatpush.msra.mxu0 %v3682
    %4813 = vmatpush.msra.mxu0 %v3674
    %4814 = vmatpush.msra.mxu0 %v3666
    %4815 = vmatpush.msra.mxu0 %v3658
    %4816 = vmatpush.msra.mxu0 %v3650
    %4817 = vmatpush.msra.mxu0 %v3642
    %4818 = vmatpush.msra.mxu0 %v3634
    %4819 = vmatpush.msra.mxu0 %v3626
    %4820 = vmatpush.msra.mxu0 %v3618
    %4821 = vmatpush.msra.mxu0 %v3610
    %4822 = vmatpush.msra.mxu0 %v3602
    %4823 = vmatpush.msra.mxu0 %v3594
    %4824 = vmatpush.msra.mxu0 %v3586
    %4825 = vmatpush.msra.mxu0 %v3578
    %4826 = vmatmul.f32.gmra.mxu0 %v2448
    %v4827 = vpop.f32.mrf.mxu0
    %v4828 = vadd.f32 0.0, %v4827
    %4829 = vmatmul.f32.gmra.mxu0 %v2451
    %v4830 = vpop.f32.mrf.mxu0
    %v4831 = vadd.f32 0.0, %v4830
    %4832 = vmatmul.f32.gmra.mxu0 %v2454
    %v4833 = vpop.f32.mrf.mxu0
    %v4834 = vadd.f32 0.0, %v4833
    %4835 = vmatmul.f32.gmra.mxu0 %v2457
    %v4836 = vpop.f32.mrf.mxu0
    %v4837 = vadd.f32 0.0, %v4836
    %4838 = vdwg.mxu0
    %4839 = vmatpush.msra.mxu0 %v3699
    %4840 = vmatpush.msra.mxu0 %v3691
    %4841 = vmatpush.msra.mxu0 %v3683
    %4842 = vmatpush.msra.mxu0 %v3675
    %4843 = vmatpush.msra.mxu0 %v3667
    %4844 = vmatpush.msra.mxu0 %v3659
    %4845 = vmatpush.msra.mxu0 %v3651
    %4846 = vmatpush.msra.mxu0 %v3643
    %4847 = vmatpush.msra.mxu0 %v3635
    %4848 = vmatpush.msra.mxu0 %v3627
    %4849 = vmatpush.msra.mxu0 %v3619
    %4850 = vmatpush.msra.mxu0 %v3611
    %4851 = vmatpush.msra.mxu0 %v3603
    %4852 = vmatpush.msra.mxu0 %v3595
    %4853 = vmatpush.msra.mxu0 %v3587
    %4854 = vmatpush.msra.mxu0 %v3579
    %4855 = vmatmul.f32.gmra.mxu0 %v2448
    %v4856 = vpop.f32.mrf.mxu0
    %v4857 = vadd.f32 0.0, %v4856
    %4858 = vmatmul.f32.gmra.mxu0 %v2451
    %v4859 = vpop.f32.mrf.mxu0
    %v4860 = vadd.f32 0.0, %v4859
    %4861 = vmatmul.f32.gmra.mxu0 %v2454
    %v4862 = vpop.f32.mrf.mxu0
    %v4863 = vadd.f32 0.0, %v4862
    %4864 = vmatmul.f32.gmra.mxu0 %v2457
    %v4865 = vpop.f32.mrf.mxu0
    %v4866 = vadd.f32 0.0, %v4865
    %4867 = vdwg.mxu0
    %4868 = vmatpush.msra.mxu0 %v3700
    %4869 = vmatpush.msra.mxu0 %v3692
    %4870 = vmatpush.msra.mxu0 %v3684
    %4871 = vmatpush.msra.mxu0 %v3676
    %4872 = vmatpush.msra.mxu0 %v3668
    %4873 = vmatpush.msra.mxu0 %v3660
    %4874 = vmatpush.msra.mxu0 %v3652
    %4875 = vmatpush.msra.mxu0 %v3644
    %4876 = vmatpush.msra.mxu0 %v3636
    %4877 = vmatpush.msra.mxu0 %v3628
    %4878 = vmatpush.msra.mxu0 %v3620
    %4879 = vmatpush.msra.mxu0 %v3612
    %4880 = vmatpush.msra.mxu0 %v3604
    %4881 = vmatpush.msra.mxu0 %v3596
    %4882 = vmatpush.msra.mxu0 %v3588
    %4883 = vmatpush.msra.mxu0 %v3580
    %4884 = vmatmul.f32.gmra.mxu0 %v2448
    %v4885 = vpop.f32.mrf.mxu0
    %v4886 = vadd.f32 0.0, %v4885
    %4887 = vmatmul.f32.gmra.mxu0 %v2451
    %v4888 = vpop.f32.mrf.mxu0
    %v4889 = vadd.f32 0.0, %v4888
    %4890 = vmatmul.f32.gmra.mxu0 %v2454
    %v4891 = vpop.f32.mrf.mxu0
    %v4892 = vadd.f32 0.0, %v4891
    %4893 = vmatmul.f32.gmra.mxu0 %v2457
    %v4894 = vpop.f32.mrf.mxu0
    %v4895 = vadd.f32 0.0, %v4894
    %4896 = vdwg.mxu0
    %4897 = vmatpush.msra.mxu0 %v3701
    %4898 = vmatpush.msra.mxu0 %v3693
    %4899 = vmatpush.msra.mxu0 %v3685
    %4900 = vmatpush.msra.mxu0 %v3677
    %4901 = vmatpush.msra.mxu0 %v3669
    %4902 = vmatpush.msra.mxu0 %v3661
    %4903 = vmatpush.msra.mxu0 %v3653
    %4904 = vmatpush.msra.mxu0 %v3645
    %4905 = vmatpush.msra.mxu0 %v3637
    %4906 = vmatpush.msra.mxu0 %v3629
    %4907 = vmatpush.msra.mxu0 %v3621
    %4908 = vmatpush.msra.mxu0 %v3613
    %4909 = vmatpush.msra.mxu0 %v3605
    %4910 = vmatpush.msra.mxu0 %v3597
    %4911 = vmatpush.msra.mxu0 %v3589
    %4912 = vmatpush.msra.mxu0 %v3581
    %4913 = vmatmul.f32.gmra.mxu0 %v2448
    %v4914 = vpop.f32.mrf.mxu0
    %v4915 = vadd.f32 0.0, %v4914
    %4916 = vmatmul.f32.gmra.mxu0 %v2451
    %v4917 = vpop.f32.mrf.mxu0
    %v4918 = vadd.f32 0.0, %v4917
    %4919 = vmatmul.f32.gmra.mxu0 %v2454
    %v4920 = vpop.f32.mrf.mxu0
    %v4921 = vadd.f32 0.0, %v4920
    %4922 = vmatmul.f32.gmra.mxu0 %v2457
    %v4923 = vpop.f32.mrf.mxu0
    %v4924 = vadd.f32 0.0, %v4923
    %4925 = vdwg.mxu0
    %v4926 = vadd.f32 %v4662, %v4712
    %v4927 = vadd.f32 %v4663, %v4741
    %v4928 = vadd.f32 %v4664, %v4770
    %v4929 = vadd.f32 %v4665, %v4799
    %v4930 = vadd.f32 %v4666, %v4828
    %v4931 = vadd.f32 %v4667, %v4857
    %v4932 = vadd.f32 %v4668, %v4886
    %v4933 = vadd.f32 %v4669, %v4915
    %v4934 = vadd.f32 %v4670, %v4715
    %v4935 = vadd.f32 %v4671, %v4744
    %v4936 = vadd.f32 %v4672, %v4773
    %v4937 = vadd.f32 %v4673, %v4802
    %v4938 = vadd.f32 %v4674, %v4831
    %v4939 = vadd.f32 %v4675, %v4860
    %v4940 = vadd.f32 %v4676, %v4889
    %v4941 = vadd.f32 %v4677, %v4918
    %v4942 = vadd.f32 %v4678, %v4718
    %v4943 = vadd.f32 %v4679, %v4747
    %v4944 = vadd.f32 %v4680, %v4776
    %v4945 = vadd.f32 %v4681, %v4805
    %v4946 = vadd.f32 %v4682, %v4834
    %v4947 = vadd.f32 %v4683, %v4863
    %v4948 = vadd.f32 %v4684, %v4892
    %v4949 = vadd.f32 %v4685, %v4921
    %v4950 = vadd.f32 %v4686, %v4721
    %v4951 = vadd.f32 %v4687, %v4750
    %v4952 = vadd.f32 %v4688, %v4779
    %v4953 = vadd.f32 %v4689, %v4808
    %v4954 = vadd.f32 %v4690, %v4837
    %v4955 = vadd.f32 %v4691, %v4866
    %v4956 = vadd.f32 %v4692, %v4895
    %v4957 = vadd.f32 %v4693, %v4924
    %v4958 = vld [vmem:[%s7] sm:$0xff]
    %v4960 = vperm.slane %v4958, 0
    %v4961 = vperm.slane %v4958, 1
    %v4962 = vperm.slane %v4958, 2
    %v4963 = vperm.slane %v4958, 3
    %v4964 = vperm.slane %v4958, 4
    %v4965 = vperm.slane %v4958, 5
    %v4966 = vperm.slane %v4958, 6
    %v4967 = vperm.slane %v4958, 7
    %v4976 = vadd.f32 %v3934, %v4960
    %v4977 = vadd.f32 %v3935, %v4961
    %v4978 = vadd.f32 %v3936, %v4962
    %v4979 = vadd.f32 %v3937, %v4963
    %v4980 = vadd.f32 %v3938, %v4964
    %v4981 = vadd.f32 %v3939, %v4965
    %v4982 = vadd.f32 %v3940, %v4966
    %v4983 = vadd.f32 %v3941, %v4967
    %v4984 = vadd.f32 %v3942, %v4960
    %v4985 = vadd.f32 %v3943, %v4961
    %v4986 = vadd.f32 %v3944, %v4962
    %v4987 = vadd.f32 %v3945, %v4963
    %v4988 = vadd.f32 %v3946, %v4964
    %v4989 = vadd.f32 %v3947, %v4965
    %v4990 = vadd.f32 %v3948, %v4966
    %v4991 = vadd.f32 %v3949, %v4967
    %v4992 = vadd.f32 %v3950, %v4960
    %v4993 = vadd.f32 %v3951, %v4961
    %v4994 = vadd.f32 %v3952, %v4962
    %v4995 = vadd.f32 %v3953, %v4963
    %v4996 = vadd.f32 %v3954, %v4964
    %v4997 = vadd.f32 %v3955, %v4965
    %v4998 = vadd.f32 %v3956, %v4966
    %v4999 = vadd.f32 %v3957, %v4967
    %v5000 = vadd.f32 %v3958, %v4960
    %v5001 = vadd.f32 %v3959, %v4961
    %v5002 = vadd.f32 %v3960, %v4962
    %v5003 = vadd.f32 %v3961, %v4963
    %v5004 = vadd.f32 %v3962, %v4964
    %v5005 = vadd.f32 %v3963, %v4965
    %v5006 = vadd.f32 %v3964, %v4966
    %v5007 = vadd.f32 %v3965, %v4967
    %v5008 = vadd.f32 %v4926, %v4960
    %v5009 = vadd.f32 %v4927, %v4961
    %v5010 = vadd.f32 %v4928, %v4962
    %v5011 = vadd.f32 %v4929, %v4963
    %v5012 = vadd.f32 %v4930, %v4964
    %v5013 = vadd.f32 %v4931, %v4965
    %v5014 = vadd.f32 %v4932, %v4966
    %v5015 = vadd.f32 %v4933, %v4967
    %v5016 = vadd.f32 %v4934, %v4960
    %v5017 = vadd.f32 %v4935, %v4961
    %v5018 = vadd.f32 %v4936, %v4962
    %v5019 = vadd.f32 %v4937, %v4963
    %v5020 = vadd.f32 %v4938, %v4964
    %v5021 = vadd.f32 %v4939, %v4965
    %v5022 = vadd.f32 %v4940, %v4966
    %v5023 = vadd.f32 %v4941, %v4967
    %v5024 = vadd.f32 %v4942, %v4960
    %v5025 = vadd.f32 %v4943, %v4961
    %v5026 = vadd.f32 %v4944, %v4962
    %v5027 = vadd.f32 %v4945, %v4963
    %v5028 = vadd.f32 %v4946, %v4964
    %v5029 = vadd.f32 %v4947, %v4965
    %v5030 = vadd.f32 %v4948, %v4966
    %v5031 = vadd.f32 %v4949, %v4967
    %v5032 = vadd.f32 %v4950, %v4960
    %v5033 = vadd.f32 %v4951, %v4961
    %v5034 = vadd.f32 %v4952, %v4962
    %v5035 = vadd.f32 %v4953, %v4963
    %v5036 = vadd.f32 %v4954, %v4964
    %v5037 = vadd.f32 %v4955, %v4965
    %v5038 = vadd.f32 %v4956, %v4966
    %v5039 = vadd.f32 %v4957, %v4967
    %v5040 = vld [vmem:[#allocation13] sm:$0xff]
    %v5041 = vld [vmem:[#allocation13 + $0x8] sm:$0xff]
    %v5042 = vld [vmem:[#allocation13 + $0x10] sm:$0xff]
    %v5043 = vld [vmem:[#allocation13 + $0x18] sm:$0xff]
    %v5044 = vld [vmem:[#allocation13 + $0x20] sm:$0xff]
    %v5045 = vld [vmem:[#allocation13 + $0x28] sm:$0xff]
    %v5046 = vld [vmem:[#allocation13 + $0x30] sm:$0xff]
    %v5047 = vld [vmem:[#allocation13 + $0x38] sm:$0xff]
    %v5048 = vld [vmem:[#allocation13 + $0x40] sm:$0xff]
    %v5049 = vld [vmem:[#allocation13 + $0x48] sm:$0xff]
    %v5050 = vld [vmem:[#allocation13 + $0x50] sm:$0xff]
    %v5051 = vld [vmem:[#allocation13 + $0x58] sm:$0xff]
    %v5052 = vld [vmem:[#allocation13 + $0x60] sm:$0xff]
    %v5053 = vld [vmem:[#allocation13 + $0x68] sm:$0xff]
    %v5054 = vld [vmem:[#allocation13 + $0x70] sm:$0xff]
    %v5055 = vld [vmem:[#allocation13 + $0x78] sm:$0xff]
    %v5056 = vld [vmem:[#allocation13 + $0x80] sm:$0xff]
    %v5057 = vld [vmem:[#allocation13 + $0x88] sm:$0xff]
    %v5058 = vld [vmem:[#allocation13 + $0x90] sm:$0xff]
    %v5059 = vld [vmem:[#allocation13 + $0x98] sm:$0xff]
    %v5060 = vld [vmem:[#allocation13 + $0xa0] sm:$0xff]
    %v5061 = vld [vmem:[#allocation13 + $0xa8] sm:$0xff]
    %v5062 = vld [vmem:[#allocation13 + $0xb0] sm:$0xff]
    %v5063 = vld [vmem:[#allocation13 + $0xb8] sm:$0xff]
    %v5064 = vld [vmem:[#allocation13 + $0xc0] sm:$0xff]
    %v5065 = vld [vmem:[#allocation13 + $0xc8] sm:$0xff]
    %v5066 = vld [vmem:[#allocation13 + $0xd0] sm:$0xff]
    %v5067 = vld [vmem:[#allocation13 + $0xd8] sm:$0xff]
    %v5068 = vld [vmem:[#allocation13 + $0xe0] sm:$0xff]
    %v5069 = vld [vmem:[#allocation13 + $0xe8] sm:$0xff]
    %v5070 = vld [vmem:[#allocation13 + $0xf0] sm:$0xff]
    %v5071 = vld [vmem:[#allocation13 + $0xf8] sm:$0xff]
    %v5072 = vld [vmem:[#allocation13 + $0x100] sm:$0xff]
    %v5073 = vld [vmem:[#allocation13 + $0x108] sm:$0xff]
    %v5074 = vld [vmem:[#allocation13 + $0x110] sm:$0xff]
    %v5075 = vld [vmem:[#allocation13 + $0x118] sm:$0xff]
    %v5076 = vld [vmem:[#allocation13 + $0x120] sm:$0xff]
    %v5077 = vld [vmem:[#allocation13 + $0x128] sm:$0xff]
    %v5078 = vld [vmem:[#allocation13 + $0x130] sm:$0xff]
    %v5079 = vld [vmem:[#allocation13 + $0x138] sm:$0xff]
    %v5080 = vld [vmem:[#allocation13 + $0x140] sm:$0xff]
    %v5081 = vld [vmem:[#allocation13 + $0x148] sm:$0xff]
    %v5082 = vld [vmem:[#allocation13 + $0x150] sm:$0xff]
    %v5083 = vld [vmem:[#allocation13 + $0x158] sm:$0xff]
    %v5084 = vld [vmem:[#allocation13 + $0x160] sm:$0xff]
    %v5085 = vld [vmem:[#allocation13 + $0x168] sm:$0xff]
    %v5086 = vld [vmem:[#allocation13 + $0x170] sm:$0xff]
    %v5087 = vld [vmem:[#allocation13 + $0x178] sm:$0xff]
    %v5088 = vld [vmem:[#allocation13 + $0x180] sm:$0xff]
    %v5089 = vld [vmem:[#allocation13 + $0x188] sm:$0xff]
    %v5090 = vld [vmem:[#allocation13 + $0x190] sm:$0xff]
    %v5091 = vld [vmem:[#allocation13 + $0x198] sm:$0xff]
    %v5092 = vld [vmem:[#allocation13 + $0x1a0] sm:$0xff]
    %v5093 = vld [vmem:[#allocation13 + $0x1a8] sm:$0xff]
    %v5094 = vld [vmem:[#allocation13 + $0x1b0] sm:$0xff]
    %v5095 = vld [vmem:[#allocation13 + $0x1b8] sm:$0xff]
    %v5096 = vld [vmem:[#allocation13 + $0x1c0] sm:$0xff]
    %v5097 = vld [vmem:[#allocation13 + $0x1c8] sm:$0xff]
    %v5098 = vld [vmem:[#allocation13 + $0x1d0] sm:$0xff]
    %v5099 = vld [vmem:[#allocation13 + $0x1d8] sm:$0xff]
    %v5100 = vld [vmem:[#allocation13 + $0x1e0] sm:$0xff]
    %v5101 = vld [vmem:[#allocation13 + $0x1e8] sm:$0xff]
    %v5102 = vld [vmem:[#allocation13 + $0x1f0] sm:$0xff]
    %v5103 = vld [vmem:[#allocation13 + $0x1f8] sm:$0xff]
    %v5104 = vld [vmem:[#allocation13 + $0x200] sm:$0xff]
    %v5105 = vld [vmem:[#allocation13 + $0x208] sm:$0xff]
    %v5106 = vld [vmem:[#allocation13 + $0x210] sm:$0xff]
    %v5107 = vld [vmem:[#allocation13 + $0x218] sm:$0xff]
    %v5108 = vld [vmem:[#allocation13 + $0x220] sm:$0xff]
    %v5109 = vld [vmem:[#allocation13 + $0x228] sm:$0xff]
    %v5110 = vld [vmem:[#allocation13 + $0x230] sm:$0xff]
    %v5111 = vld [vmem:[#allocation13 + $0x238] sm:$0xff]
    %v5112 = vld [vmem:[#allocation13 + $0x240] sm:$0xff]
    %v5113 = vld [vmem:[#allocation13 + $0x248] sm:$0xff]
    %v5114 = vld [vmem:[#allocation13 + $0x250] sm:$0xff]
    %v5115 = vld [vmem:[#allocation13 + $0x258] sm:$0xff]
    %v5116 = vld [vmem:[#allocation13 + $0x260] sm:$0xff]
    %v5117 = vld [vmem:[#allocation13 + $0x268] sm:$0xff]
    %v5118 = vld [vmem:[#allocation13 + $0x270] sm:$0xff]
    %v5119 = vld [vmem:[#allocation13 + $0x278] sm:$0xff]
    %v5120 = vld [vmem:[#allocation13 + $0x280] sm:$0xff]
    %v5121 = vld [vmem:[#allocation13 + $0x288] sm:$0xff]
    %v5122 = vld [vmem:[#allocation13 + $0x290] sm:$0xff]
    %v5123 = vld [vmem:[#allocation13 + $0x298] sm:$0xff]
    %v5124 = vld [vmem:[#allocation13 + $0x2a0] sm:$0xff]
    %v5125 = vld [vmem:[#allocation13 + $0x2a8] sm:$0xff]
    %v5126 = vld [vmem:[#allocation13 + $0x2b0] sm:$0xff]
    %v5127 = vld [vmem:[#allocation13 + $0x2b8] sm:$0xff]
    %v5128 = vld [vmem:[#allocation13 + $0x2c0] sm:$0xff]
    %v5129 = vld [vmem:[#allocation13 + $0x2c8] sm:$0xff]
    %v5130 = vld [vmem:[#allocation13 + $0x2d0] sm:$0xff]
    %v5131 = vld [vmem:[#allocation13 + $0x2d8] sm:$0xff]
    %v5132 = vld [vmem:[#allocation13 + $0x2e0] sm:$0xff]
    %v5133 = vld [vmem:[#allocation13 + $0x2e8] sm:$0xff]
    %v5134 = vld [vmem:[#allocation13 + $0x2f0] sm:$0xff]
    %v5135 = vld [vmem:[#allocation13 + $0x2f8] sm:$0xff]
    %v5136 = vld [vmem:[#allocation13 + $0x300] sm:$0xff]
    %v5137 = vld [vmem:[#allocation13 + $0x308] sm:$0xff]
    %v5138 = vld [vmem:[#allocation13 + $0x310] sm:$0xff]
    %v5139 = vld [vmem:[#allocation13 + $0x318] sm:$0xff]
    %v5140 = vld [vmem:[#allocation13 + $0x320] sm:$0xff]
    %v5141 = vld [vmem:[#allocation13 + $0x328] sm:$0xff]
    %v5142 = vld [vmem:[#allocation13 + $0x330] sm:$0xff]
    %v5143 = vld [vmem:[#allocation13 + $0x338] sm:$0xff]
    %v5144 = vld [vmem:[#allocation13 + $0x340] sm:$0xff]
    %v5145 = vld [vmem:[#allocation13 + $0x348] sm:$0xff]
    %v5146 = vld [vmem:[#allocation13 + $0x350] sm:$0xff]
    %v5147 = vld [vmem:[#allocation13 + $0x358] sm:$0xff]
    %v5148 = vld [vmem:[#allocation13 + $0x360] sm:$0xff]
    %v5149 = vld [vmem:[#allocation13 + $0x368] sm:$0xff]
    %v5150 = vld [vmem:[#allocation13 + $0x370] sm:$0xff]
    %v5151 = vld [vmem:[#allocation13 + $0x378] sm:$0xff]
    %v5152 = vld [vmem:[#allocation13 + $0x380] sm:$0xff]
    %v5153 = vld [vmem:[#allocation13 + $0x388] sm:$0xff]
    %v5154 = vld [vmem:[#allocation13 + $0x390] sm:$0xff]
    %v5155 = vld [vmem:[#allocation13 + $0x398] sm:$0xff]
    %v5156 = vld [vmem:[#allocation13 + $0x3a0] sm:$0xff]
    %v5157 = vld [vmem:[#allocation13 + $0x3a8] sm:$0xff]
    %v5158 = vld [vmem:[#allocation13 + $0x3b0] sm:$0xff]
    %v5159 = vld [vmem:[#allocation13 + $0x3b8] sm:$0xff]
    %v5160 = vld [vmem:[#allocation13 + $0x3c0] sm:$0xff]
    %v5161 = vld [vmem:[#allocation13 + $0x3c8] sm:$0xff]
    %v5162 = vld [vmem:[#allocation13 + $0x3d0] sm:$0xff]
    %v5163 = vld [vmem:[#allocation13 + $0x3d8] sm:$0xff]
    %v5164 = vld [vmem:[#allocation13 + $0x3e0] sm:$0xff]
    %v5165 = vld [vmem:[#allocation13 + $0x3e8] sm:$0xff]
    %v5166 = vld [vmem:[#allocation13 + $0x3f0] sm:$0xff]
    %v5167 = vld [vmem:[#allocation13 + $0x3f8] sm:$0xff]
    %5168 = vmatpush.msra.mxu0 %v5055
    %5169 = vmatpush.msra.mxu0 %v5054
    %5170 = vmatpush.msra.mxu0 %v5053
    %5171 = vmatpush.msra.mxu0 %v5052
    %5172 = vmatpush.msra.mxu0 %v5051
    %5173 = vmatpush.msra.mxu0 %v5050
    %5174 = vmatpush.msra.mxu0 %v5049
    %5175 = vmatpush.msra.mxu0 %v5048
    %5176 = vmatpush.msra.mxu0 %v5047
    %5177 = vmatpush.msra.mxu0 %v5046
    %5178 = vmatpush.msra.mxu0 %v5045
    %5179 = vmatpush.msra.mxu0 %v5044
    %5180 = vmatpush.msra.mxu0 %v5043
    %5181 = vmatpush.msra.mxu0 %v5042
    %5182 = vmatpush.msra.mxu0 %v5041
    %5183 = vmatpush.msra.mxu0 %v5040
    %5184 = vmatmul.f32.gmra.mxu0 %v4976
    %v5185 = vpop.f32.mrf.mxu0
    %v5186 = vadd.f32 0.0, %v5185
    %5187 = vmatmul.f32.gmra.mxu0 %v4984
    %v5188 = vpop.f32.mrf.mxu0
    %v5189 = vadd.f32 0.0, %v5188
    %5190 = vmatmul.f32.gmra.mxu0 %v4992
    %v5191 = vpop.f32.mrf.mxu0
    %v5192 = vadd.f32 0.0, %v5191
    %5193 = vmatmul.f32.gmra.mxu0 %v5000
    %v5194 = vpop.f32.mrf.mxu0
    %v5195 = vadd.f32 0.0, %v5194
    %5196 = vmatmul.f32.gmra.mxu0 %v5008
    %v5197 = vpop.f32.mrf.mxu0
    %v5198 = vadd.f32 0.0, %v5197
    %5199 = vmatmul.f32.gmra.mxu0 %v5016
    %v5200 = vpop.f32.mrf.mxu0
    %v5201 = vadd.f32 0.0, %v5200
    %5202 = vmatmul.f32.gmra.mxu0 %v5024
    %v5203 = vpop.f32.mrf.mxu0
    %v5204 = vadd.f32 0.0, %v5203
    %5205 = vmatmul.f32.gmra.mxu0 %v5032
    %v5206 = vpop.f32.mrf.mxu0
    %v5207 = vadd.f32 0.0, %v5206
    %5208 = vdwg.mxu0
    %5209 = vmatpush.msra.mxu0 %v5071
    %5210 = vmatpush.msra.mxu0 %v5070
    %5211 = vmatpush.msra.mxu0 %v5069
    %5212 = vmatpush.msra.mxu0 %v5068
    %5213 = vmatpush.msra.mxu0 %v5067
    %5214 = vmatpush.msra.mxu0 %v5066
    %5215 = vmatpush.msra.mxu0 %v5065
    %5216 = vmatpush.msra.mxu0 %v5064
    %5217 = vmatpush.msra.mxu0 %v5063
    %5218 = vmatpush.msra.mxu0 %v5062
    %5219 = vmatpush.msra.mxu0 %v5061
    %5220 = vmatpush.msra.mxu0 %v5060
    %5221 = vmatpush.msra.mxu0 %v5059
    %5222 = vmatpush.msra.mxu0 %v5058
    %5223 = vmatpush.msra.mxu0 %v5057
    %5224 = vmatpush.msra.mxu0 %v5056
    %5225 = vmatmul.f32.gmra.mxu0 %v4977
    %v5226 = vpop.f32.mrf.mxu0
    %v5227 = vadd.f32 %v5186, %v5226
    %5228 = vmatmul.f32.gmra.mxu0 %v4985
    %v5229 = vpop.f32.mrf.mxu0
    %v5230 = vadd.f32 %v5189, %v5229
    %5231 = vmatmul.f32.gmra.mxu0 %v4993
    %v5232 = vpop.f32.mrf.mxu0
    %v5233 = vadd.f32 %v5192, %v5232
    %5234 = vmatmul.f32.gmra.mxu0 %v5001
    %v5235 = vpop.f32.mrf.mxu0
    %v5236 = vadd.f32 %v5195, %v5235
    %5237 = vmatmul.f32.gmra.mxu0 %v5009
    %v5238 = vpop.f32.mrf.mxu0
    %v5239 = vadd.f32 %v5198, %v5238
    %5240 = vmatmul.f32.gmra.mxu0 %v5017
    %v5241 = vpop.f32.mrf.mxu0
    %v5242 = vadd.f32 %v5201, %v5241
    %5243 = vmatmul.f32.gmra.mxu0 %v5025
    %v5244 = vpop.f32.mrf.mxu0
    %v5245 = vadd.f32 %v5204, %v5244
    %5246 = vmatmul.f32.gmra.mxu0 %v5033
    %v5247 = vpop.f32.mrf.mxu0
    %v5248 = vadd.f32 %v5207, %v5247
    %5249 = vdwg.mxu0
    %5250 = vmatpush.msra.mxu0 %v5087
    %5251 = vmatpush.msra.mxu0 %v5086
    %5252 = vmatpush.msra.mxu0 %v5085
    %5253 = vmatpush.msra.mxu0 %v5084
    %5254 = vmatpush.msra.mxu0 %v5083
    %5255 = vmatpush.msra.mxu0 %v5082
    %5256 = vmatpush.msra.mxu0 %v5081
    %5257 = vmatpush.msra.mxu0 %v5080
    %5258 = vmatpush.msra.mxu0 %v5079
    %5259 = vmatpush.msra.mxu0 %v5078
    %5260 = vmatpush.msra.mxu0 %v5077
    %5261 = vmatpush.msra.mxu0 %v5076
    %5262 = vmatpush.msra.mxu0 %v5075
    %5263 = vmatpush.msra.mxu0 %v5074
    %5264 = vmatpush.msra.mxu0 %v5073
    %5265 = vmatpush.msra.mxu0 %v5072
    %5266 = vmatmul.f32.gmra.mxu0 %v4978
    %v5267 = vpop.f32.mrf.mxu0
    %v5268 = vadd.f32 %v5227, %v5267
    %5269 = vmatmul.f32.gmra.mxu0 %v4986
    %v5270 = vpop.f32.mrf.mxu0
    %v5271 = vadd.f32 %v5230, %v5270
    %5272 = vmatmul.f32.gmra.mxu0 %v4994
    %v5273 = vpop.f32.mrf.mxu0
    %v5274 = vadd.f32 %v5233, %v5273
    %5275 = vmatmul.f32.gmra.mxu0 %v5002
    %v5276 = vpop.f32.mrf.mxu0
    %v5277 = vadd.f32 %v5236, %v5276
    %5278 = vmatmul.f32.gmra.mxu0 %v5010
    %v5279 = vpop.f32.mrf.mxu0
    %v5280 = vadd.f32 %v5239, %v5279
    %5281 = vmatmul.f32.gmra.mxu0 %v5018
    %v5282 = vpop.f32.mrf.mxu0
    %v5283 = vadd.f32 %v5242, %v5282
    %5284 = vmatmul.f32.gmra.mxu0 %v5026
    %v5285 = vpop.f32.mrf.mxu0
    %v5286 = vadd.f32 %v5245, %v5285
    %5287 = vmatmul.f32.gmra.mxu0 %v5034
    %v5288 = vpop.f32.mrf.mxu0
    %v5289 = vadd.f32 %v5248, %v5288
    %5290 = vdwg.mxu0
    %5291 = vmatpush.msra.mxu0 %v5103
    %5292 = vmatpush.msra.mxu0 %v5102
    %5293 = vmatpush.msra.mxu0 %v5101
    %5294 = vmatpush.msra.mxu0 %v5100
    %5295 = vmatpush.msra.mxu0 %v5099
    %5296 = vmatpush.msra.mxu0 %v5098
    %5297 = vmatpush.msra.mxu0 %v5097
    %5298 = vmatpush.msra.mxu0 %v5096
    %5299 = vmatpush.msra.mxu0 %v5095
    %5300 = vmatpush.msra.mxu0 %v5094
    %5301 = vmatpush.msra.mxu0 %v5093
    %5302 = vmatpush.msra.mxu0 %v5092
    %5303 = vmatpush.msra.mxu0 %v5091
    %5304 = vmatpush.msra.mxu0 %v5090
    %5305 = vmatpush.msra.mxu0 %v5089
    %5306 = vmatpush.msra.mxu0 %v5088
    %5307 = vmatmul.f32.gmra.mxu0 %v4979
    %v5308 = vpop.f32.mrf.mxu0
    %v5309 = vadd.f32 %v5268, %v5308
    %5310 = vmatmul.f32.gmra.mxu0 %v4987
    %v5311 = vpop.f32.mrf.mxu0
    %v5312 = vadd.f32 %v5271, %v5311
    %5313 = vmatmul.f32.gmra.mxu0 %v4995
    %v5314 = vpop.f32.mrf.mxu0
    %v5315 = vadd.f32 %v5274, %v5314
    %5316 = vmatmul.f32.gmra.mxu0 %v5003
    %v5317 = vpop.f32.mrf.mxu0
    %v5318 = vadd.f32 %v5277, %v5317
    %5319 = vmatmul.f32.gmra.mxu0 %v5011
    %v5320 = vpop.f32.mrf.mxu0
    %v5321 = vadd.f32 %v5280, %v5320
    %5322 = vmatmul.f32.gmra.mxu0 %v5019
    %v5323 = vpop.f32.mrf.mxu0
    %v5324 = vadd.f32 %v5283, %v5323
    %5325 = vmatmul.f32.gmra.mxu0 %v5027
    %v5326 = vpop.f32.mrf.mxu0
    %v5327 = vadd.f32 %v5286, %v5326
    %5328 = vmatmul.f32.gmra.mxu0 %v5035
    %v5329 = vpop.f32.mrf.mxu0
    %v5330 = vadd.f32 %v5289, %v5329
    %5331 = vdwg.mxu0
    %5332 = vmatpush.msra.mxu0 %v5119
    %5333 = vmatpush.msra.mxu0 %v5118
    %5334 = vmatpush.msra.mxu0 %v5117
    %5335 = vmatpush.msra.mxu0 %v5116
    %5336 = vmatpush.msra.mxu0 %v5115
    %5337 = vmatpush.msra.mxu0 %v5114
    %5338 = vmatpush.msra.mxu0 %v5113
    %5339 = vmatpush.msra.mxu0 %v5112
    %5340 = vmatpush.msra.mxu0 %v5111
    %5341 = vmatpush.msra.mxu0 %v5110
    %5342 = vmatpush.msra.mxu0 %v5109
    %5343 = vmatpush.msra.mxu0 %v5108
    %5344 = vmatpush.msra.mxu0 %v5107
    %5345 = vmatpush.msra.mxu0 %v5106
    %5346 = vmatpush.msra.mxu0 %v5105
    %5347 = vmatpush.msra.mxu0 %v5104
    %5348 = vmatmul.f32.gmra.mxu0 %v4980
    %v5349 = vpop.f32.mrf.mxu0
    %v5350 = vadd.f32 %v5309, %v5349
    %5351 = vmatmul.f32.gmra.mxu0 %v4988
    %v5352 = vpop.f32.mrf.mxu0
    %v5353 = vadd.f32 %v5312, %v5352
    %5354 = vmatmul.f32.gmra.mxu0 %v4996
    %v5355 = vpop.f32.mrf.mxu0
    %v5356 = vadd.f32 %v5315, %v5355
    %5357 = vmatmul.f32.gmra.mxu0 %v5004
    %v5358 = vpop.f32.mrf.mxu0
    %v5359 = vadd.f32 %v5318, %v5358
    %5360 = vmatmul.f32.gmra.mxu0 %v5012
    %v5361 = vpop.f32.mrf.mxu0
    %v5362 = vadd.f32 %v5321, %v5361
    %5363 = vmatmul.f32.gmra.mxu0 %v5020
    %v5364 = vpop.f32.mrf.mxu0
    %v5365 = vadd.f32 %v5324, %v5364
    %5366 = vmatmul.f32.gmra.mxu0 %v5028
    %v5367 = vpop.f32.mrf.mxu0
    %v5368 = vadd.f32 %v5327, %v5367
    %5369 = vmatmul.f32.gmra.mxu0 %v5036
    %v5370 = vpop.f32.mrf.mxu0
    %v5371 = vadd.f32 %v5330, %v5370
    %5372 = vdwg.mxu0
    %5373 = vmatpush.msra.mxu0 %v5135
    %5374 = vmatpush.msra.mxu0 %v5134
    %5375 = vmatpush.msra.mxu0 %v5133
    %5376 = vmatpush.msra.mxu0 %v5132
    %5377 = vmatpush.msra.mxu0 %v5131
    %5378 = vmatpush.msra.mxu0 %v5130
    %5379 = vmatpush.msra.mxu0 %v5129
    %5380 = vmatpush.msra.mxu0 %v5128
    %5381 = vmatpush.msra.mxu0 %v5127
    %5382 = vmatpush.msra.mxu0 %v5126
    %5383 = vmatpush.msra.mxu0 %v5125
    %5384 = vmatpush.msra.mxu0 %v5124
    %5385 = vmatpush.msra.mxu0 %v5123
    %5386 = vmatpush.msra.mxu0 %v5122
    %5387 = vmatpush.msra.mxu0 %v5121
    %5388 = vmatpush.msra.mxu0 %v5120
    %5389 = vmatmul.f32.gmra.mxu0 %v4981
    %v5390 = vpop.f32.mrf.mxu0
    %v5391 = vadd.f32 %v5350, %v5390
    %5392 = vmatmul.f32.gmra.mxu0 %v4989
    %v5393 = vpop.f32.mrf.mxu0
    %v5394 = vadd.f32 %v5353, %v5393
    %5395 = vmatmul.f32.gmra.mxu0 %v4997
    %v5396 = vpop.f32.mrf.mxu0
    %v5397 = vadd.f32 %v5356, %v5396
    %5398 = vmatmul.f32.gmra.mxu0 %v5005
    %v5399 = vpop.f32.mrf.mxu0
    %v5400 = vadd.f32 %v5359, %v5399
    %5401 = vmatmul.f32.gmra.mxu0 %v5013
    %v5402 = vpop.f32.mrf.mxu0
    %v5403 = vadd.f32 %v5362, %v5402
    %5404 = vmatmul.f32.gmra.mxu0 %v5021
    %v5405 = vpop.f32.mrf.mxu0
    %v5406 = vadd.f32 %v5365, %v5405
    %5407 = vmatmul.f32.gmra.mxu0 %v5029
    %v5408 = vpop.f32.mrf.mxu0
    %v5409 = vadd.f32 %v5368, %v5408
    %5410 = vmatmul.f32.gmra.mxu0 %v5037
    %v5411 = vpop.f32.mrf.mxu0
    %v5412 = vadd.f32 %v5371, %v5411
    %5413 = vdwg.mxu0
    %5414 = vmatpush.msra.mxu0 %v5151
    %5415 = vmatpush.msra.mxu0 %v5150
    %5416 = vmatpush.msra.mxu0 %v5149
    %5417 = vmatpush.msra.mxu0 %v5148
    %5418 = vmatpush.msra.mxu0 %v5147
    %5419 = vmatpush.msra.mxu0 %v5146
    %5420 = vmatpush.msra.mxu0 %v5145
    %5421 = vmatpush.msra.mxu0 %v5144
    %5422 = vmatpush.msra.mxu0 %v5143
    %5423 = vmatpush.msra.mxu0 %v5142
    %5424 = vmatpush.msra.mxu0 %v5141
    %5425 = vmatpush.msra.mxu0 %v5140
    %5426 = vmatpush.msra.mxu0 %v5139
    %5427 = vmatpush.msra.mxu0 %v5138
    %5428 = vmatpush.msra.mxu0 %v5137
    %5429 = vmatpush.msra.mxu0 %v5136
    %5430 = vmatmul.f32.gmra.mxu0 %v4982
    %v5431 = vpop.f32.mrf.mxu0
    %v5432 = vadd.f32 %v5391, %v5431
    %5433 = vmatmul.f32.gmra.mxu0 %v4990
    %v5434 = vpop.f32.mrf.mxu0
    %v5435 = vadd.f32 %v5394, %v5434
    %5436 = vmatmul.f32.gmra.mxu0 %v4998
    %v5437 = vpop.f32.mrf.mxu0
    %v5438 = vadd.f32 %v5397, %v5437
    %5439 = vmatmul.f32.gmra.mxu0 %v5006
    %v5440 = vpop.f32.mrf.mxu0
    %v5441 = vadd.f32 %v5400, %v5440
    %5442 = vmatmul.f32.gmra.mxu0 %v5014
    %v5443 = vpop.f32.mrf.mxu0
    %v5444 = vadd.f32 %v5403, %v5443
    %5445 = vmatmul.f32.gmra.mxu0 %v5022
    %v5446 = vpop.f32.mrf.mxu0
    %v5447 = vadd.f32 %v5406, %v5446
    %5448 = vmatmul.f32.gmra.mxu0 %v5030
    %v5449 = vpop.f32.mrf.mxu0
    %v5450 = vadd.f32 %v5409, %v5449
    %5451 = vmatmul.f32.gmra.mxu0 %v5038
    %v5452 = vpop.f32.mrf.mxu0
    %v5453 = vadd.f32 %v5412, %v5452
    %5454 = vdwg.mxu0
    %5455 = vmatpush.msra.mxu0 %v5167
    %5456 = vmatpush.msra.mxu0 %v5166
    %5457 = vmatpush.msra.mxu0 %v5165
    %5458 = vmatpush.msra.mxu0 %v5164
    %5459 = vmatpush.msra.mxu0 %v5163
    %5460 = vmatpush.msra.mxu0 %v5162
    %5461 = vmatpush.msra.mxu0 %v5161
    %5462 = vmatpush.msra.mxu0 %v5160
    %5463 = vmatpush.msra.mxu0 %v5159
    %5464 = vmatpush.msra.mxu0 %v5158
    %5465 = vmatpush.msra.mxu0 %v5157
    %5466 = vmatpush.msra.mxu0 %v5156
    %5467 = vmatpush.msra.mxu0 %v5155
    %5468 = vmatpush.msra.mxu0 %v5154
    %5469 = vmatpush.msra.mxu0 %v5153
    %5470 = vmatpush.msra.mxu0 %v5152
    %5471 = vmatmul.f32.gmra.mxu0 %v4983
    %v5472 = vpop.f32.mrf.mxu0
    %v5473 = vadd.f32 %v5432, %v5472
    %5474 = vmatmul.f32.gmra.mxu0 %v4991
    %v5475 = vpop.f32.mrf.mxu0
    %v5476 = vadd.f32 %v5435, %v5475
    %5477 = vmatmul.f32.gmra.mxu0 %v4999
    %v5478 = vpop.f32.mrf.mxu0
    %v5479 = vadd.f32 %v5438, %v5478
    %5480 = vmatmul.f32.gmra.mxu0 %v5007
    %v5481 = vpop.f32.mrf.mxu0
    %v5482 = vadd.f32 %v5441, %v5481
    %5483 = vmatmul.f32.gmra.mxu0 %v5015
    %v5484 = vpop.f32.mrf.mxu0
    %v5485 = vadd.f32 %v5444, %v5484
    %5486 = vmatmul.f32.gmra.mxu0 %v5023
    %v5487 = vpop.f32.mrf.mxu0
    %v5488 = vadd.f32 %v5447, %v5487
    %5489 = vmatmul.f32.gmra.mxu0 %v5031
    %v5490 = vpop.f32.mrf.mxu0
    %v5491 = vadd.f32 %v5450, %v5490
    %5492 = vmatmul.f32.gmra.mxu0 %v5039
    %v5493 = vpop.f32.mrf.mxu0
    %v5494 = vadd.f32 %v5453, %v5493
    %5495 = vdwg.mxu0
    %v5496 = vld [vmem:[#allocation14] sm:$0xff]
    %v5497 = vld [vmem:[#allocation14 + $0x8] sm:$0xff]
    %v5498 = vld [vmem:[#allocation14 + $0x10] sm:$0xff]
    %v5499 = vld [vmem:[#allocation14 + $0x18] sm:$0xff]
    %v5500 = vld [vmem:[#allocation14 + $0x20] sm:$0xff]
    %v5501 = vld [vmem:[#allocation14 + $0x28] sm:$0xff]
    %v5502 = vld [vmem:[#allocation14 + $0x30] sm:$0xff]
    %v5503 = vld [vmem:[#allocation14 + $0x38] sm:$0xff]
    %v5504 = vld [vmem:[#allocation14 + $0x40] sm:$0xff]
    %v5505 = vld [vmem:[#allocation14 + $0x48] sm:$0xff]
    %v5506 = vld [vmem:[#allocation14 + $0x50] sm:$0xff]
    %v5507 = vld [vmem:[#allocation14 + $0x58] sm:$0xff]
    %v5508 = vld [vmem:[#allocation14 + $0x60] sm:$0xff]
    %v5509 = vld [vmem:[#allocation14 + $0x68] sm:$0xff]
    %v5510 = vld [vmem:[#allocation14 + $0x70] sm:$0xff]
    %v5511 = vld [vmem:[#allocation14 + $0x78] sm:$0xff]
    %v5512 = vld [vmem:[#allocation14 + $0x80] sm:$0xff]
    %v5513 = vld [vmem:[#allocation14 + $0x88] sm:$0xff]
    %v5514 = vld [vmem:[#allocation14 + $0x90] sm:$0xff]
    %v5515 = vld [vmem:[#allocation14 + $0x98] sm:$0xff]
    %v5516 = vld [vmem:[#allocation14 + $0xa0] sm:$0xff]
    %v5517 = vld [vmem:[#allocation14 + $0xa8] sm:$0xff]
    %v5518 = vld [vmem:[#allocation14 + $0xb0] sm:$0xff]
    %v5519 = vld [vmem:[#allocation14 + $0xb8] sm:$0xff]
    %v5520 = vld [vmem:[#allocation14 + $0xc0] sm:$0xff]
    %v5521 = vld [vmem:[#allocation14 + $0xc8] sm:$0xff]
    %v5522 = vld [vmem:[#allocation14 + $0xd0] sm:$0xff]
    %v5523 = vld [vmem:[#allocation14 + $0xd8] sm:$0xff]
    %v5524 = vld [vmem:[#allocation14 + $0xe0] sm:$0xff]
    %v5525 = vld [vmem:[#allocation14 + $0xe8] sm:$0xff]
    %v5526 = vld [vmem:[#allocation14 + $0xf0] sm:$0xff]
    %v5527 = vld [vmem:[#allocation14 + $0xf8] sm:$0xff]
    %v5529 = vsel %vm283, %v5473, 0
    %v5532 = vsel %vm283, %v5476, 0
    %v5535 = vsel %vm283, %v5479, 0
    %v5538 = vsel %vm283, %v5482, 0
    %v5541 = vsel %vm283, %v5485, 0
    %v5544 = vsel %vm283, %v5488, 0
    %v5547 = vsel %vm283, %v5491, 0
    %v5550 = vsel %vm283, %v5494, 0
    %5552 = vmatpush.msra.mxu0 0.0
    %5553 = vmatpush.msra.mxu0 0.0
    %5554 = vmatpush.msra.mxu0 0.0
    %5555 = vmatpush.msra.mxu0 0.0
    %5556 = vmatpush.msra.mxu0 0.0
    %5557 = vmatpush.msra.mxu0 0.0
    %5558 = vmatpush.msra.mxu0 0.0
    %5559 = vmatpush.msra.mxu0 0.0
    %5560 = vmatpush.msra.mxu0 0.0
    %5561 = vmatpush.msra.mxu0 0.0
    %5562 = vmatpush.msra.mxu0 0.0
    %5563 = vmatpush.msra.mxu0 0.0
    %5564 = vmatpush.msra.mxu0 %v5520
    %5565 = vmatpush.msra.mxu0 %v5512
    %5566 = vmatpush.msra.mxu0 %v5504
    %5567 = vmatpush.msra.mxu0 %v5496
    %5568 = vmatmul.f32.gmra.mxu0 %v5529
    %v5569 = vpop.f32.mrf.mxu0
    %v5570 = vadd.f32 0.0, %v5569
    %5571 = vmatmul.f32.gmra.mxu0 %v5532
    %v5572 = vpop.f32.mrf.mxu0
    %v5573 = vadd.f32 0.0, %v5572
    %5574 = vmatmul.f32.gmra.mxu0 %v5535
    %v5575 = vpop.f32.mrf.mxu0
    %v5576 = vadd.f32 0.0, %v5575
    %5577 = vmatmul.f32.gmra.mxu0 %v5538
    %v5578 = vpop.f32.mrf.mxu0
    %v5579 = vadd.f32 0.0, %v5578
    %5580 = vmatmul.f32.gmra.mxu0 %v5541
    %v5581 = vpop.f32.mrf.mxu0
    %v5582 = vadd.f32 0.0, %v5581
    %5583 = vmatmul.f32.gmra.mxu0 %v5544
    %v5584 = vpop.f32.mrf.mxu0
    %v5585 = vadd.f32 0.0, %v5584
    %5586 = vmatmul.f32.gmra.mxu0 %v5547
    %v5587 = vpop.f32.mrf.mxu0
    %v5588 = vadd.f32 0.0, %v5587
    %5589 = vmatmul.f32.gmra.mxu0 %v5550
    %v5590 = vpop.f32.mrf.mxu0
    %v5591 = vadd.f32 0.0, %v5590
    %5592 = vdwg.mxu0
    %5593 = vmatpush.msra.mxu0 0.0
    %5594 = vmatpush.msra.mxu0 0.0
    %5595 = vmatpush.msra.mxu0 0.0
    %5596 = vmatpush.msra.mxu0 0.0
    %5597 = vmatpush.msra.mxu0 0.0
    %5598 = vmatpush.msra.mxu0 0.0
    %5599 = vmatpush.msra.mxu0 0.0
    %5600 = vmatpush.msra.mxu0 0.0
    %5601 = vmatpush.msra.mxu0 0.0
    %5602 = vmatpush.msra.mxu0 0.0
    %5603 = vmatpush.msra.mxu0 0.0
    %5604 = vmatpush.msra.mxu0 0.0
    %5605 = vmatpush.msra.mxu0 %v5521
    %5606 = vmatpush.msra.mxu0 %v5513
    %5607 = vmatpush.msra.mxu0 %v5505
    %5608 = vmatpush.msra.mxu0 %v5497
    %5609 = vmatmul.f32.gmra.mxu0 %v5529
    %v5610 = vpop.f32.mrf.mxu0
    %v5611 = vadd.f32 0.0, %v5610
    %5612 = vmatmul.f32.gmra.mxu0 %v5532
    %v5613 = vpop.f32.mrf.mxu0
    %v5614 = vadd.f32 0.0, %v5613
    %5615 = vmatmul.f32.gmra.mxu0 %v5535
    %v5616 = vpop.f32.mrf.mxu0
    %v5617 = vadd.f32 0.0, %v5616
    %5618 = vmatmul.f32.gmra.mxu0 %v5538
    %v5619 = vpop.f32.mrf.mxu0
    %v5620 = vadd.f32 0.0, %v5619
    %5621 = vmatmul.f32.gmra.mxu0 %v5541
    %v5622 = vpop.f32.mrf.mxu0
    %v5623 = vadd.f32 0.0, %v5622
    %5624 = vmatmul.f32.gmra.mxu0 %v5544
    %v5625 = vpop.f32.mrf.mxu0
    %v5626 = vadd.f32 0.0, %v5625
    %5627 = vmatmul.f32.gmra.mxu0 %v5547
    %v5628 = vpop.f32.mrf.mxu0
    %v5629 = vadd.f32 0.0, %v5628
    %5630 = vmatmul.f32.gmra.mxu0 %v5550
    %v5631 = vpop.f32.mrf.mxu0
    %v5632 = vadd.f32 0.0, %v5631
    %5633 = vdwg.mxu0
    %5634 = vmatpush.msra.mxu0 0.0
    %5635 = vmatpush.msra.mxu0 0.0
    %5636 = vmatpush.msra.mxu0 0.0
    %5637 = vmatpush.msra.mxu0 0.0
    %5638 = vmatpush.msra.mxu0 0.0
    %5639 = vmatpush.msra.mxu0 0.0
    %5640 = vmatpush.msra.mxu0 0.0
    %5641 = vmatpush.msra.mxu0 0.0
    %5642 = vmatpush.msra.mxu0 0.0
    %5643 = vmatpush.msra.mxu0 0.0
    %5644 = vmatpush.msra.mxu0 0.0
    %5645 = vmatpush.msra.mxu0 0.0
    %5646 = vmatpush.msra.mxu0 %v5522
    %5647 = vmatpush.msra.mxu0 %v5514
    %5648 = vmatpush.msra.mxu0 %v5506
    %5649 = vmatpush.msra.mxu0 %v5498
    %5650 = vmatmul.f32.gmra.mxu0 %v5529
    %v5651 = vpop.f32.mrf.mxu0
    %v5652 = vadd.f32 0.0, %v5651
    %5653 = vmatmul.f32.gmra.mxu0 %v5532
    %v5654 = vpop.f32.mrf.mxu0
    %v5655 = vadd.f32 0.0, %v5654
    %5656 = vmatmul.f32.gmra.mxu0 %v5535
    %v5657 = vpop.f32.mrf.mxu0
    %v5658 = vadd.f32 0.0, %v5657
    %5659 = vmatmul.f32.gmra.mxu0 %v5538
    %v5660 = vpop.f32.mrf.mxu0
    %v5661 = vadd.f32 0.0, %v5660
    %5662 = vmatmul.f32.gmra.mxu0 %v5541
    %v5663 = vpop.f32.mrf.mxu0
    %v5664 = vadd.f32 0.0, %v5663
    %5665 = vmatmul.f32.gmra.mxu0 %v5544
    %v5666 = vpop.f32.mrf.mxu0
    %v5667 = vadd.f32 0.0, %v5666
    %5668 = vmatmul.f32.gmra.mxu0 %v5547
    %v5669 = vpop.f32.mrf.mxu0
    %v5670 = vadd.f32 0.0, %v5669
    %5671 = vmatmul.f32.gmra.mxu0 %v5550
    %v5672 = vpop.f32.mrf.mxu0
    %v5673 = vadd.f32 0.0, %v5672
    %5674 = vdwg.mxu0
    %5675 = vmatpush.msra.mxu0 0.0
    %5676 = vmatpush.msra.mxu0 0.0
    %5677 = vmatpush.msra.mxu0 0.0
    %5678 = vmatpush.msra.mxu0 0.0
    %5679 = vmatpush.msra.mxu0 0.0
    %5680 = vmatpush.msra.mxu0 0.0
    %5681 = vmatpush.msra.mxu0 0.0
    %5682 = vmatpush.msra.mxu0 0.0
    %5683 = vmatpush.msra.mxu0 0.0
    %5684 = vmatpush.msra.mxu0 0.0
    %5685 = vmatpush.msra.mxu0 0.0
    %5686 = vmatpush.msra.mxu0 0.0
    %5687 = vmatpush.msra.mxu0 %v5523
    %5688 = vmatpush.msra.mxu0 %v5515
    %5689 = vmatpush.msra.mxu0 %v5507
    %5690 = vmatpush.msra.mxu0 %v5499
    %5691 = vmatmul.f32.gmra.mxu0 %v5529
    %v5692 = vpop.f32.mrf.mxu0
    %v5693 = vadd.f32 0.0, %v5692
    %5694 = vmatmul.f32.gmra.mxu0 %v5532
    %v5695 = vpop.f32.mrf.mxu0
    %v5696 = vadd.f32 0.0, %v5695
    %5697 = vmatmul.f32.gmra.mxu0 %v5535
    %v5698 = vpop.f32.mrf.mxu0
    %v5699 = vadd.f32 0.0, %v5698
    %5700 = vmatmul.f32.gmra.mxu0 %v5538
    %v5701 = vpop.f32.mrf.mxu0
    %v5702 = vadd.f32 0.0, %v5701
    %5703 = vmatmul.f32.gmra.mxu0 %v5541
    %v5704 = vpop.f32.mrf.mxu0
    %v5705 = vadd.f32 0.0, %v5704
    %5706 = vmatmul.f32.gmra.mxu0 %v5544
    %v5707 = vpop.f32.mrf.mxu0
    %v5708 = vadd.f32 0.0, %v5707
    %5709 = vmatmul.f32.gmra.mxu0 %v5547
    %v5710 = vpop.f32.mrf.mxu0
    %v5711 = vadd.f32 0.0, %v5710
    %5712 = vmatmul.f32.gmra.mxu0 %v5550
    %v5713 = vpop.f32.mrf.mxu0
    %v5714 = vadd.f32 0.0, %v5713
    %5715 = vdwg.mxu0
    %5716 = vmatpush.msra.mxu0 0.0
    %5717 = vmatpush.msra.mxu0 0.0
    %5718 = vmatpush.msra.mxu0 0.0
    %5719 = vmatpush.msra.mxu0 0.0
    %5720 = vmatpush.msra.mxu0 0.0
    %5721 = vmatpush.msra.mxu0 0.0
    %5722 = vmatpush.msra.mxu0 0.0
    %5723 = vmatpush.msra.mxu0 0.0
    %5724 = vmatpush.msra.mxu0 0.0
    %5725 = vmatpush.msra.mxu0 0.0
    %5726 = vmatpush.msra.mxu0 0.0
    %5727 = vmatpush.msra.mxu0 0.0
    %5728 = vmatpush.msra.mxu0 %v5524
    %5729 = vmatpush.msra.mxu0 %v5516
    %5730 = vmatpush.msra.mxu0 %v5508
    %5731 = vmatpush.msra.mxu0 %v5500
    %5732 = vmatmul.f32.gmra.mxu0 %v5529
    %v5733 = vpop.f32.mrf.mxu0
    %v5734 = vadd.f32 0.0, %v5733
    %5735 = vmatmul.f32.gmra.mxu0 %v5532
    %v5736 = vpop.f32.mrf.mxu0
    %v5737 = vadd.f32 0.0, %v5736
    %5738 = vmatmul.f32.gmra.mxu0 %v5535
    %v5739 = vpop.f32.mrf.mxu0
    %v5740 = vadd.f32 0.0, %v5739
    %5741 = vmatmul.f32.gmra.mxu0 %v5538
    %v5742 = vpop.f32.mrf.mxu0
    %v5743 = vadd.f32 0.0, %v5742
    %5744 = vmatmul.f32.gmra.mxu0 %v5541
    %v5745 = vpop.f32.mrf.mxu0
    %v5746 = vadd.f32 0.0, %v5745
    %5747 = vmatmul.f32.gmra.mxu0 %v5544
    %v5748 = vpop.f32.mrf.mxu0
    %v5749 = vadd.f32 0.0, %v5748
    %5750 = vmatmul.f32.gmra.mxu0 %v5547
    %v5751 = vpop.f32.mrf.mxu0
    %v5752 = vadd.f32 0.0, %v5751
    %5753 = vmatmul.f32.gmra.mxu0 %v5550
    %v5754 = vpop.f32.mrf.mxu0
    %v5755 = vadd.f32 0.0, %v5754
    %5756 = vdwg.mxu0
    %5757 = vmatpush.msra.mxu0 0.0
    %5758 = vmatpush.msra.mxu0 0.0
    %5759 = vmatpush.msra.mxu0 0.0
    %5760 = vmatpush.msra.mxu0 0.0
    %5761 = vmatpush.msra.mxu0 0.0
    %5762 = vmatpush.msra.mxu0 0.0
    %5763 = vmatpush.msra.mxu0 0.0
    %5764 = vmatpush.msra.mxu0 0.0
    %5765 = vmatpush.msra.mxu0 0.0
    %5766 = vmatpush.msra.mxu0 0.0
    %5767 = vmatpush.msra.mxu0 0.0
    %5768 = vmatpush.msra.mxu0 0.0
    %5769 = vmatpush.msra.mxu0 %v5525
    %5770 = vmatpush.msra.mxu0 %v5517
    %5771 = vmatpush.msra.mxu0 %v5509
    %5772 = vmatpush.msra.mxu0 %v5501
    %5773 = vmatmul.f32.gmra.mxu0 %v5529
    %v5774 = vpop.f32.mrf.mxu0
    %v5775 = vadd.f32 0.0, %v5774
    %5776 = vmatmul.f32.gmra.mxu0 %v5532
    %v5777 = vpop.f32.mrf.mxu0
    %v5778 = vadd.f32 0.0, %v5777
    %5779 = vmatmul.f32.gmra.mxu0 %v5535
    %v5780 = vpop.f32.mrf.mxu0
    %v5781 = vadd.f32 0.0, %v5780
    %5782 = vmatmul.f32.gmra.mxu0 %v5538
    %v5783 = vpop.f32.mrf.mxu0
    %v5784 = vadd.f32 0.0, %v5783
    %5785 = vmatmul.f32.gmra.mxu0 %v5541
    %v5786 = vpop.f32.mrf.mxu0
    %v5787 = vadd.f32 0.0, %v5786
    %5788 = vmatmul.f32.gmra.mxu0 %v5544
    %v5789 = vpop.f32.mrf.mxu0
    %v5790 = vadd.f32 0.0, %v5789
    %5791 = vmatmul.f32.gmra.mxu0 %v5547
    %v5792 = vpop.f32.mrf.mxu0
    %v5793 = vadd.f32 0.0, %v5792
    %5794 = vmatmul.f32.gmra.mxu0 %v5550
    %v5795 = vpop.f32.mrf.mxu0
    %v5796 = vadd.f32 0.0, %v5795
    %5797 = vdwg.mxu0
    %5798 = vmatpush.msra.mxu0 0.0
    %5799 = vmatpush.msra.mxu0 0.0
    %5800 = vmatpush.msra.mxu0 0.0
    %5801 = vmatpush.msra.mxu0 0.0
    %5802 = vmatpush.msra.mxu0 0.0
    %5803 = vmatpush.msra.mxu0 0.0
    %5804 = vmatpush.msra.mxu0 0.0
    %5805 = vmatpush.msra.mxu0 0.0
    %5806 = vmatpush.msra.mxu0 0.0
    %5807 = vmatpush.msra.mxu0 0.0
    %5808 = vmatpush.msra.mxu0 0.0
    %5809 = vmatpush.msra.mxu0 0.0
    %5810 = vmatpush.msra.mxu0 %v5526
    %5811 = vmatpush.msra.mxu0 %v5518
    %5812 = vmatpush.msra.mxu0 %v5510
    %5813 = vmatpush.msra.mxu0 %v5502
    %5814 = vmatmul.f32.gmra.mxu0 %v5529
    %v5815 = vpop.f32.mrf.mxu0
    %v5816 = vadd.f32 0.0, %v5815
    %5817 = vmatmul.f32.gmra.mxu0 %v5532
    %v5818 = vpop.f32.mrf.mxu0
    %v5819 = vadd.f32 0.0, %v5818
    %5820 = vmatmul.f32.gmra.mxu0 %v5535
    %v5821 = vpop.f32.mrf.mxu0
    %v5822 = vadd.f32 0.0, %v5821
    %5823 = vmatmul.f32.gmra.mxu0 %v5538
    %v5824 = vpop.f32.mrf.mxu0
    %v5825 = vadd.f32 0.0, %v5824
    %5826 = vmatmul.f32.gmra.mxu0 %v5541
    %v5827 = vpop.f32.mrf.mxu0
    %v5828 = vadd.f32 0.0, %v5827
    %5829 = vmatmul.f32.gmra.mxu0 %v5544
    %v5830 = vpop.f32.mrf.mxu0
    %v5831 = vadd.f32 0.0, %v5830
    %5832 = vmatmul.f32.gmra.mxu0 %v5547
    %v5833 = vpop.f32.mrf.mxu0
    %v5834 = vadd.f32 0.0, %v5833
    %5835 = vmatmul.f32.gmra.mxu0 %v5550
    %v5836 = vpop.f32.mrf.mxu0
    %v5837 = vadd.f32 0.0, %v5836
    %5838 = vdwg.mxu0
    %5839 = vmatpush.msra.mxu0 0.0
    %5840 = vmatpush.msra.mxu0 0.0
    %5841 = vmatpush.msra.mxu0 0.0
    %5842 = vmatpush.msra.mxu0 0.0
    %5843 = vmatpush.msra.mxu0 0.0
    %5844 = vmatpush.msra.mxu0 0.0
    %5845 = vmatpush.msra.mxu0 0.0
    %5846 = vmatpush.msra.mxu0 0.0
    %5847 = vmatpush.msra.mxu0 0.0
    %5848 = vmatpush.msra.mxu0 0.0
    %5849 = vmatpush.msra.mxu0 0.0
    %5850 = vmatpush.msra.mxu0 0.0
    %5851 = vmatpush.msra.mxu0 %v5527
    %5852 = vmatpush.msra.mxu0 %v5519
    %5853 = vmatpush.msra.mxu0 %v5511
    %5854 = vmatpush.msra.mxu0 %v5503
    %5855 = vmatmul.f32.gmra.mxu0 %v5529
    %v5856 = vpop.f32.mrf.mxu0
    %v5857 = vadd.f32 0.0, %v5856
    %5858 = vmatmul.f32.gmra.mxu0 %v5532
    %v5859 = vpop.f32.mrf.mxu0
    %v5860 = vadd.f32 0.0, %v5859
    %5861 = vmatmul.f32.gmra.mxu0 %v5535
    %v5862 = vpop.f32.mrf.mxu0
    %v5863 = vadd.f32 0.0, %v5862
    %5864 = vmatmul.f32.gmra.mxu0 %v5538
    %v5865 = vpop.f32.mrf.mxu0
    %v5866 = vadd.f32 0.0, %v5865
    %5867 = vmatmul.f32.gmra.mxu0 %v5541
    %v5868 = vpop.f32.mrf.mxu0
    %v5869 = vadd.f32 0.0, %v5868
    %5870 = vmatmul.f32.gmra.mxu0 %v5544
    %v5871 = vpop.f32.mrf.mxu0
    %v5872 = vadd.f32 0.0, %v5871
    %5873 = vmatmul.f32.gmra.mxu0 %v5547
    %v5874 = vpop.f32.mrf.mxu0
    %v5875 = vadd.f32 0.0, %v5874
    %5876 = vmatmul.f32.gmra.mxu0 %v5550
    %v5877 = vpop.f32.mrf.mxu0
    %v5878 = vadd.f32 0.0, %v5877
    %5879 = vdwg.mxu0
    %v5880 = vmul.f32 %v4976, %v4976
    %v5881 = vmul.f32 %v4977, %v4977
    %v5882 = vmul.f32 %v4978, %v4978
    %v5883 = vmul.f32 %v4979, %v4979
    %v5884 = vmul.f32 %v4980, %v4980
    %v5885 = vmul.f32 %v4981, %v4981
    %v5886 = vmul.f32 %v4982, %v4982
    %v5887 = vmul.f32 %v4983, %v4983
    %v5888 = vmul.f32 %v4984, %v4984
    %v5889 = vmul.f32 %v4985, %v4985
    %v5890 = vmul.f32 %v4986, %v4986
    %v5891 = vmul.f32 %v4987, %v4987
    %v5892 = vmul.f32 %v4988, %v4988
    %v5893 = vmul.f32 %v4989, %v4989
    %v5894 = vmul.f32 %v4990, %v4990
    %v5895 = vmul.f32 %v4991, %v4991
    %v5896 = vmul.f32 %v4992, %v4992
    %v5897 = vmul.f32 %v4993, %v4993
    %v5898 = vmul.f32 %v4994, %v4994
    %v5899 = vmul.f32 %v4995, %v4995
    %v5900 = vmul.f32 %v4996, %v4996
    %v5901 = vmul.f32 %v4997, %v4997
    %v5902 = vmul.f32 %v4998, %v4998
    %v5903 = vmul.f32 %v4999, %v4999
    %v5904 = vmul.f32 %v5000, %v5000
    %v5905 = vmul.f32 %v5001, %v5001
    %v5906 = vmul.f32 %v5002, %v5002
    %v5907 = vmul.f32 %v5003, %v5003
    %v5908 = vmul.f32 %v5004, %v5004
    %v5909 = vmul.f32 %v5005, %v5005
    %v5910 = vmul.f32 %v5006, %v5006
    %v5911 = vmul.f32 %v5007, %v5007
    %v5912 = vmul.f32 %v5008, %v5008
    %v5913 = vmul.f32 %v5009, %v5009
    %v5914 = vmul.f32 %v5010, %v5010
    %v5915 = vmul.f32 %v5011, %v5011
    %v5916 = vmul.f32 %v5012, %v5012
    %v5917 = vmul.f32 %v5013, %v5013
    %v5918 = vmul.f32 %v5014, %v5014
    %v5919 = vmul.f32 %v5015, %v5015
    %v5920 = vmul.f32 %v5016, %v5016
    %v5921 = vmul.f32 %v5017, %v5017
    %v5922 = vmul.f32 %v5018, %v5018
    %v5923 = vmul.f32 %v5019, %v5019
    %v5924 = vmul.f32 %v5020, %v5020
    %v5925 = vmul.f32 %v5021, %v5021
    %v5926 = vmul.f32 %v5022, %v5022
    %v5927 = vmul.f32 %v5023, %v5023
    %v5928 = vmul.f32 %v5024, %v5024
    %v5929 = vmul.f32 %v5025, %v5025
    %v5930 = vmul.f32 %v5026, %v5026
    %v5931 = vmul.f32 %v5027, %v5027
    %v5932 = vmul.f32 %v5028, %v5028
    %v5933 = vmul.f32 %v5029, %v5029
    %v5934 = vmul.f32 %v5030, %v5030
    %v5935 = vmul.f32 %v5031, %v5031
    %v5936 = vmul.f32 %v5032, %v5032
    %v5937 = vmul.f32 %v5033, %v5033
    %v5938 = vmul.f32 %v5034, %v5034
    %v5939 = vmul.f32 %v5035, %v5035
    %v5940 = vmul.f32 %v5036, %v5036
    %v5941 = vmul.f32 %v5037, %v5037
    %v5942 = vmul.f32 %v5038, %v5038
    %v5943 = vmul.f32 %v5039, %v5039
    %5944 = vmatpush.msra.mxu0 %v5055
    %5945 = vmatpush.msra.mxu0 %v5054
    %5946 = vmatpush.msra.mxu0 %v5053
    %5947 = vmatpush.msra.mxu0 %v5052
    %5948 = vmatpush.msra.mxu0 %v5051
    %5949 = vmatpush.msra.mxu0 %v5050
    %5950 = vmatpush.msra.mxu0 %v5049
    %5951 = vmatpush.msra.mxu0 %v5048
    %5952 = vmatpush.msra.mxu0 %v5047
    %5953 = vmatpush.msra.mxu0 %v5046
    %5954 = vmatpush.msra.mxu0 %v5045
    %5955 = vmatpush.msra.mxu0 %v5044
    %5956 = vmatpush.msra.mxu0 %v5043
    %5957 = vmatpush.msra.mxu0 %v5042
    %5958 = vmatpush.msra.mxu0 %v5041
    %5959 = vmatpush.msra.mxu0 %v5040
    %5960 = vmatmul.f32.gmra.mxu0 %v5880
    %v5961 = vpop.f32.mrf.mxu0
    %v5962 = vadd.f32 0.0, %v5961
    %5963 = vmatmul.f32.gmra.mxu0 %v5888
    %v5964 = vpop.f32.mrf.mxu0
    %v5965 = vadd.f32 0.0, %v5964
    %5966 = vmatmul.f32.gmra.mxu0 %v5896
    %v5967 = vpop.f32.mrf.mxu0
    %v5968 = vadd.f32 0.0, %v5967
    %5969 = vmatmul.f32.gmra.mxu0 %v5904
    %v5970 = vpop.f32.mrf.mxu0
    %v5971 = vadd.f32 0.0, %v5970
    %5972 = vmatmul.f32.gmra.mxu0 %v5912
    %v5973 = vpop.f32.mrf.mxu0
    %v5974 = vadd.f32 0.0, %v5973
    %5975 = vmatmul.f32.gmra.mxu0 %v5920
    %v5976 = vpop.f32.mrf.mxu0
    %v5977 = vadd.f32 0.0, %v5976
    %5978 = vmatmul.f32.gmra.mxu0 %v5928
    %v5979 = vpop.f32.mrf.mxu0
    %v5980 = vadd.f32 0.0, %v5979
    %5981 = vmatmul.f32.gmra.mxu0 %v5936
    %v5982 = vpop.f32.mrf.mxu0
    %v5983 = vadd.f32 0.0, %v5982
    %5984 = vdwg.mxu0
    %5985 = vmatpush.msra.mxu0 %v5071
    %5986 = vmatpush.msra.mxu0 %v5070
    %5987 = vmatpush.msra.mxu0 %v5069
    %5988 = vmatpush.msra.mxu0 %v5068
    %5989 = vmatpush.msra.mxu0 %v5067
    %5990 = vmatpush.msra.mxu0 %v5066
    %5991 = vmatpush.msra.mxu0 %v5065
    %5992 = vmatpush.msra.mxu0 %v5064
    %5993 = vmatpush.msra.mxu0 %v5063
    %5994 = vmatpush.msra.mxu0 %v5062
    %5995 = vmatpush.msra.mxu0 %v5061
    %5996 = vmatpush.msra.mxu0 %v5060
    %5997 = vmatpush.msra.mxu0 %v5059
    %5998 = vmatpush.msra.mxu0 %v5058
    %5999 = vmatpush.msra.mxu0 %v5057
    %6000 = vmatpush.msra.mxu0 %v5056
    %6001 = vmatmul.f32.gmra.mxu0 %v5881
    %v6002 = vpop.f32.mrf.mxu0
    %v6003 = vadd.f32 %v5962, %v6002
    %6004 = vmatmul.f32.gmra.mxu0 %v5889
    %v6005 = vpop.f32.mrf.mxu0
    %v6006 = vadd.f32 %v5965, %v6005
    %6007 = vmatmul.f32.gmra.mxu0 %v5897
    %v6008 = vpop.f32.mrf.mxu0
    %v6009 = vadd.f32 %v5968, %v6008
    %6010 = vmatmul.f32.gmra.mxu0 %v5905
    %v6011 = vpop.f32.mrf.mxu0
    %v6012 = vadd.f32 %v5971, %v6011
    %6013 = vmatmul.f32.gmra.mxu0 %v5913
    %v6014 = vpop.f32.mrf.mxu0
    %v6015 = vadd.f32 %v5974, %v6014
    %6016 = vmatmul.f32.gmra.mxu0 %v5921
    %v6017 = vpop.f32.mrf.mxu0
    %v6018 = vadd.f32 %v5977, %v6017
    %6019 = vmatmul.f32.gmra.mxu0 %v5929
    %v6020 = vpop.f32.mrf.mxu0
    %v6021 = vadd.f32 %v5980, %v6020
    %6022 = vmatmul.f32.gmra.mxu0 %v5937
    %v6023 = vpop.f32.mrf.mxu0
    %v6024 = vadd.f32 %v5983, %v6023
    %6025 = vdwg.mxu0
    %6026 = vmatpush.msra.mxu0 %v5087
    %6027 = vmatpush.msra.mxu0 %v5086
    %6028 = vmatpush.msra.mxu0 %v5085
    %6029 = vmatpush.msra.mxu0 %v5084
    %6030 = vmatpush.msra.mxu0 %v5083
    %6031 = vmatpush.msra.mxu0 %v5082
    %6032 = vmatpush.msra.mxu0 %v5081
    %6033 = vmatpush.msra.mxu0 %v5080
    %6034 = vmatpush.msra.mxu0 %v5079
    %6035 = vmatpush.msra.mxu0 %v5078
    %6036 = vmatpush.msra.mxu0 %v5077
    %6037 = vmatpush.msra.mxu0 %v5076
    %6038 = vmatpush.msra.mxu0 %v5075
    %6039 = vmatpush.msra.mxu0 %v5074
    %6040 = vmatpush.msra.mxu0 %v5073
    %6041 = vmatpush.msra.mxu0 %v5072
    %6042 = vmatmul.f32.gmra.mxu0 %v5882
    %v6043 = vpop.f32.mrf.mxu0
    %v6044 = vadd.f32 %v6003, %v6043
    %6045 = vmatmul.f32.gmra.mxu0 %v5890
    %v6046 = vpop.f32.mrf.mxu0
    %v6047 = vadd.f32 %v6006, %v6046
    %6048 = vmatmul.f32.gmra.mxu0 %v5898
    %v6049 = vpop.f32.mrf.mxu0
    %v6050 = vadd.f32 %v6009, %v6049
    %6051 = vmatmul.f32.gmra.mxu0 %v5906
    %v6052 = vpop.f32.mrf.mxu0
    %v6053 = vadd.f32 %v6012, %v6052
    %6054 = vmatmul.f32.gmra.mxu0 %v5914
    %v6055 = vpop.f32.mrf.mxu0
    %v6056 = vadd.f32 %v6015, %v6055
    %6057 = vmatmul.f32.gmra.mxu0 %v5922
    %v6058 = vpop.f32.mrf.mxu0
    %v6059 = vadd.f32 %v6018, %v6058
    %6060 = vmatmul.f32.gmra.mxu0 %v5930
    %v6061 = vpop.f32.mrf.mxu0
    %v6062 = vadd.f32 %v6021, %v6061
    %6063 = vmatmul.f32.gmra.mxu0 %v5938
    %v6064 = vpop.f32.mrf.mxu0
    %v6065 = vadd.f32 %v6024, %v6064
    %6066 = vdwg.mxu0
    %6067 = vmatpush.msra.mxu0 %v5103
    %6068 = vmatpush.msra.mxu0 %v5102
    %6069 = vmatpush.msra.mxu0 %v5101
    %6070 = vmatpush.msra.mxu0 %v5100
    %6071 = vmatpush.msra.mxu0 %v5099
    %6072 = vmatpush.msra.mxu0 %v5098
    %6073 = vmatpush.msra.mxu0 %v5097
    %6074 = vmatpush.msra.mxu0 %v5096
    %6075 = vmatpush.msra.mxu0 %v5095
    %6076 = vmatpush.msra.mxu0 %v5094
    %6077 = vmatpush.msra.mxu0 %v5093
    %6078 = vmatpush.msra.mxu0 %v5092
    %6079 = vmatpush.msra.mxu0 %v5091
    %6080 = vmatpush.msra.mxu0 %v5090
    %6081 = vmatpush.msra.mxu0 %v5089
    %6082 = vmatpush.msra.mxu0 %v5088
    %6083 = vmatmul.f32.gmra.mxu0 %v5883
    %v6084 = vpop.f32.mrf.mxu0
    %v6085 = vadd.f32 %v6044, %v6084
    %6086 = vmatmul.f32.gmra.mxu0 %v5891
    %v6087 = vpop.f32.mrf.mxu0
    %v6088 = vadd.f32 %v6047, %v6087
    %6089 = vmatmul.f32.gmra.mxu0 %v5899
    %v6090 = vpop.f32.mrf.mxu0
    %v6091 = vadd.f32 %v6050, %v6090
    %6092 = vmatmul.f32.gmra.mxu0 %v5907
    %v6093 = vpop.f32.mrf.mxu0
    %v6094 = vadd.f32 %v6053, %v6093
    %6095 = vmatmul.f32.gmra.mxu0 %v5915
    %v6096 = vpop.f32.mrf.mxu0
    %v6097 = vadd.f32 %v6056, %v6096
    %6098 = vmatmul.f32.gmra.mxu0 %v5923
    %v6099 = vpop.f32.mrf.mxu0
    %v6100 = vadd.f32 %v6059, %v6099
    %6101 = vmatmul.f32.gmra.mxu0 %v5931
    %v6102 = vpop.f32.mrf.mxu0
    %v6103 = vadd.f32 %v6062, %v6102
    %6104 = vmatmul.f32.gmra.mxu0 %v5939
    %v6105 = vpop.f32.mrf.mxu0
    %v6106 = vadd.f32 %v6065, %v6105
    %6107 = vdwg.mxu0
    %6108 = vmatpush.msra.mxu0 %v5119
    %6109 = vmatpush.msra.mxu0 %v5118
    %6110 = vmatpush.msra.mxu0 %v5117
    %6111 = vmatpush.msra.mxu0 %v5116
    %6112 = vmatpush.msra.mxu0 %v5115
    %6113 = vmatpush.msra.mxu0 %v5114
    %6114 = vmatpush.msra.mxu0 %v5113
    %6115 = vmatpush.msra.mxu0 %v5112
    %6116 = vmatpush.msra.mxu0 %v5111
    %6117 = vmatpush.msra.mxu0 %v5110
    %6118 = vmatpush.msra.mxu0 %v5109
    %6119 = vmatpush.msra.mxu0 %v5108
    %6120 = vmatpush.msra.mxu0 %v5107
    %6121 = vmatpush.msra.mxu0 %v5106
    %6122 = vmatpush.msra.mxu0 %v5105
    %6123 = vmatpush.msra.mxu0 %v5104
    %6124 = vmatmul.f32.gmra.mxu0 %v5884
    %v6125 = vpop.f32.mrf.mxu0
    %v6126 = vadd.f32 %v6085, %v6125
    %6127 = vmatmul.f32.gmra.mxu0 %v5892
    %v6128 = vpop.f32.mrf.mxu0
    %v6129 = vadd.f32 %v6088, %v6128
    %6130 = vmatmul.f32.gmra.mxu0 %v5900
    %v6131 = vpop.f32.mrf.mxu0
    %v6132 = vadd.f32 %v6091, %v6131
    %6133 = vmatmul.f32.gmra.mxu0 %v5908
    %v6134 = vpop.f32.mrf.mxu0
    %v6135 = vadd.f32 %v6094, %v6134
    %6136 = vmatmul.f32.gmra.mxu0 %v5916
    %v6137 = vpop.f32.mrf.mxu0
    %v6138 = vadd.f32 %v6097, %v6137
    %6139 = vmatmul.f32.gmra.mxu0 %v5924
    %v6140 = vpop.f32.mrf.mxu0
    %v6141 = vadd.f32 %v6100, %v6140
    %6142 = vmatmul.f32.gmra.mxu0 %v5932
    %v6143 = vpop.f32.mrf.mxu0
    %v6144 = vadd.f32 %v6103, %v6143
    %6145 = vmatmul.f32.gmra.mxu0 %v5940
    %v6146 = vpop.f32.mrf.mxu0
    %v6147 = vadd.f32 %v6106, %v6146
    %6148 = vdwg.mxu0
    %6149 = vmatpush.msra.mxu0 %v5135
    %6150 = vmatpush.msra.mxu0 %v5134
    %6151 = vmatpush.msra.mxu0 %v5133
    %6152 = vmatpush.msra.mxu0 %v5132
    %6153 = vmatpush.msra.mxu0 %v5131
    %6154 = vmatpush.msra.mxu0 %v5130
    %6155 = vmatpush.msra.mxu0 %v5129
    %6156 = vmatpush.msra.mxu0 %v5128
    %6157 = vmatpush.msra.mxu0 %v5127
    %6158 = vmatpush.msra.mxu0 %v5126
    %6159 = vmatpush.msra.mxu0 %v5125
    %6160 = vmatpush.msra.mxu0 %v5124
    %6161 = vmatpush.msra.mxu0 %v5123
    %6162 = vmatpush.msra.mxu0 %v5122
    %6163 = vmatpush.msra.mxu0 %v5121
    %6164 = vmatpush.msra.mxu0 %v5120
    %6165 = vmatmul.f32.gmra.mxu0 %v5885
    %v6166 = vpop.f32.mrf.mxu0
    %v6167 = vadd.f32 %v6126, %v6166
    %6168 = vmatmul.f32.gmra.mxu0 %v5893
    %v6169 = vpop.f32.mrf.mxu0
    %v6170 = vadd.f32 %v6129, %v6169
    %6171 = vmatmul.f32.gmra.mxu0 %v5901
    %v6172 = vpop.f32.mrf.mxu0
    %v6173 = vadd.f32 %v6132, %v6172
    %6174 = vmatmul.f32.gmra.mxu0 %v5909
    %v6175 = vpop.f32.mrf.mxu0
    %v6176 = vadd.f32 %v6135, %v6175
    %6177 = vmatmul.f32.gmra.mxu0 %v5917
    %v6178 = vpop.f32.mrf.mxu0
    %v6179 = vadd.f32 %v6138, %v6178
    %6180 = vmatmul.f32.gmra.mxu0 %v5925
    %v6181 = vpop.f32.mrf.mxu0
    %v6182 = vadd.f32 %v6141, %v6181
    %6183 = vmatmul.f32.gmra.mxu0 %v5933
    %v6184 = vpop.f32.mrf.mxu0
    %v6185 = vadd.f32 %v6144, %v6184
    %6186 = vmatmul.f32.gmra.mxu0 %v5941
    %v6187 = vpop.f32.mrf.mxu0
    %v6188 = vadd.f32 %v6147, %v6187
    %6189 = vdwg.mxu0
    %6190 = vmatpush.msra.mxu0 %v5151
    %6191 = vmatpush.msra.mxu0 %v5150
    %6192 = vmatpush.msra.mxu0 %v5149
    %6193 = vmatpush.msra.mxu0 %v5148
    %6194 = vmatpush.msra.mxu0 %v5147
    %6195 = vmatpush.msra.mxu0 %v5146
    %6196 = vmatpush.msra.mxu0 %v5145
    %6197 = vmatpush.msra.mxu0 %v5144
    %6198 = vmatpush.msra.mxu0 %v5143
    %6199 = vmatpush.msra.mxu0 %v5142
    %6200 = vmatpush.msra.mxu0 %v5141
    %6201 = vmatpush.msra.mxu0 %v5140
    %6202 = vmatpush.msra.mxu0 %v5139
    %6203 = vmatpush.msra.mxu0 %v5138
    %6204 = vmatpush.msra.mxu0 %v5137
    %6205 = vmatpush.msra.mxu0 %v5136
    %6206 = vmatmul.f32.gmra.mxu0 %v5886
    %v6207 = vpop.f32.mrf.mxu0
    %v6208 = vadd.f32 %v6167, %v6207
    %6209 = vmatmul.f32.gmra.mxu0 %v5894
    %v6210 = vpop.f32.mrf.mxu0
    %v6211 = vadd.f32 %v6170, %v6210
    %6212 = vmatmul.f32.gmra.mxu0 %v5902
    %v6213 = vpop.f32.mrf.mxu0
    %v6214 = vadd.f32 %v6173, %v6213
    %6215 = vmatmul.f32.gmra.mxu0 %v5910
    %v6216 = vpop.f32.mrf.mxu0
    %v6217 = vadd.f32 %v6176, %v6216
    %6218 = vmatmul.f32.gmra.mxu0 %v5918
    %v6219 = vpop.f32.mrf.mxu0
    %v6220 = vadd.f32 %v6179, %v6219
    %6221 = vmatmul.f32.gmra.mxu0 %v5926
    %v6222 = vpop.f32.mrf.mxu0
    %v6223 = vadd.f32 %v6182, %v6222
    %6224 = vmatmul.f32.gmra.mxu0 %v5934
    %v6225 = vpop.f32.mrf.mxu0
    %v6226 = vadd.f32 %v6185, %v6225
    %6227 = vmatmul.f32.gmra.mxu0 %v5942
    %v6228 = vpop.f32.mrf.mxu0
    %v6229 = vadd.f32 %v6188, %v6228
    %6230 = vdwg.mxu0
    %6231 = vmatpush.msra.mxu0 %v5167
    %6232 = vmatpush.msra.mxu0 %v5166
    %6233 = vmatpush.msra.mxu0 %v5165
    %6234 = vmatpush.msra.mxu0 %v5164
    %6235 = vmatpush.msra.mxu0 %v5163
    %6236 = vmatpush.msra.mxu0 %v5162
    %6237 = vmatpush.msra.mxu0 %v5161
    %6238 = vmatpush.msra.mxu0 %v5160
    %6239 = vmatpush.msra.mxu0 %v5159
    %6240 = vmatpush.msra.mxu0 %v5158
    %6241 = vmatpush.msra.mxu0 %v5157
    %6242 = vmatpush.msra.mxu0 %v5156
    %6243 = vmatpush.msra.mxu0 %v5155
    %6244 = vmatpush.msra.mxu0 %v5154
    %6245 = vmatpush.msra.mxu0 %v5153
    %6246 = vmatpush.msra.mxu0 %v5152
    %6247 = vmatmul.f32.gmra.mxu0 %v5887
    %v6248 = vpop.f32.mrf.mxu0
    %v6249 = vadd.f32 %v6208, %v6248
    %6250 = vmatmul.f32.gmra.mxu0 %v5895
    %v6251 = vpop.f32.mrf.mxu0
    %v6252 = vadd.f32 %v6211, %v6251
    %6253 = vmatmul.f32.gmra.mxu0 %v5903
    %v6254 = vpop.f32.mrf.mxu0
    %v6255 = vadd.f32 %v6214, %v6254
    %6256 = vmatmul.f32.gmra.mxu0 %v5911
    %v6257 = vpop.f32.mrf.mxu0
    %v6258 = vadd.f32 %v6217, %v6257
    %6259 = vmatmul.f32.gmra.mxu0 %v5919
    %v6260 = vpop.f32.mrf.mxu0
    %v6261 = vadd.f32 %v6220, %v6260
    %6262 = vmatmul.f32.gmra.mxu0 %v5927
    %v6263 = vpop.f32.mrf.mxu0
    %v6264 = vadd.f32 %v6223, %v6263
    %6265 = vmatmul.f32.gmra.mxu0 %v5935
    %v6266 = vpop.f32.mrf.mxu0
    %v6267 = vadd.f32 %v6226, %v6266
    %6268 = vmatmul.f32.gmra.mxu0 %v5943
    %v6269 = vpop.f32.mrf.mxu0
    %v6270 = vadd.f32 %v6229, %v6269
    %6271 = vdwg.mxu0
    %v6273 = vsel %vm283, %v6249, 0
    %v6276 = vsel %vm283, %v6252, 0
    %v6279 = vsel %vm283, %v6255, 0
    %v6282 = vsel %vm283, %v6258, 0
    %v6285 = vsel %vm283, %v6261, 0
    %v6288 = vsel %vm283, %v6264, 0
    %v6291 = vsel %vm283, %v6267, 0
    %v6294 = vsel %vm283, %v6270, 0
    %6296 = vmatpush.msra.mxu0 0.0
    %6297 = vmatpush.msra.mxu0 0.0
    %6298 = vmatpush.msra.mxu0 0.0
    %6299 = vmatpush.msra.mxu0 0.0
    %6300 = vmatpush.msra.mxu0 0.0
    %6301 = vmatpush.msra.mxu0 0.0
    %6302 = vmatpush.msra.mxu0 0.0
    %6303 = vmatpush.msra.mxu0 0.0
    %6304 = vmatpush.msra.mxu0 0.0
    %6305 = vmatpush.msra.mxu0 0.0
    %6306 = vmatpush.msra.mxu0 0.0
    %6307 = vmatpush.msra.mxu0 0.0
    %6308 = vmatpush.msra.mxu0 %v5520
    %6309 = vmatpush.msra.mxu0 %v5512
    %6310 = vmatpush.msra.mxu0 %v5504
    %6311 = vmatpush.msra.mxu0 %v5496
    %6312 = vmatmul.f32.gmra.mxu0 %v6273
    %v6313 = vpop.f32.mrf.mxu0
    %v6314 = vadd.f32 0.0, %v6313
    %6315 = vmatmul.f32.gmra.mxu0 %v6276
    %v6316 = vpop.f32.mrf.mxu0
    %v6317 = vadd.f32 0.0, %v6316
    %6318 = vmatmul.f32.gmra.mxu0 %v6279
    %v6319 = vpop.f32.mrf.mxu0
    %v6320 = vadd.f32 0.0, %v6319
    %6321 = vmatmul.f32.gmra.mxu0 %v6282
    %v6322 = vpop.f32.mrf.mxu0
    %v6323 = vadd.f32 0.0, %v6322
    %6324 = vmatmul.f32.gmra.mxu0 %v6285
    %v6325 = vpop.f32.mrf.mxu0
    %v6326 = vadd.f32 0.0, %v6325
    %6327 = vmatmul.f32.gmra.mxu0 %v6288
    %v6328 = vpop.f32.mrf.mxu0
    %v6329 = vadd.f32 0.0, %v6328
    %6330 = vmatmul.f32.gmra.mxu0 %v6291
    %v6331 = vpop.f32.mrf.mxu0
    %v6332 = vadd.f32 0.0, %v6331
    %6333 = vmatmul.f32.gmra.mxu0 %v6294
    %v6334 = vpop.f32.mrf.mxu0
    %v6335 = vadd.f32 0.0, %v6334
    %6336 = vdwg.mxu0
    %6337 = vmatpush.msra.mxu0 0.0
    %6338 = vmatpush.msra.mxu0 0.0
    %6339 = vmatpush.msra.mxu0 0.0
    %6340 = vmatpush.msra.mxu0 0.0
    %6341 = vmatpush.msra.mxu0 0.0
    %6342 = vmatpush.msra.mxu0 0.0
    %6343 = vmatpush.msra.mxu0 0.0
    %6344 = vmatpush.msra.mxu0 0.0
    %6345 = vmatpush.msra.mxu0 0.0
    %6346 = vmatpush.msra.mxu0 0.0
    %6347 = vmatpush.msra.mxu0 0.0
    %6348 = vmatpush.msra.mxu0 0.0
    %6349 = vmatpush.msra.mxu0 %v5521
    %6350 = vmatpush.msra.mxu0 %v5513
    %6351 = vmatpush.msra.mxu0 %v5505
    %6352 = vmatpush.msra.mxu0 %v5497
    %6353 = vmatmul.f32.gmra.mxu0 %v6273
    %v6354 = vpop.f32.mrf.mxu0
    %v6355 = vadd.f32 0.0, %v6354
    %6356 = vmatmul.f32.gmra.mxu0 %v6276
    %v6357 = vpop.f32.mrf.mxu0
    %v6358 = vadd.f32 0.0, %v6357
    %6359 = vmatmul.f32.gmra.mxu0 %v6279
    %v6360 = vpop.f32.mrf.mxu0
    %v6361 = vadd.f32 0.0, %v6360
    %6362 = vmatmul.f32.gmra.mxu0 %v6282
    %v6363 = vpop.f32.mrf.mxu0
    %v6364 = vadd.f32 0.0, %v6363
    %6365 = vmatmul.f32.gmra.mxu0 %v6285
    %v6366 = vpop.f32.mrf.mxu0
    %v6367 = vadd.f32 0.0, %v6366
    %6368 = vmatmul.f32.gmra.mxu0 %v6288
    %v6369 = vpop.f32.mrf.mxu0
    %v6370 = vadd.f32 0.0, %v6369
    %6371 = vmatmul.f32.gmra.mxu0 %v6291
    %v6372 = vpop.f32.mrf.mxu0
    %v6373 = vadd.f32 0.0, %v6372
    %6374 = vmatmul.f32.gmra.mxu0 %v6294
    %v6375 = vpop.f32.mrf.mxu0
    %v6376 = vadd.f32 0.0, %v6375
    %6377 = vdwg.mxu0
    %6378 = vmatpush.msra.mxu0 0.0
    %6379 = vmatpush.msra.mxu0 0.0
    %6380 = vmatpush.msra.mxu0 0.0
    %6381 = vmatpush.msra.mxu0 0.0
    %6382 = vmatpush.msra.mxu0 0.0
    %6383 = vmatpush.msra.mxu0 0.0
    %6384 = vmatpush.msra.mxu0 0.0
    %6385 = vmatpush.msra.mxu0 0.0
    %6386 = vmatpush.msra.mxu0 0.0
    %6387 = vmatpush.msra.mxu0 0.0
    %6388 = vmatpush.msra.mxu0 0.0
    %6389 = vmatpush.msra.mxu0 0.0
    %6390 = vmatpush.msra.mxu0 %v5522
    %6391 = vmatpush.msra.mxu0 %v5514
    %6392 = vmatpush.msra.mxu0 %v5506
    %6393 = vmatpush.msra.mxu0 %v5498
    %6394 = vmatmul.f32.gmra.mxu0 %v6273
    %v6395 = vpop.f32.mrf.mxu0
    %v6396 = vadd.f32 0.0, %v6395
    %6397 = vmatmul.f32.gmra.mxu0 %v6276
    %v6398 = vpop.f32.mrf.mxu0
    %v6399 = vadd.f32 0.0, %v6398
    %6400 = vmatmul.f32.gmra.mxu0 %v6279
    %v6401 = vpop.f32.mrf.mxu0
    %v6402 = vadd.f32 0.0, %v6401
    %6403 = vmatmul.f32.gmra.mxu0 %v6282
    %v6404 = vpop.f32.mrf.mxu0
    %v6405 = vadd.f32 0.0, %v6404
    %6406 = vmatmul.f32.gmra.mxu0 %v6285
    %v6407 = vpop.f32.mrf.mxu0
    %v6408 = vadd.f32 0.0, %v6407
    %6409 = vmatmul.f32.gmra.mxu0 %v6288
    %v6410 = vpop.f32.mrf.mxu0
    %v6411 = vadd.f32 0.0, %v6410
    %6412 = vmatmul.f32.gmra.mxu0 %v6291
    %v6413 = vpop.f32.mrf.mxu0
    %v6414 = vadd.f32 0.0, %v6413
    %6415 = vmatmul.f32.gmra.mxu0 %v6294
    %v6416 = vpop.f32.mrf.mxu0
    %v6417 = vadd.f32 0.0, %v6416
    %6418 = vdwg.mxu0
    %6419 = vmatpush.msra.mxu0 0.0
    %6420 = vmatpush.msra.mxu0 0.0
    %6421 = vmatpush.msra.mxu0 0.0
    %6422 = vmatpush.msra.mxu0 0.0
    %6423 = vmatpush.msra.mxu0 0.0
    %6424 = vmatpush.msra.mxu0 0.0
    %6425 = vmatpush.msra.mxu0 0.0
    %6426 = vmatpush.msra.mxu0 0.0
    %6427 = vmatpush.msra.mxu0 0.0
    %6428 = vmatpush.msra.mxu0 0.0
    %6429 = vmatpush.msra.mxu0 0.0
    %6430 = vmatpush.msra.mxu0 0.0
    %6431 = vmatpush.msra.mxu0 %v5523
    %6432 = vmatpush.msra.mxu0 %v5515
    %6433 = vmatpush.msra.mxu0 %v5507
    %6434 = vmatpush.msra.mxu0 %v5499
    %6435 = vmatmul.f32.gmra.mxu0 %v6273
    %v6436 = vpop.f32.mrf.mxu0
    %v6437 = vadd.f32 0.0, %v6436
    %6438 = vmatmul.f32.gmra.mxu0 %v6276
    %v6439 = vpop.f32.mrf.mxu0
    %v6440 = vadd.f32 0.0, %v6439
    %6441 = vmatmul.f32.gmra.mxu0 %v6279
    %v6442 = vpop.f32.mrf.mxu0
    %v6443 = vadd.f32 0.0, %v6442
    %6444 = vmatmul.f32.gmra.mxu0 %v6282
    %v6445 = vpop.f32.mrf.mxu0
    %v6446 = vadd.f32 0.0, %v6445
    %6447 = vmatmul.f32.gmra.mxu0 %v6285
    %v6448 = vpop.f32.mrf.mxu0
    %v6449 = vadd.f32 0.0, %v6448
    %6450 = vmatmul.f32.gmra.mxu0 %v6288
    %v6451 = vpop.f32.mrf.mxu0
    %v6452 = vadd.f32 0.0, %v6451
    %6453 = vmatmul.f32.gmra.mxu0 %v6291
    %v6454 = vpop.f32.mrf.mxu0
    %v6455 = vadd.f32 0.0, %v6454
    %6456 = vmatmul.f32.gmra.mxu0 %v6294
    %v6457 = vpop.f32.mrf.mxu0
    %v6458 = vadd.f32 0.0, %v6457
    %6459 = vdwg.mxu0
    %6460 = vmatpush.msra.mxu0 0.0
    %6461 = vmatpush.msra.mxu0 0.0
    %6462 = vmatpush.msra.mxu0 0.0
    %6463 = vmatpush.msra.mxu0 0.0
    %6464 = vmatpush.msra.mxu0 0.0
    %6465 = vmatpush.msra.mxu0 0.0
    %6466 = vmatpush.msra.mxu0 0.0
    %6467 = vmatpush.msra.mxu0 0.0
    %6468 = vmatpush.msra.mxu0 0.0
    %6469 = vmatpush.msra.mxu0 0.0
    %6470 = vmatpush.msra.mxu0 0.0
    %6471 = vmatpush.msra.mxu0 0.0
    %6472 = vmatpush.msra.mxu0 %v5524
    %6473 = vmatpush.msra.mxu0 %v5516
    %6474 = vmatpush.msra.mxu0 %v5508
    %6475 = vmatpush.msra.mxu0 %v5500
    %6476 = vmatmul.f32.gmra.mxu0 %v6273
    %v6477 = vpop.f32.mrf.mxu0
    %v6478 = vadd.f32 0.0, %v6477
    %6479 = vmatmul.f32.gmra.mxu0 %v6276
    %v6480 = vpop.f32.mrf.mxu0
    %v6481 = vadd.f32 0.0, %v6480
    %6482 = vmatmul.f32.gmra.mxu0 %v6279
    %v6483 = vpop.f32.mrf.mxu0
    %v6484 = vadd.f32 0.0, %v6483
    %6485 = vmatmul.f32.gmra.mxu0 %v6282
    %v6486 = vpop.f32.mrf.mxu0
    %v6487 = vadd.f32 0.0, %v6486
    %6488 = vmatmul.f32.gmra.mxu0 %v6285
    %v6489 = vpop.f32.mrf.mxu0
    %v6490 = vadd.f32 0.0, %v6489
    %6491 = vmatmul.f32.gmra.mxu0 %v6288
    %v6492 = vpop.f32.mrf.mxu0
    %v6493 = vadd.f32 0.0, %v6492
    %6494 = vmatmul.f32.gmra.mxu0 %v6291
    %v6495 = vpop.f32.mrf.mxu0
    %v6496 = vadd.f32 0.0, %v6495
    %6497 = vmatmul.f32.gmra.mxu0 %v6294
    %v6498 = vpop.f32.mrf.mxu0
    %v6499 = vadd.f32 0.0, %v6498
    %6500 = vdwg.mxu0
    %6501 = vmatpush.msra.mxu0 0.0
    %6502 = vmatpush.msra.mxu0 0.0
    %6503 = vmatpush.msra.mxu0 0.0
    %6504 = vmatpush.msra.mxu0 0.0
    %6505 = vmatpush.msra.mxu0 0.0
    %6506 = vmatpush.msra.mxu0 0.0
    %6507 = vmatpush.msra.mxu0 0.0
    %6508 = vmatpush.msra.mxu0 0.0
    %6509 = vmatpush.msra.mxu0 0.0
    %6510 = vmatpush.msra.mxu0 0.0
    %6511 = vmatpush.msra.mxu0 0.0
    %6512 = vmatpush.msra.mxu0 0.0
    %6513 = vmatpush.msra.mxu0 %v5525
    %6514 = vmatpush.msra.mxu0 %v5517
    %6515 = vmatpush.msra.mxu0 %v5509
    %6516 = vmatpush.msra.mxu0 %v5501
    %6517 = vmatmul.f32.gmra.mxu0 %v6273
    %v6518 = vpop.f32.mrf.mxu0
    %v6519 = vadd.f32 0.0, %v6518
    %6520 = vmatmul.f32.gmra.mxu0 %v6276
    %v6521 = vpop.f32.mrf.mxu0
    %v6522 = vadd.f32 0.0, %v6521
    %6523 = vmatmul.f32.gmra.mxu0 %v6279
    %v6524 = vpop.f32.mrf.mxu0
    %v6525 = vadd.f32 0.0, %v6524
    %6526 = vmatmul.f32.gmra.mxu0 %v6282
    %v6527 = vpop.f32.mrf.mxu0
    %v6528 = vadd.f32 0.0, %v6527
    %6529 = vmatmul.f32.gmra.mxu0 %v6285
    %v6530 = vpop.f32.mrf.mxu0
    %v6531 = vadd.f32 0.0, %v6530
    %6532 = vmatmul.f32.gmra.mxu0 %v6288
    %v6533 = vpop.f32.mrf.mxu0
    %v6534 = vadd.f32 0.0, %v6533
    %6535 = vmatmul.f32.gmra.mxu0 %v6291
    %v6536 = vpop.f32.mrf.mxu0
    %v6537 = vadd.f32 0.0, %v6536
    %6538 = vmatmul.f32.gmra.mxu0 %v6294
    %v6539 = vpop.f32.mrf.mxu0
    %v6540 = vadd.f32 0.0, %v6539
    %6541 = vdwg.mxu0
    %6542 = vmatpush.msra.mxu0 0.0
    %6543 = vmatpush.msra.mxu0 0.0
    %6544 = vmatpush.msra.mxu0 0.0
    %6545 = vmatpush.msra.mxu0 0.0
    %6546 = vmatpush.msra.mxu0 0.0
    %6547 = vmatpush.msra.mxu0 0.0
    %6548 = vmatpush.msra.mxu0 0.0
    %6549 = vmatpush.msra.mxu0 0.0
    %6550 = vmatpush.msra.mxu0 0.0
    %6551 = vmatpush.msra.mxu0 0.0
    %6552 = vmatpush.msra.mxu0 0.0
    %6553 = vmatpush.msra.mxu0 0.0
    %6554 = vmatpush.msra.mxu0 %v5526
    %6555 = vmatpush.msra.mxu0 %v5518
    %6556 = vmatpush.msra.mxu0 %v5510
    %6557 = vmatpush.msra.mxu0 %v5502
    %6558 = vmatmul.f32.gmra.mxu0 %v6273
    %v6559 = vpop.f32.mrf.mxu0
    %v6560 = vadd.f32 0.0, %v6559
    %6561 = vmatmul.f32.gmra.mxu0 %v6276
    %v6562 = vpop.f32.mrf.mxu0
    %v6563 = vadd.f32 0.0, %v6562
    %6564 = vmatmul.f32.gmra.mxu0 %v6279
    %v6565 = vpop.f32.mrf.mxu0
    %v6566 = vadd.f32 0.0, %v6565
    %6567 = vmatmul.f32.gmra.mxu0 %v6282
    %v6568 = vpop.f32.mrf.mxu0
    %v6569 = vadd.f32 0.0, %v6568
    %6570 = vmatmul.f32.gmra.mxu0 %v6285
    %v6571 = vpop.f32.mrf.mxu0
    %v6572 = vadd.f32 0.0, %v6571
    %6573 = vmatmul.f32.gmra.mxu0 %v6288
    %v6574 = vpop.f32.mrf.mxu0
    %v6575 = vadd.f32 0.0, %v6574
    %6576 = vmatmul.f32.gmra.mxu0 %v6291
    %v6577 = vpop.f32.mrf.mxu0
    %v6578 = vadd.f32 0.0, %v6577
    %6579 = vmatmul.f32.gmra.mxu0 %v6294
    %v6580 = vpop.f32.mrf.mxu0
    %v6581 = vadd.f32 0.0, %v6580
    %6582 = vdwg.mxu0
    %6583 = vmatpush.msra.mxu0 0.0
    %6584 = vmatpush.msra.mxu0 0.0
    %6585 = vmatpush.msra.mxu0 0.0
    %6586 = vmatpush.msra.mxu0 0.0
    %6587 = vmatpush.msra.mxu0 0.0
    %6588 = vmatpush.msra.mxu0 0.0
    %6589 = vmatpush.msra.mxu0 0.0
    %6590 = vmatpush.msra.mxu0 0.0
    %6591 = vmatpush.msra.mxu0 0.0
    %6592 = vmatpush.msra.mxu0 0.0
    %6593 = vmatpush.msra.mxu0 0.0
    %6594 = vmatpush.msra.mxu0 0.0
    %6595 = vmatpush.msra.mxu0 %v5527
    %6596 = vmatpush.msra.mxu0 %v5519
    %6597 = vmatpush.msra.mxu0 %v5511
    %6598 = vmatpush.msra.mxu0 %v5503
    %6599 = vmatmul.f32.gmra.mxu0 %v6273
    %v6600 = vpop.f32.mrf.mxu0
    %v6601 = vadd.f32 0.0, %v6600
    %6602 = vmatmul.f32.gmra.mxu0 %v6276
    %v6603 = vpop.f32.mrf.mxu0
    %v6604 = vadd.f32 0.0, %v6603
    %6605 = vmatmul.f32.gmra.mxu0 %v6279
    %v6606 = vpop.f32.mrf.mxu0
    %v6607 = vadd.f32 0.0, %v6606
    %6608 = vmatmul.f32.gmra.mxu0 %v6282
    %v6609 = vpop.f32.mrf.mxu0
    %v6610 = vadd.f32 0.0, %v6609
    %6611 = vmatmul.f32.gmra.mxu0 %v6285
    %v6612 = vpop.f32.mrf.mxu0
    %v6613 = vadd.f32 0.0, %v6612
    %6614 = vmatmul.f32.gmra.mxu0 %v6288
    %v6615 = vpop.f32.mrf.mxu0
    %v6616 = vadd.f32 0.0, %v6615
    %6617 = vmatmul.f32.gmra.mxu0 %v6291
    %v6618 = vpop.f32.mrf.mxu0
    %v6619 = vadd.f32 0.0, %v6618
    %6620 = vmatmul.f32.gmra.mxu0 %v6294
    %v6621 = vpop.f32.mrf.mxu0
    %v6622 = vadd.f32 0.0, %v6621
    %6623 = vdwg.mxu0
    %v6624 = vmul.f32 %v5570, %v5570
    %v6625 = vmul.f32 %v5611, %v5611
    %v6626 = vmul.f32 %v5652, %v5652
    %v6627 = vmul.f32 %v5693, %v5693
    %v6628 = vmul.f32 %v5734, %v5734
    %v6629 = vmul.f32 %v5775, %v5775
    %v6630 = vmul.f32 %v5816, %v5816
    %v6631 = vmul.f32 %v5857, %v5857
    %v6632 = vmul.f32 %v5573, %v5573
    %v6633 = vmul.f32 %v5614, %v5614
    %v6634 = vmul.f32 %v5655, %v5655
    %v6635 = vmul.f32 %v5696, %v5696
    %v6636 = vmul.f32 %v5737, %v5737
    %v6637 = vmul.f32 %v5778, %v5778
    %v6638 = vmul.f32 %v5819, %v5819
    %v6639 = vmul.f32 %v5860, %v5860
    %v6640 = vmul.f32 %v5576, %v5576
    %v6641 = vmul.f32 %v5617, %v5617
    %v6642 = vmul.f32 %v5658, %v5658
    %v6643 = vmul.f32 %v5699, %v5699
    %v6644 = vmul.f32 %v5740, %v5740
    %v6645 = vmul.f32 %v5781, %v5781
    %v6646 = vmul.f32 %v5822, %v5822
    %v6647 = vmul.f32 %v5863, %v5863
    %v6648 = vmul.f32 %v5579, %v5579
    %v6649 = vmul.f32 %v5620, %v5620
    %v6650 = vmul.f32 %v5661, %v5661
    %v6651 = vmul.f32 %v5702, %v5702
    %v6652 = vmul.f32 %v5743, %v5743
    %v6653 = vmul.f32 %v5784, %v5784
    %v6654 = vmul.f32 %v5825, %v5825
    %v6655 = vmul.f32 %v5866, %v5866
    %v6656 = vmul.f32 %v5582, %v5582
    %v6657 = vmul.f32 %v5623, %v5623
    %v6658 = vmul.f32 %v5664, %v5664
    %v6659 = vmul.f32 %v5705, %v5705
    %v6660 = vmul.f32 %v5746, %v5746
    %v6661 = vmul.f32 %v5787, %v5787
    %v6662 = vmul.f32 %v5828, %v5828
    %v6663 = vmul.f32 %v5869, %v5869
    %v6664 = vmul.f32 %v5585, %v5585
    %v6665 = vmul.f32 %v5626, %v5626
    %v6666 = vmul.f32 %v5667, %v5667
    %v6667 = vmul.f32 %v5708, %v5708
    %v6668 = vmul.f32 %v5749, %v5749
    %v6669 = vmul.f32 %v5790, %v5790
    %v6670 = vmul.f32 %v5831, %v5831
    %v6671 = vmul.f32 %v5872, %v5872
    %v6672 = vmul.f32 %v5588, %v5588
    %v6673 = vmul.f32 %v5629, %v5629
    %v6674 = vmul.f32 %v5670, %v5670
    %v6675 = vmul.f32 %v5711, %v5711
    %v6676 = vmul.f32 %v5752, %v5752
    %v6677 = vmul.f32 %v5793, %v5793
    %v6678 = vmul.f32 %v5834, %v5834
    %v6679 = vmul.f32 %v5875, %v5875
    %v6680 = vmul.f32 %v5591, %v5591
    %v6681 = vmul.f32 %v5632, %v5632
    %v6682 = vmul.f32 %v5673, %v5673
    %v6683 = vmul.f32 %v5714, %v5714
    %v6684 = vmul.f32 %v5755, %v5755
    %v6685 = vmul.f32 %v5796, %v5796
    %v6686 = vmul.f32 %v5837, %v5837
    %v6687 = vmul.f32 %v5878, %v5878
    %v6688 = vsub.f32 %v6314, %v6624
    %v6689 = vsub.f32 %v6355, %v6625
    %v6690 = vsub.f32 %v6396, %v6626
    %v6691 = vsub.f32 %v6437, %v6627
    %v6692 = vsub.f32 %v6478, %v6628
    %v6693 = vsub.f32 %v6519, %v6629
    %v6694 = vsub.f32 %v6560, %v6630
    %v6695 = vsub.f32 %v6601, %v6631
    %v6696 = vsub.f32 %v6317, %v6632
    %v6697 = vsub.f32 %v6358, %v6633
    %v6698 = vsub.f32 %v6399, %v6634
    %v6699 = vsub.f32 %v6440, %v6635
    %v6700 = vsub.f32 %v6481, %v6636
    %v6701 = vsub.f32 %v6522, %v6637
    %v6702 = vsub.f32 %v6563, %v6638
    %v6703 = vsub.f32 %v6604, %v6639
    %v6704 = vsub.f32 %v6320, %v6640
    %v6705 = vsub.f32 %v6361, %v6641
    %v6706 = vsub.f32 %v6402, %v6642
    %v6707 = vsub.f32 %v6443, %v6643
    %v6708 = vsub.f32 %v6484, %v6644
    %v6709 = vsub.f32 %v6525, %v6645
    %v6710 = vsub.f32 %v6566, %v6646
    %v6711 = vsub.f32 %v6607, %v6647
    %v6712 = vsub.f32 %v6323, %v6648
    %v6713 = vsub.f32 %v6364, %v6649
    %v6714 = vsub.f32 %v6405, %v6650
    %v6715 = vsub.f32 %v6446, %v6651
    %v6716 = vsub.f32 %v6487, %v6652
    %v6717 = vsub.f32 %v6528, %v6653
    %v6718 = vsub.f32 %v6569, %v6654
    %v6719 = vsub.f32 %v6610, %v6655
    %v6720 = vsub.f32 %v6326, %v6656
    %v6721 = vsub.f32 %v6367, %v6657
    %v6722 = vsub.f32 %v6408, %v6658
    %v6723 = vsub.f32 %v6449, %v6659
    %v6724 = vsub.f32 %v6490, %v6660
    %v6725 = vsub.f32 %v6531, %v6661
    %v6726 = vsub.f32 %v6572, %v6662
    %v6727 = vsub.f32 %v6613, %v6663
    %v6728 = vsub.f32 %v6329, %v6664
    %v6729 = vsub.f32 %v6370, %v6665
    %v6730 = vsub.f32 %v6411, %v6666
    %v6731 = vsub.f32 %v6452, %v6667
    %v6732 = vsub.f32 %v6493, %v6668
    %v6733 = vsub.f32 %v6534, %v6669
    %v6734 = vsub.f32 %v6575, %v6670
    %v6735 = vsub.f32 %v6616, %v6671
    %v6736 = vsub.f32 %v6332, %v6672
    %v6737 = vsub.f32 %v6373, %v6673
    %v6738 = vsub.f32 %v6414, %v6674
    %v6739 = vsub.f32 %v6455, %v6675
    %v6740 = vsub.f32 %v6496, %v6676
    %v6741 = vsub.f32 %v6537, %v6677
    %v6742 = vsub.f32 %v6578, %v6678
    %v6743 = vsub.f32 %v6619, %v6679
    %v6744 = vsub.f32 %v6335, %v6680
    %v6745 = vsub.f32 %v6376, %v6681
    %v6746 = vsub.f32 %v6417, %v6682
    %v6747 = vsub.f32 %v6458, %v6683
    %v6748 = vsub.f32 %v6499, %v6684
    %v6749 = vsub.f32 %v6540, %v6685
    %v6750 = vsub.f32 %v6581, %v6686
    %v6751 = vsub.f32 %v6622, %v6687
    %v6752 = vmax.f32 %v6688, 0.0
    %v6753 = vmax.f32 %v6689, 0.0
    %v6754 = vmax.f32 %v6690, 0.0
    %v6755 = vmax.f32 %v6691, 0.0
    %v6756 = vmax.f32 %v6692, 0.0
    %v6757 = vmax.f32 %v6693, 0.0
    %v6758 = vmax.f32 %v6694, 0.0
    %v6759 = vmax.f32 %v6695, 0.0
    %v6760 = vmax.f32 %v6696, 0.0
    %v6761 = vmax.f32 %v6697, 0.0
    %v6762 = vmax.f32 %v6698, 0.0
    %v6763 = vmax.f32 %v6699, 0.0
    %v6764 = vmax.f32 %v6700, 0.0
    %v6765 = vmax.f32 %v6701, 0.0
    %v6766 = vmax.f32 %v6702, 0.0
    %v6767 = vmax.f32 %v6703, 0.0
    %v6768 = vmax.f32 %v6704, 0.0
    %v6769 = vmax.f32 %v6705, 0.0
    %v6770 = vmax.f32 %v6706, 0.0
    %v6771 = vmax.f32 %v6707, 0.0
    %v6772 = vmax.f32 %v6708, 0.0
    %v6773 = vmax.f32 %v6709, 0.0
    %v6774 = vmax.f32 %v6710, 0.0
    %v6775 = vmax.f32 %v6711, 0.0
    %v6776 = vmax.f32 %v6712, 0.0
    %v6777 = vmax.f32 %v6713, 0.0
    %v6778 = vmax.f32 %v6714, 0.0
    %v6779 = vmax.f32 %v6715, 0.0
    %v6780 = vmax.f32 %v6716, 0.0
    %v6781 = vmax.f32 %v6717, 0.0
    %v6782 = vmax.f32 %v6718, 0.0
    %v6783 = vmax.f32 %v6719, 0.0
    %v6784 = vmax.f32 %v6720, 0.0
    %v6785 = vmax.f32 %v6721, 0.0
    %v6786 = vmax.f32 %v6722, 0.0
    %v6787 = vmax.f32 %v6723, 0.0
    %v6788 = vmax.f32 %v6724, 0.0
    %v6789 = vmax.f32 %v6725, 0.0
    %v6790 = vmax.f32 %v6726, 0.0
    %v6791 = vmax.f32 %v6727, 0.0
    %v6792 = vmax.f32 %v6728, 0.0
    %v6793 = vmax.f32 %v6729, 0.0
    %v6794 = vmax.f32 %v6730, 0.0
    %v6795 = vmax.f32 %v6731, 0.0
    %v6796 = vmax.f32 %v6732, 0.0
    %v6797 = vmax.f32 %v6733, 0.0
    %v6798 = vmax.f32 %v6734, 0.0
    %v6799 = vmax.f32 %v6735, 0.0
    %v6800 = vmax.f32 %v6736, 0.0
    %v6801 = vmax.f32 %v6737, 0.0
    %v6802 = vmax.f32 %v6738, 0.0
    %v6803 = vmax.f32 %v6739, 0.0
    %v6804 = vmax.f32 %v6740, 0.0
    %v6805 = vmax.f32 %v6741, 0.0
    %v6806 = vmax.f32 %v6742, 0.0
    %v6807 = vmax.f32 %v6743, 0.0
    %v6808 = vmax.f32 %v6744, 0.0
    %v6809 = vmax.f32 %v6745, 0.0
    %v6810 = vmax.f32 %v6746, 0.0
    %v6811 = vmax.f32 %v6747, 0.0
    %v6812 = vmax.f32 %v6748, 0.0
    %v6813 = vmax.f32 %v6749, 0.0
    %v6814 = vmax.f32 %v6750, 0.0
    %v6815 = vmax.f32 %v6751, 0.0
    %v6816 = vsub.f32 %v4976, %v5570
    %v6817 = vsub.f32 %v4977, %v5611
    %v6818 = vsub.f32 %v4978, %v5652
    %v6819 = vsub.f32 %v4979, %v5693
    %v6820 = vsub.f32 %v4980, %v5734
    %v6821 = vsub.f32 %v4981, %v5775
    %v6822 = vsub.f32 %v4982, %v5816
    %v6823 = vsub.f32 %v4983, %v5857
    %v6824 = vsub.f32 %v4984, %v5573
    %v6825 = vsub.f32 %v4985, %v5614
    %v6826 = vsub.f32 %v4986, %v5655
    %v6827 = vsub.f32 %v4987, %v5696
    %v6828 = vsub.f32 %v4988, %v5737
    %v6829 = vsub.f32 %v4989, %v5778
    %v6830 = vsub.f32 %v4990, %v5819
    %v6831 = vsub.f32 %v4991, %v5860
    %v6832 = vsub.f32 %v4992, %v5576
    %v6833 = vsub.f32 %v4993, %v5617
    %v6834 = vsub.f32 %v4994, %v5658
    %v6835 = vsub.f32 %v4995, %v5699
    %v6836 = vsub.f32 %v4996, %v5740
    %v6837 = vsub.f32 %v4997, %v5781
    %v6838 = vsub.f32 %v4998, %v5822
    %v6839 = vsub.f32 %v4999, %v5863
    %v6840 = vsub.f32 %v5000, %v5579
    %v6841 = vsub.f32 %v5001, %v5620
    %v6842 = vsub.f32 %v5002, %v5661
    %v6843 = vsub.f32 %v5003, %v5702
    %v6844 = vsub.f32 %v5004, %v5743
    %v6845 = vsub.f32 %v5005, %v5784
    %v6846 = vsub.f32 %v5006, %v5825
    %v6847 = vsub.f32 %v5007, %v5866
    %v6848 = vsub.f32 %v5008, %v5582
    %v6849 = vsub.f32 %v5009, %v5623
    %v6850 = vsub.f32 %v5010, %v5664
    %v6851 = vsub.f32 %v5011, %v5705
    %v6852 = vsub.f32 %v5012, %v5746
    %v6853 = vsub.f32 %v5013, %v5787
    %v6854 = vsub.f32 %v5014, %v5828
    %v6855 = vsub.f32 %v5015, %v5869
    %v6856 = vsub.f32 %v5016, %v5585
    %v6857 = vsub.f32 %v5017, %v5626
    %v6858 = vsub.f32 %v5018, %v5667
    %v6859 = vsub.f32 %v5019, %v5708
    %v6860 = vsub.f32 %v5020, %v5749
    %v6861 = vsub.f32 %v5021, %v5790
    %v6862 = vsub.f32 %v5022, %v5831
    %v6863 = vsub.f32 %v5023, %v5872
    %v6864 = vsub.f32 %v5024, %v5588
    %v6865 = vsub.f32 %v5025, %v5629
    %v6866 = vsub.f32 %v5026, %v5670
    %v6867 = vsub.f32 %v5027, %v5711
    %v6868 = vsub.f32 %v5028, %v5752
    %v6869 = vsub.f32 %v5029, %v5793
    %v6870 = vsub.f32 %v5030, %v5834
    %v6871 = vsub.f32 %v5031, %v5875
    %v6872 = vsub.f32 %v5032, %v5591
    %v6873 = vsub.f32 %v5033, %v5632
    %v6874 = vsub.f32 %v5034, %v5673
    %v6875 = vsub.f32 %v5035, %v5714
    %v6876 = vsub.f32 %v5036, %v5755
    %v6877 = vsub.f32 %v5037, %v5796
    %v6878 = vsub.f32 %v5038, %v5837
    %v6879 = vsub.f32 %v5039, %v5878
    %v6880 = vadd.f32 %v6752, 1e-06
    %v6881 = vadd.f32 %v6753, 1e-06
    %v6882 = vadd.f32 %v6754, 1e-06
    %v6883 = vadd.f32 %v6755, 1e-06
    %v6884 = vadd.f32 %v6756, 1e-06
    %v6885 = vadd.f32 %v6757, 1e-06
    %v6886 = vadd.f32 %v6758, 1e-06
    %v6887 = vadd.f32 %v6759, 1e-06
    %v6888 = vadd.f32 %v6760, 1e-06
    %v6889 = vadd.f32 %v6761, 1e-06
    %v6890 = vadd.f32 %v6762, 1e-06
    %v6891 = vadd.f32 %v6763, 1e-06
    %v6892 = vadd.f32 %v6764, 1e-06
    %v6893 = vadd.f32 %v6765, 1e-06
    %v6894 = vadd.f32 %v6766, 1e-06
    %v6895 = vadd.f32 %v6767, 1e-06
    %v6896 = vadd.f32 %v6768, 1e-06
    %v6897 = vadd.f32 %v6769, 1e-06
    %v6898 = vadd.f32 %v6770, 1e-06
    %v6899 = vadd.f32 %v6771, 1e-06
    %v6900 = vadd.f32 %v6772, 1e-06
    %v6901 = vadd.f32 %v6773, 1e-06
    %v6902 = vadd.f32 %v6774, 1e-06
    %v6903 = vadd.f32 %v6775, 1e-06
    %v6904 = vadd.f32 %v6776, 1e-06
    %v6905 = vadd.f32 %v6777, 1e-06
    %v6906 = vadd.f32 %v6778, 1e-06
    %v6907 = vadd.f32 %v6779, 1e-06
    %v6908 = vadd.f32 %v6780, 1e-06
    %v6909 = vadd.f32 %v6781, 1e-06
    %v6910 = vadd.f32 %v6782, 1e-06
    %v6911 = vadd.f32 %v6783, 1e-06
    %v6912 = vadd.f32 %v6784, 1e-06
    %v6913 = vadd.f32 %v6785, 1e-06
    %v6914 = vadd.f32 %v6786, 1e-06
    %v6915 = vadd.f32 %v6787, 1e-06
    %v6916 = vadd.f32 %v6788, 1e-06
    %v6917 = vadd.f32 %v6789, 1e-06
    %v6918 = vadd.f32 %v6790, 1e-06
    %v6919 = vadd.f32 %v6791, 1e-06
    %v6920 = vadd.f32 %v6792, 1e-06
    %v6921 = vadd.f32 %v6793, 1e-06
    %v6922 = vadd.f32 %v6794, 1e-06
    %v6923 = vadd.f32 %v6795, 1e-06
    %v6924 = vadd.f32 %v6796, 1e-06
    %v6925 = vadd.f32 %v6797, 1e-06
    %v6926 = vadd.f32 %v6798, 1e-06
    %v6927 = vadd.f32 %v6799, 1e-06
    %v6928 = vadd.f32 %v6800, 1e-06
    %v6929 = vadd.f32 %v6801, 1e-06
    %v6930 = vadd.f32 %v6802, 1e-06
    %v6931 = vadd.f32 %v6803, 1e-06
    %v6932 = vadd.f32 %v6804, 1e-06
    %v6933 = vadd.f32 %v6805, 1e-06
    %v6934 = vadd.f32 %v6806, 1e-06
    %v6935 = vadd.f32 %v6807, 1e-06
    %v6936 = vadd.f32 %v6808, 1e-06
    %v6937 = vadd.f32 %v6809, 1e-06
    %v6938 = vadd.f32 %v6810, 1e-06
    %v6939 = vadd.f32 %v6811, 1e-06
    %v6940 = vadd.f32 %v6812, 1e-06
    %v6941 = vadd.f32 %v6813, 1e-06
    %v6942 = vadd.f32 %v6814, 1e-06
    %v6943 = vadd.f32 %v6815, 1e-06
    %v6944 = vrsqrt.pop %v6880
    %v6945 = vmul.f32 %v6944, %v6880
    %v6946 = vmul.f32 %v6945, %v6944
    %v6947 = vmul.f32 0.5, %v6946
    %v6948 = vsub.f32 1.5, %v6947
    %v6949 = vmul.f32 %v6944, %v6948
    %vm6950 = vweird.f32 %v6880
    %vm6951 = vweird.f32 %v6944
    %vm6952 = vmor %vm6950, %vm6951
    %v6953 = vsel %vm6952, %v6944, %v6949
    %v6954 = vrsqrt.pop %v6881
    %v6955 = vmul.f32 %v6954, %v6881
    %v6956 = vmul.f32 %v6955, %v6954
    %v6957 = vmul.f32 0.5, %v6956
    %v6958 = vsub.f32 1.5, %v6957
    %v6959 = vmul.f32 %v6954, %v6958
    %vm6960 = vweird.f32 %v6881
    %vm6961 = vweird.f32 %v6954
    %vm6962 = vmor %vm6960, %vm6961
    %v6963 = vsel %vm6962, %v6954, %v6959
    %v6964 = vrsqrt.pop %v6882
    %v6965 = vmul.f32 %v6964, %v6882
    %v6966 = vmul.f32 %v6965, %v6964
    %v6967 = vmul.f32 0.5, %v6966
    %v6968 = vsub.f32 1.5, %v6967
    %v6969 = vmul.f32 %v6964, %v6968
    %vm6970 = vweird.f32 %v6882
    %vm6971 = vweird.f32 %v6964
    %vm6972 = vmor %vm6970, %vm6971
    %v6973 = vsel %vm6972, %v6964, %v6969
    %v6974 = vrsqrt.pop %v6883
    %v6975 = vmul.f32 %v6974, %v6883
    %v6976 = vmul.f32 %v6975, %v6974
    %v6977 = vmul.f32 0.5, %v6976
    %v6978 = vsub.f32 1.5, %v6977
    %v6979 = vmul.f32 %v6974, %v6978
    %vm6980 = vweird.f32 %v6883
    %vm6981 = vweird.f32 %v6974
    %vm6982 = vmor %vm6980, %vm6981
    %v6983 = vsel %vm6982, %v6974, %v6979
    %v6984 = vrsqrt.pop %v6884
    %v6985 = vmul.f32 %v6984, %v6884
    %v6986 = vmul.f32 %v6985, %v6984
    %v6987 = vmul.f32 0.5, %v6986
    %v6988 = vsub.f32 1.5, %v6987
    %v6989 = vmul.f32 %v6984, %v6988
    %vm6990 = vweird.f32 %v6884
    %vm6991 = vweird.f32 %v6984
    %vm6992 = vmor %vm6990, %vm6991
    %v6993 = vsel %vm6992, %v6984, %v6989
    %v6994 = vrsqrt.pop %v6885
    %v6995 = vmul.f32 %v6994, %v6885
    %v6996 = vmul.f32 %v6995, %v6994
    %v6997 = vmul.f32 0.5, %v6996
    %v6998 = vsub.f32 1.5, %v6997
    %v6999 = vmul.f32 %v6994, %v6998
    %vm7000 = vweird.f32 %v6885
    %vm7001 = vweird.f32 %v6994
    %vm7002 = vmor %vm7000, %vm7001
    %v7003 = vsel %vm7002, %v6994, %v6999
    %v7004 = vrsqrt.pop %v6886
    %v7005 = vmul.f32 %v7004, %v6886
    %v7006 = vmul.f32 %v7005, %v7004
    %v7007 = vmul.f32 0.5, %v7006
    %v7008 = vsub.f32 1.5, %v7007
    %v7009 = vmul.f32 %v7004, %v7008
    %vm7010 = vweird.f32 %v6886
    %vm7011 = vweird.f32 %v7004
    %vm7012 = vmor %vm7010, %vm7011
    %v7013 = vsel %vm7012, %v7004, %v7009
    %v7014 = vrsqrt.pop %v6887
    %v7015 = vmul.f32 %v7014, %v6887
    %v7016 = vmul.f32 %v7015, %v7014
    %v7017 = vmul.f32 0.5, %v7016
    %v7018 = vsub.f32 1.5, %v7017
    %v7019 = vmul.f32 %v7014, %v7018
    %vm7020 = vweird.f32 %v6887
    %vm7021 = vweird.f32 %v7014
    %vm7022 = vmor %vm7020, %vm7021
    %v7023 = vsel %vm7022, %v7014, %v7019
    %v7024 = vrsqrt.pop %v6888
    %v7025 = vmul.f32 %v7024, %v6888
    %v7026 = vmul.f32 %v7025, %v7024
    %v7027 = vmul.f32 0.5, %v7026
    %v7028 = vsub.f32 1.5, %v7027
    %v7029 = vmul.f32 %v7024, %v7028
    %vm7030 = vweird.f32 %v6888
    %vm7031 = vweird.f32 %v7024
    %vm7032 = vmor %vm7030, %vm7031
    %v7033 = vsel %vm7032, %v7024, %v7029
    %v7034 = vrsqrt.pop %v6889
    %v7035 = vmul.f32 %v7034, %v6889
    %v7036 = vmul.f32 %v7035, %v7034
    %v7037 = vmul.f32 0.5, %v7036
    %v7038 = vsub.f32 1.5, %v7037
    %v7039 = vmul.f32 %v7034, %v7038
    %vm7040 = vweird.f32 %v6889
    %vm7041 = vweird.f32 %v7034
    %vm7042 = vmor %vm7040, %vm7041
    %v7043 = vsel %vm7042, %v7034, %v7039
    %v7044 = vrsqrt.pop %v6890
    %v7045 = vmul.f32 %v7044, %v6890
    %v7046 = vmul.f32 %v7045, %v7044
    %v7047 = vmul.f32 0.5, %v7046
    %v7048 = vsub.f32 1.5, %v7047
    %v7049 = vmul.f32 %v7044, %v7048
    %vm7050 = vweird.f32 %v6890
    %vm7051 = vweird.f32 %v7044
    %vm7052 = vmor %vm7050, %vm7051
    %v7053 = vsel %vm7052, %v7044, %v7049
    %v7054 = vrsqrt.pop %v6891
    %v7055 = vmul.f32 %v7054, %v6891
    %v7056 = vmul.f32 %v7055, %v7054
    %v7057 = vmul.f32 0.5, %v7056
    %v7058 = vsub.f32 1.5, %v7057
    %v7059 = vmul.f32 %v7054, %v7058
    %vm7060 = vweird.f32 %v6891
    %vm7061 = vweird.f32 %v7054
    %vm7062 = vmor %vm7060, %vm7061
    %v7063 = vsel %vm7062, %v7054, %v7059
    %v7064 = vrsqrt.pop %v6892
    %v7065 = vmul.f32 %v7064, %v6892
    %v7066 = vmul.f32 %v7065, %v7064
    %v7067 = vmul.f32 0.5, %v7066
    %v7068 = vsub.f32 1.5, %v7067
    %v7069 = vmul.f32 %v7064, %v7068
    %vm7070 = vweird.f32 %v6892
    %vm7071 = vweird.f32 %v7064
    %vm7072 = vmor %vm7070, %vm7071
    %v7073 = vsel %vm7072, %v7064, %v7069
    %v7074 = vrsqrt.pop %v6893
    %v7075 = vmul.f32 %v7074, %v6893
    %v7076 = vmul.f32 %v7075, %v7074
    %v7077 = vmul.f32 0.5, %v7076
    %v7078 = vsub.f32 1.5, %v7077
    %v7079 = vmul.f32 %v7074, %v7078
    %vm7080 = vweird.f32 %v6893
    %vm7081 = vweird.f32 %v7074
    %vm7082 = vmor %vm7080, %vm7081
    %v7083 = vsel %vm7082, %v7074, %v7079
    %v7084 = vrsqrt.pop %v6894
    %v7085 = vmul.f32 %v7084, %v6894
    %v7086 = vmul.f32 %v7085, %v7084
    %v7087 = vmul.f32 0.5, %v7086
    %v7088 = vsub.f32 1.5, %v7087
    %v7089 = vmul.f32 %v7084, %v7088
    %vm7090 = vweird.f32 %v6894
    %vm7091 = vweird.f32 %v7084
    %vm7092 = vmor %vm7090, %vm7091
    %v7093 = vsel %vm7092, %v7084, %v7089
    %v7094 = vrsqrt.pop %v6895
    %v7095 = vmul.f32 %v7094, %v6895
    %v7096 = vmul.f32 %v7095, %v7094
    %v7097 = vmul.f32 0.5, %v7096
    %v7098 = vsub.f32 1.5, %v7097
    %v7099 = vmul.f32 %v7094, %v7098
    %vm7100 = vweird.f32 %v6895
    %vm7101 = vweird.f32 %v7094
    %vm7102 = vmor %vm7100, %vm7101
    %v7103 = vsel %vm7102, %v7094, %v7099
    %v7104 = vrsqrt.pop %v6896
    %v7105 = vmul.f32 %v7104, %v6896
    %v7106 = vmul.f32 %v7105, %v7104
    %v7107 = vmul.f32 0.5, %v7106
    %v7108 = vsub.f32 1.5, %v7107
    %v7109 = vmul.f32 %v7104, %v7108
    %vm7110 = vweird.f32 %v6896
    %vm7111 = vweird.f32 %v7104
    %vm7112 = vmor %vm7110, %vm7111
    %v7113 = vsel %vm7112, %v7104, %v7109
    %v7114 = vrsqrt.pop %v6897
    %v7115 = vmul.f32 %v7114, %v6897
    %v7116 = vmul.f32 %v7115, %v7114
    %v7117 = vmul.f32 0.5, %v7116
    %v7118 = vsub.f32 1.5, %v7117
    %v7119 = vmul.f32 %v7114, %v7118
    %vm7120 = vweird.f32 %v6897
    %vm7121 = vweird.f32 %v7114
    %vm7122 = vmor %vm7120, %vm7121
    %v7123 = vsel %vm7122, %v7114, %v7119
    %v7124 = vrsqrt.pop %v6898
    %v7125 = vmul.f32 %v7124, %v6898
    %v7126 = vmul.f32 %v7125, %v7124
    %v7127 = vmul.f32 0.5, %v7126
    %v7128 = vsub.f32 1.5, %v7127
    %v7129 = vmul.f32 %v7124, %v7128
    %vm7130 = vweird.f32 %v6898
    %vm7131 = vweird.f32 %v7124
    %vm7132 = vmor %vm7130, %vm7131
    %v7133 = vsel %vm7132, %v7124, %v7129
    %v7134 = vrsqrt.pop %v6899
    %v7135 = vmul.f32 %v7134, %v6899
    %v7136 = vmul.f32 %v7135, %v7134
    %v7137 = vmul.f32 0.5, %v7136
    %v7138 = vsub.f32 1.5, %v7137
    %v7139 = vmul.f32 %v7134, %v7138
    %vm7140 = vweird.f32 %v6899
    %vm7141 = vweird.f32 %v7134
    %vm7142 = vmor %vm7140, %vm7141
    %v7143 = vsel %vm7142, %v7134, %v7139
    %v7144 = vrsqrt.pop %v6900
    %v7145 = vmul.f32 %v7144, %v6900
    %v7146 = vmul.f32 %v7145, %v7144
    %v7147 = vmul.f32 0.5, %v7146
    %v7148 = vsub.f32 1.5, %v7147
    %v7149 = vmul.f32 %v7144, %v7148
    %vm7150 = vweird.f32 %v6900
    %vm7151 = vweird.f32 %v7144
    %vm7152 = vmor %vm7150, %vm7151
    %v7153 = vsel %vm7152, %v7144, %v7149
    %v7154 = vrsqrt.pop %v6901
    %v7155 = vmul.f32 %v7154, %v6901
    %v7156 = vmul.f32 %v7155, %v7154
    %v7157 = vmul.f32 0.5, %v7156
    %v7158 = vsub.f32 1.5, %v7157
    %v7159 = vmul.f32 %v7154, %v7158
    %vm7160 = vweird.f32 %v6901
    %vm7161 = vweird.f32 %v7154
    %vm7162 = vmor %vm7160, %vm7161
    %v7163 = vsel %vm7162, %v7154, %v7159
    %v7164 = vrsqrt.pop %v6902
    %v7165 = vmul.f32 %v7164, %v6902
    %v7166 = vmul.f32 %v7165, %v7164
    %v7167 = vmul.f32 0.5, %v7166
    %v7168 = vsub.f32 1.5, %v7167
    %v7169 = vmul.f32 %v7164, %v7168
    %vm7170 = vweird.f32 %v6902
    %vm7171 = vweird.f32 %v7164
    %vm7172 = vmor %vm7170, %vm7171
    %v7173 = vsel %vm7172, %v7164, %v7169
    %v7174 = vrsqrt.pop %v6903
    %v7175 = vmul.f32 %v7174, %v6903
    %v7176 = vmul.f32 %v7175, %v7174
    %v7177 = vmul.f32 0.5, %v7176
    %v7178 = vsub.f32 1.5, %v7177
    %v7179 = vmul.f32 %v7174, %v7178
    %vm7180 = vweird.f32 %v6903
    %vm7181 = vweird.f32 %v7174
    %vm7182 = vmor %vm7180, %vm7181
    %v7183 = vsel %vm7182, %v7174, %v7179
    %v7184 = vrsqrt.pop %v6904
    %v7185 = vmul.f32 %v7184, %v6904
    %v7186 = vmul.f32 %v7185, %v7184
    %v7187 = vmul.f32 0.5, %v7186
    %v7188 = vsub.f32 1.5, %v7187
    %v7189 = vmul.f32 %v7184, %v7188
    %vm7190 = vweird.f32 %v6904
    %vm7191 = vweird.f32 %v7184
    %vm7192 = vmor %vm7190, %vm7191
    %v7193 = vsel %vm7192, %v7184, %v7189
    %v7194 = vrsqrt.pop %v6905
    %v7195 = vmul.f32 %v7194, %v6905
    %v7196 = vmul.f32 %v7195, %v7194
    %v7197 = vmul.f32 0.5, %v7196
    %v7198 = vsub.f32 1.5, %v7197
    %v7199 = vmul.f32 %v7194, %v7198
    %vm7200 = vweird.f32 %v6905
    %vm7201 = vweird.f32 %v7194
    %vm7202 = vmor %vm7200, %vm7201
    %v7203 = vsel %vm7202, %v7194, %v7199
    %v7204 = vrsqrt.pop %v6906
    %v7205 = vmul.f32 %v7204, %v6906
    %v7206 = vmul.f32 %v7205, %v7204
    %v7207 = vmul.f32 0.5, %v7206
    %v7208 = vsub.f32 1.5, %v7207
    %v7209 = vmul.f32 %v7204, %v7208
    %vm7210 = vweird.f32 %v6906
    %vm7211 = vweird.f32 %v7204
    %vm7212 = vmor %vm7210, %vm7211
    %v7213 = vsel %vm7212, %v7204, %v7209
    %v7214 = vrsqrt.pop %v6907
    %v7215 = vmul.f32 %v7214, %v6907
    %v7216 = vmul.f32 %v7215, %v7214
    %v7217 = vmul.f32 0.5, %v7216
    %v7218 = vsub.f32 1.5, %v7217
    %v7219 = vmul.f32 %v7214, %v7218
    %vm7220 = vweird.f32 %v6907
    %vm7221 = vweird.f32 %v7214
    %vm7222 = vmor %vm7220, %vm7221
    %v7223 = vsel %vm7222, %v7214, %v7219
    %v7224 = vrsqrt.pop %v6908
    %v7225 = vmul.f32 %v7224, %v6908
    %v7226 = vmul.f32 %v7225, %v7224
    %v7227 = vmul.f32 0.5, %v7226
    %v7228 = vsub.f32 1.5, %v7227
    %v7229 = vmul.f32 %v7224, %v7228
    %vm7230 = vweird.f32 %v6908
    %vm7231 = vweird.f32 %v7224
    %vm7232 = vmor %vm7230, %vm7231
    %v7233 = vsel %vm7232, %v7224, %v7229
    %v7234 = vrsqrt.pop %v6909
    %v7235 = vmul.f32 %v7234, %v6909
    %v7236 = vmul.f32 %v7235, %v7234
    %v7237 = vmul.f32 0.5, %v7236
    %v7238 = vsub.f32 1.5, %v7237
    %v7239 = vmul.f32 %v7234, %v7238
    %vm7240 = vweird.f32 %v6909
    %vm7241 = vweird.f32 %v7234
    %vm7242 = vmor %vm7240, %vm7241
    %v7243 = vsel %vm7242, %v7234, %v7239
    %v7244 = vrsqrt.pop %v6910
    %v7245 = vmul.f32 %v7244, %v6910
    %v7246 = vmul.f32 %v7245, %v7244
    %v7247 = vmul.f32 0.5, %v7246
    %v7248 = vsub.f32 1.5, %v7247
    %v7249 = vmul.f32 %v7244, %v7248
    %vm7250 = vweird.f32 %v6910
    %vm7251 = vweird.f32 %v7244
    %vm7252 = vmor %vm7250, %vm7251
    %v7253 = vsel %vm7252, %v7244, %v7249
    %v7254 = vrsqrt.pop %v6911
    %v7255 = vmul.f32 %v7254, %v6911
    %v7256 = vmul.f32 %v7255, %v7254
    %v7257 = vmul.f32 0.5, %v7256
    %v7258 = vsub.f32 1.5, %v7257
    %v7259 = vmul.f32 %v7254, %v7258
    %vm7260 = vweird.f32 %v6911
    %vm7261 = vweird.f32 %v7254
    %vm7262 = vmor %vm7260, %vm7261
    %v7263 = vsel %vm7262, %v7254, %v7259
    %v7264 = vrsqrt.pop %v6912
    %v7265 = vmul.f32 %v7264, %v6912
    %v7266 = vmul.f32 %v7265, %v7264
    %v7267 = vmul.f32 0.5, %v7266
    %v7268 = vsub.f32 1.5, %v7267
    %v7269 = vmul.f32 %v7264, %v7268
    %vm7270 = vweird.f32 %v6912
    %vm7271 = vweird.f32 %v7264
    %vm7272 = vmor %vm7270, %vm7271
    %v7273 = vsel %vm7272, %v7264, %v7269
    %v7274 = vrsqrt.pop %v6913
    %v7275 = vmul.f32 %v7274, %v6913
    %v7276 = vmul.f32 %v7275, %v7274
    %v7277 = vmul.f32 0.5, %v7276
    %v7278 = vsub.f32 1.5, %v7277
    %v7279 = vmul.f32 %v7274, %v7278
    %vm7280 = vweird.f32 %v6913
    %vm7281 = vweird.f32 %v7274
    %vm7282 = vmor %vm7280, %vm7281
    %v7283 = vsel %vm7282, %v7274, %v7279
    %v7284 = vrsqrt.pop %v6914
    %v7285 = vmul.f32 %v7284, %v6914
    %v7286 = vmul.f32 %v7285, %v7284
    %v7287 = vmul.f32 0.5, %v7286
    %v7288 = vsub.f32 1.5, %v7287
    %v7289 = vmul.f32 %v7284, %v7288
    %vm7290 = vweird.f32 %v6914
    %vm7291 = vweird.f32 %v7284
    %vm7292 = vmor %vm7290, %vm7291
    %v7293 = vsel %vm7292, %v7284, %v7289
    %v7294 = vrsqrt.pop %v6915
    %v7295 = vmul.f32 %v7294, %v6915
    %v7296 = vmul.f32 %v7295, %v7294
    %v7297 = vmul.f32 0.5, %v7296
    %v7298 = vsub.f32 1.5, %v7297
    %v7299 = vmul.f32 %v7294, %v7298
    %vm7300 = vweird.f32 %v6915
    %vm7301 = vweird.f32 %v7294
    %vm7302 = vmor %vm7300, %vm7301
    %v7303 = vsel %vm7302, %v7294, %v7299
    %v7304 = vrsqrt.pop %v6916
    %v7305 = vmul.f32 %v7304, %v6916
    %v7306 = vmul.f32 %v7305, %v7304
    %v7307 = vmul.f32 0.5, %v7306
    %v7308 = vsub.f32 1.5, %v7307
    %v7309 = vmul.f32 %v7304, %v7308
    %vm7310 = vweird.f32 %v6916
    %vm7311 = vweird.f32 %v7304
    %vm7312 = vmor %vm7310, %vm7311
    %v7313 = vsel %vm7312, %v7304, %v7309
    %v7314 = vrsqrt.pop %v6917
    %v7315 = vmul.f32 %v7314, %v6917
    %v7316 = vmul.f32 %v7315, %v7314
    %v7317 = vmul.f32 0.5, %v7316
    %v7318 = vsub.f32 1.5, %v7317
    %v7319 = vmul.f32 %v7314, %v7318
    %vm7320 = vweird.f32 %v6917
    %vm7321 = vweird.f32 %v7314
    %vm7322 = vmor %vm7320, %vm7321
    %v7323 = vsel %vm7322, %v7314, %v7319
    %v7324 = vrsqrt.pop %v6918
    %v7325 = vmul.f32 %v7324, %v6918
    %v7326 = vmul.f32 %v7325, %v7324
    %v7327 = vmul.f32 0.5, %v7326
    %v7328 = vsub.f32 1.5, %v7327
    %v7329 = vmul.f32 %v7324, %v7328
    %vm7330 = vweird.f32 %v6918
    %vm7331 = vweird.f32 %v7324
    %vm7332 = vmor %vm7330, %vm7331
    %v7333 = vsel %vm7332, %v7324, %v7329
    %v7334 = vrsqrt.pop %v6919
    %v7335 = vmul.f32 %v7334, %v6919
    %v7336 = vmul.f32 %v7335, %v7334
    %v7337 = vmul.f32 0.5, %v7336
    %v7338 = vsub.f32 1.5, %v7337
    %v7339 = vmul.f32 %v7334, %v7338
    %vm7340 = vweird.f32 %v6919
    %vm7341 = vweird.f32 %v7334
    %vm7342 = vmor %vm7340, %vm7341
    %v7343 = vsel %vm7342, %v7334, %v7339
    %v7344 = vrsqrt.pop %v6920
    %v7345 = vmul.f32 %v7344, %v6920
    %v7346 = vmul.f32 %v7345, %v7344
    %v7347 = vmul.f32 0.5, %v7346
    %v7348 = vsub.f32 1.5, %v7347
    %v7349 = vmul.f32 %v7344, %v7348
    %vm7350 = vweird.f32 %v6920
    %vm7351 = vweird.f32 %v7344
    %vm7352 = vmor %vm7350, %vm7351
    %v7353 = vsel %vm7352, %v7344, %v7349
    %v7354 = vrsqrt.pop %v6921
    %v7355 = vmul.f32 %v7354, %v6921
    %v7356 = vmul.f32 %v7355, %v7354
    %v7357 = vmul.f32 0.5, %v7356
    %v7358 = vsub.f32 1.5, %v7357
    %v7359 = vmul.f32 %v7354, %v7358
    %vm7360 = vweird.f32 %v6921
    %vm7361 = vweird.f32 %v7354
    %vm7362 = vmor %vm7360, %vm7361
    %v7363 = vsel %vm7362, %v7354, %v7359
    %v7364 = vrsqrt.pop %v6922
    %v7365 = vmul.f32 %v7364, %v6922
    %v7366 = vmul.f32 %v7365, %v7364
    %v7367 = vmul.f32 0.5, %v7366
    %v7368 = vsub.f32 1.5, %v7367
    %v7369 = vmul.f32 %v7364, %v7368
    %vm7370 = vweird.f32 %v6922
    %vm7371 = vweird.f32 %v7364
    %vm7372 = vmor %vm7370, %vm7371
    %v7373 = vsel %vm7372, %v7364, %v7369
    %v7374 = vrsqrt.pop %v6923
    %v7375 = vmul.f32 %v7374, %v6923
    %v7376 = vmul.f32 %v7375, %v7374
    %v7377 = vmul.f32 0.5, %v7376
    %v7378 = vsub.f32 1.5, %v7377
    %v7379 = vmul.f32 %v7374, %v7378
    %vm7380 = vweird.f32 %v6923
    %vm7381 = vweird.f32 %v7374
    %vm7382 = vmor %vm7380, %vm7381
    %v7383 = vsel %vm7382, %v7374, %v7379
    %v7384 = vrsqrt.pop %v6924
    %v7385 = vmul.f32 %v7384, %v6924
    %v7386 = vmul.f32 %v7385, %v7384
    %v7387 = vmul.f32 0.5, %v7386
    %v7388 = vsub.f32 1.5, %v7387
    %v7389 = vmul.f32 %v7384, %v7388
    %vm7390 = vweird.f32 %v6924
    %vm7391 = vweird.f32 %v7384
    %vm7392 = vmor %vm7390, %vm7391
    %v7393 = vsel %vm7392, %v7384, %v7389
    %v7394 = vrsqrt.pop %v6925
    %v7395 = vmul.f32 %v7394, %v6925
    %v7396 = vmul.f32 %v7395, %v7394
    %v7397 = vmul.f32 0.5, %v7396
    %v7398 = vsub.f32 1.5, %v7397
    %v7399 = vmul.f32 %v7394, %v7398
    %vm7400 = vweird.f32 %v6925
    %vm7401 = vweird.f32 %v7394
    %vm7402 = vmor %vm7400, %vm7401
    %v7403 = vsel %vm7402, %v7394, %v7399
    %v7404 = vrsqrt.pop %v6926
    %v7405 = vmul.f32 %v7404, %v6926
    %v7406 = vmul.f32 %v7405, %v7404
    %v7407 = vmul.f32 0.5, %v7406
    %v7408 = vsub.f32 1.5, %v7407
    %v7409 = vmul.f32 %v7404, %v7408
    %vm7410 = vweird.f32 %v6926
    %vm7411 = vweird.f32 %v7404
    %vm7412 = vmor %vm7410, %vm7411
    %v7413 = vsel %vm7412, %v7404, %v7409
    %v7414 = vrsqrt.pop %v6927
    %v7415 = vmul.f32 %v7414, %v6927
    %v7416 = vmul.f32 %v7415, %v7414
    %v7417 = vmul.f32 0.5, %v7416
    %v7418 = vsub.f32 1.5, %v7417
    %v7419 = vmul.f32 %v7414, %v7418
    %vm7420 = vweird.f32 %v6927
    %vm7421 = vweird.f32 %v7414
    %vm7422 = vmor %vm7420, %vm7421
    %v7423 = vsel %vm7422, %v7414, %v7419
    %v7424 = vrsqrt.pop %v6928
    %v7425 = vmul.f32 %v7424, %v6928
    %v7426 = vmul.f32 %v7425, %v7424
    %v7427 = vmul.f32 0.5, %v7426
    %v7428 = vsub.f32 1.5, %v7427
    %v7429 = vmul.f32 %v7424, %v7428
    %vm7430 = vweird.f32 %v6928
    %vm7431 = vweird.f32 %v7424
    %vm7432 = vmor %vm7430, %vm7431
    %v7433 = vsel %vm7432, %v7424, %v7429
    %v7434 = vrsqrt.pop %v6929
    %v7435 = vmul.f32 %v7434, %v6929
    %v7436 = vmul.f32 %v7435, %v7434
    %v7437 = vmul.f32 0.5, %v7436
    %v7438 = vsub.f32 1.5, %v7437
    %v7439 = vmul.f32 %v7434, %v7438
    %vm7440 = vweird.f32 %v6929
    %vm7441 = vweird.f32 %v7434
    %vm7442 = vmor %vm7440, %vm7441
    %v7443 = vsel %vm7442, %v7434, %v7439
    %v7444 = vrsqrt.pop %v6930
    %v7445 = vmul.f32 %v7444, %v6930
    %v7446 = vmul.f32 %v7445, %v7444
    %v7447 = vmul.f32 0.5, %v7446
    %v7448 = vsub.f32 1.5, %v7447
    %v7449 = vmul.f32 %v7444, %v7448
    %vm7450 = vweird.f32 %v6930
    %vm7451 = vweird.f32 %v7444
    %vm7452 = vmor %vm7450, %vm7451
    %v7453 = vsel %vm7452, %v7444, %v7449
    %v7454 = vrsqrt.pop %v6931
    %v7455 = vmul.f32 %v7454, %v6931
    %v7456 = vmul.f32 %v7455, %v7454
    %v7457 = vmul.f32 0.5, %v7456
    %v7458 = vsub.f32 1.5, %v7457
    %v7459 = vmul.f32 %v7454, %v7458
    %vm7460 = vweird.f32 %v6931
    %vm7461 = vweird.f32 %v7454
    %vm7462 = vmor %vm7460, %vm7461
    %v7463 = vsel %vm7462, %v7454, %v7459
    %v7464 = vrsqrt.pop %v6932
    %v7465 = vmul.f32 %v7464, %v6932
    %v7466 = vmul.f32 %v7465, %v7464
    %v7467 = vmul.f32 0.5, %v7466
    %v7468 = vsub.f32 1.5, %v7467
    %v7469 = vmul.f32 %v7464, %v7468
    %vm7470 = vweird.f32 %v6932
    %vm7471 = vweird.f32 %v7464
    %vm7472 = vmor %vm7470, %vm7471
    %v7473 = vsel %vm7472, %v7464, %v7469
    %v7474 = vrsqrt.pop %v6933
    %v7475 = vmul.f32 %v7474, %v6933
    %v7476 = vmul.f32 %v7475, %v7474
    %v7477 = vmul.f32 0.5, %v7476
    %v7478 = vsub.f32 1.5, %v7477
    %v7479 = vmul.f32 %v7474, %v7478
    %vm7480 = vweird.f32 %v6933
    %vm7481 = vweird.f32 %v7474
    %vm7482 = vmor %vm7480, %vm7481
    %v7483 = vsel %vm7482, %v7474, %v7479
    %v7484 = vrsqrt.pop %v6934
    %v7485 = vmul.f32 %v7484, %v6934
    %v7486 = vmul.f32 %v7485, %v7484
    %v7487 = vmul.f32 0.5, %v7486
    %v7488 = vsub.f32 1.5, %v7487
    %v7489 = vmul.f32 %v7484, %v7488
    %vm7490 = vweird.f32 %v6934
    %vm7491 = vweird.f32 %v7484
    %vm7492 = vmor %vm7490, %vm7491
    %v7493 = vsel %vm7492, %v7484, %v7489
    %v7494 = vrsqrt.pop %v6935
    %v7495 = vmul.f32 %v7494, %v6935
    %v7496 = vmul.f32 %v7495, %v7494
    %v7497 = vmul.f32 0.5, %v7496
    %v7498 = vsub.f32 1.5, %v7497
    %v7499 = vmul.f32 %v7494, %v7498
    %vm7500 = vweird.f32 %v6935
    %vm7501 = vweird.f32 %v7494
    %vm7502 = vmor %vm7500, %vm7501
    %v7503 = vsel %vm7502, %v7494, %v7499
    %v7504 = vrsqrt.pop %v6936
    %v7505 = vmul.f32 %v7504, %v6936
    %v7506 = vmul.f32 %v7505, %v7504
    %v7507 = vmul.f32 0.5, %v7506
    %v7508 = vsub.f32 1.5, %v7507
    %v7509 = vmul.f32 %v7504, %v7508
    %vm7510 = vweird.f32 %v6936
    %vm7511 = vweird.f32 %v7504
    %vm7512 = vmor %vm7510, %vm7511
    %v7513 = vsel %vm7512, %v7504, %v7509
    %v7514 = vrsqrt.pop %v6937
    %v7515 = vmul.f32 %v7514, %v6937
    %v7516 = vmul.f32 %v7515, %v7514
    %v7517 = vmul.f32 0.5, %v7516
    %v7518 = vsub.f32 1.5, %v7517
    %v7519 = vmul.f32 %v7514, %v7518
    %vm7520 = vweird.f32 %v6937
    %vm7521 = vweird.f32 %v7514
    %vm7522 = vmor %vm7520, %vm7521
    %v7523 = vsel %vm7522, %v7514, %v7519
    %v7524 = vrsqrt.pop %v6938
    %v7525 = vmul.f32 %v7524, %v6938
    %v7526 = vmul.f32 %v7525, %v7524
    %v7527 = vmul.f32 0.5, %v7526
    %v7528 = vsub.f32 1.5, %v7527
    %v7529 = vmul.f32 %v7524, %v7528
    %vm7530 = vweird.f32 %v6938
    %vm7531 = vweird.f32 %v7524
    %vm7532 = vmor %vm7530, %vm7531
    %v7533 = vsel %vm7532, %v7524, %v7529
    %v7534 = vrsqrt.pop %v6939
    %v7535 = vmul.f32 %v7534, %v6939
    %v7536 = vmul.f32 %v7535, %v7534
    %v7537 = vmul.f32 0.5, %v7536
    %v7538 = vsub.f32 1.5, %v7537
    %v7539 = vmul.f32 %v7534, %v7538
    %vm7540 = vweird.f32 %v6939
    %vm7541 = vweird.f32 %v7534
    %vm7542 = vmor %vm7540, %vm7541
    %v7543 = vsel %vm7542, %v7534, %v7539
    %v7544 = vrsqrt.pop %v6940
    %v7545 = vmul.f32 %v7544, %v6940
    %v7546 = vmul.f32 %v7545, %v7544
    %v7547 = vmul.f32 0.5, %v7546
    %v7548 = vsub.f32 1.5, %v7547
    %v7549 = vmul.f32 %v7544, %v7548
    %vm7550 = vweird.f32 %v6940
    %vm7551 = vweird.f32 %v7544
    %vm7552 = vmor %vm7550, %vm7551
    %v7553 = vsel %vm7552, %v7544, %v7549
    %v7554 = vrsqrt.pop %v6941
    %v7555 = vmul.f32 %v7554, %v6941
    %v7556 = vmul.f32 %v7555, %v7554
    %v7557 = vmul.f32 0.5, %v7556
    %v7558 = vsub.f32 1.5, %v7557
    %v7559 = vmul.f32 %v7554, %v7558
    %vm7560 = vweird.f32 %v6941
    %vm7561 = vweird.f32 %v7554
    %vm7562 = vmor %vm7560, %vm7561
    %v7563 = vsel %vm7562, %v7554, %v7559
    %v7564 = vrsqrt.pop %v6942
    %v7565 = vmul.f32 %v7564, %v6942
    %v7566 = vmul.f32 %v7565, %v7564
    %v7567 = vmul.f32 0.5, %v7566
    %v7568 = vsub.f32 1.5, %v7567
    %v7569 = vmul.f32 %v7564, %v7568
    %vm7570 = vweird.f32 %v6942
    %vm7571 = vweird.f32 %v7564
    %vm7572 = vmor %vm7570, %vm7571
    %v7573 = vsel %vm7572, %v7564, %v7569
    %v7574 = vrsqrt.pop %v6943
    %v7575 = vmul.f32 %v7574, %v6943
    %v7576 = vmul.f32 %v7575, %v7574
    %v7577 = vmul.f32 0.5, %v7576
    %v7578 = vsub.f32 1.5, %v7577
    %v7579 = vmul.f32 %v7574, %v7578
    %vm7580 = vweird.f32 %v6943
    %vm7581 = vweird.f32 %v7574
    %vm7582 = vmor %vm7580, %vm7581
    %v7583 = vsel %vm7582, %v7574, %v7579
    %v7584 = vmul.f32 %v6816, %v6953
    %v7585 = vmul.f32 %v6817, %v6963
    %v7586 = vmul.f32 %v6818, %v6973
    %v7587 = vmul.f32 %v6819, %v6983
    %v7588 = vmul.f32 %v6820, %v6993
    %v7589 = vmul.f32 %v6821, %v7003
    %v7590 = vmul.f32 %v6822, %v7013
    %v7591 = vmul.f32 %v6823, %v7023
    %v7592 = vmul.f32 %v6824, %v7033
    %v7593 = vmul.f32 %v6825, %v7043
    %v7594 = vmul.f32 %v6826, %v7053
    %v7595 = vmul.f32 %v6827, %v7063
    %v7596 = vmul.f32 %v6828, %v7073
    %v7597 = vmul.f32 %v6829, %v7083
    %v7598 = vmul.f32 %v6830, %v7093
    %v7599 = vmul.f32 %v6831, %v7103
    %v7600 = vmul.f32 %v6832, %v7113
    %v7601 = vmul.f32 %v6833, %v7123
    %v7602 = vmul.f32 %v6834, %v7133
    %v7603 = vmul.f32 %v6835, %v7143
    %v7604 = vmul.f32 %v6836, %v7153
    %v7605 = vmul.f32 %v6837, %v7163
    %v7606 = vmul.f32 %v6838, %v7173
    %v7607 = vmul.f32 %v6839, %v7183
    %v7608 = vmul.f32 %v6840, %v7193
    %v7609 = vmul.f32 %v6841, %v7203
    %v7610 = vmul.f32 %v6842, %v7213
    %v7611 = vmul.f32 %v6843, %v7223
    %v7612 = vmul.f32 %v6844, %v7233
    %v7613 = vmul.f32 %v6845, %v7243
    %v7614 = vmul.f32 %v6846, %v7253
    %v7615 = vmul.f32 %v6847, %v7263
    %v7616 = vmul.f32 %v6848, %v7273
    %v7617 = vmul.f32 %v6849, %v7283
    %v7618 = vmul.f32 %v6850, %v7293
    %v7619 = vmul.f32 %v6851, %v7303
    %v7620 = vmul.f32 %v6852, %v7313
    %v7621 = vmul.f32 %v6853, %v7323
    %v7622 = vmul.f32 %v6854, %v7333
    %v7623 = vmul.f32 %v6855, %v7343
    %v7624 = vmul.f32 %v6856, %v7353
    %v7625 = vmul.f32 %v6857, %v7363
    %v7626 = vmul.f32 %v6858, %v7373
    %v7627 = vmul.f32 %v6859, %v7383
    %v7628 = vmul.f32 %v6860, %v7393
    %v7629 = vmul.f32 %v6861, %v7403
    %v7630 = vmul.f32 %v6862, %v7413
    %v7631 = vmul.f32 %v6863, %v7423
    %v7632 = vmul.f32 %v6864, %v7433
    %v7633 = vmul.f32 %v6865, %v7443
    %v7634 = vmul.f32 %v6866, %v7453
    %v7635 = vmul.f32 %v6867, %v7463
    %v7636 = vmul.f32 %v6868, %v7473
    %v7637 = vmul.f32 %v6869, %v7483
    %v7638 = vmul.f32 %v6870, %v7493
    %v7639 = vmul.f32 %v6871, %v7503
    %v7640 = vmul.f32 %v6872, %v7513
    %v7641 = vmul.f32 %v6873, %v7523
    %v7642 = vmul.f32 %v6874, %v7533
    %v7643 = vmul.f32 %v6875, %v7543
    %v7644 = vmul.f32 %v6876, %v7553
    %v7645 = vmul.f32 %v6877, %v7563
    %v7646 = vmul.f32 %v6878, %v7573
    %v7647 = vmul.f32 %v6879, %v7583
    %v7648 = vld [vmem:[%s8] sm:$0xff]
    %v7650 = vperm.slane %v7648, 0
    %v7651 = vperm.slane %v7648, 1
    %v7652 = vperm.slane %v7648, 2
    %v7653 = vperm.slane %v7648, 3
    %v7654 = vperm.slane %v7648, 4
    %v7655 = vperm.slane %v7648, 5
    %v7656 = vperm.slane %v7648, 6
    %v7657 = vperm.slane %v7648, 7
    %v7666 = vmul.f32 %v7584, %v7650
    %v7667 = vmul.f32 %v7585, %v7651
    %v7668 = vmul.f32 %v7586, %v7652
    %v7669 = vmul.f32 %v7587, %v7653
    %v7670 = vmul.f32 %v7588, %v7654
    %v7671 = vmul.f32 %v7589, %v7655
    %v7672 = vmul.f32 %v7590, %v7656
    %v7673 = vmul.f32 %v7591, %v7657
    %v7674 = vmul.f32 %v7592, %v7650
    %v7675 = vmul.f32 %v7593, %v7651
    %v7676 = vmul.f32 %v7594, %v7652
    %v7677 = vmul.f32 %v7595, %v7653
    %v7678 = vmul.f32 %v7596, %v7654
    %v7679 = vmul.f32 %v7597, %v7655
    %v7680 = vmul.f32 %v7598, %v7656
    %v7681 = vmul.f32 %v7599, %v7657
    %v7682 = vmul.f32 %v7600, %v7650
    %v7683 = vmul.f32 %v7601, %v7651
    %v7684 = vmul.f32 %v7602, %v7652
    %v7685 = vmul.f32 %v7603, %v7653
    %v7686 = vmul.f32 %v7604, %v7654
    %v7687 = vmul.f32 %v7605, %v7655
    %v7688 = vmul.f32 %v7606, %v7656
    %v7689 = vmul.f32 %v7607, %v7657
    %v7690 = vmul.f32 %v7608, %v7650
    %v7691 = vmul.f32 %v7609, %v7651
    %v7692 = vmul.f32 %v7610, %v7652
    %v7693 = vmul.f32 %v7611, %v7653
    %v7694 = vmul.f32 %v7612, %v7654
    %v7695 = vmul.f32 %v7613, %v7655
    %v7696 = vmul.f32 %v7614, %v7656
    %v7697 = vmul.f32 %v7615, %v7657
    %v7698 = vmul.f32 %v7616, %v7650
    %v7699 = vmul.f32 %v7617, %v7651
    %v7700 = vmul.f32 %v7618, %v7652
    %v7701 = vmul.f32 %v7619, %v7653
    %v7702 = vmul.f32 %v7620, %v7654
    %v7703 = vmul.f32 %v7621, %v7655
    %v7704 = vmul.f32 %v7622, %v7656
    %v7705 = vmul.f32 %v7623, %v7657
    %v7706 = vmul.f32 %v7624, %v7650
    %v7707 = vmul.f32 %v7625, %v7651
    %v7708 = vmul.f32 %v7626, %v7652
    %v7709 = vmul.f32 %v7627, %v7653
    %v7710 = vmul.f32 %v7628, %v7654
    %v7711 = vmul.f32 %v7629, %v7655
    %v7712 = vmul.f32 %v7630, %v7656
    %v7713 = vmul.f32 %v7631, %v7657
    %v7714 = vmul.f32 %v7632, %v7650
    %v7715 = vmul.f32 %v7633, %v7651
    %v7716 = vmul.f32 %v7634, %v7652
    %v7717 = vmul.f32 %v7635, %v7653
    %v7718 = vmul.f32 %v7636, %v7654
    %v7719 = vmul.f32 %v7637, %v7655
    %v7720 = vmul.f32 %v7638, %v7656
    %v7721 = vmul.f32 %v7639, %v7657
    %v7722 = vmul.f32 %v7640, %v7650
    %v7723 = vmul.f32 %v7641, %v7651
    %v7724 = vmul.f32 %v7642, %v7652
    %v7725 = vmul.f32 %v7643, %v7653
    %v7726 = vmul.f32 %v7644, %v7654
    %v7727 = vmul.f32 %v7645, %v7655
    %v7728 = vmul.f32 %v7646, %v7656
    %v7729 = vmul.f32 %v7647, %v7657
    %v7730 = vld [vmem:[%s9] sm:$0xff]
    %v7732 = vperm.slane %v7730, 0
    %v7733 = vperm.slane %v7730, 1
    %v7734 = vperm.slane %v7730, 2
    %v7735 = vperm.slane %v7730, 3
    %v7736 = vperm.slane %v7730, 4
    %v7737 = vperm.slane %v7730, 5
    %v7738 = vperm.slane %v7730, 6
    %v7739 = vperm.slane %v7730, 7
    %v7748 = vadd.f32 %v7666, %v7732
    %v7749 = vadd.f32 %v7667, %v7733
    %v7750 = vadd.f32 %v7668, %v7734
    %v7751 = vadd.f32 %v7669, %v7735
    %v7752 = vadd.f32 %v7670, %v7736
    %v7753 = vadd.f32 %v7671, %v7737
    %v7754 = vadd.f32 %v7672, %v7738
    %v7755 = vadd.f32 %v7673, %v7739
    %v7756 = vadd.f32 %v7674, %v7732
    %v7757 = vadd.f32 %v7675, %v7733
    %v7758 = vadd.f32 %v7676, %v7734
    %v7759 = vadd.f32 %v7677, %v7735
    %v7760 = vadd.f32 %v7678, %v7736
    %v7761 = vadd.f32 %v7679, %v7737
    %v7762 = vadd.f32 %v7680, %v7738
    %v7763 = vadd.f32 %v7681, %v7739
    %v7764 = vadd.f32 %v7682, %v7732
    %v7765 = vadd.f32 %v7683, %v7733
    %v7766 = vadd.f32 %v7684, %v7734
    %v7767 = vadd.f32 %v7685, %v7735
    %v7768 = vadd.f32 %v7686, %v7736
    %v7769 = vadd.f32 %v7687, %v7737
    %v7770 = vadd.f32 %v7688, %v7738
    %v7771 = vadd.f32 %v7689, %v7739
    %v7772 = vadd.f32 %v7690, %v7732
    %v7773 = vadd.f32 %v7691, %v7733
    %v7774 = vadd.f32 %v7692, %v7734
    %v7775 = vadd.f32 %v7693, %v7735
    %v7776 = vadd.f32 %v7694, %v7736
    %v7777 = vadd.f32 %v7695, %v7737
    %v7778 = vadd.f32 %v7696, %v7738
    %v7779 = vadd.f32 %v7697, %v7739
    %v7780 = vadd.f32 %v7698, %v7732
    %v7781 = vadd.f32 %v7699, %v7733
    %v7782 = vadd.f32 %v7700, %v7734
    %v7783 = vadd.f32 %v7701, %v7735
    %v7784 = vadd.f32 %v7702, %v7736
    %v7785 = vadd.f32 %v7703, %v7737
    %v7786 = vadd.f32 %v7704, %v7738
    %v7787 = vadd.f32 %v7705, %v7739
    %v7788 = vadd.f32 %v7706, %v7732
    %v7789 = vadd.f32 %v7707, %v7733
    %v7790 = vadd.f32 %v7708, %v7734
    %v7791 = vadd.f32 %v7709, %v7735
    %v7792 = vadd.f32 %v7710, %v7736
    %v7793 = vadd.f32 %v7711, %v7737
    %v7794 = vadd.f32 %v7712, %v7738
    %v7795 = vadd.f32 %v7713, %v7739
    %v7796 = vadd.f32 %v7714, %v7732
    %v7797 = vadd.f32 %v7715, %v7733
    %v7798 = vadd.f32 %v7716, %v7734
    %v7799 = vadd.f32 %v7717, %v7735
    %v7800 = vadd.f32 %v7718, %v7736
    %v7801 = vadd.f32 %v7719, %v7737
    %v7802 = vadd.f32 %v7720, %v7738
    %v7803 = vadd.f32 %v7721, %v7739
    %v7804 = vadd.f32 %v7722, %v7732
    %v7805 = vadd.f32 %v7723, %v7733
    %v7806 = vadd.f32 %v7724, %v7734
    %v7807 = vadd.f32 %v7725, %v7735
    %v7808 = vadd.f32 %v7726, %v7736
    %v7809 = vadd.f32 %v7727, %v7737
    %v7810 = vadd.f32 %v7728, %v7738
    %v7811 = vadd.f32 %v7729, %v7739
    %v7812 = vadd.f32 %v7748, %v7756
    %v7813 = vadd.f32 %v7812, %v7764
    %v7814 = vadd.f32 %v7813, %v7772
    %v7815 = vrot.slane %v7814, 4
    %v7816 = vadd.f32 %v7814, %v7815
    %v7817 = vrot.slane %v7816, 2
    %v7818 = vadd.f32 %v7816, %v7817
    %v7819 = vrot.slane %v7818, 1
    %v7820 = vadd.f32 %v7818, %v7819
    %v7821 = vadd.f32 %v7749, %v7757
    %v7822 = vadd.f32 %v7821, %v7765
    %v7823 = vadd.f32 %v7822, %v7773
    %v7824 = vrot.slane %v7823, 4
    %v7825 = vadd.f32 %v7823, %v7824
    %v7826 = vrot.slane %v7825, 2
    %v7827 = vadd.f32 %v7825, %v7826
    %v7828 = vrot.slane %v7827, 1
    %v7829 = vadd.f32 %v7827, %v7828
    %v7830 = vadd.f32 %v7750, %v7758
    %v7831 = vadd.f32 %v7830, %v7766
    %v7832 = vadd.f32 %v7831, %v7774
    %v7833 = vrot.slane %v7832, 4
    %v7834 = vadd.f32 %v7832, %v7833
    %v7835 = vrot.slane %v7834, 2
    %v7836 = vadd.f32 %v7834, %v7835
    %v7837 = vrot.slane %v7836, 1
    %v7838 = vadd.f32 %v7836, %v7837
    %v7839 = vadd.f32 %v7751, %v7759
    %v7840 = vadd.f32 %v7839, %v7767
    %v7841 = vadd.f32 %v7840, %v7775
    %v7842 = vrot.slane %v7841, 4
    %v7843 = vadd.f32 %v7841, %v7842
    %v7844 = vrot.slane %v7843, 2
    %v7845 = vadd.f32 %v7843, %v7844
    %v7846 = vrot.slane %v7845, 1
    %v7847 = vadd.f32 %v7845, %v7846
    %v7848 = vadd.f32 %v7752, %v7760
    %v7849 = vadd.f32 %v7848, %v7768
    %v7850 = vadd.f32 %v7849, %v7776
    %v7851 = vrot.slane %v7850, 4
    %v7852 = vadd.f32 %v7850, %v7851
    %v7853 = vrot.slane %v7852, 2
    %v7854 = vadd.f32 %v7852, %v7853
    %v7855 = vrot.slane %v7854, 1
    %v7856 = vadd.f32 %v7854, %v7855
    %v7857 = vadd.f32 %v7753, %v7761
    %v7858 = vadd.f32 %v7857, %v7769
    %v7859 = vadd.f32 %v7858, %v7777
    %v7860 = vrot.slane %v7859, 4
    %v7861 = vadd.f32 %v7859, %v7860
    %v7862 = vrot.slane %v7861, 2
    %v7863 = vadd.f32 %v7861, %v7862
    %v7864 = vrot.slane %v7863, 1
    %v7865 = vadd.f32 %v7863, %v7864
    %v7866 = vadd.f32 %v7754, %v7762
    %v7867 = vadd.f32 %v7866, %v7770
    %v7868 = vadd.f32 %v7867, %v7778
    %v7869 = vrot.slane %v7868, 4
    %v7870 = vadd.f32 %v7868, %v7869
    %v7871 = vrot.slane %v7870, 2
    %v7872 = vadd.f32 %v7870, %v7871
    %v7873 = vrot.slane %v7872, 1
    %v7874 = vadd.f32 %v7872, %v7873
    %v7875 = vadd.f32 %v7755, %v7763
    %v7876 = vadd.f32 %v7875, %v7771
    %v7877 = vadd.f32 %v7876, %v7779
    %v7878 = vrot.slane %v7877, 4
    %v7879 = vadd.f32 %v7877, %v7878
    %v7880 = vrot.slane %v7879, 2
    %v7881 = vadd.f32 %v7879, %v7880
    %v7882 = vrot.slane %v7881, 1
    %v7883 = vadd.f32 %v7881, %v7882
    %v7884 = vld [vmem:[#allocation16] sm:$0xff]
    %v7885 = vld [vmem:[#allocation16 + $0x8] sm:$0xff]
    %v7886 = vld [vmem:[#allocation16 + $0x10] sm:$0xff]
    %v7887 = vld [vmem:[#allocation16 + $0x18] sm:$0xff]
    %v7888 = vld [vmem:[#allocation16 + $0x20] sm:$0xff]
    %v7889 = vld [vmem:[#allocation16 + $0x28] sm:$0xff]
    %v7890 = vld [vmem:[#allocation16 + $0x30] sm:$0xff]
    %v7891 = vld [vmem:[#allocation16 + $0x38] sm:$0xff]
    %v7892 = vld [vmem:[#allocation16 + $0x40] sm:$0xff]
    %v7893 = vld [vmem:[#allocation16 + $0x48] sm:$0xff]
    %v7894 = vld [vmem:[#allocation16 + $0x50] sm:$0xff]
    %v7895 = vld [vmem:[#allocation16 + $0x58] sm:$0xff]
    %v7896 = vld [vmem:[#allocation16 + $0x60] sm:$0xff]
    %v7897 = vld [vmem:[#allocation16 + $0x68] sm:$0xff]
    %v7898 = vld [vmem:[#allocation16 + $0x70] sm:$0xff]
    %v7899 = vld [vmem:[#allocation16 + $0x78] sm:$0xff]
    %v7900 = vld [vmem:[#allocation16 + $0x80] sm:$0xff]
    %v7901 = vld [vmem:[#allocation16 + $0x88] sm:$0xff]
    %v7902 = vld [vmem:[#allocation16 + $0x90] sm:$0xff]
    %v7903 = vld [vmem:[#allocation16 + $0x98] sm:$0xff]
    %v7904 = vld [vmem:[#allocation16 + $0xa0] sm:$0xff]
    %v7905 = vld [vmem:[#allocation16 + $0xa8] sm:$0xff]
    %v7906 = vld [vmem:[#allocation16 + $0xb0] sm:$0xff]
    %v7907 = vld [vmem:[#allocation16 + $0xb8] sm:$0xff]
    %v7908 = vld [vmem:[#allocation16 + $0xc0] sm:$0xff]
    %v7909 = vld [vmem:[#allocation16 + $0xc8] sm:$0xff]
    %v7910 = vld [vmem:[#allocation16 + $0xd0] sm:$0xff]
    %v7911 = vld [vmem:[#allocation16 + $0xd8] sm:$0xff]
    %v7912 = vld [vmem:[#allocation16 + $0xe0] sm:$0xff]
    %v7913 = vld [vmem:[#allocation16 + $0xe8] sm:$0xff]
    %v7914 = vld [vmem:[#allocation16 + $0xf0] sm:$0xff]
    %v7915 = vld [vmem:[#allocation16 + $0xf8] sm:$0xff]
    %v7916 = vld [vmem:[#allocation16 + $0x100] sm:$0xff]
    %v7917 = vld [vmem:[#allocation16 + $0x108] sm:$0xff]
    %v7918 = vld [vmem:[#allocation16 + $0x110] sm:$0xff]
    %v7919 = vld [vmem:[#allocation16 + $0x118] sm:$0xff]
    %v7920 = vld [vmem:[#allocation16 + $0x120] sm:$0xff]
    %v7921 = vld [vmem:[#allocation16 + $0x128] sm:$0xff]
    %v7922 = vld [vmem:[#allocation16 + $0x130] sm:$0xff]
    %v7923 = vld [vmem:[#allocation16 + $0x138] sm:$0xff]
    %v7924 = vld [vmem:[#allocation16 + $0x140] sm:$0xff]
    %v7925 = vld [vmem:[#allocation16 + $0x148] sm:$0xff]
    %v7926 = vld [vmem:[#allocation16 + $0x150] sm:$0xff]
    %v7927 = vld [vmem:[#allocation16 + $0x158] sm:$0xff]
    %v7928 = vld [vmem:[#allocation16 + $0x160] sm:$0xff]
    %v7929 = vld [vmem:[#allocation16 + $0x168] sm:$0xff]
    %v7930 = vld [vmem:[#allocation16 + $0x170] sm:$0xff]
    %v7931 = vld [vmem:[#allocation16 + $0x178] sm:$0xff]
    %v7932 = vld [vmem:[#allocation16 + $0x180] sm:$0xff]
    %v7933 = vld [vmem:[#allocation16 + $0x188] sm:$0xff]
    %v7934 = vld [vmem:[#allocation16 + $0x190] sm:$0xff]
    %v7935 = vld [vmem:[#allocation16 + $0x198] sm:$0xff]
    %v7936 = vld [vmem:[#allocation16 + $0x1a0] sm:$0xff]
    %v7937 = vld [vmem:[#allocation16 + $0x1a8] sm:$0xff]
    %v7938 = vld [vmem:[#allocation16 + $0x1b0] sm:$0xff]
    %v7939 = vld [vmem:[#allocation16 + $0x1b8] sm:$0xff]
    %v7940 = vld [vmem:[#allocation16 + $0x1c0] sm:$0xff]
    %v7941 = vld [vmem:[#allocation16 + $0x1c8] sm:$0xff]
    %v7942 = vld [vmem:[#allocation16 + $0x1d0] sm:$0xff]
    %v7943 = vld [vmem:[#allocation16 + $0x1d8] sm:$0xff]
    %v7944 = vld [vmem:[#allocation16 + $0x1e0] sm:$0xff]
    %v7945 = vld [vmem:[#allocation16 + $0x1e8] sm:$0xff]
    %v7946 = vld [vmem:[#allocation16 + $0x1f0] sm:$0xff]
    %v7947 = vld [vmem:[#allocation16 + $0x1f8] sm:$0xff]
    %v7948 = vld [vmem:[#allocation16 + $0x200] sm:$0xff]
    %v7949 = vld [vmem:[#allocation16 + $0x208] sm:$0xff]
    %v7950 = vld [vmem:[#allocation16 + $0x210] sm:$0xff]
    %v7951 = vld [vmem:[#allocation16 + $0x218] sm:$0xff]
    %v7952 = vld [vmem:[#allocation16 + $0x220] sm:$0xff]
    %v7953 = vld [vmem:[#allocation16 + $0x228] sm:$0xff]
    %v7954 = vld [vmem:[#allocation16 + $0x230] sm:$0xff]
    %v7955 = vld [vmem:[#allocation16 + $0x238] sm:$0xff]
    %v7956 = vld [vmem:[#allocation16 + $0x240] sm:$0xff]
    %v7957 = vld [vmem:[#allocation16 + $0x248] sm:$0xff]
    %v7958 = vld [vmem:[#allocation16 + $0x250] sm:$0xff]
    %v7959 = vld [vmem:[#allocation16 + $0x258] sm:$0xff]
    %v7960 = vld [vmem:[#allocation16 + $0x260] sm:$0xff]
    %v7961 = vld [vmem:[#allocation16 + $0x268] sm:$0xff]
    %v7962 = vld [vmem:[#allocation16 + $0x270] sm:$0xff]
    %v7963 = vld [vmem:[#allocation16 + $0x278] sm:$0xff]
    %v7964 = vld [vmem:[#allocation16 + $0x280] sm:$0xff]
    %v7965 = vld [vmem:[#allocation16 + $0x288] sm:$0xff]
    %v7966 = vld [vmem:[#allocation16 + $0x290] sm:$0xff]
    %v7967 = vld [vmem:[#allocation16 + $0x298] sm:$0xff]
    %v7968 = vld [vmem:[#allocation16 + $0x2a0] sm:$0xff]
    %v7969 = vld [vmem:[#allocation16 + $0x2a8] sm:$0xff]
    %v7970 = vld [vmem:[#allocation16 + $0x2b0] sm:$0xff]
    %v7971 = vld [vmem:[#allocation16 + $0x2b8] sm:$0xff]
    %v7972 = vld [vmem:[#allocation16 + $0x2c0] sm:$0xff]
    %v7973 = vld [vmem:[#allocation16 + $0x2c8] sm:$0xff]
    %v7974 = vld [vmem:[#allocation16 + $0x2d0] sm:$0xff]
    %v7975 = vld [vmem:[#allocation16 + $0x2d8] sm:$0xff]
    %v7976 = vld [vmem:[#allocation16 + $0x2e0] sm:$0xff]
    %v7977 = vld [vmem:[#allocation16 + $0x2e8] sm:$0xff]
    %v7978 = vld [vmem:[#allocation16 + $0x2f0] sm:$0xff]
    %v7979 = vld [vmem:[#allocation16 + $0x2f8] sm:$0xff]
    %v7980 = vld [vmem:[#allocation16 + $0x300] sm:$0xff]
    %v7981 = vld [vmem:[#allocation16 + $0x308] sm:$0xff]
    %v7982 = vld [vmem:[#allocation16 + $0x310] sm:$0xff]
    %v7983 = vld [vmem:[#allocation16 + $0x318] sm:$0xff]
    %v7984 = vld [vmem:[#allocation16 + $0x320] sm:$0xff]
    %v7985 = vld [vmem:[#allocation16 + $0x328] sm:$0xff]
    %v7986 = vld [vmem:[#allocation16 + $0x330] sm:$0xff]
    %v7987 = vld [vmem:[#allocation16 + $0x338] sm:$0xff]
    %v7988 = vld [vmem:[#allocation16 + $0x340] sm:$0xff]
    %v7989 = vld [vmem:[#allocation16 + $0x348] sm:$0xff]
    %v7990 = vld [vmem:[#allocation16 + $0x350] sm:$0xff]
    %v7991 = vld [vmem:[#allocation16 + $0x358] sm:$0xff]
    %v7992 = vld [vmem:[#allocation16 + $0x360] sm:$0xff]
    %v7993 = vld [vmem:[#allocation16 + $0x368] sm:$0xff]
    %v7994 = vld [vmem:[#allocation16 + $0x370] sm:$0xff]
    %v7995 = vld [vmem:[#allocation16 + $0x378] sm:$0xff]
    %v7996 = vld [vmem:[#allocation16 + $0x380] sm:$0xff]
    %v7997 = vld [vmem:[#allocation16 + $0x388] sm:$0xff]
    %v7998 = vld [vmem:[#allocation16 + $0x390] sm:$0xff]
    %v7999 = vld [vmem:[#allocation16 + $0x398] sm:$0xff]
    %v8000 = vld [vmem:[#allocation16 + $0x3a0] sm:$0xff]
    %v8001 = vld [vmem:[#allocation16 + $0x3a8] sm:$0xff]
    %v8002 = vld [vmem:[#allocation16 + $0x3b0] sm:$0xff]
    %v8003 = vld [vmem:[#allocation16 + $0x3b8] sm:$0xff]
    %v8004 = vld [vmem:[#allocation16 + $0x3c0] sm:$0xff]
    %v8005 = vld [vmem:[#allocation16 + $0x3c8] sm:$0xff]
    %v8006 = vld [vmem:[#allocation16 + $0x3d0] sm:$0xff]
    %v8007 = vld [vmem:[#allocation16 + $0x3d8] sm:$0xff]
    %v8008 = vld [vmem:[#allocation16 + $0x3e0] sm:$0xff]
    %v8009 = vld [vmem:[#allocation16 + $0x3e8] sm:$0xff]
    %v8010 = vld [vmem:[#allocation16 + $0x3f0] sm:$0xff]
    %v8011 = vld [vmem:[#allocation16 + $0x3f8] sm:$0xff]
    %v8012 = vmax.f32 %v7748, %v7756
    %v8013 = vmax.f32 %v8012, %v7764
    %v8014 = vmax.f32 %v8013, %v7772
    %v8015 = vrot.slane %v8014, 4
    %v8016 = vmax.f32 %v8014, %v8015
    %v8017 = vrot.slane %v8016, 2
    %v8018 = vmax.f32 %v8016, %v8017
    %v8019 = vrot.slane %v8018, 1
    %v8020 = vmax.f32 %v8018, %v8019
    %v8021 = vmax.f32 %v7749, %v7757
    %v8022 = vmax.f32 %v8021, %v7765
    %v8023 = vmax.f32 %v8022, %v7773
    %v8024 = vrot.slane %v8023, 4
    %v8025 = vmax.f32 %v8023, %v8024
    %v8026 = vrot.slane %v8025, 2
    %v8027 = vmax.f32 %v8025, %v8026
    %v8028 = vrot.slane %v8027, 1
    %v8029 = vmax.f32 %v8027, %v8028
    %v8030 = vmax.f32 %v7750, %v7758
    %v8031 = vmax.f32 %v8030, %v7766
    %v8032 = vmax.f32 %v8031, %v7774
    %v8033 = vrot.slane %v8032, 4
    %v8034 = vmax.f32 %v8032, %v8033
    %v8035 = vrot.slane %v8034, 2
    %v8036 = vmax.f32 %v8034, %v8035
    %v8037 = vrot.slane %v8036, 1
    %v8038 = vmax.f32 %v8036, %v8037
    %v8039 = vmax.f32 %v7751, %v7759
    %v8040 = vmax.f32 %v8039, %v7767
    %v8041 = vmax.f32 %v8040, %v7775
    %v8042 = vrot.slane %v8041, 4
    %v8043 = vmax.f32 %v8041, %v8042
    %v8044 = vrot.slane %v8043, 2
    %v8045 = vmax.f32 %v8043, %v8044
    %v8046 = vrot.slane %v8045, 1
    %v8047 = vmax.f32 %v8045, %v8046
    %v8048 = vmax.f32 %v7752, %v7760
    %v8049 = vmax.f32 %v8048, %v7768
    %v8050 = vmax.f32 %v8049, %v7776
    %v8051 = vrot.slane %v8050, 4
    %v8052 = vmax.f32 %v8050, %v8051
    %v8053 = vrot.slane %v8052, 2
    %v8054 = vmax.f32 %v8052, %v8053
    %v8055 = vrot.slane %v8054, 1
    %v8056 = vmax.f32 %v8054, %v8055
    %v8057 = vmax.f32 %v7753, %v7761
    %v8058 = vmax.f32 %v8057, %v7769
    %v8059 = vmax.f32 %v8058, %v7777
    %v8060 = vrot.slane %v8059, 4
    %v8061 = vmax.f32 %v8059, %v8060
    %v8062 = vrot.slane %v8061, 2
    %v8063 = vmax.f32 %v8061, %v8062
    %v8064 = vrot.slane %v8063, 1
    %v8065 = vmax.f32 %v8063, %v8064
    %v8066 = vmax.f32 %v7754, %v7762
    %v8067 = vmax.f32 %v8066, %v7770
    %v8068 = vmax.f32 %v8067, %v7778
    %v8069 = vrot.slane %v8068, 4
    %v8070 = vmax.f32 %v8068, %v8069
    %v8071 = vrot.slane %v8070, 2
    %v8072 = vmax.f32 %v8070, %v8071
    %v8073 = vrot.slane %v8072, 1
    %v8074 = vmax.f32 %v8072, %v8073
    %v8075 = vmax.f32 %v7755, %v7763
    %v8076 = vmax.f32 %v8075, %v7771
    %v8077 = vmax.f32 %v8076, %v7779
    %v8078 = vrot.slane %v8077, 4
    %v8079 = vmax.f32 %v8077, %v8078
    %v8080 = vrot.slane %v8079, 2
    %v8081 = vmax.f32 %v8079, %v8080
    %v8082 = vrot.slane %v8081, 1
    %v8083 = vmax.f32 %v8081, %v8082
    %8084 = vrot.lane.b32.xlu0 %v8020, 32
    %v8085 = vpop.permute.xlu0 %8084
    %8086 = vrot.lane.b32.xlu0 %v8029, 32
    %v8087 = vpop.permute.xlu0 %8086
    %8088 = vrot.lane.b32.xlu0 %v8038, 32
    %v8089 = vpop.permute.xlu0 %8088
    %8090 = vrot.lane.b32.xlu0 %v8047, 32
    %v8091 = vpop.permute.xlu0 %8090
    %8092 = vrot.lane.b32.xlu0 %v8056, 32
    %v8093 = vpop.permute.xlu0 %8092
    %8094 = vrot.lane.b32.xlu0 %v8065, 32
    %v8095 = vpop.permute.xlu0 %8094
    %8096 = vrot.lane.b32.xlu0 %v8074, 32
    %v8097 = vpop.permute.xlu0 %8096
    %8098 = vrot.lane.b32.xlu0 %v8083, 32
    %v8099 = vpop.permute.xlu0 %8098
    %vm8100 = vcmp.lt.s32.totalorder %v1704, 32
    %v8101 = vsel %vm8100, %v8097, %v8099
    %v8102 = vsel %vm8100, %v8095, %v8097
    %v8103 = vsel %vm8100, %v8093, %v8095
    %v8104 = vsel %vm8100, %v8091, %v8093
    %v8105 = vsel %vm8100, %v8089, %v8091
    %v8106 = vsel %vm8100, %v8087, %v8089
    %v8107 = vsel %vm8100, %v8085, %v8087
    %v8108 = vsel %vm8100, %v8099, %v8085
    %v8109 = vmax.f32 %v8020, %v8108
    %v8110 = vmax.f32 %v8029, %v8107
    %v8111 = vmax.f32 %v8038, %v8106
    %v8112 = vmax.f32 %v8047, %v8105
    %v8113 = vmax.f32 %v8056, %v8104
    %v8114 = vmax.f32 %v8065, %v8103
    %v8115 = vmax.f32 %v8074, %v8102
    %v8116 = vmax.f32 %v8083, %v8101
    %8117 = vrot.lane.b32.xlu0 %v8109, 64
    %v8118 = vpop.permute.xlu0 %8117
    %8119 = vrot.lane.b32.xlu0 %v8110, 64
    %v8120 = vpop.permute.xlu0 %8119
    %8121 = vrot.lane.b32.xlu0 %v8111, 64
    %v8122 = vpop.permute.xlu0 %8121
    %8123 = vrot.lane.b32.xlu0 %v8112, 64
    %v8124 = vpop.permute.xlu0 %8123
    %8125 = vrot.lane.b32.xlu0 %v8113, 64
    %v8126 = vpop.permute.xlu0 %8125
    %8127 = vrot.lane.b32.xlu0 %v8114, 64
    %v8128 = vpop.permute.xlu0 %8127
    %8129 = vrot.lane.b32.xlu0 %v8115, 64
    %v8130 = vpop.permute.xlu0 %8129
    %8131 = vrot.lane.b32.xlu0 %v8116, 64
    %v8132 = vpop.permute.xlu0 %8131
    %vm8133 = vcmp.lt.s32.totalorder %v1704, 64
    %v8134 = vsel %vm8133, %v8130, %v8132
    %v8135 = vsel %vm8133, %v8128, %v8130
    %v8136 = vsel %vm8133, %v8126, %v8128
    %v8137 = vsel %vm8133, %v8124, %v8126
    %v8138 = vsel %vm8133, %v8122, %v8124
    %v8139 = vsel %vm8133, %v8120, %v8122
    %v8140 = vsel %vm8133, %v8118, %v8120
    %v8141 = vsel %vm8133, %v8132, %v8118
    %v8142 = vmax.f32 %v8109, %v8141
    %v8143 = vmax.f32 %v8110, %v8140
    %v8144 = vmax.f32 %v8111, %v8139
    %v8145 = vmax.f32 %v8112, %v8138
    %v8146 = vmax.f32 %v8113, %v8137
    %v8147 = vmax.f32 %v8114, %v8136
    %v8148 = vmax.f32 %v8115, %v8135
    %v8149 = vmax.f32 %v8116, %v8134
    %v8150 = vmax.f32 %v8142, %v8149
    %v8151 = vmax.f32 %v8144, %v8143
    %v8152 = vmax.f32 %v8146, %v8145
    %v8153 = vmax.f32 %v8148, %v8147
    %v8154 = vmax.f32 %v8150, %v8153
    %v8155 = vmax.f32 %v8152, %v8151
    %v8156 = vmax.f32 %v8154, %v8155
    %8157 = vmatpush.msra.mxu0 %v7899
    %8158 = vmatpush.msra.mxu0 %v7898
    %8159 = vmatpush.msra.mxu0 %v7897
    %8160 = vmatpush.msra.mxu0 %v7896
    %8161 = vmatpush.msra.mxu0 %v7895
    %8162 = vmatpush.msra.mxu0 %v7894
    %8163 = vmatpush.msra.mxu0 %v7893
    %8164 = vmatpush.msra.mxu0 %v7892
    %8165 = vmatpush.msra.mxu0 %v7891
    %8166 = vmatpush.msra.mxu0 %v7890
    %8167 = vmatpush.msra.mxu0 %v7889
    %8168 = vmatpush.msra.mxu0 %v7888
    %8169 = vmatpush.msra.mxu0 %v7887
    %8170 = vmatpush.msra.mxu0 %v7886
    %8171 = vmatpush.msra.mxu0 %v7885
    %8172 = vmatpush.msra.mxu0 %v7884
    %8173 = vmatmul.f32.gmra.mxu0 %v7820
    %v8174 = vpop.f32.mrf.mxu0
    %v8175 = vadd.f32 %v8156, %v8174
    %8176 = vdwg.mxu0
    %8177 = vmatpush.msra.mxu0 %v7915
    %8178 = vmatpush.msra.mxu0 %v7914
    %8179 = vmatpush.msra.mxu0 %v7913
    %8180 = vmatpush.msra.mxu0 %v7912
    %8181 = vmatpush.msra.mxu0 %v7911
    %8182 = vmatpush.msra.mxu0 %v7910
    %8183 = vmatpush.msra.mxu0 %v7909
    %8184 = vmatpush.msra.mxu0 %v7908
    %8185 = vmatpush.msra.mxu0 %v7907
    %8186 = vmatpush.msra.mxu0 %v7906
    %8187 = vmatpush.msra.mxu0 %v7905
    %8188 = vmatpush.msra.mxu0 %v7904
    %8189 = vmatpush.msra.mxu0 %v7903
    %8190 = vmatpush.msra.mxu0 %v7902
    %8191 = vmatpush.msra.mxu0 %v7901
    %8192 = vmatpush.msra.mxu0 %v7900
    %8193 = vmatmul.f32.gmra.mxu0 %v7829
    %v8194 = vpop.f32.mrf.mxu0
    %v8195 = vadd.f32 %v8175, %v8194
    %8196 = vdwg.mxu0
    %8197 = vmatpush.msra.mxu0 %v7931
    %8198 = vmatpush.msra.mxu0 %v7930
    %8199 = vmatpush.msra.mxu0 %v7929
    %8200 = vmatpush.msra.mxu0 %v7928
    %8201 = vmatpush.msra.mxu0 %v7927
    %8202 = vmatpush.msra.mxu0 %v7926
    %8203 = vmatpush.msra.mxu0 %v7925
    %8204 = vmatpush.msra.mxu0 %v7924
    %8205 = vmatpush.msra.mxu0 %v7923
    %8206 = vmatpush.msra.mxu0 %v7922
    %8207 = vmatpush.msra.mxu0 %v7921
    %8208 = vmatpush.msra.mxu0 %v7920
    %8209 = vmatpush.msra.mxu0 %v7919
    %8210 = vmatpush.msra.mxu0 %v7918
    %8211 = vmatpush.msra.mxu0 %v7917
    %8212 = vmatpush.msra.mxu0 %v7916
    %8213 = vmatmul.f32.gmra.mxu0 %v7838
    %v8214 = vpop.f32.mrf.mxu0
    %v8215 = vadd.f32 %v8195, %v8214
    %8216 = vdwg.mxu0
    %8217 = vmatpush.msra.mxu0 %v7947
    %8218 = vmatpush.msra.mxu0 %v7946
    %8219 = vmatpush.msra.mxu0 %v7945
    %8220 = vmatpush.msra.mxu0 %v7944
    %8221 = vmatpush.msra.mxu0 %v7943
    %8222 = vmatpush.msra.mxu0 %v7942
    %8223 = vmatpush.msra.mxu0 %v7941
    %8224 = vmatpush.msra.mxu0 %v7940
    %8225 = vmatpush.msra.mxu0 %v7939
    %8226 = vmatpush.msra.mxu0 %v7938
    %8227 = vmatpush.msra.mxu0 %v7937
    %8228 = vmatpush.msra.mxu0 %v7936
    %8229 = vmatpush.msra.mxu0 %v7935
    %8230 = vmatpush.msra.mxu0 %v7934
    %8231 = vmatpush.msra.mxu0 %v7933
    %8232 = vmatpush.msra.mxu0 %v7932
    %8233 = vmatmul.f32.gmra.mxu0 %v7847
    %v8234 = vpop.f32.mrf.mxu0
    %v8235 = vadd.f32 %v8215, %v8234
    %8236 = vdwg.mxu0
    %8237 = vmatpush.msra.mxu0 %v7963
    %8238 = vmatpush.msra.mxu0 %v7962
    %8239 = vmatpush.msra.mxu0 %v7961
    %8240 = vmatpush.msra.mxu0 %v7960
    %8241 = vmatpush.msra.mxu0 %v7959
    %8242 = vmatpush.msra.mxu0 %v7958
    %8243 = vmatpush.msra.mxu0 %v7957
    %8244 = vmatpush.msra.mxu0 %v7956
    %8245 = vmatpush.msra.mxu0 %v7955
    %8246 = vmatpush.msra.mxu0 %v7954
    %8247 = vmatpush.msra.mxu0 %v7953
    %8248 = vmatpush.msra.mxu0 %v7952
    %8249 = vmatpush.msra.mxu0 %v7951
    %8250 = vmatpush.msra.mxu0 %v7950
    %8251 = vmatpush.msra.mxu0 %v7949
    %8252 = vmatpush.msra.mxu0 %v7948
    %8253 = vmatmul.f32.gmra.mxu0 %v7856
    %v8254 = vpop.f32.mrf.mxu0
    %v8255 = vadd.f32 %v8235, %v8254
    %8256 = vdwg.mxu0
    %8257 = vmatpush.msra.mxu0 %v7979
    %8258 = vmatpush.msra.mxu0 %v7978
    %8259 = vmatpush.msra.mxu0 %v7977
    %8260 = vmatpush.msra.mxu0 %v7976
    %8261 = vmatpush.msra.mxu0 %v7975
    %8262 = vmatpush.msra.mxu0 %v7974
    %8263 = vmatpush.msra.mxu0 %v7973
    %8264 = vmatpush.msra.mxu0 %v7972
    %8265 = vmatpush.msra.mxu0 %v7971
    %8266 = vmatpush.msra.mxu0 %v7970
    %8267 = vmatpush.msra.mxu0 %v7969
    %8268 = vmatpush.msra.mxu0 %v7968
    %8269 = vmatpush.msra.mxu0 %v7967
    %8270 = vmatpush.msra.mxu0 %v7966
    %8271 = vmatpush.msra.mxu0 %v7965
    %8272 = vmatpush.msra.mxu0 %v7964
    %8273 = vmatmul.f32.gmra.mxu0 %v7865
    %v8274 = vpop.f32.mrf.mxu0
    %v8275 = vadd.f32 %v8255, %v8274
    %8276 = vdwg.mxu0
    %8277 = vmatpush.msra.mxu0 %v7995
    %8278 = vmatpush.msra.mxu0 %v7994
    %8279 = vmatpush.msra.mxu0 %v7993
    %8280 = vmatpush.msra.mxu0 %v7992
    %8281 = vmatpush.msra.mxu0 %v7991
    %8282 = vmatpush.msra.mxu0 %v7990
    %8283 = vmatpush.msra.mxu0 %v7989
    %8284 = vmatpush.msra.mxu0 %v7988
    %8285 = vmatpush.msra.mxu0 %v7987
    %8286 = vmatpush.msra.mxu0 %v7986
    %8287 = vmatpush.msra.mxu0 %v7985
    %8288 = vmatpush.msra.mxu0 %v7984
    %8289 = vmatpush.msra.mxu0 %v7983
    %8290 = vmatpush.msra.mxu0 %v7982
    %8291 = vmatpush.msra.mxu0 %v7981
    %8292 = vmatpush.msra.mxu0 %v7980
    %8293 = vmatmul.f32.gmra.mxu0 %v7874
    %v8294 = vpop.f32.mrf.mxu0
    %v8295 = vadd.f32 %v8275, %v8294
    %8296 = vdwg.mxu0
    %8297 = vmatpush.msra.mxu0 %v8011
    %8298 = vmatpush.msra.mxu0 %v8010
    %8299 = vmatpush.msra.mxu0 %v8009
    %8300 = vmatpush.msra.mxu0 %v8008
    %8301 = vmatpush.msra.mxu0 %v8007
    %8302 = vmatpush.msra.mxu0 %v8006
    %8303 = vmatpush.msra.mxu0 %v8005
    %8304 = vmatpush.msra.mxu0 %v8004
    %8305 = vmatpush.msra.mxu0 %v8003
    %8306 = vmatpush.msra.mxu0 %v8002
    %8307 = vmatpush.msra.mxu0 %v8001
    %8308 = vmatpush.msra.mxu0 %v8000
    %8309 = vmatpush.msra.mxu0 %v7999
    %8310 = vmatpush.msra.mxu0 %v7998
    %8311 = vmatpush.msra.mxu0 %v7997
    %8312 = vmatpush.msra.mxu0 %v7996
    %8313 = vmatmul.f32.gmra.mxu0 %v7883
    %v8314 = vpop.f32.mrf.mxu0
    %v8315 = vadd.f32 %v8295, %v8314
    %8316 = vdwg.mxu0
    %v8317 = vmul.f32 %v8315, 0.5
    %v8318 = vadd.f32 %v7780, %v7788
    %v8319 = vadd.f32 %v8318, %v7796
    %v8320 = vadd.f32 %v8319, %v7804
    %v8321 = vrot.slane %v8320, 4
    %v8322 = vadd.f32 %v8320, %v8321
    %v8323 = vrot.slane %v8322, 2
    %v8324 = vadd.f32 %v8322, %v8323
    %v8325 = vrot.slane %v8324, 1
    %v8326 = vadd.f32 %v8324, %v8325
    %v8327 = vadd.f32 %v7781, %v7789
    %v8328 = vadd.f32 %v8327, %v7797
    %v8329 = vadd.f32 %v8328, %v7805
    %v8330 = vrot.slane %v8329, 4
    %v8331 = vadd.f32 %v8329, %v8330
    %v8332 = vrot.slane %v8331, 2
    %v8333 = vadd.f32 %v8331, %v8332
    %v8334 = vrot.slane %v8333, 1
    %v8335 = vadd.f32 %v8333, %v8334
    %v8336 = vadd.f32 %v7782, %v7790
    %v8337 = vadd.f32 %v8336, %v7798
    %v8338 = vadd.f32 %v8337, %v7806
    %v8339 = vrot.slane %v8338, 4
    %v8340 = vadd.f32 %v8338, %v8339
    %v8341 = vrot.slane %v8340, 2
    %v8342 = vadd.f32 %v8340, %v8341
    %v8343 = vrot.slane %v8342, 1
    %v8344 = vadd.f32 %v8342, %v8343
    %v8345 = vadd.f32 %v7783, %v7791
    %v8346 = vadd.f32 %v8345, %v7799
    %v8347 = vadd.f32 %v8346, %v7807
    %v8348 = vrot.slane %v8347, 4
    %v8349 = vadd.f32 %v8347, %v8348
    %v8350 = vrot.slane %v8349, 2
    %v8351 = vadd.f32 %v8349, %v8350
    %v8352 = vrot.slane %v8351, 1
    %v8353 = vadd.f32 %v8351, %v8352
    %v8354 = vadd.f32 %v7784, %v7792
    %v8355 = vadd.f32 %v8354, %v7800
    %v8356 = vadd.f32 %v8355, %v7808
    %v8357 = vrot.slane %v8356, 4
    %v8358 = vadd.f32 %v8356, %v8357
    %v8359 = vrot.slane %v8358, 2
    %v8360 = vadd.f32 %v8358, %v8359
    %v8361 = vrot.slane %v8360, 1
    %v8362 = vadd.f32 %v8360, %v8361
    %v8363 = vadd.f32 %v7785, %v7793
    %v8364 = vadd.f32 %v8363, %v7801
    %v8365 = vadd.f32 %v8364, %v7809
    %v8366 = vrot.slane %v8365, 4
    %v8367 = vadd.f32 %v8365, %v8366
    %v8368 = vrot.slane %v8367, 2
    %v8369 = vadd.f32 %v8367, %v8368
    %v8370 = vrot.slane %v8369, 1
    %v8371 = vadd.f32 %v8369, %v8370
    %v8372 = vadd.f32 %v7786, %v7794
    %v8373 = vadd.f32 %v8372, %v7802
    %v8374 = vadd.f32 %v8373, %v7810
    %v8375 = vrot.slane %v8374, 4
    %v8376 = vadd.f32 %v8374, %v8375
    %v8377 = vrot.slane %v8376, 2
    %v8378 = vadd.f32 %v8376, %v8377
    %v8379 = vrot.slane %v8378, 1
    %v8380 = vadd.f32 %v8378, %v8379
    %v8381 = vadd.f32 %v7787, %v7795
    %v8382 = vadd.f32 %v8381, %v7803
    %v8383 = vadd.f32 %v8382, %v7811
    %v8384 = vrot.slane %v8383, 4
    %v8385 = vadd.f32 %v8383, %v8384
    %v8386 = vrot.slane %v8385, 2
    %v8387 = vadd.f32 %v8385, %v8386
    %v8388 = vrot.slane %v8387, 1
    %v8389 = vadd.f32 %v8387, %v8388
    %v8390 = vmax.f32 %v7780, %v7788
    %v8391 = vmax.f32 %v8390, %v7796
    %v8392 = vmax.f32 %v8391, %v7804
    %v8393 = vrot.slane %v8392, 4
    %v8394 = vmax.f32 %v8392, %v8393
    %v8395 = vrot.slane %v8394, 2
    %v8396 = vmax.f32 %v8394, %v8395
    %v8397 = vrot.slane %v8396, 1
    %v8398 = vmax.f32 %v8396, %v8397
    %v8399 = vmax.f32 %v7781, %v7789
    %v8400 = vmax.f32 %v8399, %v7797
    %v8401 = vmax.f32 %v8400, %v7805
    %v8402 = vrot.slane %v8401, 4
    %v8403 = vmax.f32 %v8401, %v8402
    %v8404 = vrot.slane %v8403, 2
    %v8405 = vmax.f32 %v8403, %v8404
    %v8406 = vrot.slane %v8405, 1
    %v8407 = vmax.f32 %v8405, %v8406
    %v8408 = vmax.f32 %v7782, %v7790
    %v8409 = vmax.f32 %v8408, %v7798
    %v8410 = vmax.f32 %v8409, %v7806
    %v8411 = vrot.slane %v8410, 4
    %v8412 = vmax.f32 %v8410, %v8411
    %v8413 = vrot.slane %v8412, 2
    %v8414 = vmax.f32 %v8412, %v8413
    %v8415 = vrot.slane %v8414, 1
    %v8416 = vmax.f32 %v8414, %v8415
    %v8417 = vmax.f32 %v7783, %v7791
    %v8418 = vmax.f32 %v8417, %v7799
    %v8419 = vmax.f32 %v8418, %v7807
    %v8420 = vrot.slane %v8419, 4
    %v8421 = vmax.f32 %v8419, %v8420
    %v8422 = vrot.slane %v8421, 2
    %v8423 = vmax.f32 %v8421, %v8422
    %v8424 = vrot.slane %v8423, 1
    %v8425 = vmax.f32 %v8423, %v8424
    %v8426 = vmax.f32 %v7784, %v7792
    %v8427 = vmax.f32 %v8426, %v7800
    %v8428 = vmax.f32 %v8427, %v7808
    %v8429 = vrot.slane %v8428, 4
    %v8430 = vmax.f32 %v8428, %v8429
    %v8431 = vrot.slane %v8430, 2
    %v8432 = vmax.f32 %v8430, %v8431
    %v8433 = vrot.slane %v8432, 1
    %v8434 = vmax.f32 %v8432, %v8433
    %v8435 = vmax.f32 %v7785, %v7793
    %v8436 = vmax.f32 %v8435, %v7801
    %v8437 = vmax.f32 %v8436, %v7809
    %v8438 = vrot.slane %v8437, 4
    %v8439 = vmax.f32 %v8437, %v8438
    %v8440 = vrot.slane %v8439, 2
    %v8441 = vmax.f32 %v8439, %v8440
    %v8442 = vrot.slane %v8441, 1
    %v8443 = vmax.f32 %v8441, %v8442
    %v8444 = vmax.f32 %v7786, %v7794
    %v8445 = vmax.f32 %v8444, %v7802
    %v8446 = vmax.f32 %v8445, %v7810
    %v8447 = vrot.slane %v8446, 4
    %v8448 = vmax.f32 %v8446, %v8447
    %v8449 = vrot.slane %v8448, 2
    %v8450 = vmax.f32 %v8448, %v8449
    %v8451 = vrot.slane %v8450, 1
    %v8452 = vmax.f32 %v8450, %v8451
    %v8453 = vmax.f32 %v7787, %v7795
    %v8454 = vmax.f32 %v8453, %v7803
    %v8455 = vmax.f32 %v8454, %v7811
    %v8456 = vrot.slane %v8455, 4
    %v8457 = vmax.f32 %v8455, %v8456
    %v8458 = vrot.slane %v8457, 2
    %v8459 = vmax.f32 %v8457, %v8458
    %v8460 = vrot.slane %v8459, 1
    %v8461 = vmax.f32 %v8459, %v8460
    %8462 = vrot.lane.b32.xlu0 %v8398, 32
    %v8463 = vpop.permute.xlu0 %8462
    %8464 = vrot.lane.b32.xlu0 %v8407, 32
    %v8465 = vpop.permute.xlu0 %8464
    %8466 = vrot.lane.b32.xlu0 %v8416, 32
    %v8467 = vpop.permute.xlu0 %8466
    %8468 = vrot.lane.b32.xlu0 %v8425, 32
    %v8469 = vpop.permute.xlu0 %8468
    %8470 = vrot.lane.b32.xlu0 %v8434, 32
    %v8471 = vpop.permute.xlu0 %8470
    %8472 = vrot.lane.b32.xlu0 %v8443, 32
    %v8473 = vpop.permute.xlu0 %8472
    %8474 = vrot.lane.b32.xlu0 %v8452, 32
    %v8475 = vpop.permute.xlu0 %8474
    %8476 = vrot.lane.b32.xlu0 %v8461, 32
    %v8477 = vpop.permute.xlu0 %8476
    %v8478 = vsel %vm8100, %v8475, %v8477
    %v8479 = vsel %vm8100, %v8473, %v8475
    %v8480 = vsel %vm8100, %v8471, %v8473
    %v8481 = vsel %vm8100, %v8469, %v8471
    %v8482 = vsel %vm8100, %v8467, %v8469
    %v8483 = vsel %vm8100, %v8465, %v8467
    %v8484 = vsel %vm8100, %v8463, %v8465
    %v8485 = vsel %vm8100, %v8477, %v8463
    %v8486 = vmax.f32 %v8398, %v8485
    %v8487 = vmax.f32 %v8407, %v8484
    %v8488 = vmax.f32 %v8416, %v8483
    %v8489 = vmax.f32 %v8425, %v8482
    %v8490 = vmax.f32 %v8434, %v8481
    %v8491 = vmax.f32 %v8443, %v8480
    %v8492 = vmax.f32 %v8452, %v8479
    %v8493 = vmax.f32 %v8461, %v8478
    %8494 = vrot.lane.b32.xlu0 %v8486, 64
    %v8495 = vpop.permute.xlu0 %8494
    %8496 = vrot.lane.b32.xlu0 %v8487, 64
    %v8497 = vpop.permute.xlu0 %8496
    %8498 = vrot.lane.b32.xlu0 %v8488, 64
    %v8499 = vpop.permute.xlu0 %8498
    %8500 = vrot.lane.b32.xlu0 %v8489, 64
    %v8501 = vpop.permute.xlu0 %8500
    %8502 = vrot.lane.b32.xlu0 %v8490, 64
    %v8503 = vpop.permute.xlu0 %8502
    %8504 = vrot.lane.b32.xlu0 %v8491, 64
    %v8505 = vpop.permute.xlu0 %8504
    %8506 = vrot.lane.b32.xlu0 %v8492, 64
    %v8507 = vpop.permute.xlu0 %8506
    %8508 = vrot.lane.b32.xlu0 %v8493, 64
    %v8509 = vpop.permute.xlu0 %8508
    %v8510 = vsel %vm8133, %v8507, %v8509
    %v8511 = vsel %vm8133, %v8505, %v8507
    %v8512 = vsel %vm8133, %v8503, %v8505
    %v8513 = vsel %vm8133, %v8501, %v8503
    %v8514 = vsel %vm8133, %v8499, %v8501
    %v8515 = vsel %vm8133, %v8497, %v8499
    %v8516 = vsel %vm8133, %v8495, %v8497
    %v8517 = vsel %vm8133, %v8509, %v8495
    %v8518 = vmax.f32 %v8486, %v8517
    %v8519 = vmax.f32 %v8487, %v8516
    %v8520 = vmax.f32 %v8488, %v8515
    %v8521 = vmax.f32 %v8489, %v8514
    %v8522 = vmax.f32 %v8490, %v8513
    %v8523 = vmax.f32 %v8491, %v8512
    %v8524 = vmax.f32 %v8492, %v8511
    %v8525 = vmax.f32 %v8493, %v8510
    %v8526 = vmax.f32 %v8518, %v8525
    %v8527 = vmax.f32 %v8520, %v8519
    %v8528 = vmax.f32 %v8522, %v8521
    %v8529 = vmax.f32 %v8524, %v8523
    %v8530 = vmax.f32 %v8526, %v8529
    %v8531 = vmax.f32 %v8528, %v8527
    %v8532 = vmax.f32 %v8530, %v8531
    %8533 = vmatpush.msra.mxu0 %v7899
    %8534 = vmatpush.msra.mxu0 %v7898
    %8535 = vmatpush.msra.mxu0 %v7897
    %8536 = vmatpush.msra.mxu0 %v7896
    %8537 = vmatpush.msra.mxu0 %v7895
    %8538 = vmatpush.msra.mxu0 %v7894
    %8539 = vmatpush.msra.mxu0 %v7893
    %8540 = vmatpush.msra.mxu0 %v7892
    %8541 = vmatpush.msra.mxu0 %v7891
    %8542 = vmatpush.msra.mxu0 %v7890
    %8543 = vmatpush.msra.mxu0 %v7889
    %8544 = vmatpush.msra.mxu0 %v7888
    %8545 = vmatpush.msra.mxu0 %v7887
    %8546 = vmatpush.msra.mxu0 %v7886
    %8547 = vmatpush.msra.mxu0 %v7885
    %8548 = vmatpush.msra.mxu0 %v7884
    %8549 = vmatmul.f32.gmra.mxu0 %v8326
    %v8550 = vpop.f32.mrf.mxu0
    %v8551 = vadd.f32 %v8532, %v8550
    %8552 = vdwg.mxu0
    %8553 = vmatpush.msra.mxu0 %v7915
    %8554 = vmatpush.msra.mxu0 %v7914
    %8555 = vmatpush.msra.mxu0 %v7913
    %8556 = vmatpush.msra.mxu0 %v7912
    %8557 = vmatpush.msra.mxu0 %v7911
    %8558 = vmatpush.msra.mxu0 %v7910
    %8559 = vmatpush.msra.mxu0 %v7909
    %8560 = vmatpush.msra.mxu0 %v7908
    %8561 = vmatpush.msra.mxu0 %v7907
    %8562 = vmatpush.msra.mxu0 %v7906
    %8563 = vmatpush.msra.mxu0 %v7905
    %8564 = vmatpush.msra.mxu0 %v7904
    %8565 = vmatpush.msra.mxu0 %v7903
    %8566 = vmatpush.msra.mxu0 %v7902
    %8567 = vmatpush.msra.mxu0 %v7901
    %8568 = vmatpush.msra.mxu0 %v7900
    %8569 = vmatmul.f32.gmra.mxu0 %v8335
    %v8570 = vpop.f32.mrf.mxu0
    %v8571 = vadd.f32 %v8551, %v8570
    %8572 = vdwg.mxu0
    %8573 = vmatpush.msra.mxu0 %v7931
    %8574 = vmatpush.msra.mxu0 %v7930
    %8575 = vmatpush.msra.mxu0 %v7929
    %8576 = vmatpush.msra.mxu0 %v7928
    %8577 = vmatpush.msra.mxu0 %v7927
    %8578 = vmatpush.msra.mxu0 %v7926
    %8579 = vmatpush.msra.mxu0 %v7925
    %8580 = vmatpush.msra.mxu0 %v7924
    %8581 = vmatpush.msra.mxu0 %v7923
    %8582 = vmatpush.msra.mxu0 %v7922
    %8583 = vmatpush.msra.mxu0 %v7921
    %8584 = vmatpush.msra.mxu0 %v7920
    %8585 = vmatpush.msra.mxu0 %v7919
    %8586 = vmatpush.msra.mxu0 %v7918
    %8587 = vmatpush.msra.mxu0 %v7917
    %8588 = vmatpush.msra.mxu0 %v7916
    %8589 = vmatmul.f32.gmra.mxu0 %v8344
    %v8590 = vpop.f32.mrf.mxu0
    %v8591 = vadd.f32 %v8571, %v8590
    %8592 = vdwg.mxu0
    %8593 = vmatpush.msra.mxu0 %v7947
    %8594 = vmatpush.msra.mxu0 %v7946
    %8595 = vmatpush.msra.mxu0 %v7945
    %8596 = vmatpush.msra.mxu0 %v7944
    %8597 = vmatpush.msra.mxu0 %v7943
    %8598 = vmatpush.msra.mxu0 %v7942
    %8599 = vmatpush.msra.mxu0 %v7941
    %8600 = vmatpush.msra.mxu0 %v7940
    %8601 = vmatpush.msra.mxu0 %v7939
    %8602 = vmatpush.msra.mxu0 %v7938
    %8603 = vmatpush.msra.mxu0 %v7937
    %8604 = vmatpush.msra.mxu0 %v7936
    %8605 = vmatpush.msra.mxu0 %v7935
    %8606 = vmatpush.msra.mxu0 %v7934
    %8607 = vmatpush.msra.mxu0 %v7933
    %8608 = vmatpush.msra.mxu0 %v7932
    %8609 = vmatmul.f32.gmra.mxu0 %v8353
    %v8610 = vpop.f32.mrf.mxu0
    %v8611 = vadd.f32 %v8591, %v8610
    %8612 = vdwg.mxu0
    %8613 = vmatpush.msra.mxu0 %v7963
    %8614 = vmatpush.msra.mxu0 %v7962
    %8615 = vmatpush.msra.mxu0 %v7961
    %8616 = vmatpush.msra.mxu0 %v7960
    %8617 = vmatpush.msra.mxu0 %v7959
    %8618 = vmatpush.msra.mxu0 %v7958
    %8619 = vmatpush.msra.mxu0 %v7957
    %8620 = vmatpush.msra.mxu0 %v7956
    %8621 = vmatpush.msra.mxu0 %v7955
    %8622 = vmatpush.msra.mxu0 %v7954
    %8623 = vmatpush.msra.mxu0 %v7953
    %8624 = vmatpush.msra.mxu0 %v7952
    %8625 = vmatpush.msra.mxu0 %v7951
    %8626 = vmatpush.msra.mxu0 %v7950
    %8627 = vmatpush.msra.mxu0 %v7949
    %8628 = vmatpush.msra.mxu0 %v7948
    %8629 = vmatmul.f32.gmra.mxu0 %v8362
    %v8630 = vpop.f32.mrf.mxu0
    %v8631 = vadd.f32 %v8611, %v8630
    %8632 = vdwg.mxu0
    %8633 = vmatpush.msra.mxu0 %v7979
    %8634 = vmatpush.msra.mxu0 %v7978
    %8635 = vmatpush.msra.mxu0 %v7977
    %8636 = vmatpush.msra.mxu0 %v7976
    %8637 = vmatpush.msra.mxu0 %v7975
    %8638 = vmatpush.msra.mxu0 %v7974
    %8639 = vmatpush.msra.mxu0 %v7973
    %8640 = vmatpush.msra.mxu0 %v7972
    %8641 = vmatpush.msra.mxu0 %v7971
    %8642 = vmatpush.msra.mxu0 %v7970
    %8643 = vmatpush.msra.mxu0 %v7969
    %8644 = vmatpush.msra.mxu0 %v7968
    %8645 = vmatpush.msra.mxu0 %v7967
    %8646 = vmatpush.msra.mxu0 %v7966
    %8647 = vmatpush.msra.mxu0 %v7965
    %8648 = vmatpush.msra.mxu0 %v7964
    %8649 = vmatmul.f32.gmra.mxu0 %v8371
    %v8650 = vpop.f32.mrf.mxu0
    %v8651 = vadd.f32 %v8631, %v8650
    %8652 = vdwg.mxu0
    %8653 = vmatpush.msra.mxu0 %v7995
    %8654 = vmatpush.msra.mxu0 %v7994
    %8655 = vmatpush.msra.mxu0 %v7993
    %8656 = vmatpush.msra.mxu0 %v7992
    %8657 = vmatpush.msra.mxu0 %v7991
    %8658 = vmatpush.msra.mxu0 %v7990
    %8659 = vmatpush.msra.mxu0 %v7989
    %8660 = vmatpush.msra.mxu0 %v7988
    %8661 = vmatpush.msra.mxu0 %v7987
    %8662 = vmatpush.msra.mxu0 %v7986
    %8663 = vmatpush.msra.mxu0 %v7985
    %8664 = vmatpush.msra.mxu0 %v7984
    %8665 = vmatpush.msra.mxu0 %v7983
    %8666 = vmatpush.msra.mxu0 %v7982
    %8667 = vmatpush.msra.mxu0 %v7981
    %8668 = vmatpush.msra.mxu0 %v7980
    %8669 = vmatmul.f32.gmra.mxu0 %v8380
    %v8670 = vpop.f32.mrf.mxu0
    %v8671 = vadd.f32 %v8651, %v8670
    %8672 = vdwg.mxu0
    %8673 = vmatpush.msra.mxu0 %v8011
    %8674 = vmatpush.msra.mxu0 %v8010
    %8675 = vmatpush.msra.mxu0 %v8009
    %8676 = vmatpush.msra.mxu0 %v8008
    %8677 = vmatpush.msra.mxu0 %v8007
    %8678 = vmatpush.msra.mxu0 %v8006
    %8679 = vmatpush.msra.mxu0 %v8005
    %8680 = vmatpush.msra.mxu0 %v8004
    %8681 = vmatpush.msra.mxu0 %v8003
    %8682 = vmatpush.msra.mxu0 %v8002
    %8683 = vmatpush.msra.mxu0 %v8001
    %8684 = vmatpush.msra.mxu0 %v8000
    %8685 = vmatpush.msra.mxu0 %v7999
    %8686 = vmatpush.msra.mxu0 %v7998
    %8687 = vmatpush.msra.mxu0 %v7997
    %8688 = vmatpush.msra.mxu0 %v7996
    %8689 = vmatmul.f32.gmra.mxu0 %v8389
    %v8690 = vpop.f32.mrf.mxu0
    %v8691 = vadd.f32 %v8671, %v8690
    %8692 = vdwg.mxu0
    %v8693 = vmul.f32 %v8691, 0.5
    %v8695 = vrot.slane %v8693, 7
    %vm8697 = vcmask 1040384
    %v8698 = vsel %vm8697, %v8317, %v8695
    %vm8699 = vcmask 254976
    %v8700 = vsel %vm8699, %v8698, 0.0
    %8701 = vadd.xlane.f32.xlu0 %v8700
    %v8702 = vpop.xlane.xlu0 %8701
    %v8703 = vrcp.pop 32.0
    %v8704 = vmul.f32 32.0, %v8703
    %v8705 = vsub.f32 1.0, %v8704
    %v8706 = vmul.f32 %v8703, %v8705
    %v8707 = vadd.f32 %v8703, %v8706
    %vm8708 = vweird.f32 %v8703
    %v8709 = vsel %vm8708, %v8703, %v8707
    %v8710 = vmul.f32 %v8702, %v8709
    %v8711 = vsub.f32 %v8698, %v8710
    %v8712 = vmul.f32 %v8711, %v8711
    %v8713 = vsel %vm8699, %v8712, 0.0
    %8714 = vadd.xlane.f32.xlu0 %v8713
    %v8715 = vpop.xlane.xlu0 %8714
    %v8716 = vmul.f32 %v8715, %v8709
    %v8717 = vadd.f32 %v8716, 1e-06
    %v8718 = vrsqrt.pop %v8717
    %v8719 = vmul.f32 %v8718, %v8717
    %v8720 = vmul.f32 %v8719, %v8718
    %v8721 = vmul.f32 0.5, %v8720
    %v8722 = vsub.f32 1.5, %v8721
    %v8723 = vmul.f32 %v8718, %v8722
    %vm8724 = vweird.f32 %v8717
    %vm8725 = vweird.f32 %v8718
    %vm8726 = vmor %vm8724, %vm8725
    %v8727 = vsel %vm8726, %v8718, %v8723
    %v8728 = vmul.f32 %v8711, %v8727
    %v8729 = vld [vmem:[%s13] sm:$0x1]
    %v8731 = vperm.slane %v8729, 0
    %v8733 = vmul.f32 %v8728, %v8731
    %v8734 = vld [vmem:[%s14] sm:$0x1]
    %v8736 = vperm.slane %v8734, 0
    %v8738 = vadd.f32 %v8733, %v8736
    %v8739 = vld [vmem:[#allocation17] sm:$0xff]
    %v8740 = vld [vmem:[#allocation17 + $0x8] sm:$0xff]
    %v8741 = vld [vmem:[#allocation17 + $0x10] sm:$0xff]
    %v8742 = vld [vmem:[#allocation17 + $0x18] sm:$0xff]
    %v8743 = vld [vmem:[%s16] sm:$0x1]
    %v8745 = vperm.slane %v8743, 0
    %v8748 = vsel %vm283, %v8738, 0
    %8750 = vmatpush.msra.mxu0 0.0
    %8751 = vmatpush.msra.mxu0 0.0
    %8752 = vmatpush.msra.mxu0 0.0
    %8753 = vmatpush.msra.mxu0 0.0
    %8754 = vmatpush.msra.mxu0 0.0
    %8755 = vmatpush.msra.mxu0 0.0
    %8756 = vmatpush.msra.mxu0 0.0
    %8757 = vmatpush.msra.mxu0 0.0
    %8758 = vmatpush.msra.mxu0 0.0
    %8759 = vmatpush.msra.mxu0 0.0
    %8760 = vmatpush.msra.mxu0 0.0
    %8761 = vmatpush.msra.mxu0 0.0
    %8762 = vmatpush.msra.mxu0 %v8742
    %8763 = vmatpush.msra.mxu0 %v8741
    %8764 = vmatpush.msra.mxu0 %v8740
    %8765 = vmatpush.msra.mxu0 %v8739
    %8766 = vmatmul.f32.gmra.mxu0 %v8748
    %v8767 = vpop.f32.mrf.mxu0
    %v8768 = vadd.f32 %v8745, %v8767
    %8769 = vdwg.mxu0
    %vm8770 = vcmask 9216
    %8771 = vst.msk [vmem:[#allocation20] sm:$0x3] %vm8770, %v8768
    // Predicated region
    $region110: #{mids_med_forward.1} parent=1 // pred_check
      _
    $region111: #{mids_med_forward.1} parent=1 // pred_check_branch
      %8773 = sbr.rel (0) target = $region113
    $region112: #{mids_med_forward.1} parent=1 // pred_region
      %8775 = vsyncadd [#allocation4], 0
      %s8776 = sshll.u32 [#allocation19], 4
      %s8777 = int_to_ptr.vmem [resolvable:$true] %s8776
      %s8778 = sshll.u32 %s17, 4
      %s8779 = int_to_ptr.hbm [resolvable:$true] %s8778
      %8784 = dma.vmem_to_hbm [thread:$0]  %s8777, 4096, %s8779, [#allocation4], 128, 128, 8
    $region113: #{mids_med_forward.1} parent=1 // pred_fallthru
      _
    // Predicated region
    $region114: #{mids_med_forward.1} parent=1 // pred_check
      _
    $region115: #{mids_med_forward.1} parent=1 // pred_check_branch
      %8786 = sbr.rel (0) target = $region117
    $region116: #{mids_med_forward.1} parent=1 // pred_region
      %8788 = vsyncadd [#allocation21], 0
      %s8790 = sshll.u32 [#allocation20], 4
      %s8791 = int_to_ptr.vmem [resolvable:$true] %s8790
      %s8792 = sshll.u32 %s18, 4
      %s8793 = int_to_ptr.hbm [resolvable:$true] %s8792
      %8795 = dma.vmem_to_hbm [thread:$0]  %s8791, 32, %s8793, [#allocation21]
    $region117: #{mids_med_forward.1} parent=1 // pred_fallthru
      _
    // Predicated region
    $region118: #{mids_med_forward.1} parent=1 // pred_check
      _
    $region119: #{mids_med_forward.1} parent=1 // pred_check_branch
      %8797 = sbr.rel (0) target = $region121
    $region120: #{mids_med_forward.1} parent=1 // pred_region
      %8799 = dma.done [#allocation4], 4096
    $region121: #{mids_med_forward.1} parent=1 // pred_fallthru
      _
    // Predicated region
    $region122: #{mids_med_forward.1} parent=1 // pred_check
      _
    $region123: #{mids_med_forward.1} parent=1 // pred_check_branch
      %8801 = sbr.rel (0) target = $region125
    $region124: #{mids_med_forward.1} parent=1 // pred_region
      %8803 = dma.done [#allocation21], 32
    $region125: #{mids_med_forward.1} parent=1 // pred_fallthru
      _
    %8804 = vsyncpa [#allocation3], 1
    %8805 = vsyncpa [#allocation6], 1
    %8806 = vsyncpa [#allocation9], 1
    %8807 = vsyncpa [#allocation12], 1
    %8808 = vsyncpa [#allocation15], 1
    %8809 = vsyncpa [#allocation18], 1
    %8810 = vsyncpa [#allocation4], 1
    %8811 = vsyncpa [#allocation21], 1

</llo_original>
